<compile_context>
chip_gen: v7x
topology: tpu7x:2x2x1
jax: 0.10.0
libtpu: 0.0.40
codegen_flags: <defaults>
</compile_context>

<pallas_src>
import jax
import jax.numpy as jnp
from jax.experimental import pallas as pl
from jax.experimental.pallas import tpu as pltpu

BN_EPS = 1e-5
LANES = 128
_TARGET_BLOCK_ROWS = 1024               # target flat rows per grid block
_DEFAULT_SCOPED_VMEM = 32 * 1024 * 1024
_VMEM_LIMIT_CAP = 48 * 1024 * 1024      # stay well below v7x's 64 MiB physical VMEM


def _round_up(v, m):
    return (v + m - 1) // m * m


def _compiler_params(dim_semantics, vmem_bytes_estimate):
    """Always set dimension_semantics; raise the scoped-VMEM cap only if needed."""
    kwargs = dict(dimension_semantics=dim_semantics)
    if vmem_bytes_estimate > _DEFAULT_SCOPED_VMEM:
        kwargs["vmem_limit_bytes"] = int(
            min(vmem_bytes_estimate + (4 << 20), _VMEM_LIMIT_CAP))
    return pltpu.CompilerParams(**kwargs)


# ---------------------------------------------------------------------------
# Kernel 1: conv1 as ONE K=9*Cin MXU matmul over host-packed im2col rows,
# plus BN1 statistics.  Non-interior (halo / margin / padding) rows of the
# im2col input are zero, so they contribute exactly 0 to the conv output and
# to the statistics - no mask is needed here.
# ---------------------------------------------------------------------------
def _conv1_stats_kernel(x_ref, w_ref, y_ref, st_ref):
    # x_ref : (1, TH1, wpe, K1) bf16   im2col rows on the extended padded grid
    # w_ref : (K1, Coutp)       bf16   VMEM-resident across the grid
    # y_ref : (1, TH1, wpe, Coutp) bf16  raw conv1 output (bf16 storage)
    # st_ref: (1, 1, 8, Coutp)  f32    row0 = sum, row1 = sumsq (per block)
    _, th, wpe, k1 = x_ref.shape
    coutp = w_ref.shape[-1]
    x2 = x_ref[0].reshape(th * wpe, k1)                     # free merge (wpe % 8 == 0)
    acc = jnp.dot(x2, w_ref[...], preferred_element_type=jnp.float32)
    y_ref[0] = acc.reshape(th, wpe, coutp).astype(y_ref.dtype)
    ssum = jnp.sum(acc, axis=0, keepdims=True)
    ssq = jnp.sum(acc * acc, axis=0, keepdims=True)
    st_ref[0, 0] = jnp.concatenate(
        [ssum, ssq, jnp.zeros((6, coutp), jnp.float32)], axis=0)


# ---------------------------------------------------------------------------
# Kernel 2: fused [BN1 apply + ReLU + zero-padding] on the load path, then
# conv2 as 9 shifted-slice MXU matmuls (K = Coutp >= 128), plus BN2 statistics.
# The overlapping halo window is DMA'd manually from HBM.
# ---------------------------------------------------------------------------
def _make_conv2_kernel(h_img, w_img, tho, wpe, he, coutp):
    win_oy = tho + 4                    # 2 extra padded-grid rows above + below
    win = win_oy * wpe                  # flat rows DMA'd per block
    tm = tho * wpe                      # flat output rows per block

    def kernel(bn1_ref, w_ref, y1_hbm, y2_ref, st_ref, xwin, sem):
        n = pl.program_id(0)
        r = pl.program_id(1)
        # Manual halo-window DMA: adjacent blocks overlap by 4 oy-rows, which
        # BlockSpec tiling cannot express; y1 stays in HBM (memory_space=pl.ANY).
        start = (n * he + r * tho) * wpe
        cp = pltpu.make_async_copy(y1_hbm.at[pl.ds(start, win), :], xwin, sem)
        cp.start()
        cp.wait()
        scale1 = bn1_ref[0:1, :]
        shift1 = bn1_ref[1:2, :]
        # Interior mask from separable 2-D iotas (no vector div/mod, no DMA'd
        # mask array).  Window grid row a <-> padded-grid row (r*tho - 2 + a).
        oy = r * tho - 2 + jax.lax.broadcasted_iota(jnp.int32, (win_oy, wpe, 1), 0)
        ox = jax.lax.broadcasted_iota(jnp.int32, (win_oy, wpe, 1), 1)
        m = (oy >= 1) & (oy <= h_img) & (ox >= 1) & (ox <= w_img)
        mask = m.astype(jnp.float32).reshape(win, 1)        # free merge (wpe % 8 == 0)
        # Fused layer-1 BN + ReLU + zero padding on the loaded window (-> bf16).
        h = jnp.maximum(xwin[...].astype(jnp.float32) * scale1 + shift1, 0.0) * mask
        h = h.astype(jnp.bfloat16)
        # 3x3 conv = 9 shifted contiguous row-slices, each a deep-K MXU matmul.
        acc = None
        for k in range(9):
            dy, dx = divmod(k, 3)
            s = (dy + 1) * wpe + dx - 1                     # static slice start
            part = jnp.dot(h[s:s + tm, :], w_ref[k],
                           preferred_element_type=jnp.float32)
            acc = part if acc is None else acc + part
        # Layer-2 BN statistics over interior pixels only (mask is 0/1, so
        # sumsq = sum(masked * acc)).
        out_mask = mask[2 * wpe:2 * wpe + tm, :]
        masked = acc * out_mask
        y2_ref[0] = masked.reshape(tho, wpe, coutp).astype(y2_ref.dtype)
        ssum = jnp.sum(masked, axis=0, keepdims=True)
        ssq = jnp.sum(masked * acc, axis=0, keepdims=True)
        st_ref[0, 0] = jnp.concatenate(
            [ssum, ssq, jnp.zeros((6, coutp), jnp.float32)], axis=0)

    return kernel


# ---------------------------------------------------------------------------
# Kernel 3: final BN2 apply (one FMA) + ReLU, lane-dense tiles.
# ---------------------------------------------------------------------------
def _bn_relu_kernel(bn_ref, y_ref, o_ref):
    coutp = bn_ref.shape[-1]
    scale = bn_ref[0:1, :].reshape(1, 1, coutp)
    shift = bn_ref[1:2, :].reshape(1, 1, coutp)
    y = y_ref[0].astype(jnp.float32)
    o_ref[0] = jnp.maximum(y * scale + shift, 0.0)


# ---------------------------------------------------------------------------
# Host-side glue.
# ---------------------------------------------------------------------------
def _fold_bn(stats, gamma_p, beta_p, count):
    """Fold per-block (sum, sumsq) partials into BN scale/shift, packed (8, C)."""
    ssum = jnp.sum(stats[:, :, 0, :], axis=(0, 1))
    ssq = jnp.sum(stats[:, :, 1, :], axis=(0, 1))
    mean = ssum / count
    var = jnp.maximum(ssq / count - mean * mean, 0.0)       # biased var, training BN
    scale = gamma_p * jax.lax.rsqrt(var + BN_EPS)
    shift = beta_p - mean * scale
    packed = jnp.zeros((8, scale.shape[0]), jnp.float32)
    return packed.at[0].set(scale).at[1].set(shift)


def double_conv_forward(x_nchw, params):
    """Pallas DoubleConv.forward (training-mode, shared BatchNorm2d).

    x_nchw: (N, Cin, H, W) float32 -> (N, Cout, H, W) float32.
    """
    w1, b1, w2, b2, gamma, beta = params
    del b1, b2        # cancelled exactly by the training-mode BN mean subtraction
    n_img, cin, h_img, w_img = x_nchw.shape
    cout = w1.shape[-1]
    coutp = _round_up(cout, LANES)             # lane-dense stores / MXU N dim
    wpe = _round_up(w_img + 2, 8)              # padded-grid row length, sublane-aligned
    h2 = h_img + 2                             # padded-grid rows (incl. halo rows)
    k1 = 9 * cin

    # oy-row blocking: ~_TARGET_BLOCK_ROWS flat rows per grid step (round-up
    # padding, no divisor hunting).
    tho = max(1, min(h2, _TARGET_BLOCK_ROWS // wpe))
    h2p = _round_up(h2, tho)
    r2 = h2p // tho
    th1 = max(1, min(h2p + 4, _TARGET_BLOCK_ROWS // wpe))
    he = _round_up(h2p + 4, th1)               # extended rows: 2 margin oy-rows each side
    r1 = he // th1
    n_valid = n_img * h_img * w_img            # real pixels per channel for BN

    # ---- parameters (zero-padded channels stay exactly zero end-to-end) -----
    gamma_p = jnp.pad(gamma, (0, coutp - cout))
    beta_p = jnp.pad(beta, (0, coutp - cout))
    w1_mat = jnp.pad(w1.reshape(k1, cout),
                     ((0, 0), (0, coutp - cout))).astype(jnp.bfloat16)
    w2_slab = jnp.pad(w2, ((0, 0), (0, 0), (0, coutp - cout),
                           (0, coutp - cout))).reshape(9, coutp, coutp)
    w2_slab = w2_slab.astype(jnp.bfloat16)

    # ---- layer-1 input: one-time host im2col (lane-dense K = 9*Cin) ---------
    # TODO(synk): for large Cin, conv1 should switch to the in-kernel
    # shifted-slice path used by conv2 instead of a 9*Cin HBM im2col.
    x = jnp.transpose(x_nchw, (0, 2, 3, 1)).astype(jnp.bfloat16)
    xp = jnp.pad(x, ((0, 0), (1, 1), (1, 1), (0, 0)))
    taps = [xp[:, dy:dy + h_img, dx:dx + w_img, :]
            for dy in range(3) for dx in range(3)]
    pat = jnp.concatenate(taps, axis=-1)       # (N, H, W, 9*Cin)
    # Interior pixels land on the extended padded grid; all other rows are 0,
    # so halo/margin rows contribute exactly 0 to conv1 and its statistics.
    x1 = jnp.pad(pat, ((0, 0), (3, he - h_img - 3), (1, wpe - w_img - 1), (0, 0)))

    # ---- kernel 1: conv1 (single K=9*Cin matmul) + BN1 statistics -----------
    k1p = _round_up(k1, LANES)
    est1 = (2 * th1 * wpe * k1p * 2 + 2 * k1p * coutp * 2
            + 2 * th1 * wpe * coutp * 2 + th1 * wpe * coutp * 4
            + 4 * 8 * coutp * 4)
    y1, st1 = pl.pallas_call(
        _conv1_stats_kernel,
        out_shape=(jax.ShapeDtypeStruct((n_img, he, wpe, coutp), jnp.bfloat16),
                   jax.ShapeDtypeStruct((n_img, r1, 8, coutp), jnp.float32)),
        grid=(n_img, r1),
        in_specs=[pl.BlockSpec((1, th1, wpe, k1), lambda n, r: (n, r, 0, 0)),
                  pl.BlockSpec((k1, coutp), lambda n, r: (0, 0))],      # resident
        out_specs=(pl.BlockSpec((1, th1, wpe, coutp), lambda n, r: (n, r, 0, 0)),
                   pl.BlockSpec((1, 1, 8, coutp), lambda n, r: (n, r, 0, 0))),
        compiler_params=_compiler_params(("parallel", "parallel"), est1),
    )(x1, w1_mat)

    bn1 = _fold_bn(st1, gamma_p, beta_p, n_valid)

    # ---- kernel 2: fused BN1+ReLU (load path) -> conv2 -> BN2 statistics ----
    win = (tho + 4) * wpe
    est2 = (win * coutp * (2 + 6) + 2 * 9 * coutp * coutp * 2
            + 2 * tho * wpe * coutp * 4 + 2 * tho * wpe * coutp * 2
            + 4 * 8 * coutp * 4)
    y1_flat = y1.reshape(n_img * he * wpe, coutp)      # free reshape (merge dims)
    y2, st2 = pl.pallas_call(
        _make_conv2_kernel(h_img, w_img, tho, wpe, he, coutp),
        out_shape=(jax.ShapeDtypeStruct((n_img, h2p, wpe, coutp), jnp.bfloat16),
                   jax.ShapeDtypeStruct((n_img, r2, 8, coutp), jnp.float32)),
        grid=(n_img, r2),
        in_specs=[pl.BlockSpec((8, coutp), lambda n, r: (0, 0)),        # resident
                  pl.BlockSpec((9, coutp, coutp), lambda n, r: (0, 0, 0)),
                  pl.BlockSpec(memory_space=pl.ANY)],                   # raw HBM ref
        out_specs=(pl.BlockSpec((1, tho, wpe, coutp), lambda n, r: (n, r, 0, 0)),
                   pl.BlockSpec((1, 1, 8, coutp), lambda n, r: (n, r, 0, 0))),
        scratch_shapes=[pltpu.VMEM((win, coutp), jnp.bfloat16),
                        pltpu.SemaphoreType.DMA(())],
        compiler_params=_compiler_params(("parallel", "parallel"), est2),
    )(bn1, w2_slab, y1_flat)

    bn2 = _fold_bn(st2, gamma_p, beta_p, n_valid)

    # ---- kernel 3: BN2 apply + ReLU (lane-dense fixed row tiles) ------------
    est3 = (2 * tho * wpe * coutp * (2 + 4) + tho * wpe * coutp * 4
            + 2 * 8 * coutp * 4)
    out4 = pl.pallas_call(
        _bn_relu_kernel,
        out_shape=jax.ShapeDtypeStruct((n_img, h2p, wpe, coutp), jnp.float32),
        grid=(n_img, r2),
        in_specs=[pl.BlockSpec((8, coutp), lambda n, r: (0, 0)),        # resident
                  pl.BlockSpec((1, tho, wpe, coutp), lambda n, r: (n, r, 0, 0))],
        out_specs=pl.BlockSpec((1, tho, wpe, coutp), lambda n, r: (n, r, 0, 0)),
        compiler_params=_compiler_params(("parallel", "parallel"), est3),
    )(bn2, y2)

    # Layout plumbing back to the module's NCHW interface (done exactly once).
    out = out4[:, 1:h_img + 1, 1:w_img + 1, :cout]
    return jnp.transpose(out, (0, 3, 1, 2))


# ---------------------------------------------------------------------------
# References (for in-script sanity checks).
# ---------------------------------------------------------------------------
def _reference_forward_f32(x_nchw, params):
    """Exact module semantics in f32 (with conv biases, training-mode BN)."""
    w1, b1, w2, b2, gamma, beta = params

    def conv(x, w_hwio, b):
        y = jax.lax.conv_general_dilated(
            x, jnp.transpose(w_hwio, (3, 2, 0, 1)), (1, 1), ((1, 1), (1, 1)),
            dimension_numbers=("NCHW", "OIHW", "NCHW"))
        return y + b[None, :, None, None]

    def bn_relu(x):
        mean = jnp.mean(x, axis=(0, 2, 3), keepdims=True)
        var = jnp.mean((x - mean) ** 2, axis=(0, 2, 3), keepdims=True)
        xhat = (x - mean) * jax.lax.rsqrt(var + BN_EPS)
        return jnp.maximum(xhat * gamma[None, :, None, None]
                           + beta[None, :, None, None], 0.0)

    h = bn_relu(conv(x_nchw, w1, b1))
    return bn_relu(conv(h, w2, b2))


def _reference_forward_matched(x_nchw, params):
    """Same math with the kernel's precision choices: bf16 conv operands, f32
    accumulation, bf16 storage of both conv outputs, conv bias dropped."""
    w1, _b1, w2, _b2, gamma, beta = params
    x = jnp.transpose(x_nchw, (0, 2, 3, 1))

    def conv(xh, w_hwio):
        return jax.lax.conv_general_dilated(
            xh.astype(jnp.bfloat16), w_hwio.astype(jnp.bfloat16),
            (1, 1), ((1, 1), (1, 1)),
            dimension_numbers=("NHWC", "HWIO", "NHWC"),
            preferred_element_type=jnp.float32)

    def bn_relu(y_f32):
        mean = jnp.mean(y_f32, axis=(0, 1, 2))
        var = jnp.maximum(jnp.mean(y_f32 * y_f32, axis=(0, 1, 2)) - mean * mean, 0.0)
        scale = gamma * jax.lax.rsqrt(var + BN_EPS)
        shift = beta - mean * scale
        y_b = y_f32.astype(jnp.bfloat16).astype(jnp.float32)   # bf16-stored intermediate
        return jnp.maximum(y_b * scale + shift, 0.0)

    h = bn_relu(conv(x, w1)).astype(jnp.bfloat16)
    y = bn_relu(conv(h, w2))
    return jnp.transpose(y, (0, 3, 1, 2))


def init_params(key, cin, cout):
    """Deterministic synthetic parameters (shapes mirror the PyTorch module)."""
    k1, k2, k3, k4 = jax.random.split(key, 4)
    w1 = jax.random.normal(k1, (3, 3, cin, cout), jnp.float32) * 0.1
    b1 = jax.random.normal(k2, (cout,), jnp.float32) * 0.1
    w2 = jax.random.normal(k3, (3, 3, cout, cout), jnp.float32) * 0.1
    b2 = jax.random.normal(k4, (cout,), jnp.float32) * 0.1
    gamma = jnp.ones((cout,), jnp.float32)     # BatchNorm2d defaults
    beta = jnp.zeros((cout,), jnp.float32)
    return (w1, b1, w2, b2, gamma, beta)


if __name__ == "__main__":
    N, Cin, Cout, H, W = 2, 4, 8, 16, 16
    key = jax.random.PRNGKey(0)
    kx, kp = jax.random.split(key)
    x = jax.random.normal(kx, (N, Cin, H, W), jnp.float32)
    params = init_params(kp, Cin, Cout)

    fwd = jax.jit(double_conv_forward)
    out = jax.block_until_ready(fwd(x, params))
    assert out.shape == (N, Cout, H, W)
    assert bool(jnp.all(jnp.isfinite(out)))

    # Primary check: precision-matched reference (same bf16/f32 choices).
    ref_m = jax.block_until_ready(_reference_forward_matched(x, params))
    assert jnp.allclose(out, ref_m, atol=5e-3, rtol=5e-3), \
        "mismatch vs precision-matched reference"
    # Secondary check: exact f32 module semantics (loose bound = bf16 operand
    # rounding only; also verifies the conv-bias/BN-mean cancellation).
    ref_f = jax.block_until_ready(_reference_forward_f32(x, params))
    assert jnp.allclose(out, ref_f, atol=1e-1, rtol=1e-1), \
        "mismatch vs f32 reference"

    print("KERNEL_OK")
</pallas_src>

<mosaic_0001>
module attributes {stable_mosaic.version = 11 : i64} {
  func.func @_conv1_stats_kernel(%arg0: i32, %arg1: i32, %arg2: memref<1x22x24x36xbf16, #tpu.memory_space<vmem>>, %arg3: memref<36x128xbf16, #tpu.memory_space<vmem>>, %arg4: memref<1x22x24x128xbf16, #tpu.memory_space<vmem>>, %arg5: memref<1x1x8x128xf32, #tpu.memory_space<vmem>>) attributes {dimension_semantics = [#tpu.dimension_semantics<parallel>, #tpu.dimension_semantics<parallel>], iteration_bounds = array<i64: 2, 1>, scalar_prefetch = 0 : i64, scratch_operands = 0 : i64, tpu.core_type = #tpu.core_type<tc>, window_params = [{transform_indices = @transform_0, window_bounds = array<i64: 1, 22, 24, 36>}, {pipeline_mode = #tpu.pipeline_mode<synchronous>, transform_indices = @transform_1, window_bounds = array<i64: 36, 128>}, {transform_indices = @transform_2, window_bounds = array<i64: 1, 22, 24, 128>}, {transform_indices = @transform_3, window_bounds = array<i64: 1, 1, 8, 128>}]} {
    %c0 = arith.constant 0 : index
    %c0_0 = arith.constant 0 : index
    %c0_1 = arith.constant 0 : index
    %c0_2 = arith.constant 0 : index
    %0 = vector.load %arg2[%c0, %c0_0, %c0_1, %c0_2] : memref<1x22x24x36xbf16, #tpu.memory_space<vmem>>, vector<1x22x24x36xbf16>
    %1 = vector.shape_cast %0 : vector<1x22x24x36xbf16> to vector<22x24x36xbf16>
    %2 = vector.shape_cast %1 : vector<22x24x36xbf16> to vector<528x36xbf16>
    %c0_3 = arith.constant 0 : index
    %c0_4 = arith.constant 0 : index
    %3 = vector.load %arg3[%c0_3, %c0_4] : memref<36x128xbf16, #tpu.memory_space<vmem>>, vector<36x128xbf16>
    %cst = arith.constant dense<0.000000e+00> : vector<528x128xf32>
    %4 = tpu.matmul %2, %3, %cst {dimension_numbers = #tpu.dot_dimension_numbers<[1], [0], [0], [1], [0, 0, 1, 1], [], []>} : vector<528x36xbf16>, vector<36x128xbf16>, vector<528x128xf32> -> vector<528x128xf32>
    %5 = vector.shape_cast %4 : vector<528x128xf32> to vector<22x24x128xf32>
    %6 = arith.truncf %5 : vector<22x24x128xf32> to vector<22x24x128xbf16>
    %c0_5 = arith.constant 0 : index
    %c0_6 = arith.constant 0 : index
    %c0_7 = arith.constant 0 : index
    %c0_8 = arith.constant 0 : index
    %7 = vector.load %arg4[%c0_5, %c0_6, %c0_7, %c0_8] : memref<1x22x24x128xbf16, #tpu.memory_space<vmem>>, vector<1x22x24x128xbf16>
    %8 = vector.shape_cast %7 : vector<1x22x24x128xbf16> to vector<22x24x128xbf16>
    %9 = vector.shape_cast %6 : vector<22x24x128xbf16> to vector<1x22x24x128xbf16>
    tpu.vector_store %arg4[%c0_5, %c0_6, %c0_7, %c0_8], %9 {strides = array<i32>} : memref<1x22x24x128xbf16, #tpu.memory_space<vmem>>, vector<1x22x24x128xbf16>,
    %cst_9 = arith.constant dense<0.000000e+00> : vector<128xf32>
    %10 = vector.multi_reduction <add>, %4, %cst_9 [0] : vector<528x128xf32> to vector<128xf32>
    %11 = vector.shape_cast %10 : vector<128xf32> to vector<1x128xf32>
    %12 = arith.mulf %4, %4 : vector<528x128xf32>
    %cst_10 = arith.constant dense<0.000000e+00> : vector<128xf32>
    %13 = vector.multi_reduction <add>, %12, %cst_10 [0] : vector<528x128xf32> to vector<128xf32>
    %14 = vector.shape_cast %13 : vector<128xf32> to vector<1x128xf32>
    %cst_11 = arith.constant 0.000000e+00 : f32
    %15 = vector.broadcast %cst_11 : f32 to vector<6x128xf32>
    %16 = tpu.concatenate %11, %14, %15 in 0 : vector<1x128xf32>, vector<1x128xf32>, vector<6x128xf32> -> vector<8x128xf32>
    %c0_12 = arith.constant 0 : index
    %c0_13 = arith.constant 0 : index
    %c0_14 = arith.constant 0 : index
    %c0_15 = arith.constant 0 : index
    %17 = vector.load %arg5[%c0_12, %c0_13, %c0_14, %c0_15] : memref<1x1x8x128xf32, #tpu.memory_space<vmem>>, vector<1x1x8x128xf32>
    %18 = vector.shape_cast %17 : vector<1x1x8x128xf32> to vector<8x128xf32>
    %19 = vector.shape_cast %16 : vector<8x128xf32> to vector<1x1x8x128xf32>
    tpu.vector_store %arg5[%c0_12, %c0_13, %c0_14, %c0_15], %19 {strides = array<i32>} : memref<1x1x8x128xf32, #tpu.memory_space<vmem>>, vector<1x1x8x128xf32>,
    return
  }
  func.func @transform_0(%arg0: i32, %arg1: i32) -> (i32, i32, i32, i32) {
    %c0_i32 = arith.constant 0 : i32
    %c0_i32_0 = arith.constant 0 : i32
    %c0_i32_1 = arith.constant 0 : i32
    return %arg0, %arg1, %c0_i32, %c0_i32_0 : i32, i32, i32, i32
  }
  func.func @transform_1(%arg0: i32, %arg1: i32) -> (i32, i32) {
    %c0_i32 = arith.constant 0 : i32
    %c0_i32_0 = arith.constant 0 : i32
    %c0_i32_1 = arith.constant 0 : i32
    return %c0_i32, %c0_i32_0 : i32, i32
  }
  func.func @transform_2(%arg0: i32, %arg1: i32) -> (i32, i32, i32, i32) {
    %c0_i32 = arith.constant 0 : i32
    %c0_i32_0 = arith.constant 0 : i32
    %c0_i32_1 = arith.constant 0 : i32
    return %arg0, %arg1, %c0_i32, %c0_i32_0 : i32, i32, i32, i32
  }
  func.func @transform_3(%arg0: i32, %arg1: i32) -> (i32, i32, i32, i32) {
    %c0_i32 = arith.constant 0 : i32
    %c0_i32_0 = arith.constant 0 : i32
    %c0_i32_1 = arith.constant 0 : i32
    return %arg0, %arg1, %c0_i32, %c0_i32_0 : i32, i32, i32, i32
  }
}

module attributes {stable_mosaic.version = 11 : i64} {
  func.func @kernel(%arg0: i32, %arg1: i32, %arg2: memref<8x128xf32, #tpu.memory_space<vmem>>, %arg3: memref<9x128x128xbf16, #tpu.memory_space<vmem>>, %arg4: memref<1056x128xbf16, #tpu.memory_space<any>>, %arg5: memref<1x18x24x128xbf16, #tpu.memory_space<vmem>>, %arg6: memref<1x1x8x128xf32, #tpu.memory_space<vmem>>, %arg7: memref<528x128xbf16, #tpu.memory_space<vmem>>, %arg8: memref<!tpu.dma_semaphore, #tpu.memory_space<semaphore_mem>>) attributes {dimension_semantics = [#tpu.dimension_semantics<parallel>, #tpu.dimension_semantics<parallel>], iteration_bounds = array<i64: 2, 1>, scalar_prefetch = 0 : i64, scratch_operands = 2 : i64, tpu.core_type = #tpu.core_type<tc>, window_params = [{pipeline_mode = #tpu.pipeline_mode<synchronous>, transform_indices = @transform_0, window_bounds = array<i64: 8, 128>}, {pipeline_mode = #tpu.pipeline_mode<synchronous>, transform_indices = @transform_1, window_bounds = array<i64: 9, 128, 128>}, {}, {transform_indices = @transform_3, window_bounds = array<i64: 1, 18, 24, 128>}, {transform_indices = @transform_4, window_bounds = array<i64: 1, 1, 8, 128>}]} {
    %c22_i32 = arith.constant 22 : i32
    %0 = arith.muli %arg0, %c22_i32 : i32
    %c18_i32 = arith.constant 18 : i32
    %1 = arith.muli %arg1, %c18_i32 : i32
    %2 = arith.addi %0, %1 : i32
    %c24_i32 = arith.constant 24 : i32
    %3 = arith.muli %2, %c24_i32 : i32
    %c0_i32 = arith.constant 0 : i32
    %4 = tpu.memref_slice %arg4[%3, %c0_i32] : memref<1056x128xbf16, #tpu.memory_space<any>> -> memref<528x128xbf16, #tpu.memory_space<any>>
    tpu.enqueue_dma source(%4 : memref<528x128xbf16, #tpu.memory_space<any>>) target(%arg7 : memref<528x128xbf16, #tpu.memory_space<vmem>>) target_semaphore(%arg8 : memref<!tpu.dma_semaphore, #tpu.memory_space<semaphore_mem>>)
    %c0_i32_0 = arith.constant 0 : i32
    %5 = tpu.memref_slice %arg4[%3, %c0_i32_0] : memref<1056x128xbf16, #tpu.memory_space<any>> -> memref<528x128xbf16, #tpu.memory_space<any>>
    tpu.wait_dma2 semaphore(%arg8 : memref<!tpu.dma_semaphore, #tpu.memory_space<semaphore_mem>>) src(%5 : memref<528x128xbf16, #tpu.memory_space<any>>) dst(%arg7 : memref<528x128xbf16, #tpu.memory_space<vmem>>)
    %c0 = arith.constant 0 : index
    %c0_1 = arith.constant 0 : index
    %6 = vector.load %arg2[%c0, %c0_1] : memref<8x128xf32, #tpu.memory_space<vmem>>, vector<1x128xf32>
    %c1 = arith.constant 1 : index
    %c0_2 = arith.constant 0 : index
    %7 = vector.load %arg2[%c1, %c0_2] : memref<8x128xf32, #tpu.memory_space<vmem>>, vector<1x128xf32>
    %c18_i32_3 = arith.constant 18 : i32
    %8 = arith.muli %arg1, %c18_i32_3 : i32
    %c2_i32 = arith.constant 2 : i32
    %9 = arith.subi %8, %c2_i32 : i32
    %10 = tpu.iota {dimensions = array<i32: 0>} : vector<22x24x1xi32>
    %11 = vector.broadcast %9 : i32 to vector<22x24x1xi32>
    %12 = arith.addi %11, %10 : vector<22x24x1xi32>
    %13 = tpu.iota {dimensions = array<i32: 1>} : vector<22x24x1xi32>
    %c1_i32 = arith.constant 1 : i32
    %14 = vector.broadcast %c1_i32 : i32 to vector<22x24x1xi32>
    %15 = arith.cmpi sge, %12, %14 : vector<22x24x1xi32>
    %c16_i32 = arith.constant 16 : i32
    %16 = vector.broadcast %c16_i32 : i32 to vector<22x24x1xi32>
    %17 = arith.cmpi sle, %12, %16 : vector<22x24x1xi32>
    %18 = arith.andi %15, %17 : vector<22x24x1xi1>
    %c1_i32_4 = arith.constant 1 : i32
    %19 = vector.broadcast %c1_i32_4 : i32 to vector<22x24x1xi32>
    %20 = arith.cmpi sge, %13, %19 : vector<22x24x1xi32>
    %21 = arith.andi %18, %20 : vector<22x24x1xi1>
    %c16_i32_5 = arith.constant 16 : i32
    %22 = vector.broadcast %c16_i32_5 : i32 to vector<22x24x1xi32>
    %23 = arith.cmpi sle, %13, %22 : vector<22x24x1xi32>
    %24 = arith.andi %21, %23 : vector<22x24x1xi1>
    %25 = arith.extui %24 : vector<22x24x1xi1> to vector<22x24x1xi32>
    %26 = arith.sitofp %25 : vector<22x24x1xi32> to vector<22x24x1xf32>
    %27 = vector.shape_cast %26 : vector<22x24x1xf32> to vector<528x1xf32>
    %c0_6 = arith.constant 0 : index
    %c0_7 = arith.constant 0 : index
    %28 = vector.load %arg7[%c0_6, %c0_7] : memref<528x128xbf16, #tpu.memory_space<vmem>>, vector<528x128xbf16>
    %29 = arith.extf %28 : vector<528x128xbf16> to vector<528x128xf32>
    %30 = vector.broadcast %6 : vector<1x128xf32> to vector<528x128xf32>
    %31 = arith.mulf %29, %30 : vector<528x128xf32>
    %32 = vector.broadcast %7 : vector<1x128xf32> to vector<528x128xf32>
    %33 = arith.addf %31, %32 : vector<528x128xf32>
    %cst = arith.constant 0.000000e+00 : f32
    %34 = vector.broadcast %cst : f32 to vector<528x128xf32>
    %35 = arith.maximumf %33, %34 : vector<528x128xf32>
    %36 = vector.broadcast %27 : vector<528x1xf32> to vector<528x128xf32>
    %37 = arith.mulf %35, %36 : vector<528x128xf32>
    %38 = arith.truncf %37 : vector<528x128xf32> to vector<528x128xbf16>
    %39 = vector.extract_strided_slice %38 {offsets = [23, 0], sizes = [432, 128], strides = [1, 1]} : vector<528x128xbf16> to vector<432x128xbf16>
    %c0_8 = arith.constant 0 : index
    %c0_9 = arith.constant 0 : index
    %c0_10 = arith.constant 0 : index
    %40 = vector.load %arg3[%c0_8, %c0_9, %c0_10] : memref<9x128x128xbf16, #tpu.memory_space<vmem>>, vector<1x128x128xbf16>
    %41 = vector.shape_cast %40 : vector<1x128x128xbf16> to vector<128x128xbf16>
    %cst_11 = arith.constant dense<0.000000e+00> : vector<432x128xf32>
    %42 = tpu.matmul %39, %41, %cst_11 {dimension_numbers = #tpu.dot_dimension_numbers<[1], [0], [0], [1], [0, 0, 1, 1], [], []>} : vector<432x128xbf16>, vector<128x128xbf16>, vector<432x128xf32> -> vector<432x128xf32>
    %43 = vector.extract_strided_slice %38 {offsets = [24, 0], sizes = [432, 128], strides = [1, 1]} : vector<528x128xbf16> to vector<432x128xbf16>
    %c1_12 = arith.constant 1 : index
    %c0_13 = arith.constant 0 : index
    %c0_14 = arith.constant 0 : index
    %44 = vector.load %arg3[%c1_12, %c0_13, %c0_14] : memref<9x128x128xbf16, #tpu.memory_space<vmem>>, vector<1x128x128xbf16>
    %45 = vector.shape_cast %44 : vector<1x128x128xbf16> to vector<128x128xbf16>
    %cst_15 = arith.constant dense<0.000000e+00> : vector<432x128xf32>
    %46 = tpu.matmul %43, %45, %cst_15 {dimension_numbers = #tpu.dot_dimension_numbers<[1], [0], [0], [1], [0, 0, 1, 1], [], []>} : vector<432x128xbf16>, vector<128x128xbf16>, vector<432x128xf32> -> vector<432x128xf32>
    %47 = arith.addf %42, %46 : vector<432x128xf32>
    %48 = vector.extract_strided_slice %38 {offsets = [25, 0], sizes = [432, 128], strides = [1, 1]} : vector<528x128xbf16> to vector<432x128xbf16>
    %c2 = arith.constant 2 : index
    %c0_16 = arith.constant 0 : index
    %c0_17 = arith.constant 0 : index
    %49 = vector.load %arg3[%c2, %c0_16, %c0_17] : memref<9x128x128xbf16, #tpu.memory_space<vmem>>, vector<1x128x128xbf16>
    %50 = vector.shape_cast %49 : vector<1x128x128xbf16> to vector<128x128xbf16>
    %cst_18 = arith.constant dense<0.000000e+00> : vector<432x128xf32>
    %51 = tpu.matmul %48, %50, %cst_18 {dimension_numbers = #tpu.dot_dimension_numbers<[1], [0], [0], [1], [0, 0, 1, 1], [], []>} : vector<432x128xbf16>, vector<128x128xbf16>, vector<432x128xf32> -> vector<432x128xf32>
    %52 = arith.addf %47, %51 : vector<432x128xf32>
    %53 = vector.extract_strided_slice %38 {offsets = [47, 0], sizes = [432, 128], strides = [1, 1]} : vector<528x128xbf16> to vector<432x128xbf16>
    %c3 = arith.constant 3 : index
    %c0_19 = arith.constant 0 : index
    %c0_20 = arith.constant 0 : index
    %54 = vector.load %arg3[%c3, %c0_19, %c0_20] : memref<9x128x128xbf16, #tpu.memory_space<vmem>>, vector<1x128x128xbf16>
    %55 = vector.shape_cast %54 : vector<1x128x128xbf16> to vector<128x128xbf16>
    %cst_21 = arith.constant dense<0.000000e+00> : vector<432x128xf32>
    %56 = tpu.matmul %53, %55, %cst_21 {dimension_numbers = #tpu.dot_dimension_numbers<[1], [0], [0], [1], [0, 0, 1, 1], [], []>} : vector<432x128xbf16>, vector<128x128xbf16>, vector<432x128xf32> -> vector<432x128xf32>
    %57 = arith.addf %52, %56 : vector<432x128xf32>
    %58 = vector.extract_strided_slice %38 {offsets = [48, 0], sizes = [432, 128], strides = [1, 1]} : vector<528x128xbf16> to vector<432x128xbf16>
    %c4 = arith.constant 4 : index
    %c0_22 = arith.constant 0 : index
    %c0_23 = arith.constant 0 : index
    %59 = vector.load %arg3[%c4, %c0_22, %c0_23] : memref<9x128x128xbf16, #tpu.memory_space<vmem>>, vector<1x128x128xbf16>
    %60 = vector.shape_cast %59 : vector<1x128x128xbf16> to vector<128x128xbf16>
    %cst_24 = arith.constant dense<0.000000e+00> : vector<432x128xf32>
    %61 = tpu.matmul %58, %60, %cst_24 {dimension_numbers = #tpu.dot_dimension_numbers<[1], [0], [0], [1], [0, 0, 1, 1], [], []>} : vector<432x128xbf16>, vector<128x128xbf16>, vector<432x128xf32> -> vector<432x128xf32>
    %62 = arith.addf %57, %61 : vector<432x128xf32>
    %63 = vector.extract_strided_slice %38 {offsets = [49, 0], sizes = [432, 128], strides = [1, 1]} : vector<528x128xbf16> to vector<432x128xbf16>
    %c5 = arith.constant 5 : index
    %c0_25 = arith.constant 0 : index
    %c0_26 = arith.constant 0 : index
    %64 = vector.load %arg3[%c5, %c0_25, %c0_26] : memref<9x128x128xbf16, #tpu.memory_space<vmem>>, vector<1x128x128xbf16>
    %65 = vector.shape_cast %64 : vector<1x128x128xbf16> to vector<128x128xbf16>
    %cst_27 = arith.constant dense<0.000000e+00> : vector<432x128xf32>
    %66 = tpu.matmul %63, %65, %cst_27 {dimension_numbers = #tpu.dot_dimension_numbers<[1], [0], [0], [1], [0, 0, 1, 1], [], []>} : vector<432x128xbf16>, vector<128x128xbf16>, vector<432x128xf32> -> vector<432x128xf32>
    %67 = arith.addf %62, %66 : vector<432x128xf32>
    %68 = vector.extract_strided_slice %38 {offsets = [71, 0], sizes = [432, 128], strides = [1, 1]} : vector<528x128xbf16> to vector<432x128xbf16>
    %c6 = arith.constant 6 : index
    %c0_28 = arith.constant 0 : index
    %c0_29 = arith.constant 0 : index
    %69 = vector.load %arg3[%c6, %c0_28, %c0_29] : memref<9x128x128xbf16, #tpu.memory_space<vmem>>, vector<1x128x128xbf16>
    %70 = vector.shape_cast %69 : vector<1x128x128xbf16> to vector<128x128xbf16>
    %cst_30 = arith.constant dense<0.000000e+00> : vector<432x128xf32>
    %71 = tpu.matmul %68, %70, %cst_30 {dimension_numbers = #tpu.dot_dimension_numbers<[1], [0], [0], [1], [0, 0, 1, 1], [], []>} : vector<432x128xbf16>, vector<128x128xbf16>, vector<432x128xf32> -> vector<432x128xf32>
    %72 = arith.addf %67, %71 : vector<432x128xf32>
    %73 = vector.extract_strided_slice %38 {offsets = [72, 0], sizes = [432, 128], strides = [1, 1]} : vector<528x128xbf16> to vector<432x128xbf16>
    %c7 = arith.constant 7 : index
    %c0_31 = arith.constant 0 : index
    %c0_32 = arith.constant 0 : index
    %74 = vector.load %arg3[%c7, %c0_31, %c0_32] : memref<9x128x128xbf16, #tpu.memory_space<vmem>>, vector<1x128x128xbf16>
    %75 = vector.shape_cast %74 : vector<1x128x128xbf16> to vector<128x128xbf16>
    %cst_33 = arith.constant dense<0.000000e+00> : vector<432x128xf32>
    %76 = tpu.matmul %73, %75, %cst_33 {dimension_numbers = #tpu.dot_dimension_numbers<[1], [0], [0], [1], [0, 0, 1, 1], [], []>} : vector<432x128xbf16>, vector<128x128xbf16>, vector<432x128xf32> -> vector<432x128xf32>
    %77 = arith.addf %72, %76 : vector<432x128xf32>
    %78 = vector.extract_strided_slice %38 {offsets = [73, 0], sizes = [432, 128], strides = [1, 1]} : vector<528x128xbf16> to vector<432x128xbf16>
    %c8 = arith.constant 8 : index
    %c0_34 = arith.constant 0 : index
    %c0_35 = arith.constant 0 : index
    %79 = vector.load %arg3[%c8, %c0_34, %c0_35] : memref<9x128x128xbf16, #tpu.memory_space<vmem>>, vector<1x128x128xbf16>
    %80 = vector.shape_cast %79 : vector<1x128x128xbf16> to vector<128x128xbf16>
    %cst_36 = arith.constant dense<0.000000e+00> : vector<432x128xf32>
    %81 = tpu.matmul %78, %80, %cst_36 {dimension_numbers = #tpu.dot_dimension_numbers<[1], [0], [0], [1], [0, 0, 1, 1], [], []>} : vector<432x128xbf16>, vector<128x128xbf16>, vector<432x128xf32> -> vector<432x128xf32>
    %82 = arith.addf %77, %81 : vector<432x128xf32>
    %83 = vector.extract_strided_slice %27 {offsets = [48, 0], sizes = [432, 1], strides = [1, 1]} : vector<528x1xf32> to vector<432x1xf32>
    %84 = vector.broadcast %83 : vector<432x1xf32> to vector<432x128xf32>
    %85 = arith.mulf %82, %84 : vector<432x128xf32>
    %86 = vector.shape_cast %85 : vector<432x128xf32> to vector<18x24x128xf32>
    %87 = arith.truncf %86 : vector<18x24x128xf32> to vector<18x24x128xbf16>
    %c0_37 = arith.constant 0 : index
    %c0_38 = arith.constant 0 : index
    %c0_39 = arith.constant 0 : index
    %c0_40 = arith.constant 0 : index
    %88 = vector.load %arg5[%c0_37, %c0_38, %c0_39, %c0_40] : memref<1x18x24x128xbf16, #tpu.memory_space<vmem>>, vector<1x18x24x128xbf16>
    %89 = vector.shape_cast %88 : vector<1x18x24x128xbf16> to vector<18x24x128xbf16>
    %90 = vector.shape_cast %87 : vector<18x24x128xbf16> to vector<1x18x24x128xbf16>
    tpu.vector_store %arg5[%c0_37, %c0_38, %c0_39, %c0_40], %90 {strides = array<i32>} : memref<1x18x24x128xbf16, #tpu.memory_space<vmem>>, vector<1x18x24x128xbf16>,
    %cst_41 = arith.constant dense<0.000000e+00> : vector<128xf32>
    %91 = vector.multi_reduction <add>, %85, %cst_41 [0] : vector<432x128xf32> to vector<128xf32>
    %92 = vector.shape_cast %91 : vector<128xf32> to vector<1x128xf32>
    %93 = arith.mulf %85, %82 : vector<432x128xf32>
    %cst_42 = arith.constant dense<0.000000e+00> : vector<128xf32>
    %94 = vector.multi_reduction <add>, %93, %cst_42 [0] : vector<432x128xf32> to vector<128xf32>
    %95 = vector.shape_cast %94 : vector<128xf32> to vector<1x128xf32>
    %cst_43 = arith.constant 0.000000e+00 : f32
    %96 = vector.broadcast %cst_43 : f32 to vector<6x128xf32>
    %97 = tpu.concatenate %92, %95, %96 in 0 : vector<1x128xf32>, vector<1x128xf32>, vector<6x128xf32> -> vector<8x128xf32>
    %c0_44 = arith.constant 0 : index
    %c0_45 = arith.constant 0 : index
    %c0_46 = arith.constant 0 : index
    %c0_47 = arith.constant 0 : index
    %98 = vector.load %arg6[%c0_44, %c0_45, %c0_46, %c0_47] : memref<1x1x8x128xf32, #tpu.memory_space<vmem>>, vector<1x1x8x128xf32>
    %99 = vector.shape_cast %98 : vector<1x1x8x128xf32> to vector<8x128xf32>
    %100 = vector.shape_cast %97 : vector<8x128xf32> to vector<1x1x8x128xf32>
    tpu.vector_store %arg6[%c0_44, %c0_45, %c0_46, %c0_47], %100 {strides = array<i32>} : memref<1x1x8x128xf32, #tpu.memory_space<vmem>>, vector<1x1x8x128xf32>,
    return
  }
  func.func @transform_0(%arg0: i32, %arg1: i32) -> (i32, i32) {
    %c0_i32 = arith.constant 0 : i32
    %c0_i32_0 = arith.constant 0 : i32
    %c0_i32_1 = arith.constant 0 : i32
    return %c0_i32, %c0_i32_0 : i32, i32
  }
  func.func @transform_1(%arg0: i32, %arg1: i32) -> (i32, i32, i32) {
    %c0_i32 = arith.constant 0 : i32
    %c0_i32_0 = arith.constant 0 : i32
    %c0_i32_1 = arith.constant 0 : i32
    %c0_i32_2 = arith.constant 0 : i32
    return %c0_i32, %c0_i32_0, %c0_i32_1 : i32, i32, i32
  }
  func.func @transform_3(%arg0: i32, %arg1: i32) -> (i32, i32, i32, i32) {
    %c0_i32 = arith.constant 0 : i32
    %c0_i32_0 = arith.constant 0 : i32
    %c0_i32_1 = arith.constant 0 : i32
    return %arg0, %arg1, %c0_i32, %c0_i32_0 : i32, i32, i32, i32
  }
  func.func @transform_4(%arg0: i32, %arg1: i32) -> (i32, i32, i32, i32) {
    %c0_i32 = arith.constant 0 : i32
    %c0_i32_0 = arith.constant 0 : i32
    %c0_i32_1 = arith.constant 0 : i32
    return %arg0, %arg1, %c0_i32, %c0_i32_0 : i32, i32, i32, i32
  }
}

module attributes {stable_mosaic.version = 11 : i64} {
  func.func @_bn_relu_kernel(%arg0: i32, %arg1: i32, %arg2: memref<8x128xf32, #tpu.memory_space<vmem>>, %arg3: memref<1x18x24x128xbf16, #tpu.memory_space<vmem>>, %arg4: memref<1x18x24x128xf32, #tpu.memory_space<vmem>>) attributes {dimension_semantics = [#tpu.dimension_semantics<parallel>, #tpu.dimension_semantics<parallel>], iteration_bounds = array<i64: 2, 1>, scalar_prefetch = 0 : i64, scratch_operands = 0 : i64, tpu.core_type = #tpu.core_type<tc>, window_params = [{pipeline_mode = #tpu.pipeline_mode<synchronous>, transform_indices = @transform_0, window_bounds = array<i64: 8, 128>}, {transform_indices = @transform_1, window_bounds = array<i64: 1, 18, 24, 128>}, {transform_indices = @transform_2, window_bounds = array<i64: 1, 18, 24, 128>}]} {
    %c0 = arith.constant 0 : index
    %c0_0 = arith.constant 0 : index
    %0 = vector.load %arg2[%c0, %c0_0] : memref<8x128xf32, #tpu.memory_space<vmem>>, vector<1x128xf32>
    %1 = vector.shape_cast %0 : vector<1x128xf32> to vector<1x1x128xf32>
    %c1 = arith.constant 1 : index
    %c0_1 = arith.constant 0 : index
    %2 = vector.load %arg2[%c1, %c0_1] : memref<8x128xf32, #tpu.memory_space<vmem>>, vector<1x128xf32>
    %3 = vector.shape_cast %2 : vector<1x128xf32> to vector<1x1x128xf32>
    %c0_2 = arith.constant 0 : index
    %c0_3 = arith.constant 0 : index
    %c0_4 = arith.constant 0 : index
    %c0_5 = arith.constant 0 : index
    %4 = vector.load %arg3[%c0_2, %c0_3, %c0_4, %c0_5] : memref<1x18x24x128xbf16, #tpu.memory_space<vmem>>, vector<1x18x24x128xbf16>
    %5 = vector.shape_cast %4 : vector<1x18x24x128xbf16> to vector<18x24x128xbf16>
    %6 = arith.extf %5 : vector<18x24x128xbf16> to vector<18x24x128xf32>
    %7 = vector.broadcast %1 : vector<1x1x128xf32> to vector<18x24x128xf32>
    %8 = arith.mulf %6, %7 : vector<18x24x128xf32>
    %9 = vector.broadcast %3 : vector<1x1x128xf32> to vector<18x24x128xf32>
    %10 = arith.addf %8, %9 : vector<18x24x128xf32>
    %cst = arith.constant 0.000000e+00 : f32
    %11 = vector.broadcast %cst : f32 to vector<18x24x128xf32>
    %12 = arith.maximumf %10, %11 : vector<18x24x128xf32>
    %c0_6 = arith.constant 0 : index
    %c0_7 = arith.constant 0 : index
    %c0_8 = arith.constant 0 : index
    %c0_9 = arith.constant 0 : index
    %13 = vector.load %arg4[%c0_6, %c0_7, %c0_8, %c0_9] : memref<1x18x24x128xf32, #tpu.memory_space<vmem>>, vector<1x18x24x128xf32>
    %14 = vector.shape_cast %13 : vector<1x18x24x128xf32> to vector<18x24x128xf32>
    %15 = vector.shape_cast %12 : vector<18x24x128xf32> to vector<1x18x24x128xf32>
    tpu.vector_store %arg4[%c0_6, %c0_7, %c0_8, %c0_9], %15 {strides = array<i32>} : memref<1x18x24x128xf32, #tpu.memory_space<vmem>>, vector<1x18x24x128xf32>,
    return
  }
  func.func @transform_0(%arg0: i32, %arg1: i32) -> (i32, i32) {
    %c0_i32 = arith.constant 0 : i32
    %c0_i32_0 = arith.constant 0 : i32
    %c0_i32_1 = arith.constant 0 : i32
    return %c0_i32, %c0_i32_0 : i32, i32
  }
  func.func @transform_1(%arg0: i32, %arg1: i32) -> (i32, i32, i32, i32) {
    %c0_i32 = arith.constant 0 : i32
    %c0_i32_0 = arith.constant 0 : i32
    %c0_i32_1 = arith.constant 0 : i32
    return %arg0, %arg1, %c0_i32, %c0_i32_0 : i32, i32, i32, i32
  }
  func.func @transform_2(%arg0: i32, %arg1: i32) -> (i32, i32, i32, i32) {
    %c0_i32 = arith.constant 0 : i32
    %c0_i32_0 = arith.constant 0 : i32
    %c0_i32_1 = arith.constant 0 : i32
    return %arg0, %arg1, %c0_i32, %c0_i32_0 : i32, i32, i32, i32
  }
}

</mosaic_0001>

<llo_original>
// kernel: double_conv_forward.5
$region0: #{double_conv_forward.5}
  #allocation0 [shape = 'u32[]', space=smem, size = 0x4, offset = 0x4, fixed_abs, tag = 'smem constant byte address 0x4 - core index']
  #allocation1 [shape = 'u32[144,128]{1,0:T(1,128)}', space=vmem, size = 0x12000, scoped, tag = 'internal scratch']
  %s0 = inlined_call_operand.vmem [shape: f32[8,128], index: 0, kind: input, shape index: {}]
  %s1 = inlined_call_operand.vmem [shape: bf16[2,18,24,128], index: 1, kind: input, shape index: {}]
  %s2 = inlined_call_operand.vmem [shape: f32[2,18,24,128], index: 2, kind: output, shape index: {}]
  %s3 = sld [smem:[#allocation0]]
  $region41: #{double_conv_forward.5} parent=0
    _
  %s5 = ssub.s32 1, %s3
  %s6 = scalar_select 0, %s5, %s3
  loop: start=0, step=1, limit=4
  $region2: #{double_conv_forward.5} parent=0 // loop_pre_header
    _
  $region3: #{double_conv_forward.5} parent=0 // loop_header
    %s8 = sphi 0, %s12
    %p9 = scmp.ge.s32.totalorder %s8, 4
    %s15 = sphi 0, %s27
    %s16 = sphi 0, %s23
    %s17 = sphi 0, %s15
    %s18 = sphi 0, %s16
    %s19 = sphi 0, %s17
    %s20 = sphi 0, %s18
    %s28 = sphi 0, %s28
    %s30 = sphi 0, %s28
    %s31 = sphi 0, %s30
    %s45 = sphi 0, %s31
    %s53 = sphi 0, %s55
    %s56 = sphi 0, %s53
    %s57 = sphi 0, %s56
    %s73 = sphi 0, %s57
    %s81 = sphi 0, %s83
    %s84 = sphi 0, %s81
    %s85 = sphi 0, %s84
    %s101 = sphi 0, %s85
  $region4: #{double_conv_forward.5} parent=0 // loop_header_branch
    %11 = sbr.rel (%p9) target = $region8
  $region5: #{double_conv_forward.5} parent=0 // loop_body
    %s13 = ssub.s32 %s8, 1
    %s14 = ssub.s32 %s8, 2
    %s21 = sadd.s32 1, %s16
    %p22 = scmp.ge.s32.totalorder %s21, 1
    %s23 = scalar_select %p22, 0, %s21
    %s24 = sadd.s32 1, %s15
    %s25 = scalar_select %p22, %s24, %s15
    %p26 = scmp.ge.s32.totalorder %s25, 2
    %s27 = scalar_select %p26, 0, %s25
    %s29 = sadd.s32 %s28, 1
    %p32 = scmp.eq.s32.totalorder %s8, 1
    %p33 = scmp.ne.s32.totalorder %s28, %s30
    %p34 = scmp.eq.s32.totalorder %s8, 0
    %p35 = por %p33, %p34
    %p36 = scmp.ne.s32.totalorder %s28, %s30
    %p37 = scmp.eq.s32.totalorder %s13, 1
    %p38 = por %p36, %p37
    %p39 = scmp.ne.s32.totalorder %s30, %s31
    %p40 = scmp.eq.s32.totalorder %s13, 0
    %p41 = por %p39, %p40
    %p42 = scmp.ne.s32.totalorder %s30, %s31
    %p43 = scmp.eq.s32.totalorder %s14, 1
    %p44 = por %p42, %p43
    %p46 = scmp.ne.s32.totalorder %s31, %s45
    %p47 = scmp.eq.s32.totalorder %s14, 0
    %p48 = por %p46, %p47
    %s49 = ssub.s32 %s15, %s27
    %s50 = ssub.s32 %s16, %s23
    %s51 = sor.u32 %s49, %s50
    %p52 = scmp.eq.s32.totalorder %s51, 0
    %s54 = sadd.s32 %s53, 1
    %s55 = scalar_select %p52, %s53, %s54
    %p58 = pneg %p52
    %p59 = scmp.eq.s32.totalorder %s8, 1
    %p60 = por %p58, %p59
    %p61 = scmp.ne.s32.totalorder %s53, %s56
    %p62 = scmp.eq.s32.totalorder %s8, 0
    %p63 = por %p61, %p62
    %p64 = scmp.ne.s32.totalorder %s53, %s56
    %p65 = scmp.eq.s32.totalorder %s13, 1
    %p66 = por %p64, %p65
    %p67 = scmp.ne.s32.totalorder %s56, %s57
    %p68 = scmp.eq.s32.totalorder %s13, 0
    %p69 = por %p67, %p68
    %p70 = scmp.ne.s32.totalorder %s56, %s57
    %p71 = scmp.eq.s32.totalorder %s14, 1
    %p72 = por %p70, %p71
    %p74 = scmp.ne.s32.totalorder %s57, %s73
    %p75 = scmp.eq.s32.totalorder %s14, 0
    %p76 = por %p74, %p75
    %s77 = ssub.s32 %s15, %s27
    %s78 = ssub.s32 %s16, %s23
    %s79 = sor.u32 %s77, %s78
    %p80 = scmp.eq.s32.totalorder %s79, 0
    %s82 = sadd.s32 %s81, 1
    %s83 = scalar_select %p80, %s81, %s82
    %p86 = pneg %p80
    %p87 = scmp.eq.s32.totalorder %s8, 1
    %p88 = por %p86, %p87
    %p89 = scmp.ne.s32.totalorder %s81, %s84
    %p90 = scmp.eq.s32.totalorder %s8, 0
    %p91 = por %p89, %p90
    %p92 = scmp.ne.s32.totalorder %s81, %s84
    %p93 = scmp.eq.s32.totalorder %s13, 1
    %p94 = por %p92, %p93
    %p95 = scmp.ne.s32.totalorder %s84, %s85
    %p96 = scmp.eq.s32.totalorder %s13, 0
    %p97 = por %p95, %p96
    %p98 = scmp.ne.s32.totalorder %s84, %s85
    %p99 = scmp.eq.s32.totalorder %s14, 1
    %p100 = por %p98, %p99
    %p102 = scmp.ne.s32.totalorder %s85, %s101
    %p103 = scmp.eq.s32.totalorder %s14, 0
    %p104 = por %p102, %p103
    %p105 = scmp.le.s32.totalorder 1, %s8
    %p106 = scmp.lt.s32.totalorder %s8, 3
    %p107 = pnand %p105, %p106
    %p108 = pneg %p107
    // Predicated region
    $region9: #{double_conv_forward.5} parent=5 // pred_check
      _
    $region10: #{double_conv_forward.5} parent=5 // pred_check_branch
      %110 = sbr.rel (%p107) target = $region12
    $region11: #{double_conv_forward.5} parent=5 // pred_region
      %s111 = ssub.s32 %s8, 1
      // Predicated region
      $region13: #{double_conv_forward.5} parent=11 // pred_check
        %p112 = pneg %p41
      $region14: #{double_conv_forward.5} parent=11 // pred_check_branch
        %114 = sbr.rel (%p112) target = $region16
      $region15: #{double_conv_forward.5} parent=11 // pred_region
        _
      $region16: #{double_conv_forward.5} parent=11 // pred_fallthru
        _
    $region12: #{double_conv_forward.5} parent=5 // pred_fallthru
      _
    %p115 = scmp.lt.s32.totalorder %s8, 2
    // Predicated region
    $region17: #{double_conv_forward.5} parent=5 // pred_check
      %p116 = pneg %p115
    $region18: #{double_conv_forward.5} parent=5 // pred_check_branch
      %118 = sbr.rel (%p116) target = $region20
    $region19: #{double_conv_forward.5} parent=5 // pred_region
      // Predicated region
      $region21: #{double_conv_forward.5} parent=19 // pred_check
        %p119 = pneg %p63
      $region22: #{double_conv_forward.5} parent=19 // pred_check_branch
        %121 = sbr.rel (%p119) target = $region24
      $region23: #{double_conv_forward.5} parent=19 // pred_region
        %s122 = smul.u32 18, %s16
        %p123 = scmp.lt.s32.totalorder %s15, 1
        %s124 = scalar_select %p123, %s15, 1
        %p125 = scmp.lt.s32.totalorder %s122, 17
        %s126 = scalar_select %p125, %s122, 17
        %s127 = smul.addr %s126, 3
        %s128 = smul.addr %s124, 54
        %s129 = sadd.s32 %s127, %s128
        %s130 = smul.addr %s129, 4
        %s131 = scalar_lea.vmem %s1, %s130
        %s132 = smul.u32 18, %s16
      $region24: #{double_conv_forward.5} parent=19 // pred_fallthru
        _
    $region20: #{double_conv_forward.5} parent=5 // pred_fallthru
      _
    %p133 = scmp.le.s32.totalorder 1, %s8
    %p134 = scmp.lt.s32.totalorder %s8, 3
    %p135 = pnand %p133, %p134
    %p136 = pneg %p135
    // Predicated region
    $region25: #{double_conv_forward.5} parent=5 // pred_check
      _
    $region26: #{double_conv_forward.5} parent=5 // pred_check_branch
      %138 = sbr.rel (%p135) target = $region28
    $region27: #{double_conv_forward.5} parent=5 // pred_region
      %s139 = ssub.s32 %s8, 1
      %p140 = pneg %p41
      %p141 = pneg %p38
      %s142 = smul.u32 18, %s18
      %p143 = scmp.lt.s32.totalorder %s17, 1
      %s144 = scalar_select %p143, %s17, 1
      %p145 = scmp.lt.s32.totalorder %s142, 17
      %s146 = scalar_select %p145, %s142, 17
      %s147 = smul.addr %s146, 3
      %s148 = smul.addr %s144, 54
      %s149 = sadd.s32 %s147, %s148
      %s150 = smul.addr %s149, 4
      %s151 = scalar_lea.vmem %s1, %s150
      %p152 = pneg %p69
      %p153 = pneg %p66
      %p154 = pneg %p97
      %p155 = pneg %p94
      %s156 = smul.u32 18, %s18
      %p157 = scmp.lt.s32.totalorder %s17, 1
      %s158 = scalar_select %p157, %s17, 1
      %p159 = scmp.lt.s32.totalorder %s156, 17
      %s160 = scalar_select %p159, %s156, 17
      %s161 = smul.addr %s160, 3
      %s162 = smul.addr %s158, 54
      %s163 = sadd.s32 %s161, %s162
      %s164 = smul.addr %s163, 8
      %s165 = scalar_lea.vmem %s2, %s164
      %s166 = smul.u32 18, %s18
      %p167 = scmp.lt.s32.totalorder %s17, 1
      %s168 = scalar_select %p167, %s17, 1
      %p169 = scmp.lt.s32.totalorder %s166, 17
      %s170 = scalar_select %p169, %s166, 17
      %s171 = smul.addr %s170, 3
      %s172 = smul.addr %s168, 54
      %s173 = sadd.s32 %s171, %s172
      %s174 = smul.addr %s173, 4
      %s175 = scalar_lea.vmem %s1, %s174
      %s176 = smul.u32 18, %s18
      %s177 = smul.u32 18, %s18
      %p178 = scmp.lt.s32.totalorder %s17, 1
      %s179 = scalar_select %p178, %s17, 1
      %p180 = scmp.lt.s32.totalorder %s177, 17
      %s181 = scalar_select %p180, %s177, 17
      %s182 = smul.addr %s181, 3
      %s183 = smul.addr %s179, 54
      %s184 = sadd.s32 %s182, %s183
      %s185 = smul.addr %s184, 8
      %s186 = scalar_lea.vmem %s2, %s185
      %s187 = smul.u32 18, %s18
      %v188 = vld [vmem:[%s0] sm:$0x1]
      %v189 = vld [vmem:[%s0 + $0x1] sm:$0x1]
      %v190 = vld [vmem:[%s175] sm:$0xf]
      %v191 = vld [vmem:[%s175 + $0x4] sm:$0xf]
      %v192 = vld [vmem:[%s175 + $0x8] sm:$0xf]
      %v193 = vld [vmem:[%s175 + $0xc] sm:$0xf]
      %v194 = vld [vmem:[%s175 + $0x10] sm:$0xf]
      %v195 = vld [vmem:[%s175 + $0x14] sm:$0xf]
      %v196 = vld [vmem:[%s175 + $0x18] sm:$0xf]
      %v197 = vld [vmem:[%s175 + $0x1c] sm:$0xf]
      %v198 = vld [vmem:[%s175 + $0x20] sm:$0xf]
      %v199 = vld [vmem:[%s175 + $0x24] sm:$0xf]
      %v200 = vld [vmem:[%s175 + $0x28] sm:$0xf]
      %v201 = vld [vmem:[%s175 + $0x2c] sm:$0xf]
      %v202 = vld [vmem:[%s175 + $0x30] sm:$0xf]
      %v203 = vld [vmem:[%s175 + $0x34] sm:$0xf]
      %v204 = vld [vmem:[%s175 + $0x38] sm:$0xf]
      %v205 = vld [vmem:[%s175 + $0x3c] sm:$0xf]
      %v206 = vld [vmem:[%s175 + $0x40] sm:$0xf]
      %v207 = vld [vmem:[%s175 + $0x44] sm:$0xf]
      %v208 = vld [vmem:[%s175 + $0x48] sm:$0xf]
      %v209 = vld [vmem:[%s175 + $0x4c] sm:$0xf]
      %v210 = vld [vmem:[%s175 + $0x50] sm:$0xf]
      %v211 = vld [vmem:[%s175 + $0x54] sm:$0xf]
      %v212 = vld [vmem:[%s175 + $0x58] sm:$0xf]
      %v213 = vld [vmem:[%s175 + $0x5c] sm:$0xf]
      %v214 = vld [vmem:[%s175 + $0x60] sm:$0xf]
      %v215 = vld [vmem:[%s175 + $0x64] sm:$0xf]
      %v216 = vld [vmem:[%s175 + $0x68] sm:$0xf]
      %v217 = vld [vmem:[%s175 + $0x6c] sm:$0xf]
      %v218 = vld [vmem:[%s175 + $0x70] sm:$0xf]
      %v219 = vld [vmem:[%s175 + $0x74] sm:$0xf]
      %v220 = vld [vmem:[%s175 + $0x78] sm:$0xf]
      %v221 = vld [vmem:[%s175 + $0x7c] sm:$0xf]
      %v222 = vld [vmem:[%s175 + $0x80] sm:$0xf]
      %v223 = vld [vmem:[%s175 + $0x84] sm:$0xf]
      %v224 = vld [vmem:[%s175 + $0x88] sm:$0xf]
      %v225 = vld [vmem:[%s175 + $0x8c] sm:$0xf]
      %v226 = vld [vmem:[%s175 + $0x90] sm:$0xf]
      %v227 = vld [vmem:[%s175 + $0x94] sm:$0xf]
      %v228 = vld [vmem:[%s175 + $0x98] sm:$0xf]
      %v229 = vld [vmem:[%s175 + $0x9c] sm:$0xf]
      %v230 = vld [vmem:[%s175 + $0xa0] sm:$0xf]
      %v231 = vld [vmem:[%s175 + $0xa4] sm:$0xf]
      %v232 = vld [vmem:[%s175 + $0xa8] sm:$0xf]
      %v233 = vld [vmem:[%s175 + $0xac] sm:$0xf]
      %v234 = vld [vmem:[%s175 + $0xb0] sm:$0xf]
      %v235 = vld [vmem:[%s175 + $0xb4] sm:$0xf]
      %v236 = vld [vmem:[%s175 + $0xb8] sm:$0xf]
      %v237 = vld [vmem:[%s175 + $0xbc] sm:$0xf]
      %v238 = vld [vmem:[%s175 + $0xc0] sm:$0xf]
      %v239 = vld [vmem:[%s175 + $0xc4] sm:$0xf]
      %v240 = vld [vmem:[%s175 + $0xc8] sm:$0xf]
      %v241 = vld [vmem:[%s175 + $0xcc] sm:$0xf]
      %v242 = vld [vmem:[%s175 + $0xd0] sm:$0xf]
      %v243 = vld [vmem:[%s175 + $0xd4] sm:$0xf]
      %v244 = vunpack.c.l.bf16 %v190
      %v245 = vunpack.c.l.bf16 %v191
      %v246 = vunpack.c.l.bf16 %v192
      %v247 = vunpack.c.l.bf16 %v193
      %v248 = vunpack.c.l.bf16 %v194
      %v249 = vunpack.c.l.bf16 %v195
      %v250 = vunpack.c.l.bf16 %v196
      %v251 = vunpack.c.l.bf16 %v197
      %v252 = vunpack.c.l.bf16 %v198
      %v253 = vunpack.c.l.bf16 %v199
      %v254 = vunpack.c.l.bf16 %v200
      %v255 = vunpack.c.l.bf16 %v201
      %v256 = vunpack.c.l.bf16 %v202
      %v257 = vunpack.c.l.bf16 %v203
      %v258 = vunpack.c.l.bf16 %v204
      %v259 = vunpack.c.l.bf16 %v205
      %v260 = vunpack.c.l.bf16 %v206
      %v261 = vunpack.c.l.bf16 %v207
      %v262 = vunpack.c.l.bf16 %v208
      %v263 = vunpack.c.l.bf16 %v209
      %v264 = vunpack.c.l.bf16 %v210
      %v265 = vunpack.c.l.bf16 %v211
      %v266 = vunpack.c.l.bf16 %v212
      %v267 = vunpack.c.l.bf16 %v213
      %v268 = vunpack.c.l.bf16 %v214
      %v269 = vunpack.c.l.bf16 %v215
      %v270 = vunpack.c.l.bf16 %v216
      %v271 = vunpack.c.l.bf16 %v217
      %v272 = vunpack.c.l.bf16 %v218
      %v273 = vunpack.c.l.bf16 %v219
      %v274 = vunpack.c.l.bf16 %v220
      %v275 = vunpack.c.l.bf16 %v221
      %v276 = vunpack.c.l.bf16 %v222
      %v277 = vunpack.c.l.bf16 %v223
      %v278 = vunpack.c.l.bf16 %v224
      %v279 = vunpack.c.l.bf16 %v225
      %v280 = vunpack.c.l.bf16 %v226
      %v281 = vunpack.c.l.bf16 %v227
      %v282 = vunpack.c.l.bf16 %v228
      %v283 = vunpack.c.l.bf16 %v229
      %v284 = vunpack.c.l.bf16 %v230
      %v285 = vunpack.c.l.bf16 %v231
      %v286 = vunpack.c.l.bf16 %v232
      %v287 = vunpack.c.l.bf16 %v233
      %v288 = vunpack.c.l.bf16 %v234
      %v289 = vunpack.c.l.bf16 %v235
      %v290 = vunpack.c.l.bf16 %v236
      %v291 = vunpack.c.l.bf16 %v237
      %v292 = vunpack.c.l.bf16 %v238
      %v293 = vunpack.c.l.bf16 %v239
      %v294 = vunpack.c.l.bf16 %v240
      %v295 = vunpack.c.l.bf16 %v241
      %v296 = vunpack.c.l.bf16 %v242
      %v297 = vunpack.c.l.bf16 %v243
      %v298 = vlaneseq
      %v299 = vshrl.u32 %v298, 7
      %v300 = vsub.s32 0, %v299
      %v301 = vrot.slane %v188, %v300
      %v302 = vmul.f32 %v244, %v301
      %v303 = vmul.f32 %v245, %v301
      %v304 = vmul.f32 %v246, %v301
      %v305 = vmul.f32 %v247, %v301
      %v306 = vmul.f32 %v248, %v301
      %v307 = vmul.f32 %v249, %v301
      %v308 = vmul.f32 %v250, %v301
      %v309 = vmul.f32 %v251, %v301
      %v310 = vmul.f32 %v252, %v301
      %v311 = vmul.f32 %v253, %v301
      %v312 = vmul.f32 %v254, %v301
      %v313 = vmul.f32 %v255, %v301
      %v314 = vmul.f32 %v256, %v301
      %v315 = vmul.f32 %v257, %v301
      %v316 = vmul.f32 %v258, %v301
      %v317 = vmul.f32 %v259, %v301
      %v318 = vmul.f32 %v260, %v301
      %v319 = vmul.f32 %v261, %v301
      %v320 = vmul.f32 %v262, %v301
      %v321 = vmul.f32 %v263, %v301
      %v322 = vmul.f32 %v264, %v301
      %v323 = vmul.f32 %v265, %v301
      %v324 = vmul.f32 %v266, %v301
      %v325 = vmul.f32 %v267, %v301
      %v326 = vmul.f32 %v268, %v301
      %v327 = vmul.f32 %v269, %v301
      %v328 = vmul.f32 %v270, %v301
      %v329 = vmul.f32 %v271, %v301
      %v330 = vmul.f32 %v272, %v301
      %v331 = vmul.f32 %v273, %v301
      %v332 = vmul.f32 %v274, %v301
      %v333 = vmul.f32 %v275, %v301
      %v334 = vmul.f32 %v276, %v301
      %v335 = vmul.f32 %v277, %v301
      %v336 = vmul.f32 %v278, %v301
      %v337 = vmul.f32 %v279, %v301
      %v338 = vmul.f32 %v280, %v301
      %v339 = vmul.f32 %v281, %v301
      %v340 = vmul.f32 %v282, %v301
      %v341 = vmul.f32 %v283, %v301
      %v342 = vmul.f32 %v284, %v301
      %v343 = vmul.f32 %v285, %v301
      %v344 = vmul.f32 %v286, %v301
      %v345 = vmul.f32 %v287, %v301
      %v346 = vmul.f32 %v288, %v301
      %v347 = vmul.f32 %v289, %v301
      %v348 = vmul.f32 %v290, %v301
      %v349 = vmul.f32 %v291, %v301
      %v350 = vmul.f32 %v292, %v301
      %v351 = vmul.f32 %v293, %v301
      %v352 = vmul.f32 %v294, %v301
      %v353 = vmul.f32 %v295, %v301
      %v354 = vmul.f32 %v296, %v301
      %v355 = vmul.f32 %v297, %v301
      %v356 = vlaneseq
      %v357 = vshrl.u32 %v356, 7
      %v358 = vsub.s32 0, %v357
      %v359 = vrot.slane %v189, %v358
      %v360 = vadd.f32 %v302, %v359
      %v361 = vadd.f32 %v303, %v359
      %v362 = vadd.f32 %v304, %v359
      %v363 = vadd.f32 %v305, %v359
      %v364 = vadd.f32 %v306, %v359
      %v365 = vadd.f32 %v307, %v359
      %v366 = vadd.f32 %v308, %v359
      %v367 = vadd.f32 %v309, %v359
      %v368 = vadd.f32 %v310, %v359
      %v369 = vadd.f32 %v311, %v359
      %v370 = vadd.f32 %v312, %v359
      %v371 = vadd.f32 %v313, %v359
      %v372 = vadd.f32 %v314, %v359
      %v373 = vadd.f32 %v315, %v359
      %v374 = vadd.f32 %v316, %v359
      %v375 = vadd.f32 %v317, %v359
      %v376 = vadd.f32 %v318, %v359
      %v377 = vadd.f32 %v319, %v359
      %v378 = vadd.f32 %v320, %v359
      %v379 = vadd.f32 %v321, %v359
      %v380 = vadd.f32 %v322, %v359
      %v381 = vadd.f32 %v323, %v359
      %v382 = vadd.f32 %v324, %v359
      %v383 = vadd.f32 %v325, %v359
      %v384 = vadd.f32 %v326, %v359
      %v385 = vadd.f32 %v327, %v359
      %v386 = vadd.f32 %v328, %v359
      %v387 = vadd.f32 %v329, %v359
      %v388 = vadd.f32 %v330, %v359
      %v389 = vadd.f32 %v331, %v359
      %v390 = vadd.f32 %v332, %v359
      %v391 = vadd.f32 %v333, %v359
      %v392 = vadd.f32 %v334, %v359
      %v393 = vadd.f32 %v335, %v359
      %v394 = vadd.f32 %v336, %v359
      %v395 = vadd.f32 %v337, %v359
      %v396 = vadd.f32 %v338, %v359
      %v397 = vadd.f32 %v339, %v359
      %v398 = vadd.f32 %v340, %v359
      %v399 = vadd.f32 %v341, %v359
      %v400 = vadd.f32 %v342, %v359
      %v401 = vadd.f32 %v343, %v359
      %v402 = vadd.f32 %v344, %v359
      %v403 = vadd.f32 %v345, %v359
      %v404 = vadd.f32 %v346, %v359
      %v405 = vadd.f32 %v347, %v359
      %v406 = vadd.f32 %v348, %v359
      %v407 = vadd.f32 %v349, %v359
      %v408 = vadd.f32 %v350, %v359
      %v409 = vadd.f32 %v351, %v359
      %v410 = vadd.f32 %v352, %v359
      %v411 = vadd.f32 %v353, %v359
      %v412 = vadd.f32 %v354, %v359
      %v413 = vadd.f32 %v355, %v359
      %v414 = vmax.f32 %v360, 0.0
      %v415 = vmax.f32 %v361, 0.0
      %v416 = vmax.f32 %v362, 0.0
      %v417 = vmax.f32 %v363, 0.0
      %v418 = vmax.f32 %v364, 0.0
      %v419 = vmax.f32 %v365, 0.0
      %v420 = vmax.f32 %v366, 0.0
      %v421 = vmax.f32 %v367, 0.0
      %v422 = vmax.f32 %v368, 0.0
      %v423 = vmax.f32 %v369, 0.0
      %v424 = vmax.f32 %v370, 0.0
      %v425 = vmax.f32 %v371, 0.0
      %v426 = vmax.f32 %v372, 0.0
      %v427 = vmax.f32 %v373, 0.0
      %v428 = vmax.f32 %v374, 0.0
      %v429 = vmax.f32 %v375, 0.0
      %v430 = vmax.f32 %v376, 0.0
      %v431 = vmax.f32 %v377, 0.0
      %v432 = vmax.f32 %v378, 0.0
      %v433 = vmax.f32 %v379, 0.0
      %v434 = vmax.f32 %v380, 0.0
      %v435 = vmax.f32 %v381, 0.0
      %v436 = vmax.f32 %v382, 0.0
      %v437 = vmax.f32 %v383, 0.0
      %v438 = vmax.f32 %v384, 0.0
      %v439 = vmax.f32 %v385, 0.0
      %v440 = vmax.f32 %v386, 0.0
      %v441 = vmax.f32 %v387, 0.0
      %v442 = vmax.f32 %v388, 0.0
      %v443 = vmax.f32 %v389, 0.0
      %v444 = vmax.f32 %v390, 0.0
      %v445 = vmax.f32 %v391, 0.0
      %v446 = vmax.f32 %v392, 0.0
      %v447 = vmax.f32 %v393, 0.0
      %v448 = vmax.f32 %v394, 0.0
      %v449 = vmax.f32 %v395, 0.0
      %v450 = vmax.f32 %v396, 0.0
      %v451 = vmax.f32 %v397, 0.0
      %v452 = vmax.f32 %v398, 0.0
      %v453 = vmax.f32 %v399, 0.0
      %v454 = vmax.f32 %v400, 0.0
      %v455 = vmax.f32 %v401, 0.0
      %v456 = vmax.f32 %v402, 0.0
      %v457 = vmax.f32 %v403, 0.0
      %v458 = vmax.f32 %v404, 0.0
      %v459 = vmax.f32 %v405, 0.0
      %v460 = vmax.f32 %v406, 0.0
      %v461 = vmax.f32 %v407, 0.0
      %v462 = vmax.f32 %v408, 0.0
      %v463 = vmax.f32 %v409, 0.0
      %v464 = vmax.f32 %v410, 0.0
      %v465 = vmax.f32 %v411, 0.0
      %v466 = vmax.f32 %v412, 0.0
      %v467 = vmax.f32 %v413, 0.0
      %468 = vst [vmem:[%s186] sm:$0xff] %v414
      %469 = vst [vmem:[%s186 + $0x8] sm:$0xff] %v415
      %470 = vst [vmem:[%s186 + $0x10] sm:$0xff] %v416
      %471 = vst [vmem:[%s186 + $0x18] sm:$0xff] %v417
      %472 = vst [vmem:[%s186 + $0x20] sm:$0xff] %v418
      %473 = vst [vmem:[%s186 + $0x28] sm:$0xff] %v419
      %474 = vst [vmem:[%s186 + $0x30] sm:$0xff] %v420
      %475 = vst [vmem:[%s186 + $0x38] sm:$0xff] %v421
      %476 = vst [vmem:[%s186 + $0x40] sm:$0xff] %v422
      %477 = vst [vmem:[%s186 + $0x48] sm:$0xff] %v423
      %478 = vst [vmem:[%s186 + $0x50] sm:$0xff] %v424
      %479 = vst [vmem:[%s186 + $0x58] sm:$0xff] %v425
      %480 = vst [vmem:[%s186 + $0x60] sm:$0xff] %v426
      %481 = vst [vmem:[%s186 + $0x68] sm:$0xff] %v427
      %482 = vst [vmem:[%s186 + $0x70] sm:$0xff] %v428
      %483 = vst [vmem:[%s186 + $0x78] sm:$0xff] %v429
      %484 = vst [vmem:[%s186 + $0x80] sm:$0xff] %v430
      %485 = vst [vmem:[%s186 + $0x88] sm:$0xff] %v431
      %486 = vst [vmem:[%s186 + $0x90] sm:$0xff] %v432
      %487 = vst [vmem:[%s186 + $0x98] sm:$0xff] %v433
      %488 = vst [vmem:[%s186 + $0xa0] sm:$0xff] %v434
      %489 = vst [vmem:[%s186 + $0xa8] sm:$0xff] %v435
      %490 = vst [vmem:[%s186 + $0xb0] sm:$0xff] %v436
      %491 = vst [vmem:[%s186 + $0xb8] sm:$0xff] %v437
      %492 = vst [vmem:[%s186 + $0xc0] sm:$0xff] %v438
      %493 = vst [vmem:[%s186 + $0xc8] sm:$0xff] %v439
      %494 = vst [vmem:[%s186 + $0xd0] sm:$0xff] %v440
      %495 = vst [vmem:[%s186 + $0xd8] sm:$0xff] %v441
      %496 = vst [vmem:[%s186 + $0xe0] sm:$0xff] %v442
      %497 = vst [vmem:[%s186 + $0xe8] sm:$0xff] %v443
      %498 = vst [vmem:[%s186 + $0xf0] sm:$0xff] %v444
      %499 = vst [vmem:[%s186 + $0xf8] sm:$0xff] %v445
      %500 = vst [vmem:[%s186 + $0x100] sm:$0xff] %v446
      %501 = vst [vmem:[%s186 + $0x108] sm:$0xff] %v447
      %502 = vst [vmem:[%s186 + $0x110] sm:$0xff] %v448
      %503 = vst [vmem:[%s186 + $0x118] sm:$0xff] %v449
      %504 = vst [vmem:[%s186 + $0x120] sm:$0xff] %v450
      %505 = vst [vmem:[%s186 + $0x128] sm:$0xff] %v451
      %506 = vst [vmem:[%s186 + $0x130] sm:$0xff] %v452
      %507 = vst [vmem:[%s186 + $0x138] sm:$0xff] %v453
      %508 = vst [vmem:[%s186 + $0x140] sm:$0xff] %v454
      %509 = vst [vmem:[%s186 + $0x148] sm:$0xff] %v455
      %510 = vst [vmem:[%s186 + $0x150] sm:$0xff] %v456
      %511 = vst [vmem:[%s186 + $0x158] sm:$0xff] %v457
      %512 = vst [vmem:[%s186 + $0x160] sm:$0xff] %v458
      %513 = vst [vmem:[%s186 + $0x168] sm:$0xff] %v459
      %514 = vst [vmem:[%s186 + $0x170] sm:$0xff] %v460
      %515 = vst [vmem:[%s186 + $0x178] sm:$0xff] %v461
      %516 = vst [vmem:[%s186 + $0x180] sm:$0xff] %v462
      %517 = vst [vmem:[%s186 + $0x188] sm:$0xff] %v463
      %518 = vst [vmem:[%s186 + $0x190] sm:$0xff] %v464
      %519 = vst [vmem:[%s186 + $0x198] sm:$0xff] %v465
      %520 = vst [vmem:[%s186 + $0x1a0] sm:$0xff] %v466
      %521 = vst [vmem:[%s186 + $0x1a8] sm:$0xff] %v467
      %s522 = smul.u32 18, %s18
      %p523 = scmp.lt.s32.totalorder %s17, 1
      %s524 = scalar_select %p523, %s17, 1
      %p525 = scmp.lt.s32.totalorder %s522, 17
      %s526 = scalar_select %p525, %s522, 17
      %s527 = smul.addr %s526, 3
      %s528 = smul.addr %s524, 54
      %s529 = sadd.s32 %s527, %s528
      %s530 = smul.addr %s529, 8
      %s531 = scalar_lea.vmem %s2, %s530
      // Predicated region
      $region29: #{double_conv_forward.5} parent=27 // pred_check
        %p532 = pneg %p94
      $region30: #{double_conv_forward.5} parent=27 // pred_check_branch
        %534 = sbr.rel (%p532) target = $region32
      $region31: #{double_conv_forward.5} parent=27 // pred_region
        %s535 = smul.u32 18, %s18
      $region32: #{double_conv_forward.5} parent=27 // pred_fallthru
        _
    $region28: #{double_conv_forward.5} parent=5 // pred_fallthru
      _
    %p536 = scmp.le.s32.totalorder 2, %s8
    // Predicated region
    $region33: #{double_conv_forward.5} parent=5 // pred_check
      %p537 = pneg %p536
    $region34: #{double_conv_forward.5} parent=5 // pred_check_branch
      %539 = sbr.rel (%p537) target = $region36
    $region35: #{double_conv_forward.5} parent=5 // pred_region
      %s540 = ssub.s32 %s8, 2
      // Predicated region
      $region37: #{double_conv_forward.5} parent=35 // pred_check
        %p541 = pneg %p100
      $region38: #{double_conv_forward.5} parent=35 // pred_check_branch
        %543 = sbr.rel (%p541) target = $region40
      $region39: #{double_conv_forward.5} parent=35 // pred_region
        %s544 = smul.u32 18, %s20
        %p545 = scmp.lt.s32.totalorder %s19, 1
        %s546 = scalar_select %p545, %s19, 1
        %p547 = scmp.lt.s32.totalorder %s544, 17
        %s548 = scalar_select %p547, %s544, 17
        %s549 = smul.addr %s548, 3
        %s550 = smul.addr %s546, 54
        %s551 = sadd.s32 %s549, %s550
        %s552 = smul.addr %s551, 8
        %s553 = scalar_lea.vmem %s2, %s552
      $region40: #{double_conv_forward.5} parent=35 // pred_fallthru
        _
    $region36: #{double_conv_forward.5} parent=5 // pred_fallthru
      _
  $region6: #{double_conv_forward.5} parent=0 // loop_footer
    %s12 = sadd.s32 1, %s8
  $region7: #{double_conv_forward.5} parent=0 // loop_footer_branch
    %7 = sbr.rel target = $region3
  $region8: #{double_conv_forward.5} parent=0 // loop_exit
    _

// kernel: double_conv_forward.3
$region0: #{double_conv_forward.3}
  #allocation0 [shape = 'u32[]', space=smem, size = 0x4, offset = 0x4, fixed_abs, tag = 'smem constant byte address 0x4 - core index']
  #allocation1 [shape = 'u32[144,128]{1,0:T(1,128)}', space=vmem, size = 0x12000, scoped, tag = 'internal scratch']
  %s0 = inlined_call_operand.vmem [shape: bf16[2,22,24,36], index: 0, kind: input, shape index: {}]
  %s1 = inlined_call_operand.vmem [shape: bf16[36,128], index: 1, kind: input, shape index: {}]
  %s2 = inlined_call_operand.vmem [shape: bf16[2,22,24,128], index: 2, kind: output, shape index: {0}]
  %s3 = inlined_call_operand.vmem [shape: f32[2,1,8,128], index: 3, kind: output, shape index: {1}]
  %4 = xla_tuple %s2, %s3
  %s5 = sld [smem:[#allocation0]]
  $region49: #{double_conv_forward.3} parent=0
    _
  %s7 = ssub.s32 1, %s5
  %s8 = scalar_select 0, %s7, %s5
  loop: start=0, step=1, limit=4
  $region2: #{double_conv_forward.3} parent=0 // loop_pre_header
    _
  $region3: #{double_conv_forward.3} parent=0 // loop_header
    %s10 = sphi 0, %s14
    %p11 = scmp.ge.s32.totalorder %s10, 4
    %s17 = sphi 0, %s29
    %s18 = sphi 0, %s25
    %s19 = sphi 0, %s17
    %s20 = sphi 0, %s18
    %s21 = sphi 0, %s19
    %s22 = sphi 0, %s20
    %s34 = sphi 0, %s36
    %s37 = sphi 0, %s34
    %s38 = sphi 0, %s37
    %s54 = sphi 0, %s38
    %s58 = sphi 0, %s58
    %s60 = sphi 0, %s58
    %s61 = sphi 0, %s60
    %s75 = sphi 0, %s61
    %s83 = sphi 0, %s85
    %s86 = sphi 0, %s83
    %s87 = sphi 0, %s86
    %s103 = sphi 0, %s87
    %s111 = sphi 0, %s113
    %s114 = sphi 0, %s111
    %s115 = sphi 0, %s114
    %s131 = sphi 0, %s115
  $region4: #{double_conv_forward.3} parent=0 // loop_header_branch
    %13 = sbr.rel (%p11) target = $region8
  $region5: #{double_conv_forward.3} parent=0 // loop_body
    %s15 = ssub.s32 %s10, 1
    %s16 = ssub.s32 %s10, 2
    %s23 = sadd.s32 1, %s18
    %p24 = scmp.ge.s32.totalorder %s23, 1
    %s25 = scalar_select %p24, 0, %s23
    %s26 = sadd.s32 1, %s17
    %s27 = scalar_select %p24, %s26, %s17
    %p28 = scmp.ge.s32.totalorder %s27, 2
    %s29 = scalar_select %p28, 0, %s27
    %s30 = ssub.s32 %s17, %s29
    %s31 = ssub.s32 %s18, %s25
    %s32 = sor.u32 %s30, %s31
    %p33 = scmp.eq.s32.totalorder %s32, 0
    %s35 = sadd.s32 %s34, 1
    %s36 = scalar_select %p33, %s34, %s35
    %p39 = pneg %p33
    %p40 = scmp.eq.s32.totalorder %s10, 1
    %p41 = por %p39, %p40
    %p42 = scmp.ne.s32.totalorder %s34, %s37
    %p43 = scmp.eq.s32.totalorder %s10, 0
    %p44 = por %p42, %p43
    %p45 = scmp.ne.s32.totalorder %s34, %s37
    %p46 = scmp.eq.s32.totalorder %s15, 1
    %p47 = por %p45, %p46
    %p48 = scmp.ne.s32.totalorder %s37, %s38
    %p49 = scmp.eq.s32.totalorder %s15, 0
    %p50 = por %p48, %p49
    %p51 = scmp.ne.s32.totalorder %s37, %s38
    %p52 = scmp.eq.s32.totalorder %s16, 1
    %p53 = por %p51, %p52
    %p55 = scmp.ne.s32.totalorder %s38, %s54
    %p56 = scmp.eq.s32.totalorder %s16, 0
    %p57 = por %p55, %p56
    %s59 = sadd.s32 %s58, 1
    %p62 = scmp.eq.s32.totalorder %s10, 1
    %p63 = scmp.ne.s32.totalorder %s58, %s60
    %p64 = scmp.eq.s32.totalorder %s10, 0
    %p65 = por %p63, %p64
    %p66 = scmp.ne.s32.totalorder %s58, %s60
    %p67 = scmp.eq.s32.totalorder %s15, 1
    %p68 = por %p66, %p67
    %p69 = scmp.ne.s32.totalorder %s60, %s61
    %p70 = scmp.eq.s32.totalorder %s15, 0
    %p71 = por %p69, %p70
    %p72 = scmp.ne.s32.totalorder %s60, %s61
    %p73 = scmp.eq.s32.totalorder %s16, 1
    %p74 = por %p72, %p73
    %p76 = scmp.ne.s32.totalorder %s61, %s75
    %p77 = scmp.eq.s32.totalorder %s16, 0
    %p78 = por %p76, %p77
    %s79 = ssub.s32 %s17, %s29
    %s80 = ssub.s32 %s18, %s25
    %s81 = sor.u32 %s79, %s80
    %p82 = scmp.eq.s32.totalorder %s81, 0
    %s84 = sadd.s32 %s83, 1
    %s85 = scalar_select %p82, %s83, %s84
    %p88 = pneg %p82
    %p89 = scmp.eq.s32.totalorder %s10, 1
    %p90 = por %p88, %p89
    %p91 = scmp.ne.s32.totalorder %s83, %s86
    %p92 = scmp.eq.s32.totalorder %s10, 0
    %p93 = por %p91, %p92
    %p94 = scmp.ne.s32.totalorder %s83, %s86
    %p95 = scmp.eq.s32.totalorder %s15, 1
    %p96 = por %p94, %p95
    %p97 = scmp.ne.s32.totalorder %s86, %s87
    %p98 = scmp.eq.s32.totalorder %s15, 0
    %p99 = por %p97, %p98
    %p100 = scmp.ne.s32.totalorder %s86, %s87
    %p101 = scmp.eq.s32.totalorder %s16, 1
    %p102 = por %p100, %p101
    %p104 = scmp.ne.s32.totalorder %s87, %s103
    %p105 = scmp.eq.s32.totalorder %s16, 0
    %p106 = por %p104, %p105
    %s107 = ssub.s32 %s17, %s29
    %s108 = ssub.s32 %s18, %s25
    %s109 = sor.u32 %s107, %s108
    %p110 = scmp.eq.s32.totalorder %s109, 0
    %s112 = sadd.s32 %s111, 1
    %s113 = scalar_select %p110, %s111, %s112
    %p116 = pneg %p110
    %p117 = scmp.eq.s32.totalorder %s10, 1
    %p118 = por %p116, %p117
    %p119 = scmp.ne.s32.totalorder %s111, %s114
    %p120 = scmp.eq.s32.totalorder %s10, 0
    %p121 = por %p119, %p120
    %p122 = scmp.ne.s32.totalorder %s111, %s114
    %p123 = scmp.eq.s32.totalorder %s15, 1
    %p124 = por %p122, %p123
    %p125 = scmp.ne.s32.totalorder %s114, %s115
    %p126 = scmp.eq.s32.totalorder %s15, 0
    %p127 = por %p125, %p126
    %p128 = scmp.ne.s32.totalorder %s114, %s115
    %p129 = scmp.eq.s32.totalorder %s16, 1
    %p130 = por %p128, %p129
    %p132 = scmp.ne.s32.totalorder %s115, %s131
    %p133 = scmp.eq.s32.totalorder %s16, 0
    %p134 = por %p132, %p133
    %p135 = scmp.le.s32.totalorder 1, %s10
    %p136 = scmp.lt.s32.totalorder %s10, 3
    %p137 = pnand %p135, %p136
    %p138 = pneg %p137
    // Predicated region
    $region9: #{double_conv_forward.3} parent=5 // pred_check
      _
    $region10: #{double_conv_forward.3} parent=5 // pred_check_branch
      %140 = sbr.rel (%p137) target = $region12
    $region11: #{double_conv_forward.3} parent=5 // pred_region
      %s141 = ssub.s32 %s10, 1
      // Predicated region
      $region13: #{double_conv_forward.3} parent=11 // pred_check
        %p142 = pneg %p71
      $region14: #{double_conv_forward.3} parent=11 // pred_check_branch
        %144 = sbr.rel (%p142) target = $region16
      $region15: #{double_conv_forward.3} parent=11 // pred_region
        _
      $region16: #{double_conv_forward.3} parent=11 // pred_fallthru
        _
    $region12: #{double_conv_forward.3} parent=5 // pred_fallthru
      _
    %p145 = scmp.lt.s32.totalorder %s10, 2
    // Predicated region
    $region17: #{double_conv_forward.3} parent=5 // pred_check
      %p146 = pneg %p145
    $region18: #{double_conv_forward.3} parent=5 // pred_check_branch
      %148 = sbr.rel (%p146) target = $region20
    $region19: #{double_conv_forward.3} parent=5 // pred_region
      // Predicated region
      $region21: #{double_conv_forward.3} parent=19 // pred_check
        %p149 = pneg %p44
      $region22: #{double_conv_forward.3} parent=19 // pred_check_branch
        %151 = sbr.rel (%p149) target = $region24
      $region23: #{double_conv_forward.3} parent=19 // pred_region
        %s152 = smul.u32 22, %s18
        %p153 = scmp.lt.s32.totalorder %s17, 1
        %s154 = scalar_select %p153, %s17, 1
        %p155 = scmp.lt.s32.totalorder %s152, 21
        %s156 = scalar_select %p155, %s152, 21
        %s157 = smul.addr %s156, 3
        %s158 = smul.addr %s154, 66
        %s159 = sadd.s32 %s157, %s158
        %s160 = smul.addr %s159, 4
        %s161 = scalar_lea.vmem %s0, %s160
        %s162 = smul.u32 22, %s18
      $region24: #{double_conv_forward.3} parent=19 // pred_fallthru
        _
    $region20: #{double_conv_forward.3} parent=5 // pred_fallthru
      _
    %p163 = scmp.le.s32.totalorder 1, %s10
    %p164 = scmp.lt.s32.totalorder %s10, 3
    %p165 = pnand %p163, %p164
    %p166 = pneg %p165
    // Predicated region
    $region25: #{double_conv_forward.3} parent=5 // pred_check
      _
    $region26: #{double_conv_forward.3} parent=5 // pred_check_branch
      %168 = sbr.rel (%p165) target = $region28
    $region27: #{double_conv_forward.3} parent=5 // pred_region
      %s169 = ssub.s32 %s10, 1
      %s170 = smul.u32 22, %s20
      %p171 = scmp.lt.s32.totalorder %s19, 1
      %s172 = scalar_select %p171, %s19, 1
      %p173 = scmp.lt.s32.totalorder %s170, 21
      %s174 = scalar_select %p173, %s170, 21
      %s175 = smul.addr %s174, 3
      %s176 = smul.addr %s172, 66
      %s177 = sadd.s32 %s175, %s176
      %s178 = smul.addr %s177, 4
      %s179 = scalar_lea.vmem %s0, %s178
      %p180 = pneg %p50
      %p181 = pneg %p47
      %p182 = pneg %p71
      %p183 = pneg %p68
      %p184 = pneg %p99
      %p185 = pneg %p96
      %s186 = smul.u32 22, %s20
      %p187 = scmp.lt.s32.totalorder %s19, 1
      %s188 = scalar_select %p187, %s19, 1
      %p189 = scmp.lt.s32.totalorder %s186, 21
      %s190 = scalar_select %p189, %s186, 21
      %s191 = smul.addr %s190, 3
      %s192 = smul.addr %s188, 66
      %s193 = sadd.s32 %s191, %s192
      %s194 = smul.addr %s193, 4
      %s195 = scalar_lea.vmem %s2, %s194
      %p196 = pneg %p127
      %p197 = pneg %p124
      %p198 = scmp.lt.s32.totalorder %s19, 1
      %s199 = scalar_select %p198, %s19, 1
      %p200 = scmp.lt.s32.totalorder %s20, 0
      %s201 = scalar_select %p200, %s20, 0
      %s202 = sadd.s32 %s201, %s199
      %s203 = smul.addr %s202, 8
      %s204 = scalar_lea.vmem %s3, %s203
      %s205 = smul.u32 22, %s20
      %p206 = scmp.lt.s32.totalorder %s19, 1
      %s207 = scalar_select %p206, %s19, 1
      %p208 = scmp.lt.s32.totalorder %s205, 21
      %s209 = scalar_select %p208, %s205, 21
      %s210 = smul.addr %s209, 3
      %s211 = smul.addr %s207, 66
      %s212 = sadd.s32 %s210, %s211
      %s213 = smul.addr %s212, 4
      %s214 = scalar_lea.vmem %s0, %s213
      %s215 = smul.u32 22, %s20
      %s216 = smul.u32 22, %s20
      %p217 = scmp.lt.s32.totalorder %s19, 1
      %s218 = scalar_select %p217, %s19, 1
      %p219 = scmp.lt.s32.totalorder %s216, 21
      %s220 = scalar_select %p219, %s216, 21
      %s221 = smul.addr %s220, 3
      %s222 = smul.addr %s218, 66
      %s223 = sadd.s32 %s221, %s222
      %s224 = smul.addr %s223, 4
      %s225 = scalar_lea.vmem %s2, %s224
      %s226 = smul.u32 22, %s20
      %p227 = scmp.lt.s32.totalorder %s19, 1
      %s228 = scalar_select %p227, %s19, 1
      %p229 = scmp.lt.s32.totalorder %s20, 0
      %s230 = scalar_select %p229, %s20, 0
      %s231 = sadd.s32 %s230, %s228
      %s232 = smul.addr %s231, 8
      %s233 = scalar_lea.vmem %s3, %s232
      %v235 = vld [vmem:[%s214] sm:$0xf]
      %v236 = vld [vmem:[%s214 + $0x4] sm:$0xf]
      %v237 = vld [vmem:[%s214 + $0x8] sm:$0xf]
      %v238 = vld [vmem:[%s214 + $0xc] sm:$0xf]
      %v239 = vld [vmem:[%s214 + $0x10] sm:$0xf]
      %v240 = vld [vmem:[%s214 + $0x14] sm:$0xf]
      %v241 = vld [vmem:[%s214 + $0x18] sm:$0xf]
      %v242 = vld [vmem:[%s214 + $0x1c] sm:$0xf]
      %v243 = vld [vmem:[%s214 + $0x20] sm:$0xf]
      %v244 = vld [vmem:[%s214 + $0x24] sm:$0xf]
      %v245 = vld [vmem:[%s214 + $0x28] sm:$0xf]
      %v246 = vld [vmem:[%s214 + $0x2c] sm:$0xf]
      %v247 = vld [vmem:[%s214 + $0x30] sm:$0xf]
      %v248 = vld [vmem:[%s214 + $0x34] sm:$0xf]
      %v249 = vld [vmem:[%s214 + $0x38] sm:$0xf]
      %v250 = vld [vmem:[%s214 + $0x3c] sm:$0xf]
      %v251 = vld [vmem:[%s214 + $0x40] sm:$0xf]
      %v252 = vld [vmem:[%s214 + $0x44] sm:$0xf]
      %v253 = vld [vmem:[%s214 + $0x48] sm:$0xf]
      %v254 = vld [vmem:[%s214 + $0x4c] sm:$0xf]
      %v255 = vld [vmem:[%s214 + $0x50] sm:$0xf]
      %v256 = vld [vmem:[%s214 + $0x54] sm:$0xf]
      %v257 = vld [vmem:[%s214 + $0x58] sm:$0xf]
      %v258 = vld [vmem:[%s214 + $0x5c] sm:$0xf]
      %v259 = vld [vmem:[%s214 + $0x60] sm:$0xf]
      %v260 = vld [vmem:[%s214 + $0x64] sm:$0xf]
      %v261 = vld [vmem:[%s214 + $0x68] sm:$0xf]
      %v262 = vld [vmem:[%s214 + $0x6c] sm:$0xf]
      %v263 = vld [vmem:[%s214 + $0x70] sm:$0xf]
      %v264 = vld [vmem:[%s214 + $0x74] sm:$0xf]
      %v265 = vld [vmem:[%s214 + $0x78] sm:$0xf]
      %v266 = vld [vmem:[%s214 + $0x7c] sm:$0xf]
      %v267 = vld [vmem:[%s214 + $0x80] sm:$0xf]
      %v268 = vld [vmem:[%s214 + $0x84] sm:$0xf]
      %v269 = vld [vmem:[%s214 + $0x88] sm:$0xf]
      %v270 = vld [vmem:[%s214 + $0x8c] sm:$0xf]
      %v271 = vld [vmem:[%s214 + $0x90] sm:$0xf]
      %v272 = vld [vmem:[%s214 + $0x94] sm:$0xf]
      %v273 = vld [vmem:[%s214 + $0x98] sm:$0xf]
      %v274 = vld [vmem:[%s214 + $0x9c] sm:$0xf]
      %v275 = vld [vmem:[%s214 + $0xa0] sm:$0xf]
      %v276 = vld [vmem:[%s214 + $0xa4] sm:$0xf]
      %v277 = vld [vmem:[%s214 + $0xa8] sm:$0xf]
      %v278 = vld [vmem:[%s214 + $0xac] sm:$0xf]
      %v279 = vld [vmem:[%s214 + $0xb0] sm:$0xf]
      %v280 = vld [vmem:[%s214 + $0xb4] sm:$0xf]
      %v281 = vld [vmem:[%s214 + $0xb8] sm:$0xf]
      %v282 = vld [vmem:[%s214 + $0xbc] sm:$0xf]
      %v283 = vld [vmem:[%s214 + $0xc0] sm:$0xf]
      %v284 = vld [vmem:[%s214 + $0xc4] sm:$0xf]
      %v285 = vld [vmem:[%s214 + $0xc8] sm:$0xf]
      %v286 = vld [vmem:[%s214 + $0xcc] sm:$0xf]
      %v287 = vld [vmem:[%s214 + $0xd0] sm:$0xf]
      %v288 = vld [vmem:[%s214 + $0xd4] sm:$0xf]
      %v289 = vld [vmem:[%s214 + $0xd8] sm:$0xf]
      %v290 = vld [vmem:[%s214 + $0xdc] sm:$0xf]
      %v291 = vld [vmem:[%s214 + $0xe0] sm:$0xf]
      %v292 = vld [vmem:[%s214 + $0xe4] sm:$0xf]
      %v293 = vld [vmem:[%s214 + $0xe8] sm:$0xf]
      %v294 = vld [vmem:[%s214 + $0xec] sm:$0xf]
      %v295 = vld [vmem:[%s214 + $0xf0] sm:$0xf]
      %v296 = vld [vmem:[%s214 + $0xf4] sm:$0xf]
      %v297 = vld [vmem:[%s214 + $0xf8] sm:$0xf]
      %v298 = vld [vmem:[%s214 + $0xfc] sm:$0xf]
      %v299 = vld [vmem:[%s214 + $0x100] sm:$0xf]
      %v300 = vld [vmem:[%s214 + $0x104] sm:$0xf]
      %v301 = vld [vmem:[%s1] sm:$0xf]
      %v302 = vld [vmem:[%s1 + $0x4] sm:$0xf]
      %v303 = vld [vmem:[%s1 + $0x8] sm:$0xf]
      %v304 = vld [vmem:[%s1 + $0xc] sm:$0xf]
      %v305 = vld [vmem:[%s1 + $0x10] sm:$0x3]
      %v372 = vunpack.c.l.b16 %v235
      %v373 = vunpack.c.l.b16 %v236
      %v374 = vunpack.c.l.b16 %v237
      %v375 = vunpack.c.l.b16 %v238
      %v376 = vunpack.c.l.b16 %v239
      %v377 = vunpack.c.l.b16 %v240
      %v378 = vunpack.c.l.b16 %v241
      %v379 = vunpack.c.l.b16 %v242
      %v380 = vunpack.c.l.b16 %v243
      %v381 = vunpack.c.l.b16 %v244
      %v382 = vunpack.c.l.b16 %v245
      %v383 = vunpack.c.l.b16 %v246
      %v384 = vunpack.c.l.b16 %v247
      %v385 = vunpack.c.l.b16 %v248
      %v386 = vunpack.c.l.b16 %v249
      %v387 = vunpack.c.l.b16 %v250
      %v388 = vunpack.c.l.b16 %v251
      %v389 = vunpack.c.l.b16 %v252
      %v390 = vunpack.c.l.b16 %v253
      %v391 = vunpack.c.l.b16 %v254
      %v392 = vunpack.c.l.b16 %v255
      %v393 = vunpack.c.l.b16 %v256
      %v394 = vunpack.c.l.b16 %v257
      %v395 = vunpack.c.l.b16 %v258
      %v396 = vunpack.c.l.b16 %v259
      %v397 = vunpack.c.l.b16 %v260
      %v398 = vunpack.c.l.b16 %v261
      %v399 = vunpack.c.l.b16 %v262
      %v400 = vunpack.c.l.b16 %v263
      %v401 = vunpack.c.l.b16 %v264
      %v402 = vunpack.c.l.b16 %v265
      %v403 = vunpack.c.l.b16 %v266
      %v404 = vunpack.c.l.b16 %v267
      %v405 = vunpack.c.l.b16 %v268
      %v406 = vunpack.c.l.b16 %v269
      %v407 = vunpack.c.l.b16 %v270
      %v408 = vunpack.c.l.b16 %v271
      %v409 = vunpack.c.l.b16 %v272
      %v410 = vunpack.c.l.b16 %v273
      %v411 = vunpack.c.l.b16 %v274
      %v412 = vunpack.c.l.b16 %v275
      %v413 = vunpack.c.l.b16 %v276
      %v414 = vunpack.c.l.b16 %v277
      %v415 = vunpack.c.l.b16 %v278
      %v416 = vunpack.c.l.b16 %v279
      %v417 = vunpack.c.l.b16 %v280
      %v418 = vunpack.c.l.b16 %v281
      %v419 = vunpack.c.l.b16 %v282
      %v420 = vunpack.c.l.b16 %v283
      %v421 = vunpack.c.l.b16 %v284
      %v422 = vunpack.c.l.b16 %v285
      %v423 = vunpack.c.l.b16 %v286
      %v424 = vunpack.c.l.b16 %v287
      %v425 = vunpack.c.l.b16 %v288
      %v426 = vunpack.c.l.b16 %v289
      %v427 = vunpack.c.l.b16 %v290
      %v428 = vunpack.c.l.b16 %v291
      %v429 = vunpack.c.l.b16 %v292
      %v430 = vunpack.c.l.b16 %v293
      %v431 = vunpack.c.l.b16 %v294
      %v432 = vunpack.c.l.b16 %v295
      %v433 = vunpack.c.l.b16 %v296
      %v434 = vunpack.c.l.b16 %v297
      %v435 = vunpack.c.l.b16 %v298
      %v436 = vunpack.c.l.b16 %v299
      %v437 = vunpack.c.l.b16 %v300
      %v438 = vpack.c.b16 %v373, %v372
      %v439 = vpack.c.b16 %v375, %v374
      %v440 = vpack.c.b16 %v377, %v376
      %v441 = vpack.c.b16 %v379, %v378
      %v442 = vpack.c.b16 %v381, %v380
      %v443 = vpack.c.b16 %v383, %v382
      %v444 = vpack.c.b16 %v385, %v384
      %v445 = vpack.c.b16 %v387, %v386
      %v446 = vpack.c.b16 %v389, %v388
      %v447 = vpack.c.b16 %v391, %v390
      %v448 = vpack.c.b16 %v393, %v392
      %v449 = vpack.c.b16 %v395, %v394
      %v450 = vpack.c.b16 %v397, %v396
      %v451 = vpack.c.b16 %v399, %v398
      %v452 = vpack.c.b16 %v401, %v400
      %v453 = vpack.c.b16 %v403, %v402
      %v454 = vpack.c.b16 %v405, %v404
      %v455 = vpack.c.b16 %v407, %v406
      %v456 = vpack.c.b16 %v409, %v408
      %v457 = vpack.c.b16 %v411, %v410
      %v458 = vpack.c.b16 %v413, %v412
      %v459 = vpack.c.b16 %v415, %v414
      %v460 = vpack.c.b16 %v417, %v416
      %v461 = vpack.c.b16 %v419, %v418
      %v462 = vpack.c.b16 %v421, %v420
      %v463 = vpack.c.b16 %v423, %v422
      %v464 = vpack.c.b16 %v425, %v424
      %v465 = vpack.c.b16 %v427, %v426
      %v466 = vpack.c.b16 %v429, %v428
      %v467 = vpack.c.b16 %v431, %v430
      %v468 = vpack.c.b16 %v433, %v432
      %v469 = vpack.c.b16 %v435, %v434
      %v470 = vpack.c.b16 %v437, %v436
      %v476 = vunpack.c.l.b16 %v301
      %v477 = vunpack.c.l.b16 %v302
      %v478 = vunpack.c.l.b16 %v303
      %v479 = vunpack.c.l.b16 %v304
      %v480 = vunpack.c.l.b16 %v305
      %v481 = vpack.c.b16 %v477, %v476
      %v482 = vpack.c.b16 %v479, %v478
      %v483 = vpack.c.b16 %v480, %v480
      %vm486 = vcmask 293888
      %v488 = vsel %vm486, %v438, 0
      %v491 = vsel %vm486, %v439, 0
      %v494 = vsel %vm486, %v440, 0
      %v497 = vsel %vm486, %v441, 0
      %v500 = vsel %vm486, %v442, 0
      %v503 = vsel %vm486, %v443, 0
      %v506 = vsel %vm486, %v444, 0
      %v509 = vsel %vm486, %v445, 0
      %v512 = vsel %vm486, %v446, 0
      %v515 = vsel %vm486, %v447, 0
      %v518 = vsel %vm486, %v448, 0
      %v521 = vsel %vm486, %v449, 0
      %v524 = vsel %vm486, %v450, 0
      %v527 = vsel %vm486, %v451, 0
      %v530 = vsel %vm486, %v452, 0
      %v533 = vsel %vm486, %v453, 0
      %v536 = vsel %vm486, %v454, 0
      %v539 = vsel %vm486, %v455, 0
      %v542 = vsel %vm486, %v456, 0
      %v545 = vsel %vm486, %v457, 0
      %v548 = vsel %vm486, %v458, 0
      %v551 = vsel %vm486, %v459, 0
      %v554 = vsel %vm486, %v460, 0
      %v557 = vsel %vm486, %v461, 0
      %v560 = vsel %vm486, %v462, 0
      %v563 = vsel %vm486, %v463, 0
      %v566 = vsel %vm486, %v464, 0
      %v569 = vsel %vm486, %v465, 0
      %v572 = vsel %vm486, %v466, 0
      %v575 = vsel %vm486, %v467, 0
      %v578 = vsel %vm486, %v468, 0
      %v581 = vsel %vm486, %v469, 0
      %v584 = vsel %vm486, %v470, 0
      %vm586 = vcmask 1041408
      %v588 = vsel %vm586, %v483, 0
      %590 = vmatprep.subr.bf16.mxu0 0
      %591 = vmatpush1.bf16.msra.mxu0 %v481
      %592 = vmatprep.subr.bf16.mxu0 0
      %593 = vmatpush1.bf16.msra.mxu0 %v482
      %594 = vmatprep.subr.bf16.mxu0 0
      %595 = vmatpush1.bf16.msra.mxu0 %v588
      %596 = vmatprep.subr.bf16.mxu0 0
      %597 = vmatpush1.bf16.msra.mxu0 0
      %598 = vmatprep.subr.bf16.mxu0 0
      %599 = vmatpush1.bf16.msra.mxu0 0
      %600 = vmatprep.subr.bf16.mxu0 0
      %601 = vmatpush1.bf16.msra.mxu0 0
      %602 = vmatprep.subr.bf16.mxu0 0
      %603 = vmatpush1.bf16.msra.mxu0 0
      %604 = vmatprep.subr.bf16.mxu0 0
      %605 = vmatpush1.bf16.msra.mxu0 0
      %606 = vmatprep.subr.bf16.mxu0 0
      %607 = vmatpush1.bf16.msra.mxu0 0
      %608 = vmatprep.subr.bf16.mxu0 0
      %609 = vmatpush1.bf16.msra.mxu0 0
      %610 = vmatprep.subr.bf16.mxu0 0
      %611 = vmatpush1.bf16.msra.mxu0 0
      %612 = vmatprep.subr.bf16.mxu0 0
      %613 = vmatpush1.bf16.msra.mxu0 0
      %614 = vmatprep.subr.bf16.mxu0 0
      %615 = vmatpush1.bf16.msra.mxu0 0
      %616 = vmatprep.subr.bf16.mxu0 0
      %617 = vmatpush1.bf16.msra.mxu0 0
      %618 = vmatprep.subr.bf16.mxu0 0
      %619 = vmatpush1.bf16.msra.mxu0 0
      %620 = vmatprep.subr.bf16.mxu0 0
      %621 = vmatpush1.bf16.msra.mxu0 0
      %622 = vmatprep.mubr.bf16.mxu0 0
      %623 = vmatmul.mubr.bf16.gmra.mrb[0].mxu0 %v488
      %v624 = vpop.f32.mrb[0].mxu0
      %v625 = vadd.f32 0.0, %v624
      %v626 = vpop.f32.mrb[0].mxu0
      %v627 = vpop.f32.mrb[0].mxu0
      %v628 = vadd.f32 0.0, %v627
      %v629 = vpop.f32.mrb[0].mxu0
      %630 = vmatprep.mubr.bf16.mxu0 0
      %631 = vmatmul.mubr.bf16.gmra.mrb[0].mxu0 %v491
      %v632 = vpop.f32.mrb[0].mxu0
      %v633 = vadd.f32 0.0, %v632
      %v634 = vpop.f32.mrb[0].mxu0
      %v635 = vpop.f32.mrb[0].mxu0
      %v636 = vadd.f32 0.0, %v635
      %v637 = vpop.f32.mrb[0].mxu0
      %638 = vmatprep.mubr.bf16.mxu0 0
      %639 = vmatmul.mubr.bf16.gmra.mrb[0].mxu0 %v494
      %v640 = vpop.f32.mrb[0].mxu0
      %v641 = vadd.f32 0.0, %v640
      %v642 = vpop.f32.mrb[0].mxu0
      %v643 = vpop.f32.mrb[0].mxu0
      %v644 = vadd.f32 0.0, %v643
      %v645 = vpop.f32.mrb[0].mxu0
      %646 = vmatprep.mubr.bf16.mxu0 0
      %647 = vmatmul.mubr.bf16.gmra.mrb[0].mxu0 %v497
      %v648 = vpop.f32.mrb[0].mxu0
      %v649 = vadd.f32 0.0, %v648
      %v650 = vpop.f32.mrb[0].mxu0
      %v651 = vpop.f32.mrb[0].mxu0
      %v652 = vadd.f32 0.0, %v651
      %v653 = vpop.f32.mrb[0].mxu0
      %654 = vmatprep.mubr.bf16.mxu0 0
      %655 = vmatmul.mubr.bf16.gmra.mrb[0].mxu0 %v500
      %v656 = vpop.f32.mrb[0].mxu0
      %v657 = vadd.f32 0.0, %v656
      %v658 = vpop.f32.mrb[0].mxu0
      %v659 = vpop.f32.mrb[0].mxu0
      %v660 = vadd.f32 0.0, %v659
      %v661 = vpop.f32.mrb[0].mxu0
      %662 = vmatprep.mubr.bf16.mxu0 0
      %663 = vmatmul.mubr.bf16.gmra.mrb[0].mxu0 %v503
      %v664 = vpop.f32.mrb[0].mxu0
      %v665 = vadd.f32 0.0, %v664
      %v666 = vpop.f32.mrb[0].mxu0
      %v667 = vpop.f32.mrb[0].mxu0
      %v668 = vadd.f32 0.0, %v667
      %v669 = vpop.f32.mrb[0].mxu0
      %670 = vmatprep.mubr.bf16.mxu0 0
      %671 = vmatmul.mubr.bf16.gmra.mrb[0].mxu0 %v506
      %v672 = vpop.f32.mrb[0].mxu0
      %v673 = vadd.f32 0.0, %v672
      %v674 = vpop.f32.mrb[0].mxu0
      %v675 = vpop.f32.mrb[0].mxu0
      %v676 = vadd.f32 0.0, %v675
      %v677 = vpop.f32.mrb[0].mxu0
      %678 = vmatprep.mubr.bf16.mxu0 0
      %679 = vmatmul.mubr.bf16.gmra.mrb[0].mxu0 %v509
      %v680 = vpop.f32.mrb[0].mxu0
      %v681 = vadd.f32 0.0, %v680
      %v682 = vpop.f32.mrb[0].mxu0
      %v683 = vpop.f32.mrb[0].mxu0
      %v684 = vadd.f32 0.0, %v683
      %v685 = vpop.f32.mrb[0].mxu0
      %686 = vmatprep.mubr.bf16.mxu0 0
      %687 = vmatmul.mubr.bf16.gmra.mrb[0].mxu0 %v512
      %v688 = vpop.f32.mrb[0].mxu0
      %v689 = vadd.f32 0.0, %v688
      %v690 = vpop.f32.mrb[0].mxu0
      %v691 = vpop.f32.mrb[0].mxu0
      %v692 = vadd.f32 0.0, %v691
      %v693 = vpop.f32.mrb[0].mxu0
      %694 = vmatprep.mubr.bf16.mxu0 0
      %695 = vmatmul.mubr.bf16.gmra.mrb[0].mxu0 %v515
      %v696 = vpop.f32.mrb[0].mxu0
      %v697 = vadd.f32 0.0, %v696
      %v698 = vpop.f32.mrb[0].mxu0
      %v699 = vpop.f32.mrb[0].mxu0
      %v700 = vadd.f32 0.0, %v699
      %v701 = vpop.f32.mrb[0].mxu0
      %702 = vmatprep.mubr.bf16.mxu0 0
      %703 = vmatmul.mubr.bf16.gmra.mrb[0].mxu0 %v518
      %v704 = vpop.f32.mrb[0].mxu0
      %v705 = vadd.f32 0.0, %v704
      %v706 = vpop.f32.mrb[0].mxu0
      %v707 = vpop.f32.mrb[0].mxu0
      %v708 = vadd.f32 0.0, %v707
      %v709 = vpop.f32.mrb[0].mxu0
      %710 = vmatprep.mubr.bf16.mxu0 0
      %711 = vmatmul.mubr.bf16.gmra.mrb[0].mxu0 %v521
      %v712 = vpop.f32.mrb[0].mxu0
      %v713 = vadd.f32 0.0, %v712
      %v714 = vpop.f32.mrb[0].mxu0
      %v715 = vpop.f32.mrb[0].mxu0
      %v716 = vadd.f32 0.0, %v715
      %v717 = vpop.f32.mrb[0].mxu0
      %718 = vmatprep.mubr.bf16.mxu0 0
      %719 = vmatmul.mubr.bf16.gmra.mrb[0].mxu0 %v524
      %v720 = vpop.f32.mrb[0].mxu0
      %v721 = vadd.f32 0.0, %v720
      %v722 = vpop.f32.mrb[0].mxu0
      %v723 = vpop.f32.mrb[0].mxu0
      %v724 = vadd.f32 0.0, %v723
      %v725 = vpop.f32.mrb[0].mxu0
      %726 = vmatprep.mubr.bf16.mxu0 0
      %727 = vmatmul.mubr.bf16.gmra.mrb[0].mxu0 %v527
      %v728 = vpop.f32.mrb[0].mxu0
      %v729 = vadd.f32 0.0, %v728
      %v730 = vpop.f32.mrb[0].mxu0
      %v731 = vpop.f32.mrb[0].mxu0
      %v732 = vadd.f32 0.0, %v731
      %v733 = vpop.f32.mrb[0].mxu0
      %734 = vmatprep.mubr.bf16.mxu0 0
      %735 = vmatmul.mubr.bf16.gmra.mrb[0].mxu0 %v530
      %v736 = vpop.f32.mrb[0].mxu0
      %v737 = vadd.f32 0.0, %v736
      %v738 = vpop.f32.mrb[0].mxu0
      %v739 = vpop.f32.mrb[0].mxu0
      %v740 = vadd.f32 0.0, %v739
      %v741 = vpop.f32.mrb[0].mxu0
      %742 = vmatprep.mubr.bf16.mxu0 0
      %743 = vmatmul.mubr.bf16.gmra.mrb[0].mxu0 %v533
      %v744 = vpop.f32.mrb[0].mxu0
      %v745 = vadd.f32 0.0, %v744
      %v746 = vpop.f32.mrb[0].mxu0
      %v747 = vpop.f32.mrb[0].mxu0
      %v748 = vadd.f32 0.0, %v747
      %v749 = vpop.f32.mrb[0].mxu0
      %750 = vmatprep.mubr.bf16.mxu0 0
      %751 = vmatmul.mubr.bf16.gmra.mrb[0].mxu0 %v536
      %v752 = vpop.f32.mrb[0].mxu0
      %v753 = vadd.f32 0.0, %v752
      %v754 = vpop.f32.mrb[0].mxu0
      %v755 = vpop.f32.mrb[0].mxu0
      %v756 = vadd.f32 0.0, %v755
      %v757 = vpop.f32.mrb[0].mxu0
      %758 = vmatprep.mubr.bf16.mxu0 0
      %759 = vmatmul.mubr.bf16.gmra.mrb[0].mxu0 %v539
      %v760 = vpop.f32.mrb[0].mxu0
      %v761 = vadd.f32 0.0, %v760
      %v762 = vpop.f32.mrb[0].mxu0
      %v763 = vpop.f32.mrb[0].mxu0
      %v764 = vadd.f32 0.0, %v763
      %v765 = vpop.f32.mrb[0].mxu0
      %766 = vmatprep.mubr.bf16.mxu0 0
      %767 = vmatmul.mubr.bf16.gmra.mrb[0].mxu0 %v542
      %v768 = vpop.f32.mrb[0].mxu0
      %v769 = vadd.f32 0.0, %v768
      %v770 = vpop.f32.mrb[0].mxu0
      %v771 = vpop.f32.mrb[0].mxu0
      %v772 = vadd.f32 0.0, %v771
      %v773 = vpop.f32.mrb[0].mxu0
      %774 = vmatprep.mubr.bf16.mxu0 0
      %775 = vmatmul.mubr.bf16.gmra.mrb[0].mxu0 %v545
      %v776 = vpop.f32.mrb[0].mxu0
      %v777 = vadd.f32 0.0, %v776
      %v778 = vpop.f32.mrb[0].mxu0
      %v779 = vpop.f32.mrb[0].mxu0
      %v780 = vadd.f32 0.0, %v779
      %v781 = vpop.f32.mrb[0].mxu0
      %782 = vmatprep.mubr.bf16.mxu0 0
      %783 = vmatmul.mubr.bf16.gmra.mrb[0].mxu0 %v548
      %v784 = vpop.f32.mrb[0].mxu0
      %v785 = vadd.f32 0.0, %v784
      %v786 = vpop.f32.mrb[0].mxu0
      %v787 = vpop.f32.mrb[0].mxu0
      %v788 = vadd.f32 0.0, %v787
      %v789 = vpop.f32.mrb[0].mxu0
      %790 = vmatprep.mubr.bf16.mxu0 0
      %791 = vmatmul.mubr.bf16.gmra.mrb[0].mxu0 %v551
      %v792 = vpop.f32.mrb[0].mxu0
      %v793 = vadd.f32 0.0, %v792
      %v794 = vpop.f32.mrb[0].mxu0
      %v795 = vpop.f32.mrb[0].mxu0
      %v796 = vadd.f32 0.0, %v795
      %v797 = vpop.f32.mrb[0].mxu0
      %798 = vmatprep.mubr.bf16.mxu0 0
      %799 = vmatmul.mubr.bf16.gmra.mrb[0].mxu0 %v554
      %v800 = vpop.f32.mrb[0].mxu0
      %v801 = vadd.f32 0.0, %v800
      %v802 = vpop.f32.mrb[0].mxu0
      %v803 = vpop.f32.mrb[0].mxu0
      %v804 = vadd.f32 0.0, %v803
      %v805 = vpop.f32.mrb[0].mxu0
      %806 = vmatprep.mubr.bf16.mxu0 0
      %807 = vmatmul.mubr.bf16.gmra.mrb[0].mxu0 %v557
      %v808 = vpop.f32.mrb[0].mxu0
      %v809 = vadd.f32 0.0, %v808
      %v810 = vpop.f32.mrb[0].mxu0
      %v811 = vpop.f32.mrb[0].mxu0
      %v812 = vadd.f32 0.0, %v811
      %v813 = vpop.f32.mrb[0].mxu0
      %814 = vmatprep.mubr.bf16.mxu0 0
      %815 = vmatmul.mubr.bf16.gmra.mrb[0].mxu0 %v560
      %v816 = vpop.f32.mrb[0].mxu0
      %v817 = vadd.f32 0.0, %v816
      %v818 = vpop.f32.mrb[0].mxu0
      %v819 = vpop.f32.mrb[0].mxu0
      %v820 = vadd.f32 0.0, %v819
      %v821 = vpop.f32.mrb[0].mxu0
      %822 = vmatprep.mubr.bf16.mxu0 0
      %823 = vmatmul.mubr.bf16.gmra.mrb[0].mxu0 %v563
      %v824 = vpop.f32.mrb[0].mxu0
      %v825 = vadd.f32 0.0, %v824
      %v826 = vpop.f32.mrb[0].mxu0
      %v827 = vpop.f32.mrb[0].mxu0
      %v828 = vadd.f32 0.0, %v827
      %v829 = vpop.f32.mrb[0].mxu0
      %830 = vmatprep.mubr.bf16.mxu0 0
      %831 = vmatmul.mubr.bf16.gmra.mrb[0].mxu0 %v566
      %v832 = vpop.f32.mrb[0].mxu0
      %v833 = vadd.f32 0.0, %v832
      %v834 = vpop.f32.mrb[0].mxu0
      %v835 = vpop.f32.mrb[0].mxu0
      %v836 = vadd.f32 0.0, %v835
      %v837 = vpop.f32.mrb[0].mxu0
      %838 = vmatprep.mubr.bf16.mxu0 0
      %839 = vmatmul.mubr.bf16.gmra.mrb[0].mxu0 %v569
      %v840 = vpop.f32.mrb[0].mxu0
      %v841 = vadd.f32 0.0, %v840
      %v842 = vpop.f32.mrb[0].mxu0
      %v843 = vpop.f32.mrb[0].mxu0
      %v844 = vadd.f32 0.0, %v843
      %v845 = vpop.f32.mrb[0].mxu0
      %846 = vmatprep.mubr.bf16.mxu0 0
      %847 = vmatmul.mubr.bf16.gmra.mrb[0].mxu0 %v572
      %v848 = vpop.f32.mrb[0].mxu0
      %v849 = vadd.f32 0.0, %v848
      %v850 = vpop.f32.mrb[0].mxu0
      %v851 = vpop.f32.mrb[0].mxu0
      %v852 = vadd.f32 0.0, %v851
      %v853 = vpop.f32.mrb[0].mxu0
      %854 = vmatprep.mubr.bf16.mxu0 0
      %855 = vmatmul.mubr.bf16.gmra.mrb[0].mxu0 %v575
      %v856 = vpop.f32.mrb[0].mxu0
      %v857 = vadd.f32 0.0, %v856
      %v858 = vpop.f32.mrb[0].mxu0
      %v859 = vpop.f32.mrb[0].mxu0
      %v860 = vadd.f32 0.0, %v859
      %v861 = vpop.f32.mrb[0].mxu0
      %862 = vmatprep.mubr.bf16.mxu0 0
      %863 = vmatmul.mubr.bf16.gmra.mrb[0].mxu0 %v578
      %v864 = vpop.f32.mrb[0].mxu0
      %v865 = vadd.f32 0.0, %v864
      %v866 = vpop.f32.mrb[0].mxu0
      %v867 = vpop.f32.mrb[0].mxu0
      %v868 = vadd.f32 0.0, %v867
      %v869 = vpop.f32.mrb[0].mxu0
      %870 = vmatprep.mubr.bf16.mxu0 0
      %871 = vmatmul.mubr.bf16.gmra.mrb[0].mxu0 %v581
      %v872 = vpop.f32.mrb[0].mxu0
      %v873 = vadd.f32 0.0, %v872
      %v874 = vpop.f32.mrb[0].mxu0
      %v875 = vpop.f32.mrb[0].mxu0
      %v876 = vadd.f32 0.0, %v875
      %v877 = vpop.f32.mrb[0].mxu0
      %878 = vmatprep.mubr.bf16.mxu0 0
      %879 = vmatmul.mubr.bf16.gmra.mrb[0].mxu0 %v584
      %v880 = vpop.f32.mrb[0].mxu0
      %v881 = vadd.f32 0.0, %v880
      %v882 = vpop.f32.mrb[0].mxu0
      %v883 = vpop.f32.mrb[0].mxu0
      %v884 = vadd.f32 0.0, %v883
      %v885 = vpop.f32.mrb[0].mxu0
      %886 = vdwg.mxu0
      %v887 = vpack.c.bf16 %v628, %v625
      %v888 = vpack.c.bf16 %v633, %v633
      %v889 = vpack.c.bf16 %v641, %v636
      %v890 = vpack.c.bf16 %v644, %v644
      %v891 = vpack.c.bf16 %v652, %v649
      %v892 = vpack.c.bf16 %v657, %v657
      %v893 = vpack.c.bf16 %v665, %v660
      %v894 = vpack.c.bf16 %v668, %v668
      %v895 = vpack.c.bf16 %v676, %v673
      %v896 = vpack.c.bf16 %v681, %v681
      %v897 = vpack.c.bf16 %v689, %v684
      %v898 = vpack.c.bf16 %v692, %v692
      %v899 = vpack.c.bf16 %v700, %v697
      %v900 = vpack.c.bf16 %v705, %v705
      %v901 = vpack.c.bf16 %v713, %v708
      %v902 = vpack.c.bf16 %v716, %v716
      %v903 = vpack.c.bf16 %v724, %v721
      %v904 = vpack.c.bf16 %v729, %v729
      %v905 = vpack.c.bf16 %v737, %v732
      %v906 = vpack.c.bf16 %v740, %v740
      %v907 = vpack.c.bf16 %v748, %v745
      %v908 = vpack.c.bf16 %v753, %v753
      %v909 = vpack.c.bf16 %v761, %v756
      %v910 = vpack.c.bf16 %v764, %v764
      %v911 = vpack.c.bf16 %v772, %v769
      %v912 = vpack.c.bf16 %v777, %v777
      %v913 = vpack.c.bf16 %v785, %v780
      %v914 = vpack.c.bf16 %v788, %v788
      %v915 = vpack.c.bf16 %v796, %v793
      %v916 = vpack.c.bf16 %v801, %v801
      %v917 = vpack.c.bf16 %v809, %v804
      %v918 = vpack.c.bf16 %v812, %v812
      %v919 = vpack.c.bf16 %v820, %v817
      %v920 = vpack.c.bf16 %v825, %v825
      %v921 = vpack.c.bf16 %v833, %v828
      %v922 = vpack.c.bf16 %v836, %v836
      %v923 = vpack.c.bf16 %v844, %v841
      %v924 = vpack.c.bf16 %v849, %v849
      %v925 = vpack.c.bf16 %v857, %v852
      %v926 = vpack.c.bf16 %v860, %v860
      %v927 = vpack.c.bf16 %v868, %v865
      %v928 = vpack.c.bf16 %v873, %v873
      %v929 = vpack.c.bf16 %v881, %v876
      %v930 = vpack.c.bf16 %v884, %v884
      %v975 = vunpack.c.l.b16 %v887
      %v976 = vunpack.c.h.b16 %v887
      %v977 = vunpack.c.l.b16 %v888
      %v978 = vunpack.c.l.b16 %v889
      %v979 = vunpack.c.h.b16 %v889
      %v980 = vunpack.c.l.b16 %v890
      %v981 = vunpack.c.l.b16 %v891
      %v982 = vunpack.c.h.b16 %v891
      %v983 = vunpack.c.l.b16 %v892
      %v984 = vunpack.c.l.b16 %v893
      %v985 = vunpack.c.h.b16 %v893
      %v986 = vunpack.c.l.b16 %v894
      %v987 = vunpack.c.l.b16 %v895
      %v988 = vunpack.c.h.b16 %v895
      %v989 = vunpack.c.l.b16 %v896
      %v990 = vunpack.c.l.b16 %v897
      %v991 = vunpack.c.h.b16 %v897
      %v992 = vunpack.c.l.b16 %v898
      %v993 = vunpack.c.l.b16 %v899
      %v994 = vunpack.c.h.b16 %v899
      %v995 = vunpack.c.l.b16 %v900
      %v996 = vunpack.c.l.b16 %v901
      %v997 = vunpack.c.h.b16 %v901
      %v998 = vunpack.c.l.b16 %v902
      %v999 = vunpack.c.l.b16 %v903
      %v1000 = vunpack.c.h.b16 %v903
      %v1001 = vunpack.c.l.b16 %v904
      %v1002 = vunpack.c.l.b16 %v905
      %v1003 = vunpack.c.h.b16 %v905
      %v1004 = vunpack.c.l.b16 %v906
      %v1005 = vunpack.c.l.b16 %v907
      %v1006 = vunpack.c.h.b16 %v907
      %v1007 = vunpack.c.l.b16 %v908
      %v1008 = vunpack.c.l.b16 %v909
      %v1009 = vunpack.c.h.b16 %v909
      %v1010 = vunpack.c.l.b16 %v910
      %v1011 = vunpack.c.l.b16 %v911
      %v1012 = vunpack.c.h.b16 %v911
      %v1013 = vunpack.c.l.b16 %v912
      %v1014 = vunpack.c.l.b16 %v913
      %v1015 = vunpack.c.h.b16 %v913
      %v1016 = vunpack.c.l.b16 %v914
      %v1017 = vunpack.c.l.b16 %v915
      %v1018 = vunpack.c.h.b16 %v915
      %v1019 = vunpack.c.l.b16 %v916
      %v1020 = vunpack.c.l.b16 %v917
      %v1021 = vunpack.c.h.b16 %v917
      %v1022 = vunpack.c.l.b16 %v918
      %v1023 = vunpack.c.l.b16 %v919
      %v1024 = vunpack.c.h.b16 %v919
      %v1025 = vunpack.c.l.b16 %v920
      %v1026 = vunpack.c.l.b16 %v921
      %v1027 = vunpack.c.h.b16 %v921
      %v1028 = vunpack.c.l.b16 %v922
      %v1029 = vunpack.c.l.b16 %v923
      %v1030 = vunpack.c.h.b16 %v923
      %v1031 = vunpack.c.l.b16 %v924
      %v1032 = vunpack.c.l.b16 %v925
      %v1033 = vunpack.c.h.b16 %v925
      %v1034 = vunpack.c.l.b16 %v926
      %v1035 = vunpack.c.l.b16 %v927
      %v1036 = vunpack.c.h.b16 %v927
      %v1037 = vunpack.c.l.b16 %v928
      %v1038 = vunpack.c.l.b16 %v929
      %v1039 = vunpack.c.h.b16 %v929
      %v1040 = vunpack.c.l.b16 %v930
      %v1041 = vpack.c.b16 %v975, %v975
      %v1042 = vpack.c.b16 %v976, %v976
      %v1043 = vpack.c.b16 %v977, %v977
      %v1044 = vpack.c.b16 %v978, %v978
      %v1045 = vpack.c.b16 %v979, %v979
      %v1046 = vpack.c.b16 %v980, %v980
      %v1047 = vpack.c.b16 %v981, %v981
      %v1048 = vpack.c.b16 %v982, %v982
      %v1049 = vpack.c.b16 %v983, %v983
      %v1050 = vpack.c.b16 %v984, %v984
      %v1051 = vpack.c.b16 %v985, %v985
      %v1052 = vpack.c.b16 %v986, %v986
      %v1053 = vpack.c.b16 %v987, %v987
      %v1054 = vpack.c.b16 %v988, %v988
      %v1055 = vpack.c.b16 %v989, %v989
      %v1056 = vpack.c.b16 %v990, %v990
      %v1057 = vpack.c.b16 %v991, %v991
      %v1058 = vpack.c.b16 %v992, %v992
      %v1059 = vpack.c.b16 %v993, %v993
      %v1060 = vpack.c.b16 %v994, %v994
      %v1061 = vpack.c.b16 %v995, %v995
      %v1062 = vpack.c.b16 %v996, %v996
      %v1063 = vpack.c.b16 %v997, %v997
      %v1064 = vpack.c.b16 %v998, %v998
      %v1065 = vpack.c.b16 %v999, %v999
      %v1066 = vpack.c.b16 %v1000, %v1000
      %v1067 = vpack.c.b16 %v1001, %v1001
      %v1068 = vpack.c.b16 %v1002, %v1002
      %v1069 = vpack.c.b16 %v1003, %v1003
      %v1070 = vpack.c.b16 %v1004, %v1004
      %v1071 = vpack.c.b16 %v1005, %v1005
      %v1072 = vpack.c.b16 %v1006, %v1006
      %v1073 = vpack.c.b16 %v1007, %v1007
      %v1074 = vpack.c.b16 %v1008, %v1008
      %v1075 = vpack.c.b16 %v1009, %v1009
      %v1076 = vpack.c.b16 %v1010, %v1010
      %v1077 = vpack.c.b16 %v1011, %v1011
      %v1078 = vpack.c.b16 %v1012, %v1012
      %v1079 = vpack.c.b16 %v1013, %v1013
      %v1080 = vpack.c.b16 %v1014, %v1014
      %v1081 = vpack.c.b16 %v1015, %v1015
      %v1082 = vpack.c.b16 %v1016, %v1016
      %v1083 = vpack.c.b16 %v1017, %v1017
      %v1084 = vpack.c.b16 %v1018, %v1018
      %v1085 = vpack.c.b16 %v1019, %v1019
      %v1086 = vpack.c.b16 %v1020, %v1020
      %v1087 = vpack.c.b16 %v1021, %v1021
      %v1088 = vpack.c.b16 %v1022, %v1022
      %v1089 = vpack.c.b16 %v1023, %v1023
      %v1090 = vpack.c.b16 %v1024, %v1024
      %v1091 = vpack.c.b16 %v1025, %v1025
      %v1092 = vpack.c.b16 %v1026, %v1026
      %v1093 = vpack.c.b16 %v1027, %v1027
      %v1094 = vpack.c.b16 %v1028, %v1028
      %v1095 = vpack.c.b16 %v1029, %v1029
      %v1096 = vpack.c.b16 %v1030, %v1030
      %v1097 = vpack.c.b16 %v1031, %v1031
      %v1098 = vpack.c.b16 %v1032, %v1032
      %v1099 = vpack.c.b16 %v1033, %v1033
      %v1100 = vpack.c.b16 %v1034, %v1034
      %v1101 = vpack.c.b16 %v1035, %v1035
      %v1102 = vpack.c.b16 %v1036, %v1036
      %v1103 = vpack.c.b16 %v1037, %v1037
      %v1104 = vpack.c.b16 %v1038, %v1038
      %v1105 = vpack.c.b16 %v1039, %v1039
      %v1106 = vpack.c.b16 %v1040, %v1040
      %1173 = vst [vmem:[%s225] sm:$0xf] %v1041
      %1174 = vst [vmem:[%s225 + $0x4] sm:$0xf] %v1042
      %1175 = vst [vmem:[%s225 + $0x8] sm:$0xf] %v1043
      %1176 = vst [vmem:[%s225 + $0xc] sm:$0xf] %v1044
      %1177 = vst [vmem:[%s225 + $0x10] sm:$0xf] %v1045
      %1178 = vst [vmem:[%s225 + $0x14] sm:$0xf] %v1046
      %1179 = vst [vmem:[%s225 + $0x18] sm:$0xf] %v1047
      %1180 = vst [vmem:[%s225 + $0x1c] sm:$0xf] %v1048
      %1181 = vst [vmem:[%s225 + $0x20] sm:$0xf] %v1049
      %1182 = vst [vmem:[%s225 + $0x24] sm:$0xf] %v1050
      %1183 = vst [vmem:[%s225 + $0x28] sm:$0xf] %v1051
      %1184 = vst [vmem:[%s225 + $0x2c] sm:$0xf] %v1052
      %1185 = vst [vmem:[%s225 + $0x30] sm:$0xf] %v1053
      %1186 = vst [vmem:[%s225 + $0x34] sm:$0xf] %v1054
      %1187 = vst [vmem:[%s225 + $0x38] sm:$0xf] %v1055
      %1188 = vst [vmem:[%s225 + $0x3c] sm:$0xf] %v1056
      %1189 = vst [vmem:[%s225 + $0x40] sm:$0xf] %v1057
      %1190 = vst [vmem:[%s225 + $0x44] sm:$0xf] %v1058
      %1191 = vst [vmem:[%s225 + $0x48] sm:$0xf] %v1059
      %1192 = vst [vmem:[%s225 + $0x4c] sm:$0xf] %v1060
      %1193 = vst [vmem:[%s225 + $0x50] sm:$0xf] %v1061
      %1194 = vst [vmem:[%s225 + $0x54] sm:$0xf] %v1062
      %1195 = vst [vmem:[%s225 + $0x58] sm:$0xf] %v1063
      %1196 = vst [vmem:[%s225 + $0x5c] sm:$0xf] %v1064
      %1197 = vst [vmem:[%s225 + $0x60] sm:$0xf] %v1065
      %1198 = vst [vmem:[%s225 + $0x64] sm:$0xf] %v1066
      %1199 = vst [vmem:[%s225 + $0x68] sm:$0xf] %v1067
      %1200 = vst [vmem:[%s225 + $0x6c] sm:$0xf] %v1068
      %1201 = vst [vmem:[%s225 + $0x70] sm:$0xf] %v1069
      %1202 = vst [vmem:[%s225 + $0x74] sm:$0xf] %v1070
      %1203 = vst [vmem:[%s225 + $0x78] sm:$0xf] %v1071
      %1204 = vst [vmem:[%s225 + $0x7c] sm:$0xf] %v1072
      %1205 = vst [vmem:[%s225 + $0x80] sm:$0xf] %v1073
      %1206 = vst [vmem:[%s225 + $0x84] sm:$0xf] %v1074
      %1207 = vst [vmem:[%s225 + $0x88] sm:$0xf] %v1075
      %1208 = vst [vmem:[%s225 + $0x8c] sm:$0xf] %v1076
      %1209 = vst [vmem:[%s225 + $0x90] sm:$0xf] %v1077
      %1210 = vst [vmem:[%s225 + $0x94] sm:$0xf] %v1078
      %1211 = vst [vmem:[%s225 + $0x98] sm:$0xf] %v1079
      %1212 = vst [vmem:[%s225 + $0x9c] sm:$0xf] %v1080
      %1213 = vst [vmem:[%s225 + $0xa0] sm:$0xf] %v1081
      %1214 = vst [vmem:[%s225 + $0xa4] sm:$0xf] %v1082
      %1215 = vst [vmem:[%s225 + $0xa8] sm:$0xf] %v1083
      %1216 = vst [vmem:[%s225 + $0xac] sm:$0xf] %v1084
      %1217 = vst [vmem:[%s225 + $0xb0] sm:$0xf] %v1085
      %1218 = vst [vmem:[%s225 + $0xb4] sm:$0xf] %v1086
      %1219 = vst [vmem:[%s225 + $0xb8] sm:$0xf] %v1087
      %1220 = vst [vmem:[%s225 + $0xbc] sm:$0xf] %v1088
      %1221 = vst [vmem:[%s225 + $0xc0] sm:$0xf] %v1089
      %1222 = vst [vmem:[%s225 + $0xc4] sm:$0xf] %v1090
      %1223 = vst [vmem:[%s225 + $0xc8] sm:$0xf] %v1091
      %1224 = vst [vmem:[%s225 + $0xcc] sm:$0xf] %v1092
      %1225 = vst [vmem:[%s225 + $0xd0] sm:$0xf] %v1093
      %1226 = vst [vmem:[%s225 + $0xd4] sm:$0xf] %v1094
      %1227 = vst [vmem:[%s225 + $0xd8] sm:$0xf] %v1095
      %1228 = vst [vmem:[%s225 + $0xdc] sm:$0xf] %v1096
      %1229 = vst [vmem:[%s225 + $0xe0] sm:$0xf] %v1097
      %1230 = vst [vmem:[%s225 + $0xe4] sm:$0xf] %v1098
      %1231 = vst [vmem:[%s225 + $0xe8] sm:$0xf] %v1099
      %1232 = vst [vmem:[%s225 + $0xec] sm:$0xf] %v1100
      %1233 = vst [vmem:[%s225 + $0xf0] sm:$0xf] %v1101
      %1234 = vst [vmem:[%s225 + $0xf4] sm:$0xf] %v1102
      %1235 = vst [vmem:[%s225 + $0xf8] sm:$0xf] %v1103
      %1236 = vst [vmem:[%s225 + $0xfc] sm:$0xf] %v1104
      %1237 = vst [vmem:[%s225 + $0x100] sm:$0xf] %v1105
      %1238 = vst [vmem:[%s225 + $0x104] sm:$0xf] %v1106
      %v1239 = vadd.f32 %v625, %v628
      %v1240 = vadd.f32 %v1239, %v633
      %v1241 = vadd.f32 %v1240, %v636
      %v1242 = vadd.f32 %v1241, %v641
      %v1243 = vadd.f32 %v1242, %v644
      %v1244 = vadd.f32 %v1243, %v649
      %v1245 = vadd.f32 %v1244, %v652
      %v1246 = vadd.f32 %v1245, %v657
      %v1247 = vadd.f32 %v1246, %v660
      %v1248 = vadd.f32 %v1247, %v665
      %v1249 = vadd.f32 %v1248, %v668
      %v1250 = vadd.f32 %v1249, %v673
      %v1251 = vadd.f32 %v1250, %v676
      %v1252 = vadd.f32 %v1251, %v681
      %v1253 = vadd.f32 %v1252, %v684
      %v1254 = vadd.f32 %v1253, %v689
      %v1255 = vadd.f32 %v1254, %v692
      %v1256 = vadd.f32 %v1255, %v697
      %v1257 = vadd.f32 %v1256, %v700
      %v1258 = vadd.f32 %v1257, %v705
      %v1259 = vadd.f32 %v1258, %v708
      %v1260 = vadd.f32 %v1259, %v713
      %v1261 = vadd.f32 %v1260, %v716
      %v1262 = vadd.f32 %v1261, %v721
      %v1263 = vadd.f32 %v1262, %v724
      %v1264 = vadd.f32 %v1263, %v729
      %v1265 = vadd.f32 %v1264, %v732
      %v1266 = vadd.f32 %v1265, %v737
      %v1267 = vadd.f32 %v1266, %v740
      %v1268 = vadd.f32 %v1267, %v745
      %v1269 = vadd.f32 %v1268, %v748
      %v1270 = vadd.f32 %v1269, %v753
      %v1271 = vadd.f32 %v1270, %v756
      %v1272 = vadd.f32 %v1271, %v761
      %v1273 = vadd.f32 %v1272, %v764
      %v1274 = vadd.f32 %v1273, %v769
      %v1275 = vadd.f32 %v1274, %v772
      %v1276 = vadd.f32 %v1275, %v777
      %v1277 = vadd.f32 %v1276, %v780
      %v1278 = vadd.f32 %v1277, %v785
      %v1279 = vadd.f32 %v1278, %v788
      %v1280 = vadd.f32 %v1279, %v793
      %v1281 = vadd.f32 %v1280, %v796
      %v1282 = vadd.f32 %v1281, %v801
      %v1283 = vadd.f32 %v1282, %v804
      %v1284 = vadd.f32 %v1283, %v809
      %v1285 = vadd.f32 %v1284, %v812
      %v1286 = vadd.f32 %v1285, %v817
      %v1287 = vadd.f32 %v1286, %v820
      %v1288 = vadd.f32 %v1287, %v825
      %v1289 = vadd.f32 %v1288, %v828
      %v1290 = vadd.f32 %v1289, %v833
      %v1291 = vadd.f32 %v1290, %v836
      %v1292 = vadd.f32 %v1291, %v841
      %v1293 = vadd.f32 %v1292, %v844
      %v1294 = vadd.f32 %v1293, %v849
      %v1295 = vadd.f32 %v1294, %v852
      %v1296 = vadd.f32 %v1295, %v857
      %v1297 = vadd.f32 %v1296, %v860
      %v1298 = vadd.f32 %v1297, %v865
      %v1299 = vadd.f32 %v1298, %v868
      %v1300 = vadd.f32 %v1299, %v873
      %v1301 = vadd.f32 %v1300, %v876
      %v1302 = vadd.f32 %v1301, %v881
      %v1303 = vadd.f32 %v1302, %v884
      %v1304 = vrot.slane %v1303, 4
      %v1305 = vadd.f32 %v1303, %v1304
      %v1306 = vrot.slane %v1305, 2
      %v1307 = vadd.f32 %v1305, %v1306
      %v1308 = vrot.slane %v1307, 1
      %v1309 = vadd.f32 %v1307, %v1308
      %v1310 = vmul.f32 %v625, %v625
      %v1311 = vmul.f32 %v628, %v628
      %v1312 = vmul.f32 %v633, %v633
      %v1313 = vmul.f32 %v636, %v636
      %v1314 = vmul.f32 %v641, %v641
      %v1315 = vmul.f32 %v644, %v644
      %v1316 = vmul.f32 %v649, %v649
      %v1317 = vmul.f32 %v652, %v652
      %v1318 = vmul.f32 %v657, %v657
      %v1319 = vmul.f32 %v660, %v660
      %v1320 = vmul.f32 %v665, %v665
      %v1321 = vmul.f32 %v668, %v668
      %v1322 = vmul.f32 %v673, %v673
      %v1323 = vmul.f32 %v676, %v676
      %v1324 = vmul.f32 %v681, %v681
      %v1325 = vmul.f32 %v684, %v684
      %v1326 = vmul.f32 %v689, %v689
      %v1327 = vmul.f32 %v692, %v692
      %v1328 = vmul.f32 %v697, %v697
      %v1329 = vmul.f32 %v700, %v700
      %v1330 = vmul.f32 %v705, %v705
      %v1331 = vmul.f32 %v708, %v708
      %v1332 = vmul.f32 %v713, %v713
      %v1333 = vmul.f32 %v716, %v716
      %v1334 = vmul.f32 %v721, %v721
      %v1335 = vmul.f32 %v724, %v724
      %v1336 = vmul.f32 %v729, %v729
      %v1337 = vmul.f32 %v732, %v732
      %v1338 = vmul.f32 %v737, %v737
      %v1339 = vmul.f32 %v740, %v740
      %v1340 = vmul.f32 %v745, %v745
      %v1341 = vmul.f32 %v748, %v748
      %v1342 = vmul.f32 %v753, %v753
      %v1343 = vmul.f32 %v756, %v756
      %v1344 = vmul.f32 %v761, %v761
      %v1345 = vmul.f32 %v764, %v764
      %v1346 = vmul.f32 %v769, %v769
      %v1347 = vmul.f32 %v772, %v772
      %v1348 = vmul.f32 %v777, %v777
      %v1349 = vmul.f32 %v780, %v780
      %v1350 = vmul.f32 %v785, %v785
      %v1351 = vmul.f32 %v788, %v788
      %v1352 = vmul.f32 %v793, %v793
      %v1353 = vmul.f32 %v796, %v796
      %v1354 = vmul.f32 %v801, %v801
      %v1355 = vmul.f32 %v804, %v804
      %v1356 = vmul.f32 %v809, %v809
      %v1357 = vmul.f32 %v812, %v812
      %v1358 = vmul.f32 %v817, %v817
      %v1359 = vmul.f32 %v820, %v820
      %v1360 = vmul.f32 %v825, %v825
      %v1361 = vmul.f32 %v828, %v828
      %v1362 = vmul.f32 %v833, %v833
      %v1363 = vmul.f32 %v836, %v836
      %v1364 = vmul.f32 %v841, %v841
      %v1365 = vmul.f32 %v844, %v844
      %v1366 = vmul.f32 %v849, %v849
      %v1367 = vmul.f32 %v852, %v852
      %v1368 = vmul.f32 %v857, %v857
      %v1369 = vmul.f32 %v860, %v860
      %v1370 = vmul.f32 %v865, %v865
      %v1371 = vmul.f32 %v868, %v868
      %v1372 = vmul.f32 %v873, %v873
      %v1373 = vmul.f32 %v876, %v876
      %v1374 = vmul.f32 %v881, %v881
      %v1375 = vmul.f32 %v884, %v884
      %v1376 = vadd.f32 %v1310, %v1311
      %v1377 = vadd.f32 %v1376, %v1312
      %v1378 = vadd.f32 %v1377, %v1313
      %v1379 = vadd.f32 %v1378, %v1314
      %v1380 = vadd.f32 %v1379, %v1315
      %v1381 = vadd.f32 %v1380, %v1316
      %v1382 = vadd.f32 %v1381, %v1317
      %v1383 = vadd.f32 %v1382, %v1318
      %v1384 = vadd.f32 %v1383, %v1319
      %v1385 = vadd.f32 %v1384, %v1320
      %v1386 = vadd.f32 %v1385, %v1321
      %v1387 = vadd.f32 %v1386, %v1322
      %v1388 = vadd.f32 %v1387, %v1323
      %v1389 = vadd.f32 %v1388, %v1324
      %v1390 = vadd.f32 %v1389, %v1325
      %v1391 = vadd.f32 %v1390, %v1326
      %v1392 = vadd.f32 %v1391, %v1327
      %v1393 = vadd.f32 %v1392, %v1328
      %v1394 = vadd.f32 %v1393, %v1329
      %v1395 = vadd.f32 %v1394, %v1330
      %v1396 = vadd.f32 %v1395, %v1331
      %v1397 = vadd.f32 %v1396, %v1332
      %v1398 = vadd.f32 %v1397, %v1333
      %v1399 = vadd.f32 %v1398, %v1334
      %v1400 = vadd.f32 %v1399, %v1335
      %v1401 = vadd.f32 %v1400, %v1336
      %v1402 = vadd.f32 %v1401, %v1337
      %v1403 = vadd.f32 %v1402, %v1338
      %v1404 = vadd.f32 %v1403, %v1339
      %v1405 = vadd.f32 %v1404, %v1340
      %v1406 = vadd.f32 %v1405, %v1341
      %v1407 = vadd.f32 %v1406, %v1342
      %v1408 = vadd.f32 %v1407, %v1343
      %v1409 = vadd.f32 %v1408, %v1344
      %v1410 = vadd.f32 %v1409, %v1345
      %v1411 = vadd.f32 %v1410, %v1346
      %v1412 = vadd.f32 %v1411, %v1347
      %v1413 = vadd.f32 %v1412, %v1348
      %v1414 = vadd.f32 %v1413, %v1349
      %v1415 = vadd.f32 %v1414, %v1350
      %v1416 = vadd.f32 %v1415, %v1351
      %v1417 = vadd.f32 %v1416, %v1352
      %v1418 = vadd.f32 %v1417, %v1353
      %v1419 = vadd.f32 %v1418, %v1354
      %v1420 = vadd.f32 %v1419, %v1355
      %v1421 = vadd.f32 %v1420, %v1356
      %v1422 = vadd.f32 %v1421, %v1357
      %v1423 = vadd.f32 %v1422, %v1358
      %v1424 = vadd.f32 %v1423, %v1359
      %v1425 = vadd.f32 %v1424, %v1360
      %v1426 = vadd.f32 %v1425, %v1361
      %v1427 = vadd.f32 %v1426, %v1362
      %v1428 = vadd.f32 %v1427, %v1363
      %v1429 = vadd.f32 %v1428, %v1364
      %v1430 = vadd.f32 %v1429, %v1365
      %v1431 = vadd.f32 %v1430, %v1366
      %v1432 = vadd.f32 %v1431, %v1367
      %v1433 = vadd.f32 %v1432, %v1368
      %v1434 = vadd.f32 %v1433, %v1369
      %v1435 = vadd.f32 %v1434, %v1370
      %v1436 = vadd.f32 %v1435, %v1371
      %v1437 = vadd.f32 %v1436, %v1372
      %v1438 = vadd.f32 %v1437, %v1373
      %v1439 = vadd.f32 %v1438, %v1374
      %v1440 = vadd.f32 %v1439, %v1375
      %v1441 = vrot.slane %v1440, 4
      %v1442 = vadd.f32 %v1440, %v1441
      %v1443 = vrot.slane %v1442, 2
      %v1444 = vadd.f32 %v1442, %v1443
      %v1445 = vrot.slane %v1444, 1
      %v1446 = vadd.f32 %v1444, %v1445
      %vm1447 = vcmask 1040384
      %v1448 = vsel %vm1447, %v1309, %v1446
      %v1449 = vsel %vm586, %v1448, 0.0
      %1450 = vst [vmem:[%s233] sm:$0xff] %v1449
      %s1451 = smul.u32 22, %s20
      %p1452 = scmp.lt.s32.totalorder %s19, 1
      %s1453 = scalar_select %p1452, %s19, 1
      %p1454 = scmp.lt.s32.totalorder %s1451, 21
      %s1455 = scalar_select %p1454, %s1451, 21
      %s1456 = smul.addr %s1455, 3
      %s1457 = smul.addr %s1453, 66
      %s1458 = sadd.s32 %s1456, %s1457
      %s1459 = smul.addr %s1458, 4
      %s1460 = scalar_lea.vmem %s2, %s1459
      %p1461 = scmp.lt.s32.totalorder %s19, 1
      %s1462 = scalar_select %p1461, %s19, 1
      %p1463 = scmp.lt.s32.totalorder %s20, 0
      %s1464 = scalar_select %p1463, %s20, 0
      %s1465 = sadd.s32 %s1464, %s1462
      %s1466 = smul.addr %s1465, 8
      %s1467 = scalar_lea.vmem %s3, %s1466
      // Predicated region
      $region29: #{double_conv_forward.3} parent=27 // pred_check
        %p1468 = pneg %p96
      $region30: #{double_conv_forward.3} parent=27 // pred_check_branch
        %1470 = sbr.rel (%p1468) target = $region32
      $region31: #{double_conv_forward.3} parent=27 // pred_region
        %s1471 = smul.u32 22, %s20
      $region32: #{double_conv_forward.3} parent=27 // pred_fallthru
        _
      // Predicated region
      $region33: #{double_conv_forward.3} parent=27 // pred_check
        %p1472 = pneg %p124
      $region34: #{double_conv_forward.3} parent=27 // pred_check_branch
        %1474 = sbr.rel (%p1472) target = $region36
      $region35: #{double_conv_forward.3} parent=27 // pred_region
        _
      $region36: #{double_conv_forward.3} parent=27 // pred_fallthru
        _
    $region28: #{double_conv_forward.3} parent=5 // pred_fallthru
      _
    %p1475 = scmp.le.s32.totalorder 2, %s10
    // Predicated region
    $region37: #{double_conv_forward.3} parent=5 // pred_check
      %p1476 = pneg %p1475
    $region38: #{double_conv_forward.3} parent=5 // pred_check_branch
      %1478 = sbr.rel (%p1476) target = $region40
    $region39: #{double_conv_forward.3} parent=5 // pred_region
      %s1479 = ssub.s32 %s10, 2
      // Predicated region
      $region41: #{double_conv_forward.3} parent=39 // pred_check
        %p1480 = pneg %p102
      $region42: #{double_conv_forward.3} parent=39 // pred_check_branch
        %1482 = sbr.rel (%p1480) target = $region44
      $region43: #{double_conv_forward.3} parent=39 // pred_region
        %s1483 = smul.u32 22, %s22
        %p1484 = scmp.lt.s32.totalorder %s21, 1
        %s1485 = scalar_select %p1484, %s21, 1
        %p1486 = scmp.lt.s32.totalorder %s1483, 21
        %s1487 = scalar_select %p1486, %s1483, 21
        %s1488 = smul.addr %s1487, 3
        %s1489 = smul.addr %s1485, 66
        %s1490 = sadd.s32 %s1488, %s1489
        %s1491 = smul.addr %s1490, 4
        %s1492 = scalar_lea.vmem %s2, %s1491
      $region44: #{double_conv_forward.3} parent=39 // pred_fallthru
        _
      // Predicated region
      $region45: #{double_conv_forward.3} parent=39 // pred_check
        %p1493 = pneg %p130
      $region46: #{double_conv_forward.3} parent=39 // pred_check_branch
        %1495 = sbr.rel (%p1493) target = $region48
      $region47: #{double_conv_forward.3} parent=39 // pred_region
        %p1496 = scmp.lt.s32.totalorder %s21, 1
        %s1497 = scalar_select %p1496, %s21, 1
        %p1498 = scmp.lt.s32.totalorder %s22, 0
        %s1499 = scalar_select %p1498, %s22, 0
        %s1500 = sadd.s32 %s1499, %s1497
        %s1501 = smul.addr %s1500, 8
        %s1502 = scalar_lea.vmem %s3, %s1501
      $region48: #{double_conv_forward.3} parent=39 // pred_fallthru
        _
    $region40: #{double_conv_forward.3} parent=5 // pred_fallthru
      _
  $region6: #{double_conv_forward.3} parent=0 // loop_footer
    %s14 = sadd.s32 1, %s10
  $region7: #{double_conv_forward.3} parent=0 // loop_footer_branch
    %9 = sbr.rel target = $region3
  $region8: #{double_conv_forward.3} parent=0 // loop_exit
    _

// kernel: double_conv_forward.4
$region0: #{double_conv_forward.4}
  #allocation0 [shape = 'u32[]', space=smem, size = 0x4, offset = 0x4, fixed_abs, tag = 'smem constant byte address 0x4 - core index']
  #allocation1 [shape = 'u32[144,128]{1,0:T(1,128)}', space=vmem, size = 0x12000, scoped, tag = 'internal scratch']
  #allocation2 [shape = 'bf16[528,128]{1,0:T(16,128)(2,1)}', space=vmem, size = 0x21000, scoped, tag = 'scratch operand']
  #allocation3 [shape = 's32[1]{0}', space=sflag, size = 0x4, scoped, tag = 'scratch operand']
  #allocation4 [shape = 's32[]', space=sflag, size = 0x4, offset = 0, fixed_abs, tag = 'sflag constant byte address 0x0 - dummy sync flag']
  %s0 = inlined_call_operand.vmem [shape: f32[8,128], index: 0, kind: input, shape index: {}]
  %s1 = inlined_call_operand.vmem [shape: bf16[9,128,128], index: 1, kind: input, shape index: {}]
  %s2 = inlined_call_operand.vmem [shape: bf16[1056,128], index: 2, kind: input, shape index: {}]
  %s3 = inlined_call_operand.vmem [shape: bf16[2,18,24,128], index: 3, kind: output, shape index: {0}]
  %s4 = inlined_call_operand.vmem [shape: f32[2,1,8,128], index: 4, kind: output, shape index: {1}]
  %5 = xla_tuple %s3, %s4
  %s6 = sld [smem:[#allocation0]]
  $region83: #{double_conv_forward.4} parent=0
    _
  %s8 = ssub.s32 1, %s6
  %s9 = scalar_select 0, %s8, %s6
  loop: start=0, step=1, limit=4
  $region2: #{double_conv_forward.4} parent=0 // loop_pre_header
    _
  $region3: #{double_conv_forward.4} parent=0 // loop_header
    %s11 = sphi 0, %s15
    %p12 = scmp.ge.s32.totalorder %s11, 4
    %s18 = sphi 0, %s30
    %s19 = sphi 0, %s26
    %s20 = sphi 0, %s18
    %s21 = sphi 0, %s19
    %s22 = sphi 0, %s20
    %s23 = sphi 0, %s21
    %s31 = sphi 0, %s31
    %s33 = sphi 0, %s31
    %s34 = sphi 0, %s33
    %s48 = sphi 0, %s34
    %s52 = sphi 0, %s52
    %s54 = sphi 0, %s52
    %s55 = sphi 0, %s54
    %s69 = sphi 0, %s55
    %s77 = sphi 0, %s79
    %s80 = sphi 0, %s77
    %s81 = sphi 0, %s80
    %s97 = sphi 0, %s81
    %s105 = sphi 0, %s107
    %s108 = sphi 0, %s105
    %s109 = sphi 0, %s108
    %s125 = sphi 0, %s109
  $region4: #{double_conv_forward.4} parent=0 // loop_header_branch
    %14 = sbr.rel (%p12) target = $region8
  $region5: #{double_conv_forward.4} parent=0 // loop_body
    %s16 = ssub.s32 %s11, 1
    %s17 = ssub.s32 %s11, 2
    %s24 = sadd.s32 1, %s19
    %p25 = scmp.ge.s32.totalorder %s24, 1
    %s26 = scalar_select %p25, 0, %s24
    %s27 = sadd.s32 1, %s18
    %s28 = scalar_select %p25, %s27, %s18
    %p29 = scmp.ge.s32.totalorder %s28, 2
    %s30 = scalar_select %p29, 0, %s28
    %s32 = sadd.s32 %s31, 1
    %p35 = scmp.eq.s32.totalorder %s11, 1
    %p36 = scmp.ne.s32.totalorder %s31, %s33
    %p37 = scmp.eq.s32.totalorder %s11, 0
    %p38 = por %p36, %p37
    %p39 = scmp.ne.s32.totalorder %s31, %s33
    %p40 = scmp.eq.s32.totalorder %s16, 1
    %p41 = por %p39, %p40
    %p42 = scmp.ne.s32.totalorder %s33, %s34
    %p43 = scmp.eq.s32.totalorder %s16, 0
    %p44 = por %p42, %p43
    %p45 = scmp.ne.s32.totalorder %s33, %s34
    %p46 = scmp.eq.s32.totalorder %s17, 1
    %p47 = por %p45, %p46
    %p49 = scmp.ne.s32.totalorder %s34, %s48
    %p50 = scmp.eq.s32.totalorder %s17, 0
    %p51 = por %p49, %p50
    %s53 = sadd.s32 %s52, 1
    %p56 = scmp.eq.s32.totalorder %s11, 1
    %p57 = scmp.ne.s32.totalorder %s52, %s54
    %p58 = scmp.eq.s32.totalorder %s11, 0
    %p59 = por %p57, %p58
    %p60 = scmp.ne.s32.totalorder %s52, %s54
    %p61 = scmp.eq.s32.totalorder %s16, 1
    %p62 = por %p60, %p61
    %p63 = scmp.ne.s32.totalorder %s54, %s55
    %p64 = scmp.eq.s32.totalorder %s16, 0
    %p65 = por %p63, %p64
    %p66 = scmp.ne.s32.totalorder %s54, %s55
    %p67 = scmp.eq.s32.totalorder %s17, 1
    %p68 = por %p66, %p67
    %p70 = scmp.ne.s32.totalorder %s55, %s69
    %p71 = scmp.eq.s32.totalorder %s17, 0
    %p72 = por %p70, %p71
    %s73 = ssub.s32 %s18, %s30
    %s74 = ssub.s32 %s19, %s26
    %s75 = sor.u32 %s73, %s74
    %p76 = scmp.eq.s32.totalorder %s75, 0
    %s78 = sadd.s32 %s77, 1
    %s79 = scalar_select %p76, %s77, %s78
    %p82 = pneg %p76
    %p83 = scmp.eq.s32.totalorder %s11, 1
    %p84 = por %p82, %p83
    %p85 = scmp.ne.s32.totalorder %s77, %s80
    %p86 = scmp.eq.s32.totalorder %s11, 0
    %p87 = por %p85, %p86
    %p88 = scmp.ne.s32.totalorder %s77, %s80
    %p89 = scmp.eq.s32.totalorder %s16, 1
    %p90 = por %p88, %p89
    %p91 = scmp.ne.s32.totalorder %s80, %s81
    %p92 = scmp.eq.s32.totalorder %s16, 0
    %p93 = por %p91, %p92
    %p94 = scmp.ne.s32.totalorder %s80, %s81
    %p95 = scmp.eq.s32.totalorder %s17, 1
    %p96 = por %p94, %p95
    %p98 = scmp.ne.s32.totalorder %s81, %s97
    %p99 = scmp.eq.s32.totalorder %s17, 0
    %p100 = por %p98, %p99
    %s101 = ssub.s32 %s18, %s30
    %s102 = ssub.s32 %s19, %s26
    %s103 = sor.u32 %s101, %s102
    %p104 = scmp.eq.s32.totalorder %s103, 0
    %s106 = sadd.s32 %s105, 1
    %s107 = scalar_select %p104, %s105, %s106
    %p110 = pneg %p104
    %p111 = scmp.eq.s32.totalorder %s11, 1
    %p112 = por %p110, %p111
    %p113 = scmp.ne.s32.totalorder %s105, %s108
    %p114 = scmp.eq.s32.totalorder %s11, 0
    %p115 = por %p113, %p114
    %p116 = scmp.ne.s32.totalorder %s105, %s108
    %p117 = scmp.eq.s32.totalorder %s16, 1
    %p118 = por %p116, %p117
    %p119 = scmp.ne.s32.totalorder %s108, %s109
    %p120 = scmp.eq.s32.totalorder %s16, 0
    %p121 = por %p119, %p120
    %p122 = scmp.ne.s32.totalorder %s108, %s109
    %p123 = scmp.eq.s32.totalorder %s17, 1
    %p124 = por %p122, %p123
    %p126 = scmp.ne.s32.totalorder %s109, %s125
    %p127 = scmp.eq.s32.totalorder %s17, 0
    %p128 = por %p126, %p127
    %p129 = scmp.le.s32.totalorder 1, %s11
    %p130 = scmp.lt.s32.totalorder %s11, 3
    %p131 = pnand %p129, %p130
    %p132 = pneg %p131
    // Predicated region
    $region9: #{double_conv_forward.4} parent=5 // pred_check
      _
    $region10: #{double_conv_forward.4} parent=5 // pred_check_branch
      %134 = sbr.rel (%p131) target = $region12
    $region11: #{double_conv_forward.4} parent=5 // pred_region
      %s135 = ssub.s32 %s11, 1
      // Predicated region
      $region13: #{double_conv_forward.4} parent=11 // pred_check
        %p136 = pneg %p44
      $region14: #{double_conv_forward.4} parent=11 // pred_check_branch
        %138 = sbr.rel (%p136) target = $region16
      $region15: #{double_conv_forward.4} parent=11 // pred_region
        _
      $region16: #{double_conv_forward.4} parent=11 // pred_fallthru
        _
      // Predicated region
      $region17: #{double_conv_forward.4} parent=11 // pred_check
        %p139 = pneg %p65
      $region18: #{double_conv_forward.4} parent=11 // pred_check_branch
        %141 = sbr.rel (%p139) target = $region20
      $region19: #{double_conv_forward.4} parent=11 // pred_region
        _
      $region20: #{double_conv_forward.4} parent=11 // pred_fallthru
        _
    $region12: #{double_conv_forward.4} parent=5 // pred_fallthru
      _
    %p142 = scmp.lt.s32.totalorder %s11, 2
    // Predicated region
    $region21: #{double_conv_forward.4} parent=5 // pred_check
      %p143 = pneg %p142
    $region22: #{double_conv_forward.4} parent=5 // pred_check_branch
      %145 = sbr.rel (%p143) target = $region24
    $region23: #{double_conv_forward.4} parent=5 // pred_region
      _
    $region24: #{double_conv_forward.4} parent=5 // pred_fallthru
      _
    %p146 = scmp.le.s32.totalorder 1, %s11
    %p147 = scmp.lt.s32.totalorder %s11, 3
    %p148 = pnand %p146, %p147
    %p149 = pneg %p148
    // Predicated region
    $region25: #{double_conv_forward.4} parent=5 // pred_check
      _
    $region26: #{double_conv_forward.4} parent=5 // pred_check_branch
      %151 = sbr.rel (%p148) target = $region28
    $region27: #{double_conv_forward.4} parent=5 // pred_region
      %s152 = ssub.s32 %s11, 1
      %p153 = pneg %p44
      %p154 = pneg %p41
      %p155 = pneg %p65
      %p156 = pneg %p62
      %p157 = pneg %p93
      %p158 = pneg %p90
      %s159 = smul.u32 18, %s21
      %p160 = scmp.lt.s32.totalorder %s20, 1
      %s161 = scalar_select %p160, %s20, 1
      %p162 = scmp.lt.s32.totalorder %s159, 17
      %s163 = scalar_select %p162, %s159, 17
      %s164 = smul.addr %s163, 3
      %s165 = smul.addr %s161, 54
      %s166 = sadd.s32 %s164, %s165
      %s167 = smul.addr %s166, 4
      %s168 = scalar_lea.vmem %s3, %s167
      %p169 = pneg %p121
      %p170 = pneg %p118
      %p171 = scmp.lt.s32.totalorder %s20, 1
      %s172 = scalar_select %p171, %s20, 1
      %p173 = scmp.lt.s32.totalorder %s21, 0
      %s174 = scalar_select %p173, %s21, 0
      %s175 = sadd.s32 %s174, %s172
      %s176 = smul.addr %s175, 8
      %s177 = scalar_lea.vmem %s4, %s176
      %s178 = smul.u32 18, %s21
      %p179 = scmp.lt.s32.totalorder %s20, 1
      %s180 = scalar_select %p179, %s20, 1
      %p181 = scmp.lt.s32.totalorder %s178, 17
      %s182 = scalar_select %p181, %s178, 17
      %s183 = smul.addr %s182, 3
      %s184 = smul.addr %s180, 54
      %s185 = sadd.s32 %s183, %s184
      %s186 = smul.addr %s185, 4
      %s187 = scalar_lea.vmem %s3, %s186
      %s188 = smul.u32 18, %s21
      %p189 = scmp.lt.s32.totalorder %s20, 1
      %s190 = scalar_select %p189, %s20, 1
      %p191 = scmp.lt.s32.totalorder %s21, 0
      %s192 = scalar_select %p191, %s21, 0
      %s193 = sadd.s32 %s192, %s190
      %s194 = smul.addr %s193, 8
      %s195 = scalar_lea.vmem %s4, %s194
      %s197 = smul.u32 %s20, 22
      %s198 = smul.u32 %s21, 18
      %s199 = sadd.s32 %s197, %s198
      %s200 = smul.u32 %s199, 24
      %s201 = sshra.s32 %s200, 3
      %s202 = sand.u32 %s200, 7
      %s203 = smul.addr %s201, 4
      %s204 = scalar_lea.vmem %s2, %s203
      %p206 = scmp.lt.u32.totalorder 264, 8
      %p207 = pneg %p206
      // Predicated region
      $region29: #{double_conv_forward.4} parent=27 // pred_check
        _
      $region30: #{double_conv_forward.4} parent=27 // pred_check_branch
        %209 = sbr.rel (%p206) target = $region32
      $region31: #{double_conv_forward.4} parent=27 // pred_region
        %s224 = sand.u32 264, 7
        %p225 = scmp.eq.s32.totalorder %s224, 0
        // Predicated region
        $region44: #{double_conv_forward.4} parent=31 // pred_check
          %p226 = pneg %p225
        $region45: #{double_conv_forward.4} parent=31 // pred_check_branch
          %228 = sbr.rel (%p226) target = $region47
        $region46: #{double_conv_forward.4} parent=31 // pred_region
          loop: start=0, step=1, limit=1
          $region48: #{double_conv_forward.4} parent=46 // loop_pre_header
            _
          $region49: #{double_conv_forward.4} parent=46 // loop_header
            %s230 = sphi 0, %s234
            %p231 = scmp.ge.s32.totalorder %s230, 1
            %s235 = sphi %s204, %s204
            %s236 = sphi [#allocation2], [#allocation2]
          $region50: #{double_conv_forward.4} parent=46 // loop_header_branch
            %233 = sbr.rel (%p231) target = $region54
          $region51: #{double_conv_forward.4} parent=46 // loop_body
            %v237 = vld [vmem:[%s235] sm:$0xff]
            %238 = vst [vmem:[%s236] sm:$0xff] %v237
            %v239 = vld [vmem:[%s235 + $0x8] sm:$0xff]
            %240 = vst [vmem:[%s236 + $0x8] sm:$0xff] %v239
            %v241 = vld [vmem:[%s235 + $0x10] sm:$0xff]
            %242 = vst [vmem:[%s236 + $0x10] sm:$0xff] %v241
            %v243 = vld [vmem:[%s235 + $0x18] sm:$0xff]
            %244 = vst [vmem:[%s236 + $0x18] sm:$0xff] %v243
            %v245 = vld [vmem:[%s235 + $0x20] sm:$0xff]
            %246 = vst [vmem:[%s236 + $0x20] sm:$0xff] %v245
            %v247 = vld [vmem:[%s235 + $0x28] sm:$0xff]
            %248 = vst [vmem:[%s236 + $0x28] sm:$0xff] %v247
            %v249 = vld [vmem:[%s235 + $0x30] sm:$0xff]
            %250 = vst [vmem:[%s236 + $0x30] sm:$0xff] %v249
            %v251 = vld [vmem:[%s235 + $0x38] sm:$0xff]
            %252 = vst [vmem:[%s236 + $0x38] sm:$0xff] %v251
            %v253 = vld [vmem:[%s235 + $0x40] sm:$0xff]
            %254 = vst [vmem:[%s236 + $0x40] sm:$0xff] %v253
            %v255 = vld [vmem:[%s235 + $0x48] sm:$0xff]
            %256 = vst [vmem:[%s236 + $0x48] sm:$0xff] %v255
            %v257 = vld [vmem:[%s235 + $0x50] sm:$0xff]
            %258 = vst [vmem:[%s236 + $0x50] sm:$0xff] %v257
            %v259 = vld [vmem:[%s235 + $0x58] sm:$0xff]
            %260 = vst [vmem:[%s236 + $0x58] sm:$0xff] %v259
            %v261 = vld [vmem:[%s235 + $0x60] sm:$0xff]
            %262 = vst [vmem:[%s236 + $0x60] sm:$0xff] %v261
            %v263 = vld [vmem:[%s235 + $0x68] sm:$0xff]
            %264 = vst [vmem:[%s236 + $0x68] sm:$0xff] %v263
            %v265 = vld [vmem:[%s235 + $0x70] sm:$0xff]
            %266 = vst [vmem:[%s236 + $0x70] sm:$0xff] %v265
            %v267 = vld [vmem:[%s235 + $0x78] sm:$0xff]
            %268 = vst [vmem:[%s236 + $0x78] sm:$0xff] %v267
            %v269 = vld [vmem:[%s235 + $0x80] sm:$0xff]
            %270 = vst [vmem:[%s236 + $0x80] sm:$0xff] %v269
            %v271 = vld [vmem:[%s235 + $0x88] sm:$0xff]
            %272 = vst [vmem:[%s236 + $0x88] sm:$0xff] %v271
            %v273 = vld [vmem:[%s235 + $0x90] sm:$0xff]
            %274 = vst [vmem:[%s236 + $0x90] sm:$0xff] %v273
            %v275 = vld [vmem:[%s235 + $0x98] sm:$0xff]
            %276 = vst [vmem:[%s236 + $0x98] sm:$0xff] %v275
            %v277 = vld [vmem:[%s235 + $0xa0] sm:$0xff]
            %278 = vst [vmem:[%s236 + $0xa0] sm:$0xff] %v277
            %v279 = vld [vmem:[%s235 + $0xa8] sm:$0xff]
            %280 = vst [vmem:[%s236 + $0xa8] sm:$0xff] %v279
            %v281 = vld [vmem:[%s235 + $0xb0] sm:$0xff]
            %282 = vst [vmem:[%s236 + $0xb0] sm:$0xff] %v281
            %v283 = vld [vmem:[%s235 + $0xb8] sm:$0xff]
            %284 = vst [vmem:[%s236 + $0xb8] sm:$0xff] %v283
            %v285 = vld [vmem:[%s235 + $0xc0] sm:$0xff]
            %286 = vst [vmem:[%s236 + $0xc0] sm:$0xff] %v285
            %v287 = vld [vmem:[%s235 + $0xc8] sm:$0xff]
            %288 = vst [vmem:[%s236 + $0xc8] sm:$0xff] %v287
            %v289 = vld [vmem:[%s235 + $0xd0] sm:$0xff]
            %290 = vst [vmem:[%s236 + $0xd0] sm:$0xff] %v289
            %v291 = vld [vmem:[%s235 + $0xd8] sm:$0xff]
            %292 = vst [vmem:[%s236 + $0xd8] sm:$0xff] %v291
            %v293 = vld [vmem:[%s235 + $0xe0] sm:$0xff]
            %294 = vst [vmem:[%s236 + $0xe0] sm:$0xff] %v293
            %v295 = vld [vmem:[%s235 + $0xe8] sm:$0xff]
            %296 = vst [vmem:[%s236 + $0xe8] sm:$0xff] %v295
            %v297 = vld [vmem:[%s235 + $0xf0] sm:$0xff]
            %298 = vst [vmem:[%s236 + $0xf0] sm:$0xff] %v297
            %v299 = vld [vmem:[%s235 + $0xf8] sm:$0xff]
            %300 = vst [vmem:[%s236 + $0xf8] sm:$0xff] %v299
            %v301 = vld [vmem:[%s235 + $0x100] sm:$0xff]
            %302 = vst [vmem:[%s236 + $0x100] sm:$0xff] %v301
          $region52: #{double_conv_forward.4} parent=46 // loop_footer
            %s234 = sadd.s32 1, %s230
          $region53: #{double_conv_forward.4} parent=46 // loop_footer_branch
            %229 = sbr.rel target = $region49
          $region54: #{double_conv_forward.4} parent=46 // loop_exit
            _
        $region47: #{double_conv_forward.4} parent=31 // pred_fallthru
          _
        %p303 = pneg %p225
        // Predicated region
        $region55: #{double_conv_forward.4} parent=31 // pred_check
          _
        $region56: #{double_conv_forward.4} parent=31 // pred_check_branch
          %305 = sbr.rel (%p225) target = $region58
        $region57: #{double_conv_forward.4} parent=31 // pred_region
          %s306 = sand.u32 264, 7
        $region58: #{double_conv_forward.4} parent=31 // pred_fallthru
          _
      $region32: #{double_conv_forward.4} parent=27 // pred_fallthru
        _
      // Predicated region
      $region33: #{double_conv_forward.4} parent=27 // pred_check
        %p210 = pneg %p206
      $region34: #{double_conv_forward.4} parent=27 // pred_check_branch
        %212 = sbr.rel (%p210) target = $region36
      $region35: #{double_conv_forward.4} parent=27 // pred_region
        %s213 = sshllo.u32 0, 264
        loop: start=0, step=1, limit=1
        $region37: #{double_conv_forward.4} parent=35 // loop_pre_header
          _
        $region38: #{double_conv_forward.4} parent=35 // loop_header
          %s215 = sphi 0, %s219
          %p216 = scmp.ge.s32.totalorder %s215, 1
          %s220 = sphi %s204, %s204
          %s221 = sphi [#allocation2], [#allocation2]
        $region39: #{double_conv_forward.4} parent=35 // loop_header_branch
          %218 = sbr.rel (%p216) target = $region43
        $region40: #{double_conv_forward.4} parent=35 // loop_body
          %v222 = vld [vmem:[%s220] sm:%s213]
          %223 = vst [vmem:[%s221] sm:%s213] %v222
        $region41: #{double_conv_forward.4} parent=35 // loop_footer
          %s219 = sadd.s32 1, %s215
        $region42: #{double_conv_forward.4} parent=35 // loop_footer_branch
          %214 = sbr.rel target = $region38
        $region43: #{double_conv_forward.4} parent=35 // loop_exit
          _
      $region36: #{double_conv_forward.4} parent=27 // pred_fallthru
        _
      // Predicated region
      $region59: #{double_conv_forward.4} parent=27 // pred_check
        _
      $region60: #{double_conv_forward.4} parent=27 // pred_check_branch
        %309 = sbr.rel (0) target = $region62
      $region61: #{double_conv_forward.4} parent=27 // pred_region
        %310 = vsyncadd [#allocation3], 4224
      $region62: #{double_conv_forward.4} parent=27 // pred_fallthru
        _
      %s311 = smul.u32 4, 66
      %s312 = smul.u32 %s311, 1
      %s313 = sshll.u32 %s312, 4
      %314 = dma.done [#allocation3], %s313
      %v315 = vld [vmem:[%s0] sm:$0x1]
      %v316 = vld [vmem:[%s0 + $0x1] sm:$0x1]
      %s317 = ssub.s32 %s198, 2
      %v318 = vstv %s317
      %v319 = vadd.s32 %v318, 1
      %v320 = vadd.s32 %v318, 2
      %v321 = vadd.s32 %v318, 3
      %v322 = vadd.s32 %v318, 4
      %v323 = vadd.s32 %v318, 5
      %v324 = vadd.s32 %v318, 6
      %v325 = vadd.s32 %v318, 7
      %v326 = vadd.s32 %v318, 8
      %v327 = vadd.s32 %v318, 9
      %v328 = vadd.s32 %v318, 10
      %v329 = vadd.s32 %v318, 11
      %v330 = vadd.s32 %v318, 12
      %v331 = vadd.s32 %v318, 13
      %v332 = vadd.s32 %v318, 14
      %v333 = vadd.s32 %v318, 15
      %v334 = vadd.s32 %v318, 16
      %v335 = vadd.s32 %v318, 17
      %v336 = vadd.s32 %v318, 18
      %v337 = vadd.s32 %v318, 19
      %v338 = vadd.s32 %v318, 20
      %v339 = vadd.s32 %v318, 21
      %v340 = vlaneseq
      %v341 = vshrl.u32 %v340, 7
      %v342 = vadd.s32 %v341, 8
      %v343 = vadd.s32 %v341, 16
      %vm344 = vcmp.ge.s32.totalorder %v318, 1
      %vm345 = vcmp.ge.s32.totalorder %v319, 1
      %vm346 = vcmp.ge.s32.totalorder %v320, 1
      %vm347 = vcmp.ge.s32.totalorder %v321, 1
      %vm348 = vcmp.ge.s32.totalorder %v322, 1
      %vm349 = vcmp.ge.s32.totalorder %v323, 1
      %vm350 = vcmp.ge.s32.totalorder %v324, 1
      %vm351 = vcmp.ge.s32.totalorder %v325, 1
      %vm352 = vcmp.ge.s32.totalorder %v326, 1
      %vm353 = vcmp.ge.s32.totalorder %v327, 1
      %vm354 = vcmp.ge.s32.totalorder %v328, 1
      %vm355 = vcmp.ge.s32.totalorder %v329, 1
      %vm356 = vcmp.ge.s32.totalorder %v330, 1
      %vm357 = vcmp.ge.s32.totalorder %v331, 1
      %vm358 = vcmp.ge.s32.totalorder %v332, 1
      %vm359 = vcmp.ge.s32.totalorder %v333, 1
      %vm360 = vcmp.ge.s32.totalorder %v334, 1
      %vm361 = vcmp.ge.s32.totalorder %v335, 1
      %vm362 = vcmp.ge.s32.totalorder %v336, 1
      %vm363 = vcmp.ge.s32.totalorder %v337, 1
      %vm364 = vcmp.ge.s32.totalorder %v338, 1
      %vm365 = vcmp.ge.s32.totalorder %v339, 1
      %vm366 = vcmp.le.s32.totalorder %v318, 16
      %vm367 = vcmp.le.s32.totalorder %v319, 16
      %vm368 = vcmp.le.s32.totalorder %v320, 16
      %vm369 = vcmp.le.s32.totalorder %v321, 16
      %vm370 = vcmp.le.s32.totalorder %v322, 16
      %vm371 = vcmp.le.s32.totalorder %v323, 16
      %vm372 = vcmp.le.s32.totalorder %v324, 16
      %vm373 = vcmp.le.s32.totalorder %v325, 16
      %vm374 = vcmp.le.s32.totalorder %v326, 16
      %vm375 = vcmp.le.s32.totalorder %v327, 16
      %vm376 = vcmp.le.s32.totalorder %v328, 16
      %vm377 = vcmp.le.s32.totalorder %v329, 16
      %vm378 = vcmp.le.s32.totalorder %v330, 16
      %vm379 = vcmp.le.s32.totalorder %v331, 16
      %vm380 = vcmp.le.s32.totalorder %v332, 16
      %vm381 = vcmp.le.s32.totalorder %v333, 16
      %vm382 = vcmp.le.s32.totalorder %v334, 16
      %vm383 = vcmp.le.s32.totalorder %v335, 16
      %vm384 = vcmp.le.s32.totalorder %v336, 16
      %vm385 = vcmp.le.s32.totalorder %v337, 16
      %vm386 = vcmp.le.s32.totalorder %v338, 16
      %vm387 = vcmp.le.s32.totalorder %v339, 16
      %vm388 = vmand %vm344, %vm366
      %vm389 = vmand %vm345, %vm367
      %vm390 = vmand %vm346, %vm368
      %vm391 = vmand %vm347, %vm369
      %vm392 = vmand %vm348, %vm370
      %vm393 = vmand %vm349, %vm371
      %vm394 = vmand %vm350, %vm372
      %vm395 = vmand %vm351, %vm373
      %vm396 = vmand %vm352, %vm374
      %vm397 = vmand %vm353, %vm375
      %vm398 = vmand %vm354, %vm376
      %vm399 = vmand %vm355, %vm377
      %vm400 = vmand %vm356, %vm378
      %vm401 = vmand %vm357, %vm379
      %vm402 = vmand %vm358, %vm380
      %vm403 = vmand %vm359, %vm381
      %vm404 = vmand %vm360, %vm382
      %vm405 = vmand %vm361, %vm383
      %vm406 = vmand %vm362, %vm384
      %vm407 = vmand %vm363, %vm385
      %vm408 = vmand %vm364, %vm386
      %vm409 = vmand %vm365, %vm387
      %vm410 = vcmp.ge.s32.totalorder %v343, 1
      %vm411 = vcmp.ge.s32.totalorder %v341, 1
      %vm412 = vcmp.ge.s32.totalorder %v342, 1
      %vm413 = vmand %vm388, %vm410
      %vm414 = vmand %vm389, %vm411
      %vm415 = vmand %vm389, %vm412
      %vm416 = vmand %vm389, %vm410
      %vm417 = vmand %vm390, %vm411
      %vm418 = vmand %vm390, %vm412
      %vm419 = vmand %vm390, %vm410
      %vm420 = vmand %vm391, %vm411
      %vm421 = vmand %vm391, %vm412
      %vm422 = vmand %vm391, %vm410
      %vm423 = vmand %vm392, %vm411
      %vm424 = vmand %vm392, %vm412
      %vm425 = vmand %vm392, %vm410
      %vm426 = vmand %vm393, %vm411
      %vm427 = vmand %vm393, %vm412
      %vm428 = vmand %vm393, %vm410
      %vm429 = vmand %vm394, %vm411
      %vm430 = vmand %vm394, %vm412
      %vm431 = vmand %vm394, %vm410
      %vm432 = vmand %vm395, %vm411
      %vm433 = vmand %vm395, %vm412
      %vm434 = vmand %vm395, %vm410
      %vm435 = vmand %vm396, %vm411
      %vm436 = vmand %vm396, %vm412
      %vm437 = vmand %vm396, %vm410
      %vm438 = vmand %vm397, %vm411
      %vm439 = vmand %vm397, %vm412
      %vm440 = vmand %vm397, %vm410
      %vm441 = vmand %vm398, %vm411
      %vm442 = vmand %vm398, %vm412
      %vm443 = vmand %vm398, %vm410
      %vm444 = vmand %vm399, %vm411
      %vm445 = vmand %vm399, %vm412
      %vm446 = vmand %vm399, %vm410
      %vm447 = vmand %vm400, %vm411
      %vm448 = vmand %vm400, %vm412
      %vm449 = vmand %vm400, %vm410
      %vm450 = vmand %vm401, %vm411
      %vm451 = vmand %vm401, %vm412
      %vm452 = vmand %vm401, %vm410
      %vm453 = vmand %vm402, %vm411
      %vm454 = vmand %vm402, %vm412
      %vm455 = vmand %vm402, %vm410
      %vm456 = vmand %vm403, %vm411
      %vm457 = vmand %vm403, %vm412
      %vm458 = vmand %vm403, %vm410
      %vm459 = vmand %vm404, %vm411
      %vm460 = vmand %vm404, %vm412
      %vm461 = vmand %vm404, %vm410
      %vm462 = vmand %vm405, %vm411
      %vm463 = vmand %vm405, %vm412
      %vm464 = vmand %vm405, %vm410
      %vm465 = vmand %vm406, %vm411
      %vm466 = vmand %vm406, %vm412
      %vm467 = vmand %vm406, %vm410
      %vm468 = vmand %vm407, %vm411
      %vm469 = vmand %vm407, %vm412
      %vm470 = vmand %vm407, %vm410
      %vm471 = vmand %vm408, %vm411
      %vm472 = vmand %vm408, %vm412
      %vm473 = vmand %vm408, %vm410
      %vm474 = vmand %vm409, %vm411
      %vm475 = vcmp.le.s32.totalorder %v343, 16
      %vm476 = vcmp.le.s32.totalorder %v341, 16
      %vm477 = vcmp.le.s32.totalorder %v342, 16
      %vm478 = vmand %vm413, %vm475
      %vm479 = vmand %vm414, %vm476
      %vm480 = vmand %vm415, %vm477
      %vm481 = vmand %vm416, %vm475
      %vm482 = vmand %vm417, %vm476
      %vm483 = vmand %vm418, %vm477
      %vm484 = vmand %vm419, %vm475
      %vm485 = vmand %vm420, %vm476
      %vm486 = vmand %vm421, %vm477
      %vm487 = vmand %vm422, %vm475
      %vm488 = vmand %vm423, %vm476
      %vm489 = vmand %vm424, %vm477
      %vm490 = vmand %vm425, %vm475
      %vm491 = vmand %vm426, %vm476
      %vm492 = vmand %vm427, %vm477
      %vm493 = vmand %vm428, %vm475
      %vm494 = vmand %vm429, %vm476
      %vm495 = vmand %vm430, %vm477
      %vm496 = vmand %vm431, %vm475
      %vm497 = vmand %vm432, %vm476
      %vm498 = vmand %vm433, %vm477
      %vm499 = vmand %vm434, %vm475
      %vm500 = vmand %vm435, %vm476
      %vm501 = vmand %vm436, %vm477
      %vm502 = vmand %vm437, %vm475
      %vm503 = vmand %vm438, %vm476
      %vm504 = vmand %vm439, %vm477
      %vm505 = vmand %vm440, %vm475
      %vm506 = vmand %vm441, %vm476
      %vm507 = vmand %vm442, %vm477
      %vm508 = vmand %vm443, %vm475
      %vm509 = vmand %vm444, %vm476
      %vm510 = vmand %vm445, %vm477
      %vm511 = vmand %vm446, %vm475
      %vm512 = vmand %vm447, %vm476
      %vm513 = vmand %vm448, %vm477
      %vm514 = vmand %vm449, %vm475
      %vm515 = vmand %vm450, %vm476
      %vm516 = vmand %vm451, %vm477
      %vm517 = vmand %vm452, %vm475
      %vm518 = vmand %vm453, %vm476
      %vm519 = vmand %vm454, %vm477
      %vm520 = vmand %vm455, %vm475
      %vm521 = vmand %vm456, %vm476
      %vm522 = vmand %vm457, %vm477
      %vm523 = vmand %vm458, %vm475
      %vm524 = vmand %vm459, %vm476
      %vm525 = vmand %vm460, %vm477
      %vm526 = vmand %vm461, %vm475
      %vm527 = vmand %vm462, %vm476
      %vm528 = vmand %vm463, %vm477
      %vm529 = vmand %vm464, %vm475
      %vm530 = vmand %vm465, %vm476
      %vm531 = vmand %vm466, %vm477
      %vm532 = vmand %vm467, %vm475
      %vm533 = vmand %vm468, %vm476
      %vm534 = vmand %vm469, %vm477
      %vm535 = vmand %vm470, %vm475
      %vm536 = vmand %vm471, %vm476
      %vm537 = vmand %vm472, %vm477
      %vm538 = vmand %vm473, %vm475
      %vm539 = vmand %vm474, %vm476
      %v540 = vsel %vm478, 1, 0
      %v541 = vsel %vm479, 1, 0
      %v542 = vsel %vm480, 1, 0
      %v543 = vsel %vm481, 1, 0
      %v544 = vsel %vm482, 1, 0
      %v545 = vsel %vm483, 1, 0
      %v546 = vsel %vm484, 1, 0
      %v547 = vsel %vm485, 1, 0
      %v548 = vsel %vm486, 1, 0
      %v549 = vsel %vm487, 1, 0
      %v550 = vsel %vm488, 1, 0
      %v551 = vsel %vm489, 1, 0
      %v552 = vsel %vm490, 1, 0
      %v553 = vsel %vm491, 1, 0
      %v554 = vsel %vm492, 1, 0
      %v555 = vsel %vm493, 1, 0
      %v556 = vsel %vm494, 1, 0
      %v557 = vsel %vm495, 1, 0
      %v558 = vsel %vm496, 1, 0
      %v559 = vsel %vm497, 1, 0
      %v560 = vsel %vm498, 1, 0
      %v561 = vsel %vm499, 1, 0
      %v562 = vsel %vm500, 1, 0
      %v563 = vsel %vm501, 1, 0
      %v564 = vsel %vm502, 1, 0
      %v565 = vsel %vm503, 1, 0
      %v566 = vsel %vm504, 1, 0
      %v567 = vsel %vm505, 1, 0
      %v568 = vsel %vm506, 1, 0
      %v569 = vsel %vm507, 1, 0
      %v570 = vsel %vm508, 1, 0
      %v571 = vsel %vm509, 1, 0
      %v572 = vsel %vm510, 1, 0
      %v573 = vsel %vm511, 1, 0
      %v574 = vsel %vm512, 1, 0
      %v575 = vsel %vm513, 1, 0
      %v576 = vsel %vm514, 1, 0
      %v577 = vsel %vm515, 1, 0
      %v578 = vsel %vm516, 1, 0
      %v579 = vsel %vm517, 1, 0
      %v580 = vsel %vm518, 1, 0
      %v581 = vsel %vm519, 1, 0
      %v582 = vsel %vm520, 1, 0
      %v583 = vsel %vm521, 1, 0
      %v584 = vsel %vm522, 1, 0
      %v585 = vsel %vm523, 1, 0
      %v586 = vsel %vm524, 1, 0
      %v587 = vsel %vm525, 1, 0
      %v588 = vsel %vm526, 1, 0
      %v589 = vsel %vm527, 1, 0
      %v590 = vsel %vm528, 1, 0
      %v591 = vsel %vm529, 1, 0
      %v592 = vsel %vm530, 1, 0
      %v593 = vsel %vm531, 1, 0
      %v594 = vsel %vm532, 1, 0
      %v595 = vsel %vm533, 1, 0
      %v596 = vsel %vm534, 1, 0
      %v597 = vsel %vm535, 1, 0
      %v598 = vsel %vm536, 1, 0
      %v599 = vsel %vm537, 1, 0
      %v600 = vsel %vm538, 1, 0
      %v601 = vsel %vm539, 1, 0
      %v602 = vcvt.s32.f32 %v540
      %v603 = vcvt.s32.f32 %v541
      %v604 = vcvt.s32.f32 %v542
      %v605 = vcvt.s32.f32 %v543
      %v606 = vcvt.s32.f32 %v544
      %v607 = vcvt.s32.f32 %v545
      %v608 = vcvt.s32.f32 %v546
      %v609 = vcvt.s32.f32 %v547
      %v610 = vcvt.s32.f32 %v548
      %v611 = vcvt.s32.f32 %v549
      %v612 = vcvt.s32.f32 %v550
      %v613 = vcvt.s32.f32 %v551
      %v614 = vcvt.s32.f32 %v552
      %v615 = vcvt.s32.f32 %v553
      %v616 = vcvt.s32.f32 %v554
      %v617 = vcvt.s32.f32 %v555
      %v618 = vcvt.s32.f32 %v556
      %v619 = vcvt.s32.f32 %v557
      %v620 = vcvt.s32.f32 %v558
      %v621 = vcvt.s32.f32 %v559
      %v622 = vcvt.s32.f32 %v560
      %v623 = vcvt.s32.f32 %v561
      %v624 = vcvt.s32.f32 %v562
      %v625 = vcvt.s32.f32 %v563
      %v626 = vcvt.s32.f32 %v564
      %v627 = vcvt.s32.f32 %v565
      %v628 = vcvt.s32.f32 %v566
      %v629 = vcvt.s32.f32 %v567
      %v630 = vcvt.s32.f32 %v568
      %v631 = vcvt.s32.f32 %v569
      %v632 = vcvt.s32.f32 %v570
      %v633 = vcvt.s32.f32 %v571
      %v634 = vcvt.s32.f32 %v572
      %v635 = vcvt.s32.f32 %v573
      %v636 = vcvt.s32.f32 %v574
      %v637 = vcvt.s32.f32 %v575
      %v638 = vcvt.s32.f32 %v576
      %v639 = vcvt.s32.f32 %v577
      %v640 = vcvt.s32.f32 %v578
      %v641 = vcvt.s32.f32 %v579
      %v642 = vcvt.s32.f32 %v580
      %v643 = vcvt.s32.f32 %v581
      %v644 = vcvt.s32.f32 %v582
      %v645 = vcvt.s32.f32 %v583
      %v646 = vcvt.s32.f32 %v584
      %v647 = vcvt.s32.f32 %v585
      %v648 = vcvt.s32.f32 %v586
      %v649 = vcvt.s32.f32 %v587
      %v650 = vcvt.s32.f32 %v588
      %v651 = vcvt.s32.f32 %v589
      %v652 = vcvt.s32.f32 %v590
      %v653 = vcvt.s32.f32 %v591
      %v654 = vcvt.s32.f32 %v592
      %v655 = vcvt.s32.f32 %v593
      %v656 = vcvt.s32.f32 %v594
      %v657 = vcvt.s32.f32 %v595
      %v658 = vcvt.s32.f32 %v596
      %v659 = vcvt.s32.f32 %v597
      %v660 = vcvt.s32.f32 %v598
      %v661 = vcvt.s32.f32 %v599
      %v662 = vcvt.s32.f32 %v600
      %v663 = vcvt.s32.f32 %v601
      %v664 = vld [vmem:[#allocation2 + $0x8] sm:$0xff]
      %v665 = vld [vmem:[#allocation2 + $0x10] sm:$0xff]
      %v666 = vld [vmem:[#allocation2 + $0x18] sm:$0xff]
      %v667 = vld [vmem:[#allocation2 + $0x20] sm:$0xff]
      %v668 = vld [vmem:[#allocation2 + $0x28] sm:$0xff]
      %v669 = vld [vmem:[#allocation2 + $0x30] sm:$0xff]
      %v670 = vld [vmem:[#allocation2 + $0x38] sm:$0xff]
      %v671 = vld [vmem:[#allocation2 + $0x40] sm:$0xff]
      %v672 = vld [vmem:[#allocation2 + $0x48] sm:$0xff]
      %v673 = vld [vmem:[#allocation2 + $0x50] sm:$0xff]
      %v674 = vld [vmem:[#allocation2 + $0x58] sm:$0xff]
      %v675 = vld [vmem:[#allocation2 + $0x60] sm:$0xff]
      %v676 = vld [vmem:[#allocation2 + $0x68] sm:$0xff]
      %v677 = vld [vmem:[#allocation2 + $0x70] sm:$0xff]
      %v678 = vld [vmem:[#allocation2 + $0x78] sm:$0xff]
      %v679 = vld [vmem:[#allocation2 + $0x80] sm:$0xff]
      %v680 = vld [vmem:[#allocation2 + $0x88] sm:$0xff]
      %v681 = vld [vmem:[#allocation2 + $0x90] sm:$0xff]
      %v682 = vld [vmem:[#allocation2 + $0x98] sm:$0xff]
      %v683 = vld [vmem:[#allocation2 + $0xa0] sm:$0xff]
      %v684 = vld [vmem:[#allocation2 + $0xa8] sm:$0xff]
      %v685 = vld [vmem:[#allocation2 + $0xb0] sm:$0xff]
      %v686 = vld [vmem:[#allocation2 + $0xb8] sm:$0xff]
      %v687 = vld [vmem:[#allocation2 + $0xc0] sm:$0xff]
      %v688 = vld [vmem:[#allocation2 + $0xc8] sm:$0xff]
      %v689 = vld [vmem:[#allocation2 + $0xd0] sm:$0xff]
      %v690 = vld [vmem:[#allocation2 + $0xd8] sm:$0xff]
      %v691 = vld [vmem:[#allocation2 + $0xe0] sm:$0xff]
      %v692 = vld [vmem:[#allocation2 + $0xe8] sm:$0xff]
      %v693 = vld [vmem:[#allocation2 + $0xf0] sm:$0xff]
      %v694 = vld [vmem:[#allocation2 + $0xf8] sm:$0xff]
      %v695 = vunpack.c.l.bf16 %v664
      %v696 = vunpack.c.h.bf16 %v664
      %v697 = vunpack.c.l.bf16 %v665
      %v698 = vunpack.c.h.bf16 %v665
      %v699 = vunpack.c.l.bf16 %v666
      %v700 = vunpack.c.h.bf16 %v666
      %v701 = vunpack.c.l.bf16 %v667
      %v702 = vunpack.c.h.bf16 %v667
      %v703 = vunpack.c.l.bf16 %v668
      %v704 = vunpack.c.h.bf16 %v668
      %v705 = vunpack.c.l.bf16 %v669
      %v706 = vunpack.c.h.bf16 %v669
      %v707 = vunpack.c.l.bf16 %v670
      %v708 = vunpack.c.h.bf16 %v670
      %v709 = vunpack.c.l.bf16 %v671
      %v710 = vunpack.c.h.bf16 %v671
      %v711 = vunpack.c.l.bf16 %v672
      %v712 = vunpack.c.h.bf16 %v672
      %v713 = vunpack.c.l.bf16 %v673
      %v714 = vunpack.c.h.bf16 %v673
      %v715 = vunpack.c.l.bf16 %v674
      %v716 = vunpack.c.h.bf16 %v674
      %v717 = vunpack.c.l.bf16 %v675
      %v718 = vunpack.c.h.bf16 %v675
      %v719 = vunpack.c.l.bf16 %v676
      %v720 = vunpack.c.h.bf16 %v676
      %v721 = vunpack.c.l.bf16 %v677
      %v722 = vunpack.c.h.bf16 %v677
      %v723 = vunpack.c.l.bf16 %v678
      %v724 = vunpack.c.h.bf16 %v678
      %v725 = vunpack.c.l.bf16 %v679
      %v726 = vunpack.c.h.bf16 %v679
      %v727 = vunpack.c.l.bf16 %v680
      %v728 = vunpack.c.h.bf16 %v680
      %v729 = vunpack.c.l.bf16 %v681
      %v730 = vunpack.c.h.bf16 %v681
      %v731 = vunpack.c.l.bf16 %v682
      %v732 = vunpack.c.h.bf16 %v682
      %v733 = vunpack.c.l.bf16 %v683
      %v734 = vunpack.c.h.bf16 %v683
      %v735 = vunpack.c.l.bf16 %v684
      %v736 = vunpack.c.h.bf16 %v684
      %v737 = vunpack.c.l.bf16 %v685
      %v738 = vunpack.c.h.bf16 %v685
      %v739 = vunpack.c.l.bf16 %v686
      %v740 = vunpack.c.h.bf16 %v686
      %v741 = vunpack.c.l.bf16 %v687
      %v742 = vunpack.c.h.bf16 %v687
      %v743 = vunpack.c.l.bf16 %v688
      %v744 = vunpack.c.h.bf16 %v688
      %v745 = vunpack.c.l.bf16 %v689
      %v746 = vunpack.c.h.bf16 %v689
      %v747 = vunpack.c.l.bf16 %v690
      %v748 = vunpack.c.h.bf16 %v690
      %v749 = vunpack.c.l.bf16 %v691
      %v750 = vunpack.c.h.bf16 %v691
      %v751 = vunpack.c.l.bf16 %v692
      %v752 = vunpack.c.h.bf16 %v692
      %v753 = vunpack.c.l.bf16 %v693
      %v754 = vunpack.c.h.bf16 %v693
      %v755 = vunpack.c.l.bf16 %v694
      %v756 = vunpack.c.h.bf16 %v694
      %v757 = vlaneseq
      %v758 = vshrl.u32 %v757, 7
      %v759 = vsub.s32 0, %v758
      %v760 = vrot.slane %v315, %v759
      %v761 = vmul.f32 %v695, %v760
      %v762 = vmul.f32 %v696, %v760
      %v763 = vmul.f32 %v697, %v760
      %v764 = vmul.f32 %v698, %v760
      %v765 = vmul.f32 %v699, %v760
      %v766 = vmul.f32 %v700, %v760
      %v767 = vmul.f32 %v701, %v760
      %v768 = vmul.f32 %v702, %v760
      %v769 = vmul.f32 %v703, %v760
      %v770 = vmul.f32 %v704, %v760
      %v771 = vmul.f32 %v705, %v760
      %v772 = vmul.f32 %v706, %v760
      %v773 = vmul.f32 %v707, %v760
      %v774 = vmul.f32 %v708, %v760
      %v775 = vmul.f32 %v709, %v760
      %v776 = vmul.f32 %v710, %v760
      %v777 = vmul.f32 %v711, %v760
      %v778 = vmul.f32 %v712, %v760
      %v779 = vmul.f32 %v713, %v760
      %v780 = vmul.f32 %v714, %v760
      %v781 = vmul.f32 %v715, %v760
      %v782 = vmul.f32 %v716, %v760
      %v783 = vmul.f32 %v717, %v760
      %v784 = vmul.f32 %v718, %v760
      %v785 = vmul.f32 %v719, %v760
      %v786 = vmul.f32 %v720, %v760
      %v787 = vmul.f32 %v721, %v760
      %v788 = vmul.f32 %v722, %v760
      %v789 = vmul.f32 %v723, %v760
      %v790 = vmul.f32 %v724, %v760
      %v791 = vmul.f32 %v725, %v760
      %v792 = vmul.f32 %v726, %v760
      %v793 = vmul.f32 %v727, %v760
      %v794 = vmul.f32 %v728, %v760
      %v795 = vmul.f32 %v729, %v760
      %v796 = vmul.f32 %v730, %v760
      %v797 = vmul.f32 %v731, %v760
      %v798 = vmul.f32 %v732, %v760
      %v799 = vmul.f32 %v733, %v760
      %v800 = vmul.f32 %v734, %v760
      %v801 = vmul.f32 %v735, %v760
      %v802 = vmul.f32 %v736, %v760
      %v803 = vmul.f32 %v737, %v760
      %v804 = vmul.f32 %v738, %v760
      %v805 = vmul.f32 %v739, %v760
      %v806 = vmul.f32 %v740, %v760
      %v807 = vmul.f32 %v741, %v760
      %v808 = vmul.f32 %v742, %v760
      %v809 = vmul.f32 %v743, %v760
      %v810 = vmul.f32 %v744, %v760
      %v811 = vmul.f32 %v745, %v760
      %v812 = vmul.f32 %v746, %v760
      %v813 = vmul.f32 %v747, %v760
      %v814 = vmul.f32 %v748, %v760
      %v815 = vmul.f32 %v749, %v760
      %v816 = vmul.f32 %v750, %v760
      %v817 = vmul.f32 %v751, %v760
      %v818 = vmul.f32 %v752, %v760
      %v819 = vmul.f32 %v753, %v760
      %v820 = vmul.f32 %v754, %v760
      %v821 = vmul.f32 %v755, %v760
      %v822 = vmul.f32 %v756, %v760
      %v823 = vlaneseq
      %v824 = vshrl.u32 %v823, 7
      %v825 = vsub.s32 0, %v824
      %v826 = vrot.slane %v316, %v825
      %v827 = vadd.f32 %v761, %v826
      %v828 = vadd.f32 %v762, %v826
      %v829 = vadd.f32 %v763, %v826
      %v830 = vadd.f32 %v764, %v826
      %v831 = vadd.f32 %v765, %v826
      %v832 = vadd.f32 %v766, %v826
      %v833 = vadd.f32 %v767, %v826
      %v834 = vadd.f32 %v768, %v826
      %v835 = vadd.f32 %v769, %v826
      %v836 = vadd.f32 %v770, %v826
      %v837 = vadd.f32 %v771, %v826
      %v838 = vadd.f32 %v772, %v826
      %v839 = vadd.f32 %v773, %v826
      %v840 = vadd.f32 %v774, %v826
      %v841 = vadd.f32 %v775, %v826
      %v842 = vadd.f32 %v776, %v826
      %v843 = vadd.f32 %v777, %v826
      %v844 = vadd.f32 %v778, %v826
      %v845 = vadd.f32 %v779, %v826
      %v846 = vadd.f32 %v780, %v826
      %v847 = vadd.f32 %v781, %v826
      %v848 = vadd.f32 %v782, %v826
      %v849 = vadd.f32 %v783, %v826
      %v850 = vadd.f32 %v784, %v826
      %v851 = vadd.f32 %v785, %v826
      %v852 = vadd.f32 %v786, %v826
      %v853 = vadd.f32 %v787, %v826
      %v854 = vadd.f32 %v788, %v826
      %v855 = vadd.f32 %v789, %v826
      %v856 = vadd.f32 %v790, %v826
      %v857 = vadd.f32 %v791, %v826
      %v858 = vadd.f32 %v792, %v826
      %v859 = vadd.f32 %v793, %v826
      %v860 = vadd.f32 %v794, %v826
      %v861 = vadd.f32 %v795, %v826
      %v862 = vadd.f32 %v796, %v826
      %v863 = vadd.f32 %v797, %v826
      %v864 = vadd.f32 %v798, %v826
      %v865 = vadd.f32 %v799, %v826
      %v866 = vadd.f32 %v800, %v826
      %v867 = vadd.f32 %v801, %v826
      %v868 = vadd.f32 %v802, %v826
      %v869 = vadd.f32 %v803, %v826
      %v870 = vadd.f32 %v804, %v826
      %v871 = vadd.f32 %v805, %v826
      %v872 = vadd.f32 %v806, %v826
      %v873 = vadd.f32 %v807, %v826
      %v874 = vadd.f32 %v808, %v826
      %v875 = vadd.f32 %v809, %v826
      %v876 = vadd.f32 %v810, %v826
      %v877 = vadd.f32 %v811, %v826
      %v878 = vadd.f32 %v812, %v826
      %v879 = vadd.f32 %v813, %v826
      %v880 = vadd.f32 %v814, %v826
      %v881 = vadd.f32 %v815, %v826
      %v882 = vadd.f32 %v816, %v826
      %v883 = vadd.f32 %v817, %v826
      %v884 = vadd.f32 %v818, %v826
      %v885 = vadd.f32 %v819, %v826
      %v886 = vadd.f32 %v820, %v826
      %v887 = vadd.f32 %v821, %v826
      %v888 = vadd.f32 %v822, %v826
      %v889 = vmax.f32 %v827, 0.0
      %v890 = vmax.f32 %v828, 0.0
      %v891 = vmax.f32 %v829, 0.0
      %v892 = vmax.f32 %v830, 0.0
      %v893 = vmax.f32 %v831, 0.0
      %v894 = vmax.f32 %v832, 0.0
      %v895 = vmax.f32 %v833, 0.0
      %v896 = vmax.f32 %v834, 0.0
      %v897 = vmax.f32 %v835, 0.0
      %v898 = vmax.f32 %v836, 0.0
      %v899 = vmax.f32 %v837, 0.0
      %v900 = vmax.f32 %v838, 0.0
      %v901 = vmax.f32 %v839, 0.0
      %v902 = vmax.f32 %v840, 0.0
      %v903 = vmax.f32 %v841, 0.0
      %v904 = vmax.f32 %v842, 0.0
      %v905 = vmax.f32 %v843, 0.0
      %v906 = vmax.f32 %v844, 0.0
      %v907 = vmax.f32 %v845, 0.0
      %v908 = vmax.f32 %v846, 0.0
      %v909 = vmax.f32 %v847, 0.0
      %v910 = vmax.f32 %v848, 0.0
      %v911 = vmax.f32 %v849, 0.0
      %v912 = vmax.f32 %v850, 0.0
      %v913 = vmax.f32 %v851, 0.0
      %v914 = vmax.f32 %v852, 0.0
      %v915 = vmax.f32 %v853, 0.0
      %v916 = vmax.f32 %v854, 0.0
      %v917 = vmax.f32 %v855, 0.0
      %v918 = vmax.f32 %v856, 0.0
      %v919 = vmax.f32 %v857, 0.0
      %v920 = vmax.f32 %v858, 0.0
      %v921 = vmax.f32 %v859, 0.0
      %v922 = vmax.f32 %v860, 0.0
      %v923 = vmax.f32 %v861, 0.0
      %v924 = vmax.f32 %v862, 0.0
      %v925 = vmax.f32 %v863, 0.0
      %v926 = vmax.f32 %v864, 0.0
      %v927 = vmax.f32 %v865, 0.0
      %v928 = vmax.f32 %v866, 0.0
      %v929 = vmax.f32 %v867, 0.0
      %v930 = vmax.f32 %v868, 0.0
      %v931 = vmax.f32 %v869, 0.0
      %v932 = vmax.f32 %v870, 0.0
      %v933 = vmax.f32 %v871, 0.0
      %v934 = vmax.f32 %v872, 0.0
      %v935 = vmax.f32 %v873, 0.0
      %v936 = vmax.f32 %v874, 0.0
      %v937 = vmax.f32 %v875, 0.0
      %v938 = vmax.f32 %v876, 0.0
      %v939 = vmax.f32 %v877, 0.0
      %v940 = vmax.f32 %v878, 0.0
      %v941 = vmax.f32 %v879, 0.0
      %v942 = vmax.f32 %v880, 0.0
      %v943 = vmax.f32 %v881, 0.0
      %v944 = vmax.f32 %v882, 0.0
      %v945 = vmax.f32 %v883, 0.0
      %v946 = vmax.f32 %v884, 0.0
      %v947 = vmax.f32 %v885, 0.0
      %v948 = vmax.f32 %v886, 0.0
      %v949 = vmax.f32 %v887, 0.0
      %v950 = vmax.f32 %v888, 0.0
      %v951 = vmul.f32 %v889, %v602
      %v952 = vmul.f32 %v890, %v603
      %v953 = vmul.f32 %v891, %v604
      %v954 = vmul.f32 %v892, %v605
      %v955 = vmul.f32 %v893, %v606
      %v956 = vmul.f32 %v894, %v607
      %v957 = vmul.f32 %v895, %v608
      %v958 = vmul.f32 %v896, %v609
      %v959 = vmul.f32 %v897, %v610
      %v960 = vmul.f32 %v898, %v611
      %v961 = vmul.f32 %v899, %v612
      %v962 = vmul.f32 %v900, %v613
      %v963 = vmul.f32 %v901, %v614
      %v964 = vmul.f32 %v902, %v615
      %v965 = vmul.f32 %v903, %v616
      %v966 = vmul.f32 %v904, %v617
      %v967 = vmul.f32 %v905, %v618
      %v968 = vmul.f32 %v906, %v619
      %v969 = vmul.f32 %v907, %v620
      %v970 = vmul.f32 %v908, %v621
      %v971 = vmul.f32 %v909, %v622
      %v972 = vmul.f32 %v910, %v623
      %v973 = vmul.f32 %v911, %v624
      %v974 = vmul.f32 %v912, %v625
      %v975 = vmul.f32 %v913, %v626
      %v976 = vmul.f32 %v914, %v627
      %v977 = vmul.f32 %v915, %v628
      %v978 = vmul.f32 %v916, %v629
      %v979 = vmul.f32 %v917, %v630
      %v980 = vmul.f32 %v918, %v631
      %v981 = vmul.f32 %v919, %v632
      %v982 = vmul.f32 %v920, %v633
      %v983 = vmul.f32 %v921, %v634
      %v984 = vmul.f32 %v922, %v635
      %v985 = vmul.f32 %v923, %v636
      %v986 = vmul.f32 %v924, %v637
      %v987 = vmul.f32 %v925, %v638
      %v988 = vmul.f32 %v926, %v639
      %v989 = vmul.f32 %v927, %v640
      %v990 = vmul.f32 %v928, %v641
      %v991 = vmul.f32 %v929, %v642
      %v992 = vmul.f32 %v930, %v643
      %v993 = vmul.f32 %v931, %v644
      %v994 = vmul.f32 %v932, %v645
      %v995 = vmul.f32 %v933, %v646
      %v996 = vmul.f32 %v934, %v647
      %v997 = vmul.f32 %v935, %v648
      %v998 = vmul.f32 %v936, %v649
      %v999 = vmul.f32 %v937, %v650
      %v1000 = vmul.f32 %v938, %v651
      %v1001 = vmul.f32 %v939, %v652
      %v1002 = vmul.f32 %v940, %v653
      %v1003 = vmul.f32 %v941, %v654
      %v1004 = vmul.f32 %v942, %v655
      %v1005 = vmul.f32 %v943, %v656
      %v1006 = vmul.f32 %v944, %v657
      %v1007 = vmul.f32 %v945, %v658
      %v1008 = vmul.f32 %v946, %v659
      %v1009 = vmul.f32 %v947, %v660
      %v1010 = vmul.f32 %v948, %v661
      %v1011 = vmul.f32 %v949, %v662
      %v1012 = vmul.f32 %v950, %v663
      %v1013 = vpack.c.bf16 %v952, %v951
      %v1014 = vpack.c.bf16 %v954, %v953
      %v1015 = vpack.c.bf16 %v956, %v955
      %v1016 = vpack.c.bf16 %v958, %v957
      %v1017 = vpack.c.bf16 %v960, %v959
      %v1018 = vpack.c.bf16 %v962, %v961
      %v1019 = vpack.c.bf16 %v964, %v963
      %v1020 = vpack.c.bf16 %v966, %v965
      %v1021 = vpack.c.bf16 %v968, %v967
      %v1022 = vpack.c.bf16 %v970, %v969
      %v1023 = vpack.c.bf16 %v972, %v971
      %v1024 = vpack.c.bf16 %v974, %v973
      %v1025 = vpack.c.bf16 %v976, %v975
      %v1026 = vpack.c.bf16 %v978, %v977
      %v1027 = vpack.c.bf16 %v980, %v979
      %v1028 = vpack.c.bf16 %v982, %v981
      %v1029 = vpack.c.bf16 %v984, %v983
      %v1030 = vpack.c.bf16 %v986, %v985
      %v1031 = vpack.c.bf16 %v988, %v987
      %v1032 = vpack.c.bf16 %v990, %v989
      %v1033 = vpack.c.bf16 %v992, %v991
      %v1034 = vpack.c.bf16 %v994, %v993
      %v1035 = vpack.c.bf16 %v996, %v995
      %v1036 = vpack.c.bf16 %v998, %v997
      %v1037 = vpack.c.bf16 %v1000, %v999
      %v1038 = vpack.c.bf16 %v1002, %v1001
      %v1039 = vpack.c.bf16 %v1004, %v1003
      %v1040 = vpack.c.bf16 %v1006, %v1005
      %v1041 = vpack.c.bf16 %v1008, %v1007
      %v1042 = vpack.c.bf16 %v1010, %v1009
      %v1043 = vpack.c.bf16 %v1012, %v1011
      %v1044 = vld [vmem:[%s1] sm:$0xf]
      %v1045 = vld [vmem:[%s1 + $0x4] sm:$0xf]
      %v1046 = vld [vmem:[%s1 + $0x8] sm:$0xf]
      %v1047 = vld [vmem:[%s1 + $0xc] sm:$0xf]
      %v1048 = vld [vmem:[%s1 + $0x10] sm:$0xf]
      %v1049 = vld [vmem:[%s1 + $0x14] sm:$0xf]
      %v1050 = vld [vmem:[%s1 + $0x18] sm:$0xf]
      %v1051 = vld [vmem:[%s1 + $0x1c] sm:$0xf]
      %v1052 = vld [vmem:[%s1 + $0x20] sm:$0xf]
      %v1053 = vld [vmem:[%s1 + $0x24] sm:$0xf]
      %v1054 = vld [vmem:[%s1 + $0x28] sm:$0xf]
      %v1055 = vld [vmem:[%s1 + $0x2c] sm:$0xf]
      %v1056 = vld [vmem:[%s1 + $0x30] sm:$0xf]
      %v1057 = vld [vmem:[%s1 + $0x34] sm:$0xf]
      %v1058 = vld [vmem:[%s1 + $0x38] sm:$0xf]
      %v1059 = vld [vmem:[%s1 + $0x3c] sm:$0xf]
      %s1060 = scalar_lea.vmem %s1, 64
      %v1061 = vld [vmem:[%s1060] sm:$0xf]
      %v1062 = vld [vmem:[%s1060 + $0x4] sm:$0xf]
      %v1063 = vld [vmem:[%s1060 + $0x8] sm:$0xf]
      %v1064 = vld [vmem:[%s1060 + $0xc] sm:$0xf]
      %v1065 = vld [vmem:[%s1060 + $0x10] sm:$0xf]
      %v1066 = vld [vmem:[%s1060 + $0x14] sm:$0xf]
      %v1067 = vld [vmem:[%s1060 + $0x18] sm:$0xf]
      %v1068 = vld [vmem:[%s1060 + $0x1c] sm:$0xf]
      %v1069 = vld [vmem:[%s1060 + $0x20] sm:$0xf]
      %v1070 = vld [vmem:[%s1060 + $0x24] sm:$0xf]
      %v1071 = vld [vmem:[%s1060 + $0x28] sm:$0xf]
      %v1072 = vld [vmem:[%s1060 + $0x2c] sm:$0xf]
      %v1073 = vld [vmem:[%s1060 + $0x30] sm:$0xf]
      %v1074 = vld [vmem:[%s1060 + $0x34] sm:$0xf]
      %v1075 = vld [vmem:[%s1060 + $0x38] sm:$0xf]
      %v1076 = vld [vmem:[%s1060 + $0x3c] sm:$0xf]
      %vm1105 = vcmask 1043456
      %v1106 = vrot.slane %v1013, 4
      %v1107 = vrot.slane %v1014, 4
      %v1108 = vsel %vm1105, %v1106, %v1107
      %v1109 = vrot.slane %v1015, 4
      %v1110 = vsel %vm1105, %v1107, %v1109
      %v1111 = vrot.slane %v1016, 4
      %v1112 = vsel %vm1105, %v1109, %v1111
      %v1113 = vrot.slane %v1017, 4
      %v1114 = vsel %vm1105, %v1111, %v1113
      %v1115 = vrot.slane %v1018, 4
      %v1116 = vsel %vm1105, %v1113, %v1115
      %v1117 = vrot.slane %v1019, 4
      %v1118 = vsel %vm1105, %v1115, %v1117
      %v1119 = vrot.slane %v1020, 4
      %v1120 = vsel %vm1105, %v1117, %v1119
      %v1121 = vrot.slane %v1021, 4
      %v1122 = vsel %vm1105, %v1119, %v1121
      %v1123 = vrot.slane %v1022, 4
      %v1124 = vsel %vm1105, %v1121, %v1123
      %v1125 = vrot.slane %v1023, 4
      %v1126 = vsel %vm1105, %v1123, %v1125
      %v1127 = vrot.slane %v1024, 4
      %v1128 = vsel %vm1105, %v1125, %v1127
      %v1129 = vrot.slane %v1025, 4
      %v1130 = vsel %vm1105, %v1127, %v1129
      %v1131 = vrot.slane %v1026, 4
      %v1132 = vsel %vm1105, %v1129, %v1131
      %v1133 = vrot.slane %v1027, 4
      %v1134 = vsel %vm1105, %v1131, %v1133
      %v1135 = vrot.slane %v1028, 4
      %v1136 = vsel %vm1105, %v1133, %v1135
      %v1137 = vrot.slane %v1029, 4
      %v1138 = vsel %vm1105, %v1135, %v1137
      %v1139 = vrot.slane %v1030, 4
      %v1140 = vsel %vm1105, %v1137, %v1139
      %v1141 = vrot.slane %v1031, 4
      %v1142 = vsel %vm1105, %v1139, %v1141
      %v1143 = vrot.slane %v1032, 4
      %v1144 = vsel %vm1105, %v1141, %v1143
      %v1145 = vrot.slane %v1033, 4
      %v1146 = vsel %vm1105, %v1143, %v1145
      %v1147 = vrot.slane %v1034, 4
      %v1148 = vsel %vm1105, %v1145, %v1147
      %v1149 = vrot.slane %v1035, 4
      %v1150 = vsel %vm1105, %v1147, %v1149
      %v1151 = vrot.slane %v1036, 4
      %v1152 = vsel %vm1105, %v1149, %v1151
      %v1153 = vrot.slane %v1037, 4
      %v1154 = vsel %vm1105, %v1151, %v1153
      %v1155 = vrot.slane %v1038, 4
      %v1156 = vsel %vm1105, %v1153, %v1155
      %v1157 = vrot.slane %v1039, 4
      %v1158 = vsel %vm1105, %v1155, %v1157
      %v1159 = vrot.slane %v1040, 4
      %v1160 = vsel %vm1105, %v1157, %v1159
      %v1204 = vunpack.c.l.b16 %v1061
      %v1205 = vunpack.c.l.b16 %v1062
      %v1206 = vunpack.c.l.b16 %v1063
      %v1207 = vunpack.c.l.b16 %v1064
      %v1208 = vunpack.c.l.b16 %v1065
      %v1209 = vunpack.c.l.b16 %v1066
      %v1210 = vunpack.c.l.b16 %v1067
      %v1211 = vunpack.c.l.b16 %v1068
      %v1212 = vunpack.c.l.b16 %v1069
      %v1213 = vunpack.c.l.b16 %v1070
      %v1214 = vunpack.c.l.b16 %v1071
      %v1215 = vunpack.c.l.b16 %v1072
      %v1216 = vunpack.c.l.b16 %v1073
      %v1217 = vunpack.c.l.b16 %v1074
      %v1218 = vunpack.c.l.b16 %v1075
      %v1219 = vunpack.c.l.b16 %v1076
      %v1220 = vpack.c.b16 %v1205, %v1204
      %v1221 = vpack.c.b16 %v1207, %v1206
      %v1222 = vpack.c.b16 %v1209, %v1208
      %v1223 = vpack.c.b16 %v1211, %v1210
      %v1224 = vpack.c.b16 %v1213, %v1212
      %v1225 = vpack.c.b16 %v1215, %v1214
      %v1226 = vpack.c.b16 %v1217, %v1216
      %v1227 = vpack.c.b16 %v1219, %v1218
      %1236 = vmatprep.subr.bf16.mxu0 0
      %1237 = vmatpush1.bf16.msra.mxu0 %v1220
      %1238 = vmatprep.subr.bf16.mxu0 0
      %1239 = vmatpush1.bf16.msra.mxu0 %v1221
      %1240 = vmatprep.subr.bf16.mxu0 0
      %1241 = vmatpush1.bf16.msra.mxu0 %v1222
      %1242 = vmatprep.subr.bf16.mxu0 0
      %1243 = vmatpush1.bf16.msra.mxu0 %v1223
      %1244 = vmatprep.subr.bf16.mxu0 0
      %1245 = vmatpush1.bf16.msra.mxu0 %v1224
      %1246 = vmatprep.subr.bf16.mxu0 0
      %1247 = vmatpush1.bf16.msra.mxu0 %v1225
      %1248 = vmatprep.subr.bf16.mxu0 0
      %1249 = vmatpush1.bf16.msra.mxu0 %v1226
      %1250 = vmatprep.subr.bf16.mxu0 0
      %1251 = vmatpush1.bf16.msra.mxu0 %v1227
      %1252 = vmatprep.subr.bf16.mxu0 0
      %1253 = vmatpush1.bf16.msra.mxu0 0
      %1254 = vmatprep.subr.bf16.mxu0 0
      %1255 = vmatpush1.bf16.msra.mxu0 0
      %1256 = vmatprep.subr.bf16.mxu0 0
      %1257 = vmatpush1.bf16.msra.mxu0 0
      %1258 = vmatprep.subr.bf16.mxu0 0
      %1259 = vmatpush1.bf16.msra.mxu0 0
      %1260 = vmatprep.subr.bf16.mxu0 0
      %1261 = vmatpush1.bf16.msra.mxu0 0
      %1262 = vmatprep.subr.bf16.mxu0 0
      %1263 = vmatpush1.bf16.msra.mxu0 0
      %1264 = vmatprep.subr.bf16.mxu0 0
      %1265 = vmatpush1.bf16.msra.mxu0 0
      %1266 = vmatprep.subr.bf16.mxu0 0
      %1267 = vmatpush1.bf16.msra.mxu0 0
      %1268 = vmatprep.mubr.bf16.mxu0 0
      %1269 = vmatmul.mubr.bf16.gmra.mrb[0].mxu0 %v1108
      %v1270 = vpop.f32.mrb[0].mxu0
      %v1271 = vadd.f32 0.0, %v1270
      %v1272 = vpop.f32.mrb[0].mxu0
      %v1273 = vpop.f32.mrb[0].mxu0
      %v1274 = vadd.f32 0.0, %v1273
      %v1275 = vpop.f32.mrb[0].mxu0
      %1276 = vmatprep.mubr.bf16.mxu0 0
      %1277 = vmatmul.mubr.bf16.gmra.mrb[0].mxu0 %v1110
      %v1278 = vpop.f32.mrb[0].mxu0
      %v1279 = vadd.f32 0.0, %v1278
      %v1280 = vpop.f32.mrb[0].mxu0
      %v1281 = vpop.f32.mrb[0].mxu0
      %v1282 = vadd.f32 0.0, %v1281
      %v1283 = vpop.f32.mrb[0].mxu0
      %1284 = vmatprep.mubr.bf16.mxu0 0
      %1285 = vmatmul.mubr.bf16.gmra.mrb[0].mxu0 %v1112
      %v1286 = vpop.f32.mrb[0].mxu0
      %v1287 = vadd.f32 0.0, %v1286
      %v1288 = vpop.f32.mrb[0].mxu0
      %v1289 = vpop.f32.mrb[0].mxu0
      %v1290 = vadd.f32 0.0, %v1289
      %v1291 = vpop.f32.mrb[0].mxu0
      %1292 = vmatprep.mubr.bf16.mxu0 0
      %1293 = vmatmul.mubr.bf16.gmra.mrb[0].mxu0 %v1114
      %v1294 = vpop.f32.mrb[0].mxu0
      %v1295 = vadd.f32 0.0, %v1294
      %v1296 = vpop.f32.mrb[0].mxu0
      %v1297 = vpop.f32.mrb[0].mxu0
      %v1298 = vadd.f32 0.0, %v1297
      %v1299 = vpop.f32.mrb[0].mxu0
      %1300 = vmatprep.mubr.bf16.mxu0 0
      %1301 = vmatmul.mubr.bf16.gmra.mrb[0].mxu0 %v1116
      %v1302 = vpop.f32.mrb[0].mxu0
      %v1303 = vadd.f32 0.0, %v1302
      %v1304 = vpop.f32.mrb[0].mxu0
      %v1305 = vpop.f32.mrb[0].mxu0
      %v1306 = vadd.f32 0.0, %v1305
      %v1307 = vpop.f32.mrb[0].mxu0
      %1308 = vmatprep.mubr.bf16.mxu0 0
      %1309 = vmatmul.mubr.bf16.gmra.mrb[0].mxu0 %v1118
      %v1310 = vpop.f32.mrb[0].mxu0
      %v1311 = vadd.f32 0.0, %v1310
      %v1312 = vpop.f32.mrb[0].mxu0
      %v1313 = vpop.f32.mrb[0].mxu0
      %v1314 = vadd.f32 0.0, %v1313
      %v1315 = vpop.f32.mrb[0].mxu0
      %1316 = vmatprep.mubr.bf16.mxu0 0
      %1317 = vmatmul.mubr.bf16.gmra.mrb[0].mxu0 %v1120
      %v1318 = vpop.f32.mrb[0].mxu0
      %v1319 = vadd.f32 0.0, %v1318
      %v1320 = vpop.f32.mrb[0].mxu0
      %v1321 = vpop.f32.mrb[0].mxu0
      %v1322 = vadd.f32 0.0, %v1321
      %v1323 = vpop.f32.mrb[0].mxu0
      %1324 = vmatprep.mubr.bf16.mxu0 0
      %1325 = vmatmul.mubr.bf16.gmra.mrb[0].mxu0 %v1122
      %v1326 = vpop.f32.mrb[0].mxu0
      %v1327 = vadd.f32 0.0, %v1326
      %v1328 = vpop.f32.mrb[0].mxu0
      %v1329 = vpop.f32.mrb[0].mxu0
      %v1330 = vadd.f32 0.0, %v1329
      %v1331 = vpop.f32.mrb[0].mxu0
      %1332 = vmatprep.mubr.bf16.mxu0 0
      %1333 = vmatmul.mubr.bf16.gmra.mrb[0].mxu0 %v1124
      %v1334 = vpop.f32.mrb[0].mxu0
      %v1335 = vadd.f32 0.0, %v1334
      %v1336 = vpop.f32.mrb[0].mxu0
      %v1337 = vpop.f32.mrb[0].mxu0
      %v1338 = vadd.f32 0.0, %v1337
      %v1339 = vpop.f32.mrb[0].mxu0
      %1340 = vmatprep.mubr.bf16.mxu0 0
      %1341 = vmatmul.mubr.bf16.gmra.mrb[0].mxu0 %v1126
      %v1342 = vpop.f32.mrb[0].mxu0
      %v1343 = vadd.f32 0.0, %v1342
      %v1344 = vpop.f32.mrb[0].mxu0
      %v1345 = vpop.f32.mrb[0].mxu0
      %v1346 = vadd.f32 0.0, %v1345
      %v1347 = vpop.f32.mrb[0].mxu0
      %1348 = vmatprep.mubr.bf16.mxu0 0
      %1349 = vmatmul.mubr.bf16.gmra.mrb[0].mxu0 %v1128
      %v1350 = vpop.f32.mrb[0].mxu0
      %v1351 = vadd.f32 0.0, %v1350
      %v1352 = vpop.f32.mrb[0].mxu0
      %v1353 = vpop.f32.mrb[0].mxu0
      %v1354 = vadd.f32 0.0, %v1353
      %v1355 = vpop.f32.mrb[0].mxu0
      %1356 = vmatprep.mubr.bf16.mxu0 0
      %1357 = vmatmul.mubr.bf16.gmra.mrb[0].mxu0 %v1130
      %v1358 = vpop.f32.mrb[0].mxu0
      %v1359 = vadd.f32 0.0, %v1358
      %v1360 = vpop.f32.mrb[0].mxu0
      %v1361 = vpop.f32.mrb[0].mxu0
      %v1362 = vadd.f32 0.0, %v1361
      %v1363 = vpop.f32.mrb[0].mxu0
      %1364 = vmatprep.mubr.bf16.mxu0 0
      %1365 = vmatmul.mubr.bf16.gmra.mrb[0].mxu0 %v1132
      %v1366 = vpop.f32.mrb[0].mxu0
      %v1367 = vadd.f32 0.0, %v1366
      %v1368 = vpop.f32.mrb[0].mxu0
      %v1369 = vpop.f32.mrb[0].mxu0
      %v1370 = vadd.f32 0.0, %v1369
      %v1371 = vpop.f32.mrb[0].mxu0
      %1372 = vmatprep.mubr.bf16.mxu0 0
      %1373 = vmatmul.mubr.bf16.gmra.mrb[0].mxu0 %v1134
      %v1374 = vpop.f32.mrb[0].mxu0
      %v1375 = vadd.f32 0.0, %v1374
      %v1376 = vpop.f32.mrb[0].mxu0
      %v1377 = vpop.f32.mrb[0].mxu0
      %v1378 = vadd.f32 0.0, %v1377
      %v1379 = vpop.f32.mrb[0].mxu0
      %1380 = vmatprep.mubr.bf16.mxu0 0
      %1381 = vmatmul.mubr.bf16.gmra.mrb[0].mxu0 %v1136
      %v1382 = vpop.f32.mrb[0].mxu0
      %v1383 = vadd.f32 0.0, %v1382
      %v1384 = vpop.f32.mrb[0].mxu0
      %v1385 = vpop.f32.mrb[0].mxu0
      %v1386 = vadd.f32 0.0, %v1385
      %v1387 = vpop.f32.mrb[0].mxu0
      %1388 = vmatprep.mubr.bf16.mxu0 0
      %1389 = vmatmul.mubr.bf16.gmra.mrb[0].mxu0 %v1138
      %v1390 = vpop.f32.mrb[0].mxu0
      %v1391 = vadd.f32 0.0, %v1390
      %v1392 = vpop.f32.mrb[0].mxu0
      %v1393 = vpop.f32.mrb[0].mxu0
      %v1394 = vadd.f32 0.0, %v1393
      %v1395 = vpop.f32.mrb[0].mxu0
      %1396 = vmatprep.mubr.bf16.mxu0 0
      %1397 = vmatmul.mubr.bf16.gmra.mrb[0].mxu0 %v1140
      %v1398 = vpop.f32.mrb[0].mxu0
      %v1399 = vadd.f32 0.0, %v1398
      %v1400 = vpop.f32.mrb[0].mxu0
      %v1401 = vpop.f32.mrb[0].mxu0
      %v1402 = vadd.f32 0.0, %v1401
      %v1403 = vpop.f32.mrb[0].mxu0
      %1404 = vmatprep.mubr.bf16.mxu0 0
      %1405 = vmatmul.mubr.bf16.gmra.mrb[0].mxu0 %v1142
      %v1406 = vpop.f32.mrb[0].mxu0
      %v1407 = vadd.f32 0.0, %v1406
      %v1408 = vpop.f32.mrb[0].mxu0
      %v1409 = vpop.f32.mrb[0].mxu0
      %v1410 = vadd.f32 0.0, %v1409
      %v1411 = vpop.f32.mrb[0].mxu0
      %1412 = vmatprep.mubr.bf16.mxu0 0
      %1413 = vmatmul.mubr.bf16.gmra.mrb[0].mxu0 %v1144
      %v1414 = vpop.f32.mrb[0].mxu0
      %v1415 = vadd.f32 0.0, %v1414
      %v1416 = vpop.f32.mrb[0].mxu0
      %v1417 = vpop.f32.mrb[0].mxu0
      %v1418 = vadd.f32 0.0, %v1417
      %v1419 = vpop.f32.mrb[0].mxu0
      %1420 = vmatprep.mubr.bf16.mxu0 0
      %1421 = vmatmul.mubr.bf16.gmra.mrb[0].mxu0 %v1146
      %v1422 = vpop.f32.mrb[0].mxu0
      %v1423 = vadd.f32 0.0, %v1422
      %v1424 = vpop.f32.mrb[0].mxu0
      %v1425 = vpop.f32.mrb[0].mxu0
      %v1426 = vadd.f32 0.0, %v1425
      %v1427 = vpop.f32.mrb[0].mxu0
      %1428 = vmatprep.mubr.bf16.mxu0 0
      %1429 = vmatmul.mubr.bf16.gmra.mrb[0].mxu0 %v1148
      %v1430 = vpop.f32.mrb[0].mxu0
      %v1431 = vadd.f32 0.0, %v1430
      %v1432 = vpop.f32.mrb[0].mxu0
      %v1433 = vpop.f32.mrb[0].mxu0
      %v1434 = vadd.f32 0.0, %v1433
      %v1435 = vpop.f32.mrb[0].mxu0
      %1436 = vmatprep.mubr.bf16.mxu0 0
      %1437 = vmatmul.mubr.bf16.gmra.mrb[0].mxu0 %v1150
      %v1438 = vpop.f32.mrb[0].mxu0
      %v1439 = vadd.f32 0.0, %v1438
      %v1440 = vpop.f32.mrb[0].mxu0
      %v1441 = vpop.f32.mrb[0].mxu0
      %v1442 = vadd.f32 0.0, %v1441
      %v1443 = vpop.f32.mrb[0].mxu0
      %1444 = vmatprep.mubr.bf16.mxu0 0
      %1445 = vmatmul.mubr.bf16.gmra.mrb[0].mxu0 %v1152
      %v1446 = vpop.f32.mrb[0].mxu0
      %v1447 = vadd.f32 0.0, %v1446
      %v1448 = vpop.f32.mrb[0].mxu0
      %v1449 = vpop.f32.mrb[0].mxu0
      %v1450 = vadd.f32 0.0, %v1449
      %v1451 = vpop.f32.mrb[0].mxu0
      %1452 = vmatprep.mubr.bf16.mxu0 0
      %1453 = vmatmul.mubr.bf16.gmra.mrb[0].mxu0 %v1154
      %v1454 = vpop.f32.mrb[0].mxu0
      %v1455 = vadd.f32 0.0, %v1454
      %v1456 = vpop.f32.mrb[0].mxu0
      %v1457 = vpop.f32.mrb[0].mxu0
      %v1458 = vadd.f32 0.0, %v1457
      %v1459 = vpop.f32.mrb[0].mxu0
      %1460 = vmatprep.mubr.bf16.mxu0 0
      %1461 = vmatmul.mubr.bf16.gmra.mrb[0].mxu0 %v1156
      %v1462 = vpop.f32.mrb[0].mxu0
      %v1463 = vadd.f32 0.0, %v1462
      %v1464 = vpop.f32.mrb[0].mxu0
      %v1465 = vpop.f32.mrb[0].mxu0
      %v1466 = vadd.f32 0.0, %v1465
      %v1467 = vpop.f32.mrb[0].mxu0
      %1468 = vmatprep.mubr.bf16.mxu0 0
      %1469 = vmatmul.mubr.bf16.gmra.mrb[0].mxu0 %v1158
      %v1470 = vpop.f32.mrb[0].mxu0
      %v1471 = vadd.f32 0.0, %v1470
      %v1472 = vpop.f32.mrb[0].mxu0
      %v1473 = vpop.f32.mrb[0].mxu0
      %v1474 = vadd.f32 0.0, %v1473
      %v1475 = vpop.f32.mrb[0].mxu0
      %1476 = vmatprep.mubr.bf16.mxu0 0
      %1477 = vmatmul.mubr.bf16.gmra.mrb[0].mxu0 %v1160
      %v1478 = vpop.f32.mrb[0].mxu0
      %v1479 = vadd.f32 0.0, %v1478
      %v1480 = vpop.f32.mrb[0].mxu0
      %v1481 = vpop.f32.mrb[0].mxu0
      %v1482 = vadd.f32 0.0, %v1481
      %v1483 = vpop.f32.mrb[0].mxu0
      %1484 = vdwg.mxu0
      %vm1485 = vsmask.f32 4352
      %v1487 = vshrl.u32 %v1013, 16
      %v1489 = vrot.slane %v1487, 3
      %v1490 = vshll.u32 %v1013, 16
      %v1492 = vrot.slane %v1490, 4
      %v1493 = vor.u32 %v1489, %v1492
      %v1495 = vshrl.u32 %v1014, 16
      %v1497 = vrot.slane %v1495, 3
      %v1498 = vshll.u32 %v1014, 16
      %v1500 = vrot.slane %v1498, 4
      %v1501 = vor.u32 %v1497, %v1500
      %v1502 = vsel %vm1485, %v1493, %v1501
      %v1504 = vshrl.u32 %v1015, 16
      %v1506 = vrot.slane %v1504, 3
      %v1507 = vshll.u32 %v1015, 16
      %v1509 = vrot.slane %v1507, 4
      %v1510 = vor.u32 %v1506, %v1509
      %v1511 = vsel %vm1485, %v1501, %v1510
      %v1513 = vshrl.u32 %v1016, 16
      %v1515 = vrot.slane %v1513, 3
      %v1516 = vshll.u32 %v1016, 16
      %v1518 = vrot.slane %v1516, 4
      %v1519 = vor.u32 %v1515, %v1518
      %v1520 = vsel %vm1485, %v1510, %v1519
      %v1522 = vshrl.u32 %v1017, 16
      %v1524 = vrot.slane %v1522, 3
      %v1525 = vshll.u32 %v1017, 16
      %v1527 = vrot.slane %v1525, 4
      %v1528 = vor.u32 %v1524, %v1527
      %v1529 = vsel %vm1485, %v1519, %v1528
      %v1531 = vshrl.u32 %v1018, 16
      %v1533 = vrot.slane %v1531, 3
      %v1534 = vshll.u32 %v1018, 16
      %v1536 = vrot.slane %v1534, 4
      %v1537 = vor.u32 %v1533, %v1536
      %v1538 = vsel %vm1485, %v1528, %v1537
      %v1540 = vshrl.u32 %v1019, 16
      %v1542 = vrot.slane %v1540, 3
      %v1543 = vshll.u32 %v1019, 16
      %v1545 = vrot.slane %v1543, 4
      %v1546 = vor.u32 %v1542, %v1545
      %v1547 = vsel %vm1485, %v1537, %v1546
      %v1549 = vshrl.u32 %v1020, 16
      %v1551 = vrot.slane %v1549, 3
      %v1552 = vshll.u32 %v1020, 16
      %v1554 = vrot.slane %v1552, 4
      %v1555 = vor.u32 %v1551, %v1554
      %v1556 = vsel %vm1485, %v1546, %v1555
      %v1558 = vshrl.u32 %v1021, 16
      %v1560 = vrot.slane %v1558, 3
      %v1561 = vshll.u32 %v1021, 16
      %v1563 = vrot.slane %v1561, 4
      %v1564 = vor.u32 %v1560, %v1563
      %v1565 = vsel %vm1485, %v1555, %v1564
      %v1567 = vshrl.u32 %v1022, 16
      %v1569 = vrot.slane %v1567, 3
      %v1570 = vshll.u32 %v1022, 16
      %v1572 = vrot.slane %v1570, 4
      %v1573 = vor.u32 %v1569, %v1572
      %v1574 = vsel %vm1485, %v1564, %v1573
      %v1576 = vshrl.u32 %v1023, 16
      %v1578 = vrot.slane %v1576, 3
      %v1579 = vshll.u32 %v1023, 16
      %v1581 = vrot.slane %v1579, 4
      %v1582 = vor.u32 %v1578, %v1581
      %v1583 = vsel %vm1485, %v1573, %v1582
      %v1585 = vshrl.u32 %v1024, 16
      %v1587 = vrot.slane %v1585, 3
      %v1588 = vshll.u32 %v1024, 16
      %v1590 = vrot.slane %v1588, 4
      %v1591 = vor.u32 %v1587, %v1590
      %v1592 = vsel %vm1485, %v1582, %v1591
      %v1594 = vshrl.u32 %v1025, 16
      %v1596 = vrot.slane %v1594, 3
      %v1597 = vshll.u32 %v1025, 16
      %v1599 = vrot.slane %v1597, 4
      %v1600 = vor.u32 %v1596, %v1599
      %v1601 = vsel %vm1485, %v1591, %v1600
      %v1603 = vshrl.u32 %v1026, 16
      %v1605 = vrot.slane %v1603, 3
      %v1606 = vshll.u32 %v1026, 16
      %v1608 = vrot.slane %v1606, 4
      %v1609 = vor.u32 %v1605, %v1608
      %v1610 = vsel %vm1485, %v1600, %v1609
      %v1612 = vshrl.u32 %v1027, 16
      %v1614 = vrot.slane %v1612, 3
      %v1615 = vshll.u32 %v1027, 16
      %v1617 = vrot.slane %v1615, 4
      %v1618 = vor.u32 %v1614, %v1617
      %v1619 = vsel %vm1485, %v1609, %v1618
      %v1621 = vshrl.u32 %v1028, 16
      %v1623 = vrot.slane %v1621, 3
      %v1624 = vshll.u32 %v1028, 16
      %v1626 = vrot.slane %v1624, 4
      %v1627 = vor.u32 %v1623, %v1626
      %v1628 = vsel %vm1485, %v1618, %v1627
      %v1630 = vshrl.u32 %v1029, 16
      %v1632 = vrot.slane %v1630, 3
      %v1633 = vshll.u32 %v1029, 16
      %v1635 = vrot.slane %v1633, 4
      %v1636 = vor.u32 %v1632, %v1635
      %v1637 = vsel %vm1485, %v1627, %v1636
      %v1639 = vshrl.u32 %v1030, 16
      %v1641 = vrot.slane %v1639, 3
      %v1642 = vshll.u32 %v1030, 16
      %v1644 = vrot.slane %v1642, 4
      %v1645 = vor.u32 %v1641, %v1644
      %v1646 = vsel %vm1485, %v1636, %v1645
      %v1648 = vshrl.u32 %v1031, 16
      %v1650 = vrot.slane %v1648, 3
      %v1651 = vshll.u32 %v1031, 16
      %v1653 = vrot.slane %v1651, 4
      %v1654 = vor.u32 %v1650, %v1653
      %v1655 = vsel %vm1485, %v1645, %v1654
      %v1657 = vshrl.u32 %v1032, 16
      %v1659 = vrot.slane %v1657, 3
      %v1660 = vshll.u32 %v1032, 16
      %v1662 = vrot.slane %v1660, 4
      %v1663 = vor.u32 %v1659, %v1662
      %v1664 = vsel %vm1485, %v1654, %v1663
      %v1666 = vshrl.u32 %v1033, 16
      %v1668 = vrot.slane %v1666, 3
      %v1669 = vshll.u32 %v1033, 16
      %v1671 = vrot.slane %v1669, 4
      %v1672 = vor.u32 %v1668, %v1671
      %v1673 = vsel %vm1485, %v1663, %v1672
      %v1675 = vshrl.u32 %v1034, 16
      %v1677 = vrot.slane %v1675, 3
      %v1678 = vshll.u32 %v1034, 16
      %v1680 = vrot.slane %v1678, 4
      %v1681 = vor.u32 %v1677, %v1680
      %v1682 = vsel %vm1485, %v1672, %v1681
      %v1684 = vshrl.u32 %v1035, 16
      %v1686 = vrot.slane %v1684, 3
      %v1687 = vshll.u32 %v1035, 16
      %v1689 = vrot.slane %v1687, 4
      %v1690 = vor.u32 %v1686, %v1689
      %v1691 = vsel %vm1485, %v1681, %v1690
      %v1693 = vshrl.u32 %v1036, 16
      %v1695 = vrot.slane %v1693, 3
      %v1696 = vshll.u32 %v1036, 16
      %v1698 = vrot.slane %v1696, 4
      %v1699 = vor.u32 %v1695, %v1698
      %v1700 = vsel %vm1485, %v1690, %v1699
      %v1702 = vshrl.u32 %v1037, 16
      %v1704 = vrot.slane %v1702, 3
      %v1705 = vshll.u32 %v1037, 16
      %v1707 = vrot.slane %v1705, 4
      %v1708 = vor.u32 %v1704, %v1707
      %v1709 = vsel %vm1485, %v1699, %v1708
      %v1711 = vshrl.u32 %v1038, 16
      %v1713 = vrot.slane %v1711, 3
      %v1714 = vshll.u32 %v1038, 16
      %v1716 = vrot.slane %v1714, 4
      %v1717 = vor.u32 %v1713, %v1716
      %v1718 = vsel %vm1485, %v1708, %v1717
      %v1720 = vshrl.u32 %v1039, 16
      %v1722 = vrot.slane %v1720, 3
      %v1723 = vshll.u32 %v1039, 16
      %v1725 = vrot.slane %v1723, 4
      %v1726 = vor.u32 %v1722, %v1725
      %v1727 = vsel %vm1485, %v1717, %v1726
      %v1729 = vshrl.u32 %v1040, 16
      %v1731 = vrot.slane %v1729, 3
      %v1732 = vshll.u32 %v1040, 16
      %v1734 = vrot.slane %v1732, 4
      %v1735 = vor.u32 %v1731, %v1734
      %v1736 = vsel %vm1485, %v1726, %v1735
      %v1780 = vunpack.c.l.b16 %v1044
      %v1781 = vunpack.c.l.b16 %v1045
      %v1782 = vunpack.c.l.b16 %v1046
      %v1783 = vunpack.c.l.b16 %v1047
      %v1784 = vunpack.c.l.b16 %v1048
      %v1785 = vunpack.c.l.b16 %v1049
      %v1786 = vunpack.c.l.b16 %v1050
      %v1787 = vunpack.c.l.b16 %v1051
      %v1788 = vunpack.c.l.b16 %v1052
      %v1789 = vunpack.c.l.b16 %v1053
      %v1790 = vunpack.c.l.b16 %v1054
      %v1791 = vunpack.c.l.b16 %v1055
      %v1792 = vunpack.c.l.b16 %v1056
      %v1793 = vunpack.c.l.b16 %v1057
      %v1794 = vunpack.c.l.b16 %v1058
      %v1795 = vunpack.c.l.b16 %v1059
      %v1796 = vpack.c.b16 %v1781, %v1780
      %v1797 = vpack.c.b16 %v1783, %v1782
      %v1798 = vpack.c.b16 %v1785, %v1784
      %v1799 = vpack.c.b16 %v1787, %v1786
      %v1800 = vpack.c.b16 %v1789, %v1788
      %v1801 = vpack.c.b16 %v1791, %v1790
      %v1802 = vpack.c.b16 %v1793, %v1792
      %v1803 = vpack.c.b16 %v1795, %v1794
      %1812 = vmatprep.subr.bf16.mxu0 0
      %1813 = vmatpush1.bf16.msra.mxu0 %v1796
      %1814 = vmatprep.subr.bf16.mxu0 0
      %1815 = vmatpush1.bf16.msra.mxu0 %v1797
      %1816 = vmatprep.subr.bf16.mxu0 0
      %1817 = vmatpush1.bf16.msra.mxu0 %v1798
      %1818 = vmatprep.subr.bf16.mxu0 0
      %1819 = vmatpush1.bf16.msra.mxu0 %v1799
      %1820 = vmatprep.subr.bf16.mxu0 0
      %1821 = vmatpush1.bf16.msra.mxu0 %v1800
      %1822 = vmatprep.subr.bf16.mxu0 0
      %1823 = vmatpush1.bf16.msra.mxu0 %v1801
      %1824 = vmatprep.subr.bf16.mxu0 0
      %1825 = vmatpush1.bf16.msra.mxu0 %v1802
      %1826 = vmatprep.subr.bf16.mxu0 0
      %1827 = vmatpush1.bf16.msra.mxu0 %v1803
      %1828 = vmatprep.subr.bf16.mxu0 0
      %1829 = vmatpush1.bf16.msra.mxu0 0
      %1830 = vmatprep.subr.bf16.mxu0 0
      %1831 = vmatpush1.bf16.msra.mxu0 0
      %1832 = vmatprep.subr.bf16.mxu0 0
      %1833 = vmatpush1.bf16.msra.mxu0 0
      %1834 = vmatprep.subr.bf16.mxu0 0
      %1835 = vmatpush1.bf16.msra.mxu0 0
      %1836 = vmatprep.subr.bf16.mxu0 0
      %1837 = vmatpush1.bf16.msra.mxu0 0
      %1838 = vmatprep.subr.bf16.mxu0 0
      %1839 = vmatpush1.bf16.msra.mxu0 0
      %1840 = vmatprep.subr.bf16.mxu0 0
      %1841 = vmatpush1.bf16.msra.mxu0 0
      %1842 = vmatprep.subr.bf16.mxu0 0
      %1843 = vmatpush1.bf16.msra.mxu0 0
      %1844 = vmatprep.mubr.bf16.mxu0 0
      %1845 = vmatmul.mubr.bf16.gmra.mrb[0].mxu0 %v1502
      %v1846 = vpop.f32.mrb[0].mxu0
      %v1847 = vadd.f32 %v1271, %v1846
      %v1848 = vpop.f32.mrb[0].mxu0
      %v1849 = vpop.f32.mrb[0].mxu0
      %v1850 = vadd.f32 %v1274, %v1849
      %v1851 = vpop.f32.mrb[0].mxu0
      %1852 = vmatprep.mubr.bf16.mxu0 0
      %1853 = vmatmul.mubr.bf16.gmra.mrb[0].mxu0 %v1511
      %v1854 = vpop.f32.mrb[0].mxu0
      %v1855 = vadd.f32 %v1279, %v1854
      %v1856 = vpop.f32.mrb[0].mxu0
      %v1857 = vpop.f32.mrb[0].mxu0
      %v1858 = vadd.f32 %v1282, %v1857
      %v1859 = vpop.f32.mrb[0].mxu0
      %1860 = vmatprep.mubr.bf16.mxu0 0
      %1861 = vmatmul.mubr.bf16.gmra.mrb[0].mxu0 %v1520
      %v1862 = vpop.f32.mrb[0].mxu0
      %v1863 = vadd.f32 %v1287, %v1862
      %v1864 = vpop.f32.mrb[0].mxu0
      %v1865 = vpop.f32.mrb[0].mxu0
      %v1866 = vadd.f32 %v1290, %v1865
      %v1867 = vpop.f32.mrb[0].mxu0
      %1868 = vmatprep.mubr.bf16.mxu0 0
      %1869 = vmatmul.mubr.bf16.gmra.mrb[0].mxu0 %v1529
      %v1870 = vpop.f32.mrb[0].mxu0
      %v1871 = vadd.f32 %v1295, %v1870
      %v1872 = vpop.f32.mrb[0].mxu0
      %v1873 = vpop.f32.mrb[0].mxu0
      %v1874 = vadd.f32 %v1298, %v1873
      %v1875 = vpop.f32.mrb[0].mxu0
      %1876 = vmatprep.mubr.bf16.mxu0 0
      %1877 = vmatmul.mubr.bf16.gmra.mrb[0].mxu0 %v1538
      %v1878 = vpop.f32.mrb[0].mxu0
      %v1879 = vadd.f32 %v1303, %v1878
      %v1880 = vpop.f32.mrb[0].mxu0
      %v1881 = vpop.f32.mrb[0].mxu0
      %v1882 = vadd.f32 %v1306, %v1881
      %v1883 = vpop.f32.mrb[0].mxu0
      %1884 = vmatprep.mubr.bf16.mxu0 0
      %1885 = vmatmul.mubr.bf16.gmra.mrb[0].mxu0 %v1547
      %v1886 = vpop.f32.mrb[0].mxu0
      %v1887 = vadd.f32 %v1311, %v1886
      %v1888 = vpop.f32.mrb[0].mxu0
      %v1889 = vpop.f32.mrb[0].mxu0
      %v1890 = vadd.f32 %v1314, %v1889
      %v1891 = vpop.f32.mrb[0].mxu0
      %1892 = vmatprep.mubr.bf16.mxu0 0
      %1893 = vmatmul.mubr.bf16.gmra.mrb[0].mxu0 %v1556
      %v1894 = vpop.f32.mrb[0].mxu0
      %v1895 = vadd.f32 %v1319, %v1894
      %v1896 = vpop.f32.mrb[0].mxu0
      %v1897 = vpop.f32.mrb[0].mxu0
      %v1898 = vadd.f32 %v1322, %v1897
      %v1899 = vpop.f32.mrb[0].mxu0
      %1900 = vmatprep.mubr.bf16.mxu0 0
      %1901 = vmatmul.mubr.bf16.gmra.mrb[0].mxu0 %v1565
      %v1902 = vpop.f32.mrb[0].mxu0
      %v1903 = vadd.f32 %v1327, %v1902
      %v1904 = vpop.f32.mrb[0].mxu0
      %v1905 = vpop.f32.mrb[0].mxu0
      %v1906 = vadd.f32 %v1330, %v1905
      %v1907 = vpop.f32.mrb[0].mxu0
      %1908 = vmatprep.mubr.bf16.mxu0 0
      %1909 = vmatmul.mubr.bf16.gmra.mrb[0].mxu0 %v1574
      %v1910 = vpop.f32.mrb[0].mxu0
      %v1911 = vadd.f32 %v1335, %v1910
      %v1912 = vpop.f32.mrb[0].mxu0
      %v1913 = vpop.f32.mrb[0].mxu0
      %v1914 = vadd.f32 %v1338, %v1913
      %v1915 = vpop.f32.mrb[0].mxu0
      %1916 = vmatprep.mubr.bf16.mxu0 0
      %1917 = vmatmul.mubr.bf16.gmra.mrb[0].mxu0 %v1583
      %v1918 = vpop.f32.mrb[0].mxu0
      %v1919 = vadd.f32 %v1343, %v1918
      %v1920 = vpop.f32.mrb[0].mxu0
      %v1921 = vpop.f32.mrb[0].mxu0
      %v1922 = vadd.f32 %v1346, %v1921
      %v1923 = vpop.f32.mrb[0].mxu0
      %1924 = vmatprep.mubr.bf16.mxu0 0
      %1925 = vmatmul.mubr.bf16.gmra.mrb[0].mxu0 %v1592
      %v1926 = vpop.f32.mrb[0].mxu0
      %v1927 = vadd.f32 %v1351, %v1926
      %v1928 = vpop.f32.mrb[0].mxu0
      %v1929 = vpop.f32.mrb[0].mxu0
      %v1930 = vadd.f32 %v1354, %v1929
      %v1931 = vpop.f32.mrb[0].mxu0
      %1932 = vmatprep.mubr.bf16.mxu0 0
      %1933 = vmatmul.mubr.bf16.gmra.mrb[0].mxu0 %v1601
      %v1934 = vpop.f32.mrb[0].mxu0
      %v1935 = vadd.f32 %v1359, %v1934
      %v1936 = vpop.f32.mrb[0].mxu0
      %v1937 = vpop.f32.mrb[0].mxu0
      %v1938 = vadd.f32 %v1362, %v1937
      %v1939 = vpop.f32.mrb[0].mxu0
      %1940 = vmatprep.mubr.bf16.mxu0 0
      %1941 = vmatmul.mubr.bf16.gmra.mrb[0].mxu0 %v1610
      %v1942 = vpop.f32.mrb[0].mxu0
      %v1943 = vadd.f32 %v1367, %v1942
      %v1944 = vpop.f32.mrb[0].mxu0
      %v1945 = vpop.f32.mrb[0].mxu0
      %v1946 = vadd.f32 %v1370, %v1945
      %v1947 = vpop.f32.mrb[0].mxu0
      %1948 = vmatprep.mubr.bf16.mxu0 0
      %1949 = vmatmul.mubr.bf16.gmra.mrb[0].mxu0 %v1619
      %v1950 = vpop.f32.mrb[0].mxu0
      %v1951 = vadd.f32 %v1375, %v1950
      %v1952 = vpop.f32.mrb[0].mxu0
      %v1953 = vpop.f32.mrb[0].mxu0
      %v1954 = vadd.f32 %v1378, %v1953
      %v1955 = vpop.f32.mrb[0].mxu0
      %1956 = vmatprep.mubr.bf16.mxu0 0
      %1957 = vmatmul.mubr.bf16.gmra.mrb[0].mxu0 %v1628
      %v1958 = vpop.f32.mrb[0].mxu0
      %v1959 = vadd.f32 %v1383, %v1958
      %v1960 = vpop.f32.mrb[0].mxu0
      %v1961 = vpop.f32.mrb[0].mxu0
      %v1962 = vadd.f32 %v1386, %v1961
      %v1963 = vpop.f32.mrb[0].mxu0
      %1964 = vmatprep.mubr.bf16.mxu0 0
      %1965 = vmatmul.mubr.bf16.gmra.mrb[0].mxu0 %v1637
      %v1966 = vpop.f32.mrb[0].mxu0
      %v1967 = vadd.f32 %v1391, %v1966
      %v1968 = vpop.f32.mrb[0].mxu0
      %v1969 = vpop.f32.mrb[0].mxu0
      %v1970 = vadd.f32 %v1394, %v1969
      %v1971 = vpop.f32.mrb[0].mxu0
      %1972 = vmatprep.mubr.bf16.mxu0 0
      %1973 = vmatmul.mubr.bf16.gmra.mrb[0].mxu0 %v1646
      %v1974 = vpop.f32.mrb[0].mxu0
      %v1975 = vadd.f32 %v1399, %v1974
      %v1976 = vpop.f32.mrb[0].mxu0
      %v1977 = vpop.f32.mrb[0].mxu0
      %v1978 = vadd.f32 %v1402, %v1977
      %v1979 = vpop.f32.mrb[0].mxu0
      %1980 = vmatprep.mubr.bf16.mxu0 0
      %1981 = vmatmul.mubr.bf16.gmra.mrb[0].mxu0 %v1655
      %v1982 = vpop.f32.mrb[0].mxu0
      %v1983 = vadd.f32 %v1407, %v1982
      %v1984 = vpop.f32.mrb[0].mxu0
      %v1985 = vpop.f32.mrb[0].mxu0
      %v1986 = vadd.f32 %v1410, %v1985
      %v1987 = vpop.f32.mrb[0].mxu0
      %1988 = vmatprep.mubr.bf16.mxu0 0
      %1989 = vmatmul.mubr.bf16.gmra.mrb[0].mxu0 %v1664
      %v1990 = vpop.f32.mrb[0].mxu0
      %v1991 = vadd.f32 %v1415, %v1990
      %v1992 = vpop.f32.mrb[0].mxu0
      %v1993 = vpop.f32.mrb[0].mxu0
      %v1994 = vadd.f32 %v1418, %v1993
      %v1995 = vpop.f32.mrb[0].mxu0
      %1996 = vmatprep.mubr.bf16.mxu0 0
      %1997 = vmatmul.mubr.bf16.gmra.mrb[0].mxu0 %v1673
      %v1998 = vpop.f32.mrb[0].mxu0
      %v1999 = vadd.f32 %v1423, %v1998
      %v2000 = vpop.f32.mrb[0].mxu0
      %v2001 = vpop.f32.mrb[0].mxu0
      %v2002 = vadd.f32 %v1426, %v2001
      %v2003 = vpop.f32.mrb[0].mxu0
      %2004 = vmatprep.mubr.bf16.mxu0 0
      %2005 = vmatmul.mubr.bf16.gmra.mrb[0].mxu0 %v1682
      %v2006 = vpop.f32.mrb[0].mxu0
      %v2007 = vadd.f32 %v1431, %v2006
      %v2008 = vpop.f32.mrb[0].mxu0
      %v2009 = vpop.f32.mrb[0].mxu0
      %v2010 = vadd.f32 %v1434, %v2009
      %v2011 = vpop.f32.mrb[0].mxu0
      %2012 = vmatprep.mubr.bf16.mxu0 0
      %2013 = vmatmul.mubr.bf16.gmra.mrb[0].mxu0 %v1691
      %v2014 = vpop.f32.mrb[0].mxu0
      %v2015 = vadd.f32 %v1439, %v2014
      %v2016 = vpop.f32.mrb[0].mxu0
      %v2017 = vpop.f32.mrb[0].mxu0
      %v2018 = vadd.f32 %v1442, %v2017
      %v2019 = vpop.f32.mrb[0].mxu0
      %2020 = vmatprep.mubr.bf16.mxu0 0
      %2021 = vmatmul.mubr.bf16.gmra.mrb[0].mxu0 %v1700
      %v2022 = vpop.f32.mrb[0].mxu0
      %v2023 = vadd.f32 %v1447, %v2022
      %v2024 = vpop.f32.mrb[0].mxu0
      %v2025 = vpop.f32.mrb[0].mxu0
      %v2026 = vadd.f32 %v1450, %v2025
      %v2027 = vpop.f32.mrb[0].mxu0
      %2028 = vmatprep.mubr.bf16.mxu0 0
      %2029 = vmatmul.mubr.bf16.gmra.mrb[0].mxu0 %v1709
      %v2030 = vpop.f32.mrb[0].mxu0
      %v2031 = vadd.f32 %v1455, %v2030
      %v2032 = vpop.f32.mrb[0].mxu0
      %v2033 = vpop.f32.mrb[0].mxu0
      %v2034 = vadd.f32 %v1458, %v2033
      %v2035 = vpop.f32.mrb[0].mxu0
      %2036 = vmatprep.mubr.bf16.mxu0 0
      %2037 = vmatmul.mubr.bf16.gmra.mrb[0].mxu0 %v1718
      %v2038 = vpop.f32.mrb[0].mxu0
      %v2039 = vadd.f32 %v1463, %v2038
      %v2040 = vpop.f32.mrb[0].mxu0
      %v2041 = vpop.f32.mrb[0].mxu0
      %v2042 = vadd.f32 %v1466, %v2041
      %v2043 = vpop.f32.mrb[0].mxu0
      %2044 = vmatprep.mubr.bf16.mxu0 0
      %2045 = vmatmul.mubr.bf16.gmra.mrb[0].mxu0 %v1727
      %v2046 = vpop.f32.mrb[0].mxu0
      %v2047 = vadd.f32 %v1471, %v2046
      %v2048 = vpop.f32.mrb[0].mxu0
      %v2049 = vpop.f32.mrb[0].mxu0
      %v2050 = vadd.f32 %v1474, %v2049
      %v2051 = vpop.f32.mrb[0].mxu0
      %2052 = vmatprep.mubr.bf16.mxu0 0
      %2053 = vmatmul.mubr.bf16.gmra.mrb[0].mxu0 %v1736
      %v2054 = vpop.f32.mrb[0].mxu0
      %v2055 = vadd.f32 %v1479, %v2054
      %v2056 = vpop.f32.mrb[0].mxu0
      %v2057 = vpop.f32.mrb[0].mxu0
      %v2058 = vadd.f32 %v1482, %v2057
      %v2059 = vpop.f32.mrb[0].mxu0
      %2060 = vdwg.mxu0
      %s2061 = scalar_lea.vmem %s1, 128
      %v2062 = vld [vmem:[%s2061] sm:$0xf]
      %v2063 = vld [vmem:[%s2061 + $0x4] sm:$0xf]
      %v2064 = vld [vmem:[%s2061 + $0x8] sm:$0xf]
      %v2065 = vld [vmem:[%s2061 + $0xc] sm:$0xf]
      %v2066 = vld [vmem:[%s2061 + $0x10] sm:$0xf]
      %v2067 = vld [vmem:[%s2061 + $0x14] sm:$0xf]
      %v2068 = vld [vmem:[%s2061 + $0x18] sm:$0xf]
      %v2069 = vld [vmem:[%s2061 + $0x1c] sm:$0xf]
      %v2070 = vld [vmem:[%s2061 + $0x20] sm:$0xf]
      %v2071 = vld [vmem:[%s2061 + $0x24] sm:$0xf]
      %v2072 = vld [vmem:[%s2061 + $0x28] sm:$0xf]
      %v2073 = vld [vmem:[%s2061 + $0x2c] sm:$0xf]
      %v2074 = vld [vmem:[%s2061 + $0x30] sm:$0xf]
      %v2075 = vld [vmem:[%s2061 + $0x34] sm:$0xf]
      %v2076 = vld [vmem:[%s2061 + $0x38] sm:$0xf]
      %v2077 = vld [vmem:[%s2061 + $0x3c] sm:$0xf]
      %vm2078 = vsmask.f32 3328
      %v2079 = vrot.slane %v1487, 4
      %v2080 = vrot.slane %v1490, 5
      %v2081 = vor.u32 %v2079, %v2080
      %v2082 = vrot.slane %v1495, 4
      %v2083 = vrot.slane %v1498, 5
      %v2084 = vor.u32 %v2082, %v2083
      %v2085 = vsel %vm2078, %v2081, %v2084
      %v2086 = vrot.slane %v1504, 4
      %v2087 = vrot.slane %v1507, 5
      %v2088 = vor.u32 %v2086, %v2087
      %v2089 = vsel %vm2078, %v2084, %v2088
      %v2090 = vrot.slane %v1513, 4
      %v2091 = vrot.slane %v1516, 5
      %v2092 = vor.u32 %v2090, %v2091
      %v2093 = vsel %vm2078, %v2088, %v2092
      %v2094 = vrot.slane %v1522, 4
      %v2095 = vrot.slane %v1525, 5
      %v2096 = vor.u32 %v2094, %v2095
      %v2097 = vsel %vm2078, %v2092, %v2096
      %v2098 = vrot.slane %v1531, 4
      %v2099 = vrot.slane %v1534, 5
      %v2100 = vor.u32 %v2098, %v2099
      %v2101 = vsel %vm2078, %v2096, %v2100
      %v2102 = vrot.slane %v1540, 4
      %v2103 = vrot.slane %v1543, 5
      %v2104 = vor.u32 %v2102, %v2103
      %v2105 = vsel %vm2078, %v2100, %v2104
      %v2106 = vrot.slane %v1549, 4
      %v2107 = vrot.slane %v1552, 5
      %v2108 = vor.u32 %v2106, %v2107
      %v2109 = vsel %vm2078, %v2104, %v2108
      %v2110 = vrot.slane %v1558, 4
      %v2111 = vrot.slane %v1561, 5
      %v2112 = vor.u32 %v2110, %v2111
      %v2113 = vsel %vm2078, %v2108, %v2112
      %v2114 = vrot.slane %v1567, 4
      %v2115 = vrot.slane %v1570, 5
      %v2116 = vor.u32 %v2114, %v2115
      %v2117 = vsel %vm2078, %v2112, %v2116
      %v2118 = vrot.slane %v1576, 4
      %v2119 = vrot.slane %v1579, 5
      %v2120 = vor.u32 %v2118, %v2119
      %v2121 = vsel %vm2078, %v2116, %v2120
      %v2122 = vrot.slane %v1585, 4
      %v2123 = vrot.slane %v1588, 5
      %v2124 = vor.u32 %v2122, %v2123
      %v2125 = vsel %vm2078, %v2120, %v2124
      %v2126 = vrot.slane %v1594, 4
      %v2127 = vrot.slane %v1597, 5
      %v2128 = vor.u32 %v2126, %v2127
      %v2129 = vsel %vm2078, %v2124, %v2128
      %v2130 = vrot.slane %v1603, 4
      %v2131 = vrot.slane %v1606, 5
      %v2132 = vor.u32 %v2130, %v2131
      %v2133 = vsel %vm2078, %v2128, %v2132
      %v2134 = vrot.slane %v1612, 4
      %v2135 = vrot.slane %v1615, 5
      %v2136 = vor.u32 %v2134, %v2135
      %v2137 = vsel %vm2078, %v2132, %v2136
      %v2138 = vrot.slane %v1621, 4
      %v2139 = vrot.slane %v1624, 5
      %v2140 = vor.u32 %v2138, %v2139
      %v2141 = vsel %vm2078, %v2136, %v2140
      %v2142 = vrot.slane %v1630, 4
      %v2143 = vrot.slane %v1633, 5
      %v2144 = vor.u32 %v2142, %v2143
      %v2145 = vsel %vm2078, %v2140, %v2144
      %v2146 = vrot.slane %v1639, 4
      %v2147 = vrot.slane %v1642, 5
      %v2148 = vor.u32 %v2146, %v2147
      %v2149 = vsel %vm2078, %v2144, %v2148
      %v2150 = vrot.slane %v1648, 4
      %v2151 = vrot.slane %v1651, 5
      %v2152 = vor.u32 %v2150, %v2151
      %v2153 = vsel %vm2078, %v2148, %v2152
      %v2154 = vrot.slane %v1657, 4
      %v2155 = vrot.slane %v1660, 5
      %v2156 = vor.u32 %v2154, %v2155
      %v2157 = vsel %vm2078, %v2152, %v2156
      %v2158 = vrot.slane %v1666, 4
      %v2159 = vrot.slane %v1669, 5
      %v2160 = vor.u32 %v2158, %v2159
      %v2161 = vsel %vm2078, %v2156, %v2160
      %v2162 = vrot.slane %v1675, 4
      %v2163 = vrot.slane %v1678, 5
      %v2164 = vor.u32 %v2162, %v2163
      %v2165 = vsel %vm2078, %v2160, %v2164
      %v2166 = vrot.slane %v1684, 4
      %v2167 = vrot.slane %v1687, 5
      %v2168 = vor.u32 %v2166, %v2167
      %v2169 = vsel %vm2078, %v2164, %v2168
      %v2170 = vrot.slane %v1693, 4
      %v2171 = vrot.slane %v1696, 5
      %v2172 = vor.u32 %v2170, %v2171
      %v2173 = vsel %vm2078, %v2168, %v2172
      %v2174 = vrot.slane %v1702, 4
      %v2175 = vrot.slane %v1705, 5
      %v2176 = vor.u32 %v2174, %v2175
      %v2177 = vsel %vm2078, %v2172, %v2176
      %v2178 = vrot.slane %v1711, 4
      %v2179 = vrot.slane %v1714, 5
      %v2180 = vor.u32 %v2178, %v2179
      %v2181 = vsel %vm2078, %v2176, %v2180
      %v2182 = vrot.slane %v1720, 4
      %v2183 = vrot.slane %v1723, 5
      %v2184 = vor.u32 %v2182, %v2183
      %v2185 = vsel %vm2078, %v2180, %v2184
      %v2186 = vrot.slane %v1729, 4
      %v2187 = vrot.slane %v1732, 5
      %v2188 = vor.u32 %v2186, %v2187
      %v2189 = vsel %vm2078, %v2184, %v2188
      %v2233 = vunpack.c.l.b16 %v2062
      %v2234 = vunpack.c.l.b16 %v2063
      %v2235 = vunpack.c.l.b16 %v2064
      %v2236 = vunpack.c.l.b16 %v2065
      %v2237 = vunpack.c.l.b16 %v2066
      %v2238 = vunpack.c.l.b16 %v2067
      %v2239 = vunpack.c.l.b16 %v2068
      %v2240 = vunpack.c.l.b16 %v2069
      %v2241 = vunpack.c.l.b16 %v2070
      %v2242 = vunpack.c.l.b16 %v2071
      %v2243 = vunpack.c.l.b16 %v2072
      %v2244 = vunpack.c.l.b16 %v2073
      %v2245 = vunpack.c.l.b16 %v2074
      %v2246 = vunpack.c.l.b16 %v2075
      %v2247 = vunpack.c.l.b16 %v2076
      %v2248 = vunpack.c.l.b16 %v2077
      %v2249 = vpack.c.b16 %v2234, %v2233
      %v2250 = vpack.c.b16 %v2236, %v2235
      %v2251 = vpack.c.b16 %v2238, %v2237
      %v2252 = vpack.c.b16 %v2240, %v2239
      %v2253 = vpack.c.b16 %v2242, %v2241
      %v2254 = vpack.c.b16 %v2244, %v2243
      %v2255 = vpack.c.b16 %v2246, %v2245
      %v2256 = vpack.c.b16 %v2248, %v2247
      %2265 = vmatprep.subr.bf16.mxu0 0
      %2266 = vmatpush1.bf16.msra.mxu0 %v2249
      %2267 = vmatprep.subr.bf16.mxu0 0
      %2268 = vmatpush1.bf16.msra.mxu0 %v2250
      %2269 = vmatprep.subr.bf16.mxu0 0
      %2270 = vmatpush1.bf16.msra.mxu0 %v2251
      %2271 = vmatprep.subr.bf16.mxu0 0
      %2272 = vmatpush1.bf16.msra.mxu0 %v2252
      %2273 = vmatprep.subr.bf16.mxu0 0
      %2274 = vmatpush1.bf16.msra.mxu0 %v2253
      %2275 = vmatprep.subr.bf16.mxu0 0
      %2276 = vmatpush1.bf16.msra.mxu0 %v2254
      %2277 = vmatprep.subr.bf16.mxu0 0
      %2278 = vmatpush1.bf16.msra.mxu0 %v2255
      %2279 = vmatprep.subr.bf16.mxu0 0
      %2280 = vmatpush1.bf16.msra.mxu0 %v2256
      %2281 = vmatprep.subr.bf16.mxu0 0
      %2282 = vmatpush1.bf16.msra.mxu0 0
      %2283 = vmatprep.subr.bf16.mxu0 0
      %2284 = vmatpush1.bf16.msra.mxu0 0
      %2285 = vmatprep.subr.bf16.mxu0 0
      %2286 = vmatpush1.bf16.msra.mxu0 0
      %2287 = vmatprep.subr.bf16.mxu0 0
      %2288 = vmatpush1.bf16.msra.mxu0 0
      %2289 = vmatprep.subr.bf16.mxu0 0
      %2290 = vmatpush1.bf16.msra.mxu0 0
      %2291 = vmatprep.subr.bf16.mxu0 0
      %2292 = vmatpush1.bf16.msra.mxu0 0
      %2293 = vmatprep.subr.bf16.mxu0 0
      %2294 = vmatpush1.bf16.msra.mxu0 0
      %2295 = vmatprep.subr.bf16.mxu0 0
      %2296 = vmatpush1.bf16.msra.mxu0 0
      %2297 = vmatprep.mubr.bf16.mxu0 0
      %2298 = vmatmul.mubr.bf16.gmra.mrb[0].mxu0 %v2085
      %v2299 = vpop.f32.mrb[0].mxu0
      %v2300 = vadd.f32 0.0, %v2299
      %v2301 = vpop.f32.mrb[0].mxu0
      %v2302 = vpop.f32.mrb[0].mxu0
      %v2303 = vadd.f32 0.0, %v2302
      %v2304 = vpop.f32.mrb[0].mxu0
      %2305 = vmatprep.mubr.bf16.mxu0 0
      %2306 = vmatmul.mubr.bf16.gmra.mrb[0].mxu0 %v2089
      %v2307 = vpop.f32.mrb[0].mxu0
      %v2308 = vadd.f32 0.0, %v2307
      %v2309 = vpop.f32.mrb[0].mxu0
      %v2310 = vpop.f32.mrb[0].mxu0
      %v2311 = vadd.f32 0.0, %v2310
      %v2312 = vpop.f32.mrb[0].mxu0
      %2313 = vmatprep.mubr.bf16.mxu0 0
      %2314 = vmatmul.mubr.bf16.gmra.mrb[0].mxu0 %v2093
      %v2315 = vpop.f32.mrb[0].mxu0
      %v2316 = vadd.f32 0.0, %v2315
      %v2317 = vpop.f32.mrb[0].mxu0
      %v2318 = vpop.f32.mrb[0].mxu0
      %v2319 = vadd.f32 0.0, %v2318
      %v2320 = vpop.f32.mrb[0].mxu0
      %2321 = vmatprep.mubr.bf16.mxu0 0
      %2322 = vmatmul.mubr.bf16.gmra.mrb[0].mxu0 %v2097
      %v2323 = vpop.f32.mrb[0].mxu0
      %v2324 = vadd.f32 0.0, %v2323
      %v2325 = vpop.f32.mrb[0].mxu0
      %v2326 = vpop.f32.mrb[0].mxu0
      %v2327 = vadd.f32 0.0, %v2326
      %v2328 = vpop.f32.mrb[0].mxu0
      %2329 = vmatprep.mubr.bf16.mxu0 0
      %2330 = vmatmul.mubr.bf16.gmra.mrb[0].mxu0 %v2101
      %v2331 = vpop.f32.mrb[0].mxu0
      %v2332 = vadd.f32 0.0, %v2331
      %v2333 = vpop.f32.mrb[0].mxu0
      %v2334 = vpop.f32.mrb[0].mxu0
      %v2335 = vadd.f32 0.0, %v2334
      %v2336 = vpop.f32.mrb[0].mxu0
      %2337 = vmatprep.mubr.bf16.mxu0 0
      %2338 = vmatmul.mubr.bf16.gmra.mrb[0].mxu0 %v2105
      %v2339 = vpop.f32.mrb[0].mxu0
      %v2340 = vadd.f32 0.0, %v2339
      %v2341 = vpop.f32.mrb[0].mxu0
      %v2342 = vpop.f32.mrb[0].mxu0
      %v2343 = vadd.f32 0.0, %v2342
      %v2344 = vpop.f32.mrb[0].mxu0
      %2345 = vmatprep.mubr.bf16.mxu0 0
      %2346 = vmatmul.mubr.bf16.gmra.mrb[0].mxu0 %v2109
      %v2347 = vpop.f32.mrb[0].mxu0
      %v2348 = vadd.f32 0.0, %v2347
      %v2349 = vpop.f32.mrb[0].mxu0
      %v2350 = vpop.f32.mrb[0].mxu0
      %v2351 = vadd.f32 0.0, %v2350
      %v2352 = vpop.f32.mrb[0].mxu0
      %2353 = vmatprep.mubr.bf16.mxu0 0
      %2354 = vmatmul.mubr.bf16.gmra.mrb[0].mxu0 %v2113
      %v2355 = vpop.f32.mrb[0].mxu0
      %v2356 = vadd.f32 0.0, %v2355
      %v2357 = vpop.f32.mrb[0].mxu0
      %v2358 = vpop.f32.mrb[0].mxu0
      %v2359 = vadd.f32 0.0, %v2358
      %v2360 = vpop.f32.mrb[0].mxu0
      %2361 = vmatprep.mubr.bf16.mxu0 0
      %2362 = vmatmul.mubr.bf16.gmra.mrb[0].mxu0 %v2117
      %v2363 = vpop.f32.mrb[0].mxu0
      %v2364 = vadd.f32 0.0, %v2363
      %v2365 = vpop.f32.mrb[0].mxu0
      %v2366 = vpop.f32.mrb[0].mxu0
      %v2367 = vadd.f32 0.0, %v2366
      %v2368 = vpop.f32.mrb[0].mxu0
      %2369 = vmatprep.mubr.bf16.mxu0 0
      %2370 = vmatmul.mubr.bf16.gmra.mrb[0].mxu0 %v2121
      %v2371 = vpop.f32.mrb[0].mxu0
      %v2372 = vadd.f32 0.0, %v2371
      %v2373 = vpop.f32.mrb[0].mxu0
      %v2374 = vpop.f32.mrb[0].mxu0
      %v2375 = vadd.f32 0.0, %v2374
      %v2376 = vpop.f32.mrb[0].mxu0
      %2377 = vmatprep.mubr.bf16.mxu0 0
      %2378 = vmatmul.mubr.bf16.gmra.mrb[0].mxu0 %v2125
      %v2379 = vpop.f32.mrb[0].mxu0
      %v2380 = vadd.f32 0.0, %v2379
      %v2381 = vpop.f32.mrb[0].mxu0
      %v2382 = vpop.f32.mrb[0].mxu0
      %v2383 = vadd.f32 0.0, %v2382
      %v2384 = vpop.f32.mrb[0].mxu0
      %2385 = vmatprep.mubr.bf16.mxu0 0
      %2386 = vmatmul.mubr.bf16.gmra.mrb[0].mxu0 %v2129
      %v2387 = vpop.f32.mrb[0].mxu0
      %v2388 = vadd.f32 0.0, %v2387
      %v2389 = vpop.f32.mrb[0].mxu0
      %v2390 = vpop.f32.mrb[0].mxu0
      %v2391 = vadd.f32 0.0, %v2390
      %v2392 = vpop.f32.mrb[0].mxu0
      %2393 = vmatprep.mubr.bf16.mxu0 0
      %2394 = vmatmul.mubr.bf16.gmra.mrb[0].mxu0 %v2133
      %v2395 = vpop.f32.mrb[0].mxu0
      %v2396 = vadd.f32 0.0, %v2395
      %v2397 = vpop.f32.mrb[0].mxu0
      %v2398 = vpop.f32.mrb[0].mxu0
      %v2399 = vadd.f32 0.0, %v2398
      %v2400 = vpop.f32.mrb[0].mxu0
      %2401 = vmatprep.mubr.bf16.mxu0 0
      %2402 = vmatmul.mubr.bf16.gmra.mrb[0].mxu0 %v2137
      %v2403 = vpop.f32.mrb[0].mxu0
      %v2404 = vadd.f32 0.0, %v2403
      %v2405 = vpop.f32.mrb[0].mxu0
      %v2406 = vpop.f32.mrb[0].mxu0
      %v2407 = vadd.f32 0.0, %v2406
      %v2408 = vpop.f32.mrb[0].mxu0
      %2409 = vmatprep.mubr.bf16.mxu0 0
      %2410 = vmatmul.mubr.bf16.gmra.mrb[0].mxu0 %v2141
      %v2411 = vpop.f32.mrb[0].mxu0
      %v2412 = vadd.f32 0.0, %v2411
      %v2413 = vpop.f32.mrb[0].mxu0
      %v2414 = vpop.f32.mrb[0].mxu0
      %v2415 = vadd.f32 0.0, %v2414
      %v2416 = vpop.f32.mrb[0].mxu0
      %2417 = vmatprep.mubr.bf16.mxu0 0
      %2418 = vmatmul.mubr.bf16.gmra.mrb[0].mxu0 %v2145
      %v2419 = vpop.f32.mrb[0].mxu0
      %v2420 = vadd.f32 0.0, %v2419
      %v2421 = vpop.f32.mrb[0].mxu0
      %v2422 = vpop.f32.mrb[0].mxu0
      %v2423 = vadd.f32 0.0, %v2422
      %v2424 = vpop.f32.mrb[0].mxu0
      %2425 = vmatprep.mubr.bf16.mxu0 0
      %2426 = vmatmul.mubr.bf16.gmra.mrb[0].mxu0 %v2149
      %v2427 = vpop.f32.mrb[0].mxu0
      %v2428 = vadd.f32 0.0, %v2427
      %v2429 = vpop.f32.mrb[0].mxu0
      %v2430 = vpop.f32.mrb[0].mxu0
      %v2431 = vadd.f32 0.0, %v2430
      %v2432 = vpop.f32.mrb[0].mxu0
      %2433 = vmatprep.mubr.bf16.mxu0 0
      %2434 = vmatmul.mubr.bf16.gmra.mrb[0].mxu0 %v2153
      %v2435 = vpop.f32.mrb[0].mxu0
      %v2436 = vadd.f32 0.0, %v2435
      %v2437 = vpop.f32.mrb[0].mxu0
      %v2438 = vpop.f32.mrb[0].mxu0
      %v2439 = vadd.f32 0.0, %v2438
      %v2440 = vpop.f32.mrb[0].mxu0
      %2441 = vmatprep.mubr.bf16.mxu0 0
      %2442 = vmatmul.mubr.bf16.gmra.mrb[0].mxu0 %v2157
      %v2443 = vpop.f32.mrb[0].mxu0
      %v2444 = vadd.f32 0.0, %v2443
      %v2445 = vpop.f32.mrb[0].mxu0
      %v2446 = vpop.f32.mrb[0].mxu0
      %v2447 = vadd.f32 0.0, %v2446
      %v2448 = vpop.f32.mrb[0].mxu0
      %2449 = vmatprep.mubr.bf16.mxu0 0
      %2450 = vmatmul.mubr.bf16.gmra.mrb[0].mxu0 %v2161
      %v2451 = vpop.f32.mrb[0].mxu0
      %v2452 = vadd.f32 0.0, %v2451
      %v2453 = vpop.f32.mrb[0].mxu0
      %v2454 = vpop.f32.mrb[0].mxu0
      %v2455 = vadd.f32 0.0, %v2454
      %v2456 = vpop.f32.mrb[0].mxu0
      %2457 = vmatprep.mubr.bf16.mxu0 0
      %2458 = vmatmul.mubr.bf16.gmra.mrb[0].mxu0 %v2165
      %v2459 = vpop.f32.mrb[0].mxu0
      %v2460 = vadd.f32 0.0, %v2459
      %v2461 = vpop.f32.mrb[0].mxu0
      %v2462 = vpop.f32.mrb[0].mxu0
      %v2463 = vadd.f32 0.0, %v2462
      %v2464 = vpop.f32.mrb[0].mxu0
      %2465 = vmatprep.mubr.bf16.mxu0 0
      %2466 = vmatmul.mubr.bf16.gmra.mrb[0].mxu0 %v2169
      %v2467 = vpop.f32.mrb[0].mxu0
      %v2468 = vadd.f32 0.0, %v2467
      %v2469 = vpop.f32.mrb[0].mxu0
      %v2470 = vpop.f32.mrb[0].mxu0
      %v2471 = vadd.f32 0.0, %v2470
      %v2472 = vpop.f32.mrb[0].mxu0
      %2473 = vmatprep.mubr.bf16.mxu0 0
      %2474 = vmatmul.mubr.bf16.gmra.mrb[0].mxu0 %v2173
      %v2475 = vpop.f32.mrb[0].mxu0
      %v2476 = vadd.f32 0.0, %v2475
      %v2477 = vpop.f32.mrb[0].mxu0
      %v2478 = vpop.f32.mrb[0].mxu0
      %v2479 = vadd.f32 0.0, %v2478
      %v2480 = vpop.f32.mrb[0].mxu0
      %2481 = vmatprep.mubr.bf16.mxu0 0
      %2482 = vmatmul.mubr.bf16.gmra.mrb[0].mxu0 %v2177
      %v2483 = vpop.f32.mrb[0].mxu0
      %v2484 = vadd.f32 0.0, %v2483
      %v2485 = vpop.f32.mrb[0].mxu0
      %v2486 = vpop.f32.mrb[0].mxu0
      %v2487 = vadd.f32 0.0, %v2486
      %v2488 = vpop.f32.mrb[0].mxu0
      %2489 = vmatprep.mubr.bf16.mxu0 0
      %2490 = vmatmul.mubr.bf16.gmra.mrb[0].mxu0 %v2181
      %v2491 = vpop.f32.mrb[0].mxu0
      %v2492 = vadd.f32 0.0, %v2491
      %v2493 = vpop.f32.mrb[0].mxu0
      %v2494 = vpop.f32.mrb[0].mxu0
      %v2495 = vadd.f32 0.0, %v2494
      %v2496 = vpop.f32.mrb[0].mxu0
      %2497 = vmatprep.mubr.bf16.mxu0 0
      %2498 = vmatmul.mubr.bf16.gmra.mrb[0].mxu0 %v2185
      %v2499 = vpop.f32.mrb[0].mxu0
      %v2500 = vadd.f32 0.0, %v2499
      %v2501 = vpop.f32.mrb[0].mxu0
      %v2502 = vpop.f32.mrb[0].mxu0
      %v2503 = vadd.f32 0.0, %v2502
      %v2504 = vpop.f32.mrb[0].mxu0
      %2505 = vmatprep.mubr.bf16.mxu0 0
      %2506 = vmatmul.mubr.bf16.gmra.mrb[0].mxu0 %v2189
      %v2507 = vpop.f32.mrb[0].mxu0
      %v2508 = vadd.f32 0.0, %v2507
      %v2509 = vpop.f32.mrb[0].mxu0
      %v2510 = vpop.f32.mrb[0].mxu0
      %v2511 = vadd.f32 0.0, %v2510
      %v2512 = vpop.f32.mrb[0].mxu0
      %2513 = vdwg.mxu0
      %v2514 = vadd.f32 %v1847, %v2300
      %v2515 = vadd.f32 %v1850, %v2303
      %v2516 = vadd.f32 %v1855, %v2308
      %v2517 = vadd.f32 %v1858, %v2311
      %v2518 = vadd.f32 %v1863, %v2316
      %v2519 = vadd.f32 %v1866, %v2319
      %v2520 = vadd.f32 %v1871, %v2324
      %v2521 = vadd.f32 %v1874, %v2327
      %v2522 = vadd.f32 %v1879, %v2332
      %v2523 = vadd.f32 %v1882, %v2335
      %v2524 = vadd.f32 %v1887, %v2340
      %v2525 = vadd.f32 %v1890, %v2343
      %v2526 = vadd.f32 %v1895, %v2348
      %v2527 = vadd.f32 %v1898, %v2351
      %v2528 = vadd.f32 %v1903, %v2356
      %v2529 = vadd.f32 %v1906, %v2359
      %v2530 = vadd.f32 %v1911, %v2364
      %v2531 = vadd.f32 %v1914, %v2367
      %v2532 = vadd.f32 %v1919, %v2372
      %v2533 = vadd.f32 %v1922, %v2375
      %v2534 = vadd.f32 %v1927, %v2380
      %v2535 = vadd.f32 %v1930, %v2383
      %v2536 = vadd.f32 %v1935, %v2388
      %v2537 = vadd.f32 %v1938, %v2391
      %v2538 = vadd.f32 %v1943, %v2396
      %v2539 = vadd.f32 %v1946, %v2399
      %v2540 = vadd.f32 %v1951, %v2404
      %v2541 = vadd.f32 %v1954, %v2407
      %v2542 = vadd.f32 %v1959, %v2412
      %v2543 = vadd.f32 %v1962, %v2415
      %v2544 = vadd.f32 %v1967, %v2420
      %v2545 = vadd.f32 %v1970, %v2423
      %v2546 = vadd.f32 %v1975, %v2428
      %v2547 = vadd.f32 %v1978, %v2431
      %v2548 = vadd.f32 %v1983, %v2436
      %v2549 = vadd.f32 %v1986, %v2439
      %v2550 = vadd.f32 %v1991, %v2444
      %v2551 = vadd.f32 %v1994, %v2447
      %v2552 = vadd.f32 %v1999, %v2452
      %v2553 = vadd.f32 %v2002, %v2455
      %v2554 = vadd.f32 %v2007, %v2460
      %v2555 = vadd.f32 %v2010, %v2463
      %v2556 = vadd.f32 %v2015, %v2468
      %v2557 = vadd.f32 %v2018, %v2471
      %v2558 = vadd.f32 %v2023, %v2476
      %v2559 = vadd.f32 %v2026, %v2479
      %v2560 = vadd.f32 %v2031, %v2484
      %v2561 = vadd.f32 %v2034, %v2487
      %v2562 = vadd.f32 %v2039, %v2492
      %v2563 = vadd.f32 %v2042, %v2495
      %v2564 = vadd.f32 %v2047, %v2500
      %v2565 = vadd.f32 %v2050, %v2503
      %v2566 = vadd.f32 %v2055, %v2508
      %v2567 = vadd.f32 %v2058, %v2511
      %s2568 = scalar_lea.vmem %s1, 192
      %v2569 = vld [vmem:[%s2568] sm:$0xf]
      %v2570 = vld [vmem:[%s2568 + $0x4] sm:$0xf]
      %v2571 = vld [vmem:[%s2568 + $0x8] sm:$0xf]
      %v2572 = vld [vmem:[%s2568 + $0xc] sm:$0xf]
      %v2573 = vld [vmem:[%s2568 + $0x10] sm:$0xf]
      %v2574 = vld [vmem:[%s2568 + $0x14] sm:$0xf]
      %v2575 = vld [vmem:[%s2568 + $0x18] sm:$0xf]
      %v2576 = vld [vmem:[%s2568 + $0x1c] sm:$0xf]
      %v2577 = vld [vmem:[%s2568 + $0x20] sm:$0xf]
      %v2578 = vld [vmem:[%s2568 + $0x24] sm:$0xf]
      %v2579 = vld [vmem:[%s2568 + $0x28] sm:$0xf]
      %v2580 = vld [vmem:[%s2568 + $0x2c] sm:$0xf]
      %v2581 = vld [vmem:[%s2568 + $0x30] sm:$0xf]
      %v2582 = vld [vmem:[%s2568 + $0x34] sm:$0xf]
      %v2583 = vld [vmem:[%s2568 + $0x38] sm:$0xf]
      %v2584 = vld [vmem:[%s2568 + $0x3c] sm:$0xf]
      %vm2585 = vsmask.f32 256
      %v2586 = vrot.slane %v1495, 7
      %v2587 = vrot.slane %v1504, 7
      %v2588 = vor.u32 %v2587, %v1507
      %v2589 = vsel %vm2585, %v2586, %v2588
      %v2590 = vrot.slane %v1513, 7
      %v2591 = vor.u32 %v2590, %v1516
      %v2592 = vsel %vm2585, %v2587, %v2591
      %v2593 = vrot.slane %v1522, 7
      %v2594 = vor.u32 %v2593, %v1525
      %v2595 = vsel %vm2585, %v2590, %v2594
      %v2596 = vrot.slane %v1531, 7
      %v2597 = vor.u32 %v2596, %v1534
      %v2598 = vsel %vm2585, %v2593, %v2597
      %v2599 = vrot.slane %v1540, 7
      %v2600 = vor.u32 %v2599, %v1543
      %v2601 = vsel %vm2585, %v2596, %v2600
      %v2602 = vrot.slane %v1549, 7
      %v2603 = vor.u32 %v2602, %v1552
      %v2604 = vsel %vm2585, %v2599, %v2603
      %v2605 = vrot.slane %v1558, 7
      %v2606 = vor.u32 %v2605, %v1561
      %v2607 = vsel %vm2585, %v2602, %v2606
      %v2608 = vrot.slane %v1567, 7
      %v2609 = vor.u32 %v2608, %v1570
      %v2610 = vsel %vm2585, %v2605, %v2609
      %v2611 = vrot.slane %v1576, 7
      %v2612 = vor.u32 %v2611, %v1579
      %v2613 = vsel %vm2585, %v2608, %v2612
      %v2614 = vrot.slane %v1585, 7
      %v2615 = vor.u32 %v2614, %v1588
      %v2616 = vsel %vm2585, %v2611, %v2615
      %v2617 = vrot.slane %v1594, 7
      %v2618 = vor.u32 %v2617, %v1597
      %v2619 = vsel %vm2585, %v2614, %v2618
      %v2620 = vrot.slane %v1603, 7
      %v2621 = vor.u32 %v2620, %v1606
      %v2622 = vsel %vm2585, %v2617, %v2621
      %v2623 = vrot.slane %v1612, 7
      %v2624 = vor.u32 %v2623, %v1615
      %v2625 = vsel %vm2585, %v2620, %v2624
      %v2626 = vrot.slane %v1621, 7
      %v2627 = vor.u32 %v2626, %v1624
      %v2628 = vsel %vm2585, %v2623, %v2627
      %v2629 = vrot.slane %v1630, 7
      %v2630 = vor.u32 %v2629, %v1633
      %v2631 = vsel %vm2585, %v2626, %v2630
      %v2632 = vrot.slane %v1639, 7
      %v2633 = vor.u32 %v2632, %v1642
      %v2634 = vsel %vm2585, %v2629, %v2633
      %v2635 = vrot.slane %v1648, 7
      %v2636 = vor.u32 %v2635, %v1651
      %v2637 = vsel %vm2585, %v2632, %v2636
      %v2638 = vrot.slane %v1657, 7
      %v2639 = vor.u32 %v2638, %v1660
      %v2640 = vsel %vm2585, %v2635, %v2639
      %v2641 = vrot.slane %v1666, 7
      %v2642 = vor.u32 %v2641, %v1669
      %v2643 = vsel %vm2585, %v2638, %v2642
      %v2644 = vrot.slane %v1675, 7
      %v2645 = vor.u32 %v2644, %v1678
      %v2646 = vsel %vm2585, %v2641, %v2645
      %v2647 = vrot.slane %v1684, 7
      %v2648 = vor.u32 %v2647, %v1687
      %v2649 = vsel %vm2585, %v2644, %v2648
      %v2650 = vrot.slane %v1693, 7
      %v2651 = vor.u32 %v2650, %v1696
      %v2652 = vsel %vm2585, %v2647, %v2651
      %v2653 = vrot.slane %v1702, 7
      %v2654 = vor.u32 %v2653, %v1705
      %v2655 = vsel %vm2585, %v2650, %v2654
      %v2656 = vrot.slane %v1711, 7
      %v2657 = vor.u32 %v2656, %v1714
      %v2658 = vsel %vm2585, %v2653, %v2657
      %v2659 = vrot.slane %v1720, 7
      %v2660 = vor.u32 %v2659, %v1723
      %v2661 = vsel %vm2585, %v2656, %v2660
      %v2662 = vrot.slane %v1729, 7
      %v2663 = vor.u32 %v2662, %v1732
      %v2664 = vsel %vm2585, %v2659, %v2663
      %v2666 = vshrl.u32 %v1041, 16
      %v2668 = vrot.slane %v2666, 7
      %v2669 = vshll.u32 %v1041, 16
      %v2671 = vor.u32 %v2668, %v2669
      %v2672 = vsel %vm2585, %v2662, %v2671
      %v2716 = vunpack.c.l.b16 %v2569
      %v2717 = vunpack.c.l.b16 %v2570
      %v2718 = vunpack.c.l.b16 %v2571
      %v2719 = vunpack.c.l.b16 %v2572
      %v2720 = vunpack.c.l.b16 %v2573
      %v2721 = vunpack.c.l.b16 %v2574
      %v2722 = vunpack.c.l.b16 %v2575
      %v2723 = vunpack.c.l.b16 %v2576
      %v2724 = vunpack.c.l.b16 %v2577
      %v2725 = vunpack.c.l.b16 %v2578
      %v2726 = vunpack.c.l.b16 %v2579
      %v2727 = vunpack.c.l.b16 %v2580
      %v2728 = vunpack.c.l.b16 %v2581
      %v2729 = vunpack.c.l.b16 %v2582
      %v2730 = vunpack.c.l.b16 %v2583
      %v2731 = vunpack.c.l.b16 %v2584
      %v2732 = vpack.c.b16 %v2717, %v2716
      %v2733 = vpack.c.b16 %v2719, %v2718
      %v2734 = vpack.c.b16 %v2721, %v2720
      %v2735 = vpack.c.b16 %v2723, %v2722
      %v2736 = vpack.c.b16 %v2725, %v2724
      %v2737 = vpack.c.b16 %v2727, %v2726
      %v2738 = vpack.c.b16 %v2729, %v2728
      %v2739 = vpack.c.b16 %v2731, %v2730
      %2748 = vmatprep.subr.bf16.mxu0 0
      %2749 = vmatpush1.bf16.msra.mxu0 %v2732
      %2750 = vmatprep.subr.bf16.mxu0 0
      %2751 = vmatpush1.bf16.msra.mxu0 %v2733
      %2752 = vmatprep.subr.bf16.mxu0 0
      %2753 = vmatpush1.bf16.msra.mxu0 %v2734
      %2754 = vmatprep.subr.bf16.mxu0 0
      %2755 = vmatpush1.bf16.msra.mxu0 %v2735
      %2756 = vmatprep.subr.bf16.mxu0 0
      %2757 = vmatpush1.bf16.msra.mxu0 %v2736
      %2758 = vmatprep.subr.bf16.mxu0 0
      %2759 = vmatpush1.bf16.msra.mxu0 %v2737
      %2760 = vmatprep.subr.bf16.mxu0 0
      %2761 = vmatpush1.bf16.msra.mxu0 %v2738
      %2762 = vmatprep.subr.bf16.mxu0 0
      %2763 = vmatpush1.bf16.msra.mxu0 %v2739
      %2764 = vmatprep.subr.bf16.mxu0 0
      %2765 = vmatpush1.bf16.msra.mxu0 0
      %2766 = vmatprep.subr.bf16.mxu0 0
      %2767 = vmatpush1.bf16.msra.mxu0 0
      %2768 = vmatprep.subr.bf16.mxu0 0
      %2769 = vmatpush1.bf16.msra.mxu0 0
      %2770 = vmatprep.subr.bf16.mxu0 0
      %2771 = vmatpush1.bf16.msra.mxu0 0
      %2772 = vmatprep.subr.bf16.mxu0 0
      %2773 = vmatpush1.bf16.msra.mxu0 0
      %2774 = vmatprep.subr.bf16.mxu0 0
      %2775 = vmatpush1.bf16.msra.mxu0 0
      %2776 = vmatprep.subr.bf16.mxu0 0
      %2777 = vmatpush1.bf16.msra.mxu0 0
      %2778 = vmatprep.subr.bf16.mxu0 0
      %2779 = vmatpush1.bf16.msra.mxu0 0
      %2780 = vmatprep.mubr.bf16.mxu0 0
      %2781 = vmatmul.mubr.bf16.gmra.mrb[0].mxu0 %v2589
      %v2782 = vpop.f32.mrb[0].mxu0
      %v2783 = vadd.f32 0.0, %v2782
      %v2784 = vpop.f32.mrb[0].mxu0
      %v2785 = vpop.f32.mrb[0].mxu0
      %v2786 = vadd.f32 0.0, %v2785
      %v2787 = vpop.f32.mrb[0].mxu0
      %2788 = vmatprep.mubr.bf16.mxu0 0
      %2789 = vmatmul.mubr.bf16.gmra.mrb[0].mxu0 %v2592
      %v2790 = vpop.f32.mrb[0].mxu0
      %v2791 = vadd.f32 0.0, %v2790
      %v2792 = vpop.f32.mrb[0].mxu0
      %v2793 = vpop.f32.mrb[0].mxu0
      %v2794 = vadd.f32 0.0, %v2793
      %v2795 = vpop.f32.mrb[0].mxu0
      %2796 = vmatprep.mubr.bf16.mxu0 0
      %2797 = vmatmul.mubr.bf16.gmra.mrb[0].mxu0 %v2595
      %v2798 = vpop.f32.mrb[0].mxu0
      %v2799 = vadd.f32 0.0, %v2798
      %v2800 = vpop.f32.mrb[0].mxu0
      %v2801 = vpop.f32.mrb[0].mxu0
      %v2802 = vadd.f32 0.0, %v2801
      %v2803 = vpop.f32.mrb[0].mxu0
      %2804 = vmatprep.mubr.bf16.mxu0 0
      %2805 = vmatmul.mubr.bf16.gmra.mrb[0].mxu0 %v2598
      %v2806 = vpop.f32.mrb[0].mxu0
      %v2807 = vadd.f32 0.0, %v2806
      %v2808 = vpop.f32.mrb[0].mxu0
      %v2809 = vpop.f32.mrb[0].mxu0
      %v2810 = vadd.f32 0.0, %v2809
      %v2811 = vpop.f32.mrb[0].mxu0
      %2812 = vmatprep.mubr.bf16.mxu0 0
      %2813 = vmatmul.mubr.bf16.gmra.mrb[0].mxu0 %v2601
      %v2814 = vpop.f32.mrb[0].mxu0
      %v2815 = vadd.f32 0.0, %v2814
      %v2816 = vpop.f32.mrb[0].mxu0
      %v2817 = vpop.f32.mrb[0].mxu0
      %v2818 = vadd.f32 0.0, %v2817
      %v2819 = vpop.f32.mrb[0].mxu0
      %2820 = vmatprep.mubr.bf16.mxu0 0
      %2821 = vmatmul.mubr.bf16.gmra.mrb[0].mxu0 %v2604
      %v2822 = vpop.f32.mrb[0].mxu0
      %v2823 = vadd.f32 0.0, %v2822
      %v2824 = vpop.f32.mrb[0].mxu0
      %v2825 = vpop.f32.mrb[0].mxu0
      %v2826 = vadd.f32 0.0, %v2825
      %v2827 = vpop.f32.mrb[0].mxu0
      %2828 = vmatprep.mubr.bf16.mxu0 0
      %2829 = vmatmul.mubr.bf16.gmra.mrb[0].mxu0 %v2607
      %v2830 = vpop.f32.mrb[0].mxu0
      %v2831 = vadd.f32 0.0, %v2830
      %v2832 = vpop.f32.mrb[0].mxu0
      %v2833 = vpop.f32.mrb[0].mxu0
      %v2834 = vadd.f32 0.0, %v2833
      %v2835 = vpop.f32.mrb[0].mxu0
      %2836 = vmatprep.mubr.bf16.mxu0 0
      %2837 = vmatmul.mubr.bf16.gmra.mrb[0].mxu0 %v2610
      %v2838 = vpop.f32.mrb[0].mxu0
      %v2839 = vadd.f32 0.0, %v2838
      %v2840 = vpop.f32.mrb[0].mxu0
      %v2841 = vpop.f32.mrb[0].mxu0
      %v2842 = vadd.f32 0.0, %v2841
      %v2843 = vpop.f32.mrb[0].mxu0
      %2844 = vmatprep.mubr.bf16.mxu0 0
      %2845 = vmatmul.mubr.bf16.gmra.mrb[0].mxu0 %v2613
      %v2846 = vpop.f32.mrb[0].mxu0
      %v2847 = vadd.f32 0.0, %v2846
      %v2848 = vpop.f32.mrb[0].mxu0
      %v2849 = vpop.f32.mrb[0].mxu0
      %v2850 = vadd.f32 0.0, %v2849
      %v2851 = vpop.f32.mrb[0].mxu0
      %2852 = vmatprep.mubr.bf16.mxu0 0
      %2853 = vmatmul.mubr.bf16.gmra.mrb[0].mxu0 %v2616
      %v2854 = vpop.f32.mrb[0].mxu0
      %v2855 = vadd.f32 0.0, %v2854
      %v2856 = vpop.f32.mrb[0].mxu0
      %v2857 = vpop.f32.mrb[0].mxu0
      %v2858 = vadd.f32 0.0, %v2857
      %v2859 = vpop.f32.mrb[0].mxu0
      %2860 = vmatprep.mubr.bf16.mxu0 0
      %2861 = vmatmul.mubr.bf16.gmra.mrb[0].mxu0 %v2619
      %v2862 = vpop.f32.mrb[0].mxu0
      %v2863 = vadd.f32 0.0, %v2862
      %v2864 = vpop.f32.mrb[0].mxu0
      %v2865 = vpop.f32.mrb[0].mxu0
      %v2866 = vadd.f32 0.0, %v2865
      %v2867 = vpop.f32.mrb[0].mxu0
      %2868 = vmatprep.mubr.bf16.mxu0 0
      %2869 = vmatmul.mubr.bf16.gmra.mrb[0].mxu0 %v2622
      %v2870 = vpop.f32.mrb[0].mxu0
      %v2871 = vadd.f32 0.0, %v2870
      %v2872 = vpop.f32.mrb[0].mxu0
      %v2873 = vpop.f32.mrb[0].mxu0
      %v2874 = vadd.f32 0.0, %v2873
      %v2875 = vpop.f32.mrb[0].mxu0
      %2876 = vmatprep.mubr.bf16.mxu0 0
      %2877 = vmatmul.mubr.bf16.gmra.mrb[0].mxu0 %v2625
      %v2878 = vpop.f32.mrb[0].mxu0
      %v2879 = vadd.f32 0.0, %v2878
      %v2880 = vpop.f32.mrb[0].mxu0
      %v2881 = vpop.f32.mrb[0].mxu0
      %v2882 = vadd.f32 0.0, %v2881
      %v2883 = vpop.f32.mrb[0].mxu0
      %2884 = vmatprep.mubr.bf16.mxu0 0
      %2885 = vmatmul.mubr.bf16.gmra.mrb[0].mxu0 %v2628
      %v2886 = vpop.f32.mrb[0].mxu0
      %v2887 = vadd.f32 0.0, %v2886
      %v2888 = vpop.f32.mrb[0].mxu0
      %v2889 = vpop.f32.mrb[0].mxu0
      %v2890 = vadd.f32 0.0, %v2889
      %v2891 = vpop.f32.mrb[0].mxu0
      %2892 = vmatprep.mubr.bf16.mxu0 0
      %2893 = vmatmul.mubr.bf16.gmra.mrb[0].mxu0 %v2631
      %v2894 = vpop.f32.mrb[0].mxu0
      %v2895 = vadd.f32 0.0, %v2894
      %v2896 = vpop.f32.mrb[0].mxu0
      %v2897 = vpop.f32.mrb[0].mxu0
      %v2898 = vadd.f32 0.0, %v2897
      %v2899 = vpop.f32.mrb[0].mxu0
      %2900 = vmatprep.mubr.bf16.mxu0 0
      %2901 = vmatmul.mubr.bf16.gmra.mrb[0].mxu0 %v2634
      %v2902 = vpop.f32.mrb[0].mxu0
      %v2903 = vadd.f32 0.0, %v2902
      %v2904 = vpop.f32.mrb[0].mxu0
      %v2905 = vpop.f32.mrb[0].mxu0
      %v2906 = vadd.f32 0.0, %v2905
      %v2907 = vpop.f32.mrb[0].mxu0
      %2908 = vmatprep.mubr.bf16.mxu0 0
      %2909 = vmatmul.mubr.bf16.gmra.mrb[0].mxu0 %v2637
      %v2910 = vpop.f32.mrb[0].mxu0
      %v2911 = vadd.f32 0.0, %v2910
      %v2912 = vpop.f32.mrb[0].mxu0
      %v2913 = vpop.f32.mrb[0].mxu0
      %v2914 = vadd.f32 0.0, %v2913
      %v2915 = vpop.f32.mrb[0].mxu0
      %2916 = vmatprep.mubr.bf16.mxu0 0
      %2917 = vmatmul.mubr.bf16.gmra.mrb[0].mxu0 %v2640
      %v2918 = vpop.f32.mrb[0].mxu0
      %v2919 = vadd.f32 0.0, %v2918
      %v2920 = vpop.f32.mrb[0].mxu0
      %v2921 = vpop.f32.mrb[0].mxu0
      %v2922 = vadd.f32 0.0, %v2921
      %v2923 = vpop.f32.mrb[0].mxu0
      %2924 = vmatprep.mubr.bf16.mxu0 0
      %2925 = vmatmul.mubr.bf16.gmra.mrb[0].mxu0 %v2643
      %v2926 = vpop.f32.mrb[0].mxu0
      %v2927 = vadd.f32 0.0, %v2926
      %v2928 = vpop.f32.mrb[0].mxu0
      %v2929 = vpop.f32.mrb[0].mxu0
      %v2930 = vadd.f32 0.0, %v2929
      %v2931 = vpop.f32.mrb[0].mxu0
      %2932 = vmatprep.mubr.bf16.mxu0 0
      %2933 = vmatmul.mubr.bf16.gmra.mrb[0].mxu0 %v2646
      %v2934 = vpop.f32.mrb[0].mxu0
      %v2935 = vadd.f32 0.0, %v2934
      %v2936 = vpop.f32.mrb[0].mxu0
      %v2937 = vpop.f32.mrb[0].mxu0
      %v2938 = vadd.f32 0.0, %v2937
      %v2939 = vpop.f32.mrb[0].mxu0
      %2940 = vmatprep.mubr.bf16.mxu0 0
      %2941 = vmatmul.mubr.bf16.gmra.mrb[0].mxu0 %v2649
      %v2942 = vpop.f32.mrb[0].mxu0
      %v2943 = vadd.f32 0.0, %v2942
      %v2944 = vpop.f32.mrb[0].mxu0
      %v2945 = vpop.f32.mrb[0].mxu0
      %v2946 = vadd.f32 0.0, %v2945
      %v2947 = vpop.f32.mrb[0].mxu0
      %2948 = vmatprep.mubr.bf16.mxu0 0
      %2949 = vmatmul.mubr.bf16.gmra.mrb[0].mxu0 %v2652
      %v2950 = vpop.f32.mrb[0].mxu0
      %v2951 = vadd.f32 0.0, %v2950
      %v2952 = vpop.f32.mrb[0].mxu0
      %v2953 = vpop.f32.mrb[0].mxu0
      %v2954 = vadd.f32 0.0, %v2953
      %v2955 = vpop.f32.mrb[0].mxu0
      %2956 = vmatprep.mubr.bf16.mxu0 0
      %2957 = vmatmul.mubr.bf16.gmra.mrb[0].mxu0 %v2655
      %v2958 = vpop.f32.mrb[0].mxu0
      %v2959 = vadd.f32 0.0, %v2958
      %v2960 = vpop.f32.mrb[0].mxu0
      %v2961 = vpop.f32.mrb[0].mxu0
      %v2962 = vadd.f32 0.0, %v2961
      %v2963 = vpop.f32.mrb[0].mxu0
      %2964 = vmatprep.mubr.bf16.mxu0 0
      %2965 = vmatmul.mubr.bf16.gmra.mrb[0].mxu0 %v2658
      %v2966 = vpop.f32.mrb[0].mxu0
      %v2967 = vadd.f32 0.0, %v2966
      %v2968 = vpop.f32.mrb[0].mxu0
      %v2969 = vpop.f32.mrb[0].mxu0
      %v2970 = vadd.f32 0.0, %v2969
      %v2971 = vpop.f32.mrb[0].mxu0
      %2972 = vmatprep.mubr.bf16.mxu0 0
      %2973 = vmatmul.mubr.bf16.gmra.mrb[0].mxu0 %v2661
      %v2974 = vpop.f32.mrb[0].mxu0
      %v2975 = vadd.f32 0.0, %v2974
      %v2976 = vpop.f32.mrb[0].mxu0
      %v2977 = vpop.f32.mrb[0].mxu0
      %v2978 = vadd.f32 0.0, %v2977
      %v2979 = vpop.f32.mrb[0].mxu0
      %2980 = vmatprep.mubr.bf16.mxu0 0
      %2981 = vmatmul.mubr.bf16.gmra.mrb[0].mxu0 %v2664
      %v2982 = vpop.f32.mrb[0].mxu0
      %v2983 = vadd.f32 0.0, %v2982
      %v2984 = vpop.f32.mrb[0].mxu0
      %v2985 = vpop.f32.mrb[0].mxu0
      %v2986 = vadd.f32 0.0, %v2985
      %v2987 = vpop.f32.mrb[0].mxu0
      %2988 = vmatprep.mubr.bf16.mxu0 0
      %2989 = vmatmul.mubr.bf16.gmra.mrb[0].mxu0 %v2672
      %v2990 = vpop.f32.mrb[0].mxu0
      %v2991 = vadd.f32 0.0, %v2990
      %v2992 = vpop.f32.mrb[0].mxu0
      %v2993 = vpop.f32.mrb[0].mxu0
      %v2994 = vadd.f32 0.0, %v2993
      %v2995 = vpop.f32.mrb[0].mxu0
      %2996 = vdwg.mxu0
      %v2997 = vadd.f32 %v2514, %v2783
      %v2998 = vadd.f32 %v2515, %v2786
      %v2999 = vadd.f32 %v2516, %v2791
      %v3000 = vadd.f32 %v2517, %v2794
      %v3001 = vadd.f32 %v2518, %v2799
      %v3002 = vadd.f32 %v2519, %v2802
      %v3003 = vadd.f32 %v2520, %v2807
      %v3004 = vadd.f32 %v2521, %v2810
      %v3005 = vadd.f32 %v2522, %v2815
      %v3006 = vadd.f32 %v2523, %v2818
      %v3007 = vadd.f32 %v2524, %v2823
      %v3008 = vadd.f32 %v2525, %v2826
      %v3009 = vadd.f32 %v2526, %v2831
      %v3010 = vadd.f32 %v2527, %v2834
      %v3011 = vadd.f32 %v2528, %v2839
      %v3012 = vadd.f32 %v2529, %v2842
      %v3013 = vadd.f32 %v2530, %v2847
      %v3014 = vadd.f32 %v2531, %v2850
      %v3015 = vadd.f32 %v2532, %v2855
      %v3016 = vadd.f32 %v2533, %v2858
      %v3017 = vadd.f32 %v2534, %v2863
      %v3018 = vadd.f32 %v2535, %v2866
      %v3019 = vadd.f32 %v2536, %v2871
      %v3020 = vadd.f32 %v2537, %v2874
      %v3021 = vadd.f32 %v2538, %v2879
      %v3022 = vadd.f32 %v2539, %v2882
      %v3023 = vadd.f32 %v2540, %v2887
      %v3024 = vadd.f32 %v2541, %v2890
      %v3025 = vadd.f32 %v2542, %v2895
      %v3026 = vadd.f32 %v2543, %v2898
      %v3027 = vadd.f32 %v2544, %v2903
      %v3028 = vadd.f32 %v2545, %v2906
      %v3029 = vadd.f32 %v2546, %v2911
      %v3030 = vadd.f32 %v2547, %v2914
      %v3031 = vadd.f32 %v2548, %v2919
      %v3032 = vadd.f32 %v2549, %v2922
      %v3033 = vadd.f32 %v2550, %v2927
      %v3034 = vadd.f32 %v2551, %v2930
      %v3035 = vadd.f32 %v2552, %v2935
      %v3036 = vadd.f32 %v2553, %v2938
      %v3037 = vadd.f32 %v2554, %v2943
      %v3038 = vadd.f32 %v2555, %v2946
      %v3039 = vadd.f32 %v2556, %v2951
      %v3040 = vadd.f32 %v2557, %v2954
      %v3041 = vadd.f32 %v2558, %v2959
      %v3042 = vadd.f32 %v2559, %v2962
      %v3043 = vadd.f32 %v2560, %v2967
      %v3044 = vadd.f32 %v2561, %v2970
      %v3045 = vadd.f32 %v2562, %v2975
      %v3046 = vadd.f32 %v2563, %v2978
      %v3047 = vadd.f32 %v2564, %v2983
      %v3048 = vadd.f32 %v2565, %v2986
      %v3049 = vadd.f32 %v2566, %v2991
      %v3050 = vadd.f32 %v2567, %v2994
      %s3051 = scalar_lea.vmem %s1, 256
      %v3052 = vld [vmem:[%s3051] sm:$0xf]
      %v3053 = vld [vmem:[%s3051 + $0x4] sm:$0xf]
      %v3054 = vld [vmem:[%s3051 + $0x8] sm:$0xf]
      %v3055 = vld [vmem:[%s3051 + $0xc] sm:$0xf]
      %v3056 = vld [vmem:[%s3051 + $0x10] sm:$0xf]
      %v3057 = vld [vmem:[%s3051 + $0x14] sm:$0xf]
      %v3058 = vld [vmem:[%s3051 + $0x18] sm:$0xf]
      %v3059 = vld [vmem:[%s3051 + $0x1c] sm:$0xf]
      %v3060 = vld [vmem:[%s3051 + $0x20] sm:$0xf]
      %v3061 = vld [vmem:[%s3051 + $0x24] sm:$0xf]
      %v3062 = vld [vmem:[%s3051 + $0x28] sm:$0xf]
      %v3063 = vld [vmem:[%s3051 + $0x2c] sm:$0xf]
      %v3064 = vld [vmem:[%s3051 + $0x30] sm:$0xf]
      %v3065 = vld [vmem:[%s3051 + $0x34] sm:$0xf]
      %v3066 = vld [vmem:[%s3051 + $0x38] sm:$0xf]
      %v3067 = vld [vmem:[%s3051 + $0x3c] sm:$0xf]
      %v3084 = vunpack.c.l.b16 %v3052
      %v3085 = vunpack.c.l.b16 %v3053
      %v3086 = vunpack.c.l.b16 %v3054
      %v3087 = vunpack.c.l.b16 %v3055
      %v3088 = vunpack.c.l.b16 %v3056
      %v3089 = vunpack.c.l.b16 %v3057
      %v3090 = vunpack.c.l.b16 %v3058
      %v3091 = vunpack.c.l.b16 %v3059
      %v3092 = vunpack.c.l.b16 %v3060
      %v3093 = vunpack.c.l.b16 %v3061
      %v3094 = vunpack.c.l.b16 %v3062
      %v3095 = vunpack.c.l.b16 %v3063
      %v3096 = vunpack.c.l.b16 %v3064
      %v3097 = vunpack.c.l.b16 %v3065
      %v3098 = vunpack.c.l.b16 %v3066
      %v3099 = vunpack.c.l.b16 %v3067
      %v3100 = vpack.c.b16 %v3085, %v3084
      %v3101 = vpack.c.b16 %v3087, %v3086
      %v3102 = vpack.c.b16 %v3089, %v3088
      %v3103 = vpack.c.b16 %v3091, %v3090
      %v3104 = vpack.c.b16 %v3093, %v3092
      %v3105 = vpack.c.b16 %v3095, %v3094
      %v3106 = vpack.c.b16 %v3097, %v3096
      %v3107 = vpack.c.b16 %v3099, %v3098
      %3116 = vmatprep.subr.bf16.mxu0 0
      %3117 = vmatpush1.bf16.msra.mxu0 %v3100
      %3118 = vmatprep.subr.bf16.mxu0 0
      %3119 = vmatpush1.bf16.msra.mxu0 %v3101
      %3120 = vmatprep.subr.bf16.mxu0 0
      %3121 = vmatpush1.bf16.msra.mxu0 %v3102
      %3122 = vmatprep.subr.bf16.mxu0 0
      %3123 = vmatpush1.bf16.msra.mxu0 %v3103
      %3124 = vmatprep.subr.bf16.mxu0 0
      %3125 = vmatpush1.bf16.msra.mxu0 %v3104
      %3126 = vmatprep.subr.bf16.mxu0 0
      %3127 = vmatpush1.bf16.msra.mxu0 %v3105
      %3128 = vmatprep.subr.bf16.mxu0 0
      %3129 = vmatpush1.bf16.msra.mxu0 %v3106
      %3130 = vmatprep.subr.bf16.mxu0 0
      %3131 = vmatpush1.bf16.msra.mxu0 %v3107
      %3132 = vmatprep.subr.bf16.mxu0 0
      %3133 = vmatpush1.bf16.msra.mxu0 0
      %3134 = vmatprep.subr.bf16.mxu0 0
      %3135 = vmatpush1.bf16.msra.mxu0 0
      %3136 = vmatprep.subr.bf16.mxu0 0
      %3137 = vmatpush1.bf16.msra.mxu0 0
      %3138 = vmatprep.subr.bf16.mxu0 0
      %3139 = vmatpush1.bf16.msra.mxu0 0
      %3140 = vmatprep.subr.bf16.mxu0 0
      %3141 = vmatpush1.bf16.msra.mxu0 0
      %3142 = vmatprep.subr.bf16.mxu0 0
      %3143 = vmatpush1.bf16.msra.mxu0 0
      %3144 = vmatprep.subr.bf16.mxu0 0
      %3145 = vmatpush1.bf16.msra.mxu0 0
      %3146 = vmatprep.subr.bf16.mxu0 0
      %3147 = vmatpush1.bf16.msra.mxu0 0
      %3148 = vmatprep.mubr.bf16.mxu0 0
      %3149 = vmatmul.mubr.bf16.gmra.mrb[0].mxu0 %v1015
      %v3150 = vpop.f32.mrb[0].mxu0
      %v3151 = vadd.f32 0.0, %v3150
      %v3152 = vpop.f32.mrb[0].mxu0
      %v3153 = vpop.f32.mrb[0].mxu0
      %v3154 = vadd.f32 0.0, %v3153
      %v3155 = vpop.f32.mrb[0].mxu0
      %3156 = vmatprep.mubr.bf16.mxu0 0
      %3157 = vmatmul.mubr.bf16.gmra.mrb[0].mxu0 %v1016
      %v3158 = vpop.f32.mrb[0].mxu0
      %v3159 = vadd.f32 0.0, %v3158
      %v3160 = vpop.f32.mrb[0].mxu0
      %v3161 = vpop.f32.mrb[0].mxu0
      %v3162 = vadd.f32 0.0, %v3161
      %v3163 = vpop.f32.mrb[0].mxu0
      %3164 = vmatprep.mubr.bf16.mxu0 0
      %3165 = vmatmul.mubr.bf16.gmra.mrb[0].mxu0 %v1017
      %v3166 = vpop.f32.mrb[0].mxu0
      %v3167 = vadd.f32 0.0, %v3166
      %v3168 = vpop.f32.mrb[0].mxu0
      %v3169 = vpop.f32.mrb[0].mxu0
      %v3170 = vadd.f32 0.0, %v3169
      %v3171 = vpop.f32.mrb[0].mxu0
      %3172 = vmatprep.mubr.bf16.mxu0 0
      %3173 = vmatmul.mubr.bf16.gmra.mrb[0].mxu0 %v1018
      %v3174 = vpop.f32.mrb[0].mxu0
      %v3175 = vadd.f32 0.0, %v3174
      %v3176 = vpop.f32.mrb[0].mxu0
      %v3177 = vpop.f32.mrb[0].mxu0
      %v3178 = vadd.f32 0.0, %v3177
      %v3179 = vpop.f32.mrb[0].mxu0
      %3180 = vmatprep.mubr.bf16.mxu0 0
      %3181 = vmatmul.mubr.bf16.gmra.mrb[0].mxu0 %v1019
      %v3182 = vpop.f32.mrb[0].mxu0
      %v3183 = vadd.f32 0.0, %v3182
      %v3184 = vpop.f32.mrb[0].mxu0
      %v3185 = vpop.f32.mrb[0].mxu0
      %v3186 = vadd.f32 0.0, %v3185
      %v3187 = vpop.f32.mrb[0].mxu0
      %3188 = vmatprep.mubr.bf16.mxu0 0
      %3189 = vmatmul.mubr.bf16.gmra.mrb[0].mxu0 %v1020
      %v3190 = vpop.f32.mrb[0].mxu0
      %v3191 = vadd.f32 0.0, %v3190
      %v3192 = vpop.f32.mrb[0].mxu0
      %v3193 = vpop.f32.mrb[0].mxu0
      %v3194 = vadd.f32 0.0, %v3193
      %v3195 = vpop.f32.mrb[0].mxu0
      %3196 = vmatprep.mubr.bf16.mxu0 0
      %3197 = vmatmul.mubr.bf16.gmra.mrb[0].mxu0 %v1021
      %v3198 = vpop.f32.mrb[0].mxu0
      %v3199 = vadd.f32 0.0, %v3198
      %v3200 = vpop.f32.mrb[0].mxu0
      %v3201 = vpop.f32.mrb[0].mxu0
      %v3202 = vadd.f32 0.0, %v3201
      %v3203 = vpop.f32.mrb[0].mxu0
      %3204 = vmatprep.mubr.bf16.mxu0 0
      %3205 = vmatmul.mubr.bf16.gmra.mrb[0].mxu0 %v1022
      %v3206 = vpop.f32.mrb[0].mxu0
      %v3207 = vadd.f32 0.0, %v3206
      %v3208 = vpop.f32.mrb[0].mxu0
      %v3209 = vpop.f32.mrb[0].mxu0
      %v3210 = vadd.f32 0.0, %v3209
      %v3211 = vpop.f32.mrb[0].mxu0
      %3212 = vmatprep.mubr.bf16.mxu0 0
      %3213 = vmatmul.mubr.bf16.gmra.mrb[0].mxu0 %v1023
      %v3214 = vpop.f32.mrb[0].mxu0
      %v3215 = vadd.f32 0.0, %v3214
      %v3216 = vpop.f32.mrb[0].mxu0
      %v3217 = vpop.f32.mrb[0].mxu0
      %v3218 = vadd.f32 0.0, %v3217
      %v3219 = vpop.f32.mrb[0].mxu0
      %3220 = vmatprep.mubr.bf16.mxu0 0
      %3221 = vmatmul.mubr.bf16.gmra.mrb[0].mxu0 %v1024
      %v3222 = vpop.f32.mrb[0].mxu0
      %v3223 = vadd.f32 0.0, %v3222
      %v3224 = vpop.f32.mrb[0].mxu0
      %v3225 = vpop.f32.mrb[0].mxu0
      %v3226 = vadd.f32 0.0, %v3225
      %v3227 = vpop.f32.mrb[0].mxu0
      %3228 = vmatprep.mubr.bf16.mxu0 0
      %3229 = vmatmul.mubr.bf16.gmra.mrb[0].mxu0 %v1025
      %v3230 = vpop.f32.mrb[0].mxu0
      %v3231 = vadd.f32 0.0, %v3230
      %v3232 = vpop.f32.mrb[0].mxu0
      %v3233 = vpop.f32.mrb[0].mxu0
      %v3234 = vadd.f32 0.0, %v3233
      %v3235 = vpop.f32.mrb[0].mxu0
      %3236 = vmatprep.mubr.bf16.mxu0 0
      %3237 = vmatmul.mubr.bf16.gmra.mrb[0].mxu0 %v1026
      %v3238 = vpop.f32.mrb[0].mxu0
      %v3239 = vadd.f32 0.0, %v3238
      %v3240 = vpop.f32.mrb[0].mxu0
      %v3241 = vpop.f32.mrb[0].mxu0
      %v3242 = vadd.f32 0.0, %v3241
      %v3243 = vpop.f32.mrb[0].mxu0
      %3244 = vmatprep.mubr.bf16.mxu0 0
      %3245 = vmatmul.mubr.bf16.gmra.mrb[0].mxu0 %v1027
      %v3246 = vpop.f32.mrb[0].mxu0
      %v3247 = vadd.f32 0.0, %v3246
      %v3248 = vpop.f32.mrb[0].mxu0
      %v3249 = vpop.f32.mrb[0].mxu0
      %v3250 = vadd.f32 0.0, %v3249
      %v3251 = vpop.f32.mrb[0].mxu0
      %3252 = vmatprep.mubr.bf16.mxu0 0
      %3253 = vmatmul.mubr.bf16.gmra.mrb[0].mxu0 %v1028
      %v3254 = vpop.f32.mrb[0].mxu0
      %v3255 = vadd.f32 0.0, %v3254
      %v3256 = vpop.f32.mrb[0].mxu0
      %v3257 = vpop.f32.mrb[0].mxu0
      %v3258 = vadd.f32 0.0, %v3257
      %v3259 = vpop.f32.mrb[0].mxu0
      %3260 = vmatprep.mubr.bf16.mxu0 0
      %3261 = vmatmul.mubr.bf16.gmra.mrb[0].mxu0 %v1029
      %v3262 = vpop.f32.mrb[0].mxu0
      %v3263 = vadd.f32 0.0, %v3262
      %v3264 = vpop.f32.mrb[0].mxu0
      %v3265 = vpop.f32.mrb[0].mxu0
      %v3266 = vadd.f32 0.0, %v3265
      %v3267 = vpop.f32.mrb[0].mxu0
      %3268 = vmatprep.mubr.bf16.mxu0 0
      %3269 = vmatmul.mubr.bf16.gmra.mrb[0].mxu0 %v1030
      %v3270 = vpop.f32.mrb[0].mxu0
      %v3271 = vadd.f32 0.0, %v3270
      %v3272 = vpop.f32.mrb[0].mxu0
      %v3273 = vpop.f32.mrb[0].mxu0
      %v3274 = vadd.f32 0.0, %v3273
      %v3275 = vpop.f32.mrb[0].mxu0
      %3276 = vmatprep.mubr.bf16.mxu0 0
      %3277 = vmatmul.mubr.bf16.gmra.mrb[0].mxu0 %v1031
      %v3278 = vpop.f32.mrb[0].mxu0
      %v3279 = vadd.f32 0.0, %v3278
      %v3280 = vpop.f32.mrb[0].mxu0
      %v3281 = vpop.f32.mrb[0].mxu0
      %v3282 = vadd.f32 0.0, %v3281
      %v3283 = vpop.f32.mrb[0].mxu0
      %3284 = vmatprep.mubr.bf16.mxu0 0
      %3285 = vmatmul.mubr.bf16.gmra.mrb[0].mxu0 %v1032
      %v3286 = vpop.f32.mrb[0].mxu0
      %v3287 = vadd.f32 0.0, %v3286
      %v3288 = vpop.f32.mrb[0].mxu0
      %v3289 = vpop.f32.mrb[0].mxu0
      %v3290 = vadd.f32 0.0, %v3289
      %v3291 = vpop.f32.mrb[0].mxu0
      %3292 = vmatprep.mubr.bf16.mxu0 0
      %3293 = vmatmul.mubr.bf16.gmra.mrb[0].mxu0 %v1033
      %v3294 = vpop.f32.mrb[0].mxu0
      %v3295 = vadd.f32 0.0, %v3294
      %v3296 = vpop.f32.mrb[0].mxu0
      %v3297 = vpop.f32.mrb[0].mxu0
      %v3298 = vadd.f32 0.0, %v3297
      %v3299 = vpop.f32.mrb[0].mxu0
      %3300 = vmatprep.mubr.bf16.mxu0 0
      %3301 = vmatmul.mubr.bf16.gmra.mrb[0].mxu0 %v1034
      %v3302 = vpop.f32.mrb[0].mxu0
      %v3303 = vadd.f32 0.0, %v3302
      %v3304 = vpop.f32.mrb[0].mxu0
      %v3305 = vpop.f32.mrb[0].mxu0
      %v3306 = vadd.f32 0.0, %v3305
      %v3307 = vpop.f32.mrb[0].mxu0
      %3308 = vmatprep.mubr.bf16.mxu0 0
      %3309 = vmatmul.mubr.bf16.gmra.mrb[0].mxu0 %v1035
      %v3310 = vpop.f32.mrb[0].mxu0
      %v3311 = vadd.f32 0.0, %v3310
      %v3312 = vpop.f32.mrb[0].mxu0
      %v3313 = vpop.f32.mrb[0].mxu0
      %v3314 = vadd.f32 0.0, %v3313
      %v3315 = vpop.f32.mrb[0].mxu0
      %3316 = vmatprep.mubr.bf16.mxu0 0
      %3317 = vmatmul.mubr.bf16.gmra.mrb[0].mxu0 %v1036
      %v3318 = vpop.f32.mrb[0].mxu0
      %v3319 = vadd.f32 0.0, %v3318
      %v3320 = vpop.f32.mrb[0].mxu0
      %v3321 = vpop.f32.mrb[0].mxu0
      %v3322 = vadd.f32 0.0, %v3321
      %v3323 = vpop.f32.mrb[0].mxu0
      %3324 = vmatprep.mubr.bf16.mxu0 0
      %3325 = vmatmul.mubr.bf16.gmra.mrb[0].mxu0 %v1037
      %v3326 = vpop.f32.mrb[0].mxu0
      %v3327 = vadd.f32 0.0, %v3326
      %v3328 = vpop.f32.mrb[0].mxu0
      %v3329 = vpop.f32.mrb[0].mxu0
      %v3330 = vadd.f32 0.0, %v3329
      %v3331 = vpop.f32.mrb[0].mxu0
      %3332 = vmatprep.mubr.bf16.mxu0 0
      %3333 = vmatmul.mubr.bf16.gmra.mrb[0].mxu0 %v1038
      %v3334 = vpop.f32.mrb[0].mxu0
      %v3335 = vadd.f32 0.0, %v3334
      %v3336 = vpop.f32.mrb[0].mxu0
      %v3337 = vpop.f32.mrb[0].mxu0
      %v3338 = vadd.f32 0.0, %v3337
      %v3339 = vpop.f32.mrb[0].mxu0
      %3340 = vmatprep.mubr.bf16.mxu0 0
      %3341 = vmatmul.mubr.bf16.gmra.mrb[0].mxu0 %v1039
      %v3342 = vpop.f32.mrb[0].mxu0
      %v3343 = vadd.f32 0.0, %v3342
      %v3344 = vpop.f32.mrb[0].mxu0
      %v3345 = vpop.f32.mrb[0].mxu0
      %v3346 = vadd.f32 0.0, %v3345
      %v3347 = vpop.f32.mrb[0].mxu0
      %3348 = vmatprep.mubr.bf16.mxu0 0
      %3349 = vmatmul.mubr.bf16.gmra.mrb[0].mxu0 %v1040
      %v3350 = vpop.f32.mrb[0].mxu0
      %v3351 = vadd.f32 0.0, %v3350
      %v3352 = vpop.f32.mrb[0].mxu0
      %v3353 = vpop.f32.mrb[0].mxu0
      %v3354 = vadd.f32 0.0, %v3353
      %v3355 = vpop.f32.mrb[0].mxu0
      %3356 = vmatprep.mubr.bf16.mxu0 0
      %3357 = vmatmul.mubr.bf16.gmra.mrb[0].mxu0 %v1041
      %v3358 = vpop.f32.mrb[0].mxu0
      %v3359 = vadd.f32 0.0, %v3358
      %v3360 = vpop.f32.mrb[0].mxu0
      %v3361 = vpop.f32.mrb[0].mxu0
      %v3362 = vadd.f32 0.0, %v3361
      %v3363 = vpop.f32.mrb[0].mxu0
      %3364 = vdwg.mxu0
      %v3365 = vadd.f32 %v2997, %v3151
      %v3366 = vadd.f32 %v2998, %v3154
      %v3367 = vadd.f32 %v2999, %v3159
      %v3368 = vadd.f32 %v3000, %v3162
      %v3369 = vadd.f32 %v3001, %v3167
      %v3370 = vadd.f32 %v3002, %v3170
      %v3371 = vadd.f32 %v3003, %v3175
      %v3372 = vadd.f32 %v3004, %v3178
      %v3373 = vadd.f32 %v3005, %v3183
      %v3374 = vadd.f32 %v3006, %v3186
      %v3375 = vadd.f32 %v3007, %v3191
      %v3376 = vadd.f32 %v3008, %v3194
      %v3377 = vadd.f32 %v3009, %v3199
      %v3378 = vadd.f32 %v3010, %v3202
      %v3379 = vadd.f32 %v3011, %v3207
      %v3380 = vadd.f32 %v3012, %v3210
      %v3381 = vadd.f32 %v3013, %v3215
      %v3382 = vadd.f32 %v3014, %v3218
      %v3383 = vadd.f32 %v3015, %v3223
      %v3384 = vadd.f32 %v3016, %v3226
      %v3385 = vadd.f32 %v3017, %v3231
      %v3386 = vadd.f32 %v3018, %v3234
      %v3387 = vadd.f32 %v3019, %v3239
      %v3388 = vadd.f32 %v3020, %v3242
      %v3389 = vadd.f32 %v3021, %v3247
      %v3390 = vadd.f32 %v3022, %v3250
      %v3391 = vadd.f32 %v3023, %v3255
      %v3392 = vadd.f32 %v3024, %v3258
      %v3393 = vadd.f32 %v3025, %v3263
      %v3394 = vadd.f32 %v3026, %v3266
      %v3395 = vadd.f32 %v3027, %v3271
      %v3396 = vadd.f32 %v3028, %v3274
      %v3397 = vadd.f32 %v3029, %v3279
      %v3398 = vadd.f32 %v3030, %v3282
      %v3399 = vadd.f32 %v3031, %v3287
      %v3400 = vadd.f32 %v3032, %v3290
      %v3401 = vadd.f32 %v3033, %v3295
      %v3402 = vadd.f32 %v3034, %v3298
      %v3403 = vadd.f32 %v3035, %v3303
      %v3404 = vadd.f32 %v3036, %v3306
      %v3405 = vadd.f32 %v3037, %v3311
      %v3406 = vadd.f32 %v3038, %v3314
      %v3407 = vadd.f32 %v3039, %v3319
      %v3408 = vadd.f32 %v3040, %v3322
      %v3409 = vadd.f32 %v3041, %v3327
      %v3410 = vadd.f32 %v3042, %v3330
      %v3411 = vadd.f32 %v3043, %v3335
      %v3412 = vadd.f32 %v3044, %v3338
      %v3413 = vadd.f32 %v3045, %v3343
      %v3414 = vadd.f32 %v3046, %v3346
      %v3415 = vadd.f32 %v3047, %v3351
      %v3416 = vadd.f32 %v3048, %v3354
      %v3417 = vadd.f32 %v3049, %v3359
      %v3418 = vadd.f32 %v3050, %v3362
      %s3419 = scalar_lea.vmem %s1, 320
      %v3420 = vld [vmem:[%s3419] sm:$0xf]
      %v3421 = vld [vmem:[%s3419 + $0x4] sm:$0xf]
      %v3422 = vld [vmem:[%s3419 + $0x8] sm:$0xf]
      %v3423 = vld [vmem:[%s3419 + $0xc] sm:$0xf]
      %v3424 = vld [vmem:[%s3419 + $0x10] sm:$0xf]
      %v3425 = vld [vmem:[%s3419 + $0x14] sm:$0xf]
      %v3426 = vld [vmem:[%s3419 + $0x18] sm:$0xf]
      %v3427 = vld [vmem:[%s3419 + $0x1c] sm:$0xf]
      %v3428 = vld [vmem:[%s3419 + $0x20] sm:$0xf]
      %v3429 = vld [vmem:[%s3419 + $0x24] sm:$0xf]
      %v3430 = vld [vmem:[%s3419 + $0x28] sm:$0xf]
      %v3431 = vld [vmem:[%s3419 + $0x2c] sm:$0xf]
      %v3432 = vld [vmem:[%s3419 + $0x30] sm:$0xf]
      %v3433 = vld [vmem:[%s3419 + $0x34] sm:$0xf]
      %v3434 = vld [vmem:[%s3419 + $0x38] sm:$0xf]
      %v3435 = vld [vmem:[%s3419 + $0x3c] sm:$0xf]
      %vm3436 = vsmask.f32 7424
      %v3437 = vrot.slane %v1507, 1
      %v3438 = vor.u32 %v1504, %v3437
      %v3439 = vrot.slane %v1516, 1
      %v3440 = vsel %vm3436, %v3438, %v3439
      %v3441 = vor.u32 %v1513, %v3439
      %v3442 = vrot.slane %v1525, 1
      %v3443 = vsel %vm3436, %v3441, %v3442
      %v3444 = vor.u32 %v1522, %v3442
      %v3445 = vrot.slane %v1534, 1
      %v3446 = vsel %vm3436, %v3444, %v3445
      %v3447 = vor.u32 %v1531, %v3445
      %v3448 = vrot.slane %v1543, 1
      %v3449 = vsel %vm3436, %v3447, %v3448
      %v3450 = vor.u32 %v1540, %v3448
      %v3451 = vrot.slane %v1552, 1
      %v3452 = vsel %vm3436, %v3450, %v3451
      %v3453 = vor.u32 %v1549, %v3451
      %v3454 = vrot.slane %v1561, 1
      %v3455 = vsel %vm3436, %v3453, %v3454
      %v3456 = vor.u32 %v1558, %v3454
      %v3457 = vrot.slane %v1570, 1
      %v3458 = vsel %vm3436, %v3456, %v3457
      %v3459 = vor.u32 %v1567, %v3457
      %v3460 = vrot.slane %v1579, 1
      %v3461 = vsel %vm3436, %v3459, %v3460
      %v3462 = vor.u32 %v1576, %v3460
      %v3463 = vrot.slane %v1588, 1
      %v3464 = vsel %vm3436, %v3462, %v3463
      %v3465 = vor.u32 %v1585, %v3463
      %v3466 = vrot.slane %v1597, 1
      %v3467 = vsel %vm3436, %v3465, %v3466
      %v3468 = vor.u32 %v1594, %v3466
      %v3469 = vrot.slane %v1606, 1
      %v3470 = vsel %vm3436, %v3468, %v3469
      %v3471 = vor.u32 %v1603, %v3469
      %v3472 = vrot.slane %v1615, 1
      %v3473 = vsel %vm3436, %v3471, %v3472
      %v3474 = vor.u32 %v1612, %v3472
      %v3475 = vrot.slane %v1624, 1
      %v3476 = vsel %vm3436, %v3474, %v3475
      %v3477 = vor.u32 %v1621, %v3475
      %v3478 = vrot.slane %v1633, 1
      %v3479 = vsel %vm3436, %v3477, %v3478
      %v3480 = vor.u32 %v1630, %v3478
      %v3481 = vrot.slane %v1642, 1
      %v3482 = vsel %vm3436, %v3480, %v3481
      %v3483 = vor.u32 %v1639, %v3481
      %v3484 = vrot.slane %v1651, 1
      %v3485 = vsel %vm3436, %v3483, %v3484
      %v3486 = vor.u32 %v1648, %v3484
      %v3487 = vrot.slane %v1660, 1
      %v3488 = vsel %vm3436, %v3486, %v3487
      %v3489 = vor.u32 %v1657, %v3487
      %v3490 = vrot.slane %v1669, 1
      %v3491 = vsel %vm3436, %v3489, %v3490
      %v3492 = vor.u32 %v1666, %v3490
      %v3493 = vrot.slane %v1678, 1
      %v3494 = vsel %vm3436, %v3492, %v3493
      %v3495 = vor.u32 %v1675, %v3493
      %v3496 = vrot.slane %v1687, 1
      %v3497 = vsel %vm3436, %v3495, %v3496
      %v3498 = vor.u32 %v1684, %v3496
      %v3499 = vrot.slane %v1696, 1
      %v3500 = vsel %vm3436, %v3498, %v3499
      %v3501 = vor.u32 %v1693, %v3499
      %v3502 = vrot.slane %v1705, 1
      %v3503 = vsel %vm3436, %v3501, %v3502
      %v3504 = vor.u32 %v1702, %v3502
      %v3505 = vrot.slane %v1714, 1
      %v3506 = vsel %vm3436, %v3504, %v3505
      %v3507 = vor.u32 %v1711, %v3505
      %v3508 = vrot.slane %v1723, 1
      %v3509 = vsel %vm3436, %v3507, %v3508
      %v3510 = vor.u32 %v1720, %v3508
      %v3511 = vrot.slane %v1732, 1
      %v3512 = vsel %vm3436, %v3510, %v3511
      %v3513 = vor.u32 %v1729, %v3511
      %v3514 = vrot.slane %v2669, 1
      %v3515 = vsel %vm3436, %v3513, %v3514
      %v3516 = vor.u32 %v2666, %v3514
      %v3518 = vshll.u32 %v1042, 16
      %v3520 = vrot.slane %v3518, 1
      %v3521 = vsel %vm3436, %v3516, %v3520
      %v3565 = vunpack.c.l.b16 %v3420
      %v3566 = vunpack.c.l.b16 %v3421
      %v3567 = vunpack.c.l.b16 %v3422
      %v3568 = vunpack.c.l.b16 %v3423
      %v3569 = vunpack.c.l.b16 %v3424
      %v3570 = vunpack.c.l.b16 %v3425
      %v3571 = vunpack.c.l.b16 %v3426
      %v3572 = vunpack.c.l.b16 %v3427
      %v3573 = vunpack.c.l.b16 %v3428
      %v3574 = vunpack.c.l.b16 %v3429
      %v3575 = vunpack.c.l.b16 %v3430
      %v3576 = vunpack.c.l.b16 %v3431
      %v3577 = vunpack.c.l.b16 %v3432
      %v3578 = vunpack.c.l.b16 %v3433
      %v3579 = vunpack.c.l.b16 %v3434
      %v3580 = vunpack.c.l.b16 %v3435
      %v3581 = vpack.c.b16 %v3566, %v3565
      %v3582 = vpack.c.b16 %v3568, %v3567
      %v3583 = vpack.c.b16 %v3570, %v3569
      %v3584 = vpack.c.b16 %v3572, %v3571
      %v3585 = vpack.c.b16 %v3574, %v3573
      %v3586 = vpack.c.b16 %v3576, %v3575
      %v3587 = vpack.c.b16 %v3578, %v3577
      %v3588 = vpack.c.b16 %v3580, %v3579
      %3597 = vmatprep.subr.bf16.mxu0 0
      %3598 = vmatpush1.bf16.msra.mxu0 %v3581
      %3599 = vmatprep.subr.bf16.mxu0 0
      %3600 = vmatpush1.bf16.msra.mxu0 %v3582
      %3601 = vmatprep.subr.bf16.mxu0 0
      %3602 = vmatpush1.bf16.msra.mxu0 %v3583
      %3603 = vmatprep.subr.bf16.mxu0 0
      %3604 = vmatpush1.bf16.msra.mxu0 %v3584
      %3605 = vmatprep.subr.bf16.mxu0 0
      %3606 = vmatpush1.bf16.msra.mxu0 %v3585
      %3607 = vmatprep.subr.bf16.mxu0 0
      %3608 = vmatpush1.bf16.msra.mxu0 %v3586
      %3609 = vmatprep.subr.bf16.mxu0 0
      %3610 = vmatpush1.bf16.msra.mxu0 %v3587
      %3611 = vmatprep.subr.bf16.mxu0 0
      %3612 = vmatpush1.bf16.msra.mxu0 %v3588
      %3613 = vmatprep.subr.bf16.mxu0 0
      %3614 = vmatpush1.bf16.msra.mxu0 0
      %3615 = vmatprep.subr.bf16.mxu0 0
      %3616 = vmatpush1.bf16.msra.mxu0 0
      %3617 = vmatprep.subr.bf16.mxu0 0
      %3618 = vmatpush1.bf16.msra.mxu0 0
      %3619 = vmatprep.subr.bf16.mxu0 0
      %3620 = vmatpush1.bf16.msra.mxu0 0
      %3621 = vmatprep.subr.bf16.mxu0 0
      %3622 = vmatpush1.bf16.msra.mxu0 0
      %3623 = vmatprep.subr.bf16.mxu0 0
      %3624 = vmatpush1.bf16.msra.mxu0 0
      %3625 = vmatprep.subr.bf16.mxu0 0
      %3626 = vmatpush1.bf16.msra.mxu0 0
      %3627 = vmatprep.subr.bf16.mxu0 0
      %3628 = vmatpush1.bf16.msra.mxu0 0
      %3629 = vmatprep.mubr.bf16.mxu0 0
      %3630 = vmatmul.mubr.bf16.gmra.mrb[0].mxu0 %v3440
      %v3631 = vpop.f32.mrb[0].mxu0
      %v3632 = vadd.f32 0.0, %v3631
      %v3633 = vpop.f32.mrb[0].mxu0
      %v3634 = vpop.f32.mrb[0].mxu0
      %v3635 = vadd.f32 0.0, %v3634
      %v3636 = vpop.f32.mrb[0].mxu0
      %3637 = vmatprep.mubr.bf16.mxu0 0
      %3638 = vmatmul.mubr.bf16.gmra.mrb[0].mxu0 %v3443
      %v3639 = vpop.f32.mrb[0].mxu0
      %v3640 = vadd.f32 0.0, %v3639
      %v3641 = vpop.f32.mrb[0].mxu0
      %v3642 = vpop.f32.mrb[0].mxu0
      %v3643 = vadd.f32 0.0, %v3642
      %v3644 = vpop.f32.mrb[0].mxu0
      %3645 = vmatprep.mubr.bf16.mxu0 0
      %3646 = vmatmul.mubr.bf16.gmra.mrb[0].mxu0 %v3446
      %v3647 = vpop.f32.mrb[0].mxu0
      %v3648 = vadd.f32 0.0, %v3647
      %v3649 = vpop.f32.mrb[0].mxu0
      %v3650 = vpop.f32.mrb[0].mxu0
      %v3651 = vadd.f32 0.0, %v3650
      %v3652 = vpop.f32.mrb[0].mxu0
      %3653 = vmatprep.mubr.bf16.mxu0 0
      %3654 = vmatmul.mubr.bf16.gmra.mrb[0].mxu0 %v3449
      %v3655 = vpop.f32.mrb[0].mxu0
      %v3656 = vadd.f32 0.0, %v3655
      %v3657 = vpop.f32.mrb[0].mxu0
      %v3658 = vpop.f32.mrb[0].mxu0
      %v3659 = vadd.f32 0.0, %v3658
      %v3660 = vpop.f32.mrb[0].mxu0
      %3661 = vmatprep.mubr.bf16.mxu0 0
      %3662 = vmatmul.mubr.bf16.gmra.mrb[0].mxu0 %v3452
      %v3663 = vpop.f32.mrb[0].mxu0
      %v3664 = vadd.f32 0.0, %v3663
      %v3665 = vpop.f32.mrb[0].mxu0
      %v3666 = vpop.f32.mrb[0].mxu0
      %v3667 = vadd.f32 0.0, %v3666
      %v3668 = vpop.f32.mrb[0].mxu0
      %3669 = vmatprep.mubr.bf16.mxu0 0
      %3670 = vmatmul.mubr.bf16.gmra.mrb[0].mxu0 %v3455
      %v3671 = vpop.f32.mrb[0].mxu0
      %v3672 = vadd.f32 0.0, %v3671
      %v3673 = vpop.f32.mrb[0].mxu0
      %v3674 = vpop.f32.mrb[0].mxu0
      %v3675 = vadd.f32 0.0, %v3674
      %v3676 = vpop.f32.mrb[0].mxu0
      %3677 = vmatprep.mubr.bf16.mxu0 0
      %3678 = vmatmul.mubr.bf16.gmra.mrb[0].mxu0 %v3458
      %v3679 = vpop.f32.mrb[0].mxu0
      %v3680 = vadd.f32 0.0, %v3679
      %v3681 = vpop.f32.mrb[0].mxu0
      %v3682 = vpop.f32.mrb[0].mxu0
      %v3683 = vadd.f32 0.0, %v3682
      %v3684 = vpop.f32.mrb[0].mxu0
      %3685 = vmatprep.mubr.bf16.mxu0 0
      %3686 = vmatmul.mubr.bf16.gmra.mrb[0].mxu0 %v3461
      %v3687 = vpop.f32.mrb[0].mxu0
      %v3688 = vadd.f32 0.0, %v3687
      %v3689 = vpop.f32.mrb[0].mxu0
      %v3690 = vpop.f32.mrb[0].mxu0
      %v3691 = vadd.f32 0.0, %v3690
      %v3692 = vpop.f32.mrb[0].mxu0
      %3693 = vmatprep.mubr.bf16.mxu0 0
      %3694 = vmatmul.mubr.bf16.gmra.mrb[0].mxu0 %v3464
      %v3695 = vpop.f32.mrb[0].mxu0
      %v3696 = vadd.f32 0.0, %v3695
      %v3697 = vpop.f32.mrb[0].mxu0
      %v3698 = vpop.f32.mrb[0].mxu0
      %v3699 = vadd.f32 0.0, %v3698
      %v3700 = vpop.f32.mrb[0].mxu0
      %3701 = vmatprep.mubr.bf16.mxu0 0
      %3702 = vmatmul.mubr.bf16.gmra.mrb[0].mxu0 %v3467
      %v3703 = vpop.f32.mrb[0].mxu0
      %v3704 = vadd.f32 0.0, %v3703
      %v3705 = vpop.f32.mrb[0].mxu0
      %v3706 = vpop.f32.mrb[0].mxu0
      %v3707 = vadd.f32 0.0, %v3706
      %v3708 = vpop.f32.mrb[0].mxu0
      %3709 = vmatprep.mubr.bf16.mxu0 0
      %3710 = vmatmul.mubr.bf16.gmra.mrb[0].mxu0 %v3470
      %v3711 = vpop.f32.mrb[0].mxu0
      %v3712 = vadd.f32 0.0, %v3711
      %v3713 = vpop.f32.mrb[0].mxu0
      %v3714 = vpop.f32.mrb[0].mxu0
      %v3715 = vadd.f32 0.0, %v3714
      %v3716 = vpop.f32.mrb[0].mxu0
      %3717 = vmatprep.mubr.bf16.mxu0 0
      %3718 = vmatmul.mubr.bf16.gmra.mrb[0].mxu0 %v3473
      %v3719 = vpop.f32.mrb[0].mxu0
      %v3720 = vadd.f32 0.0, %v3719
      %v3721 = vpop.f32.mrb[0].mxu0
      %v3722 = vpop.f32.mrb[0].mxu0
      %v3723 = vadd.f32 0.0, %v3722
      %v3724 = vpop.f32.mrb[0].mxu0
      %3725 = vmatprep.mubr.bf16.mxu0 0
      %3726 = vmatmul.mubr.bf16.gmra.mrb[0].mxu0 %v3476
      %v3727 = vpop.f32.mrb[0].mxu0
      %v3728 = vadd.f32 0.0, %v3727
      %v3729 = vpop.f32.mrb[0].mxu0
      %v3730 = vpop.f32.mrb[0].mxu0
      %v3731 = vadd.f32 0.0, %v3730
      %v3732 = vpop.f32.mrb[0].mxu0
      %3733 = vmatprep.mubr.bf16.mxu0 0
      %3734 = vmatmul.mubr.bf16.gmra.mrb[0].mxu0 %v3479
      %v3735 = vpop.f32.mrb[0].mxu0
      %v3736 = vadd.f32 0.0, %v3735
      %v3737 = vpop.f32.mrb[0].mxu0
      %v3738 = vpop.f32.mrb[0].mxu0
      %v3739 = vadd.f32 0.0, %v3738
      %v3740 = vpop.f32.mrb[0].mxu0
      %3741 = vmatprep.mubr.bf16.mxu0 0
      %3742 = vmatmul.mubr.bf16.gmra.mrb[0].mxu0 %v3482
      %v3743 = vpop.f32.mrb[0].mxu0
      %v3744 = vadd.f32 0.0, %v3743
      %v3745 = vpop.f32.mrb[0].mxu0
      %v3746 = vpop.f32.mrb[0].mxu0
      %v3747 = vadd.f32 0.0, %v3746
      %v3748 = vpop.f32.mrb[0].mxu0
      %3749 = vmatprep.mubr.bf16.mxu0 0
      %3750 = vmatmul.mubr.bf16.gmra.mrb[0].mxu0 %v3485
      %v3751 = vpop.f32.mrb[0].mxu0
      %v3752 = vadd.f32 0.0, %v3751
      %v3753 = vpop.f32.mrb[0].mxu0
      %v3754 = vpop.f32.mrb[0].mxu0
      %v3755 = vadd.f32 0.0, %v3754
      %v3756 = vpop.f32.mrb[0].mxu0
      %3757 = vmatprep.mubr.bf16.mxu0 0
      %3758 = vmatmul.mubr.bf16.gmra.mrb[0].mxu0 %v3488
      %v3759 = vpop.f32.mrb[0].mxu0
      %v3760 = vadd.f32 0.0, %v3759
      %v3761 = vpop.f32.mrb[0].mxu0
      %v3762 = vpop.f32.mrb[0].mxu0
      %v3763 = vadd.f32 0.0, %v3762
      %v3764 = vpop.f32.mrb[0].mxu0
      %3765 = vmatprep.mubr.bf16.mxu0 0
      %3766 = vmatmul.mubr.bf16.gmra.mrb[0].mxu0 %v3491
      %v3767 = vpop.f32.mrb[0].mxu0
      %v3768 = vadd.f32 0.0, %v3767
      %v3769 = vpop.f32.mrb[0].mxu0
      %v3770 = vpop.f32.mrb[0].mxu0
      %v3771 = vadd.f32 0.0, %v3770
      %v3772 = vpop.f32.mrb[0].mxu0
      %3773 = vmatprep.mubr.bf16.mxu0 0
      %3774 = vmatmul.mubr.bf16.gmra.mrb[0].mxu0 %v3494
      %v3775 = vpop.f32.mrb[0].mxu0
      %v3776 = vadd.f32 0.0, %v3775
      %v3777 = vpop.f32.mrb[0].mxu0
      %v3778 = vpop.f32.mrb[0].mxu0
      %v3779 = vadd.f32 0.0, %v3778
      %v3780 = vpop.f32.mrb[0].mxu0
      %3781 = vmatprep.mubr.bf16.mxu0 0
      %3782 = vmatmul.mubr.bf16.gmra.mrb[0].mxu0 %v3497
      %v3783 = vpop.f32.mrb[0].mxu0
      %v3784 = vadd.f32 0.0, %v3783
      %v3785 = vpop.f32.mrb[0].mxu0
      %v3786 = vpop.f32.mrb[0].mxu0
      %v3787 = vadd.f32 0.0, %v3786
      %v3788 = vpop.f32.mrb[0].mxu0
      %3789 = vmatprep.mubr.bf16.mxu0 0
      %3790 = vmatmul.mubr.bf16.gmra.mrb[0].mxu0 %v3500
      %v3791 = vpop.f32.mrb[0].mxu0
      %v3792 = vadd.f32 0.0, %v3791
      %v3793 = vpop.f32.mrb[0].mxu0
      %v3794 = vpop.f32.mrb[0].mxu0
      %v3795 = vadd.f32 0.0, %v3794
      %v3796 = vpop.f32.mrb[0].mxu0
      %3797 = vmatprep.mubr.bf16.mxu0 0
      %3798 = vmatmul.mubr.bf16.gmra.mrb[0].mxu0 %v3503
      %v3799 = vpop.f32.mrb[0].mxu0
      %v3800 = vadd.f32 0.0, %v3799
      %v3801 = vpop.f32.mrb[0].mxu0
      %v3802 = vpop.f32.mrb[0].mxu0
      %v3803 = vadd.f32 0.0, %v3802
      %v3804 = vpop.f32.mrb[0].mxu0
      %3805 = vmatprep.mubr.bf16.mxu0 0
      %3806 = vmatmul.mubr.bf16.gmra.mrb[0].mxu0 %v3506
      %v3807 = vpop.f32.mrb[0].mxu0
      %v3808 = vadd.f32 0.0, %v3807
      %v3809 = vpop.f32.mrb[0].mxu0
      %v3810 = vpop.f32.mrb[0].mxu0
      %v3811 = vadd.f32 0.0, %v3810
      %v3812 = vpop.f32.mrb[0].mxu0
      %3813 = vmatprep.mubr.bf16.mxu0 0
      %3814 = vmatmul.mubr.bf16.gmra.mrb[0].mxu0 %v3509
      %v3815 = vpop.f32.mrb[0].mxu0
      %v3816 = vadd.f32 0.0, %v3815
      %v3817 = vpop.f32.mrb[0].mxu0
      %v3818 = vpop.f32.mrb[0].mxu0
      %v3819 = vadd.f32 0.0, %v3818
      %v3820 = vpop.f32.mrb[0].mxu0
      %3821 = vmatprep.mubr.bf16.mxu0 0
      %3822 = vmatmul.mubr.bf16.gmra.mrb[0].mxu0 %v3512
      %v3823 = vpop.f32.mrb[0].mxu0
      %v3824 = vadd.f32 0.0, %v3823
      %v3825 = vpop.f32.mrb[0].mxu0
      %v3826 = vpop.f32.mrb[0].mxu0
      %v3827 = vadd.f32 0.0, %v3826
      %v3828 = vpop.f32.mrb[0].mxu0
      %3829 = vmatprep.mubr.bf16.mxu0 0
      %3830 = vmatmul.mubr.bf16.gmra.mrb[0].mxu0 %v3515
      %v3831 = vpop.f32.mrb[0].mxu0
      %v3832 = vadd.f32 0.0, %v3831
      %v3833 = vpop.f32.mrb[0].mxu0
      %v3834 = vpop.f32.mrb[0].mxu0
      %v3835 = vadd.f32 0.0, %v3834
      %v3836 = vpop.f32.mrb[0].mxu0
      %3837 = vmatprep.mubr.bf16.mxu0 0
      %3838 = vmatmul.mubr.bf16.gmra.mrb[0].mxu0 %v3521
      %v3839 = vpop.f32.mrb[0].mxu0
      %v3840 = vadd.f32 0.0, %v3839
      %v3841 = vpop.f32.mrb[0].mxu0
      %v3842 = vpop.f32.mrb[0].mxu0
      %v3843 = vadd.f32 0.0, %v3842
      %v3844 = vpop.f32.mrb[0].mxu0
      %3845 = vdwg.mxu0
      %v3846 = vadd.f32 %v3365, %v3632
      %v3847 = vadd.f32 %v3366, %v3635
      %v3848 = vadd.f32 %v3367, %v3640
      %v3849 = vadd.f32 %v3368, %v3643
      %v3850 = vadd.f32 %v3369, %v3648
      %v3851 = vadd.f32 %v3370, %v3651
      %v3852 = vadd.f32 %v3371, %v3656
      %v3853 = vadd.f32 %v3372, %v3659
      %v3854 = vadd.f32 %v3373, %v3664
      %v3855 = vadd.f32 %v3374, %v3667
      %v3856 = vadd.f32 %v3375, %v3672
      %v3857 = vadd.f32 %v3376, %v3675
      %v3858 = vadd.f32 %v3377, %v3680
      %v3859 = vadd.f32 %v3378, %v3683
      %v3860 = vadd.f32 %v3379, %v3688
      %v3861 = vadd.f32 %v3380, %v3691
      %v3862 = vadd.f32 %v3381, %v3696
      %v3863 = vadd.f32 %v3382, %v3699
      %v3864 = vadd.f32 %v3383, %v3704
      %v3865 = vadd.f32 %v3384, %v3707
      %v3866 = vadd.f32 %v3385, %v3712
      %v3867 = vadd.f32 %v3386, %v3715
      %v3868 = vadd.f32 %v3387, %v3720
      %v3869 = vadd.f32 %v3388, %v3723
      %v3870 = vadd.f32 %v3389, %v3728
      %v3871 = vadd.f32 %v3390, %v3731
      %v3872 = vadd.f32 %v3391, %v3736
      %v3873 = vadd.f32 %v3392, %v3739
      %v3874 = vadd.f32 %v3393, %v3744
      %v3875 = vadd.f32 %v3394, %v3747
      %v3876 = vadd.f32 %v3395, %v3752
      %v3877 = vadd.f32 %v3396, %v3755
      %v3878 = vadd.f32 %v3397, %v3760
      %v3879 = vadd.f32 %v3398, %v3763
      %v3880 = vadd.f32 %v3399, %v3768
      %v3881 = vadd.f32 %v3400, %v3771
      %v3882 = vadd.f32 %v3401, %v3776
      %v3883 = vadd.f32 %v3402, %v3779
      %v3884 = vadd.f32 %v3403, %v3784
      %v3885 = vadd.f32 %v3404, %v3787
      %v3886 = vadd.f32 %v3405, %v3792
      %v3887 = vadd.f32 %v3406, %v3795
      %v3888 = vadd.f32 %v3407, %v3800
      %v3889 = vadd.f32 %v3408, %v3803
      %v3890 = vadd.f32 %v3409, %v3808
      %v3891 = vadd.f32 %v3410, %v3811
      %v3892 = vadd.f32 %v3411, %v3816
      %v3893 = vadd.f32 %v3412, %v3819
      %v3894 = vadd.f32 %v3413, %v3824
      %v3895 = vadd.f32 %v3414, %v3827
      %v3896 = vadd.f32 %v3415, %v3832
      %v3897 = vadd.f32 %v3416, %v3835
      %v3898 = vadd.f32 %v3417, %v3840
      %v3899 = vadd.f32 %v3418, %v3843
      %s3900 = scalar_lea.vmem %s1, 384
      %v3901 = vld [vmem:[%s3900] sm:$0xf]
      %v3902 = vld [vmem:[%s3900 + $0x4] sm:$0xf]
      %v3903 = vld [vmem:[%s3900 + $0x8] sm:$0xf]
      %v3904 = vld [vmem:[%s3900 + $0xc] sm:$0xf]
      %v3905 = vld [vmem:[%s3900 + $0x10] sm:$0xf]
      %v3906 = vld [vmem:[%s3900 + $0x14] sm:$0xf]
      %v3907 = vld [vmem:[%s3900 + $0x18] sm:$0xf]
      %v3908 = vld [vmem:[%s3900 + $0x1c] sm:$0xf]
      %v3909 = vld [vmem:[%s3900 + $0x20] sm:$0xf]
      %v3910 = vld [vmem:[%s3900 + $0x24] sm:$0xf]
      %v3911 = vld [vmem:[%s3900 + $0x28] sm:$0xf]
      %v3912 = vld [vmem:[%s3900 + $0x2c] sm:$0xf]
      %v3913 = vld [vmem:[%s3900 + $0x30] sm:$0xf]
      %v3914 = vld [vmem:[%s3900 + $0x34] sm:$0xf]
      %v3915 = vld [vmem:[%s3900 + $0x38] sm:$0xf]
      %v3916 = vld [vmem:[%s3900 + $0x3c] sm:$0xf]
      %v3917 = vrot.slane %v2666, 3
      %v3918 = vrot.slane %v2669, 4
      %v3919 = vor.u32 %v3917, %v3918
      %v3920 = vsel %vm1485, %v1735, %v3919
      %v3921 = vshrl.u32 %v1042, 16
      %v3923 = vrot.slane %v3921, 3
      %v3924 = vrot.slane %v3518, 4
      %v3925 = vor.u32 %v3923, %v3924
      %v3926 = vsel %vm1485, %v3919, %v3925
      %v3928 = vshrl.u32 %v1043, 16
      %v3930 = vrot.slane %v3928, 3
      %v3931 = vshll.u32 %v1043, 16
      %v3933 = vrot.slane %v3931, 4
      %v3934 = vor.u32 %v3930, %v3933
      %v3935 = vsel %vm1485, %v3925, %v3934
      %v3955 = vunpack.c.l.b16 %v3901
      %v3956 = vunpack.c.l.b16 %v3902
      %v3957 = vunpack.c.l.b16 %v3903
      %v3958 = vunpack.c.l.b16 %v3904
      %v3959 = vunpack.c.l.b16 %v3905
      %v3960 = vunpack.c.l.b16 %v3906
      %v3961 = vunpack.c.l.b16 %v3907
      %v3962 = vunpack.c.l.b16 %v3908
      %v3963 = vunpack.c.l.b16 %v3909
      %v3964 = vunpack.c.l.b16 %v3910
      %v3965 = vunpack.c.l.b16 %v3911
      %v3966 = vunpack.c.l.b16 %v3912
      %v3967 = vunpack.c.l.b16 %v3913
      %v3968 = vunpack.c.l.b16 %v3914
      %v3969 = vunpack.c.l.b16 %v3915
      %v3970 = vunpack.c.l.b16 %v3916
      %v3971 = vpack.c.b16 %v3956, %v3955
      %v3972 = vpack.c.b16 %v3958, %v3957
      %v3973 = vpack.c.b16 %v3960, %v3959
      %v3974 = vpack.c.b16 %v3962, %v3961
      %v3975 = vpack.c.b16 %v3964, %v3963
      %v3976 = vpack.c.b16 %v3966, %v3965
      %v3977 = vpack.c.b16 %v3968, %v3967
      %v3978 = vpack.c.b16 %v3970, %v3969
      %3987 = vmatprep.subr.bf16.mxu0 0
      %3988 = vmatpush1.bf16.msra.mxu0 %v3971
      %3989 = vmatprep.subr.bf16.mxu0 0
      %3990 = vmatpush1.bf16.msra.mxu0 %v3972
      %3991 = vmatprep.subr.bf16.mxu0 0
      %3992 = vmatpush1.bf16.msra.mxu0 %v3973
      %3993 = vmatprep.subr.bf16.mxu0 0
      %3994 = vmatpush1.bf16.msra.mxu0 %v3974
      %3995 = vmatprep.subr.bf16.mxu0 0
      %3996 = vmatpush1.bf16.msra.mxu0 %v3975
      %3997 = vmatprep.subr.bf16.mxu0 0
      %3998 = vmatpush1.bf16.msra.mxu0 %v3976
      %3999 = vmatprep.subr.bf16.mxu0 0
      %4000 = vmatpush1.bf16.msra.mxu0 %v3977
      %4001 = vmatprep.subr.bf16.mxu0 0
      %4002 = vmatpush1.bf16.msra.mxu0 %v3978
      %4003 = vmatprep.subr.bf16.mxu0 0
      %4004 = vmatpush1.bf16.msra.mxu0 0
      %4005 = vmatprep.subr.bf16.mxu0 0
      %4006 = vmatpush1.bf16.msra.mxu0 0
      %4007 = vmatprep.subr.bf16.mxu0 0
      %4008 = vmatpush1.bf16.msra.mxu0 0
      %4009 = vmatprep.subr.bf16.mxu0 0
      %4010 = vmatpush1.bf16.msra.mxu0 0
      %4011 = vmatprep.subr.bf16.mxu0 0
      %4012 = vmatpush1.bf16.msra.mxu0 0
      %4013 = vmatprep.subr.bf16.mxu0 0
      %4014 = vmatpush1.bf16.msra.mxu0 0
      %4015 = vmatprep.subr.bf16.mxu0 0
      %4016 = vmatpush1.bf16.msra.mxu0 0
      %4017 = vmatprep.subr.bf16.mxu0 0
      %4018 = vmatpush1.bf16.msra.mxu0 0
      %4019 = vmatprep.mubr.bf16.mxu0 0
      %4020 = vmatmul.mubr.bf16.gmra.mrb[0].mxu0 %v1529
      %v4021 = vpop.f32.mrb[0].mxu0
      %v4022 = vadd.f32 0.0, %v4021
      %v4023 = vpop.f32.mrb[0].mxu0
      %v4024 = vpop.f32.mrb[0].mxu0
      %v4025 = vadd.f32 0.0, %v4024
      %v4026 = vpop.f32.mrb[0].mxu0
      %4027 = vmatprep.mubr.bf16.mxu0 0
      %4028 = vmatmul.mubr.bf16.gmra.mrb[0].mxu0 %v1538
      %v4029 = vpop.f32.mrb[0].mxu0
      %v4030 = vadd.f32 0.0, %v4029
      %v4031 = vpop.f32.mrb[0].mxu0
      %v4032 = vpop.f32.mrb[0].mxu0
      %v4033 = vadd.f32 0.0, %v4032
      %v4034 = vpop.f32.mrb[0].mxu0
      %4035 = vmatprep.mubr.bf16.mxu0 0
      %4036 = vmatmul.mubr.bf16.gmra.mrb[0].mxu0 %v1547
      %v4037 = vpop.f32.mrb[0].mxu0
      %v4038 = vadd.f32 0.0, %v4037
      %v4039 = vpop.f32.mrb[0].mxu0
      %v4040 = vpop.f32.mrb[0].mxu0
      %v4041 = vadd.f32 0.0, %v4040
      %v4042 = vpop.f32.mrb[0].mxu0
      %4043 = vmatprep.mubr.bf16.mxu0 0
      %4044 = vmatmul.mubr.bf16.gmra.mrb[0].mxu0 %v1556
      %v4045 = vpop.f32.mrb[0].mxu0
      %v4046 = vadd.f32 0.0, %v4045
      %v4047 = vpop.f32.mrb[0].mxu0
      %v4048 = vpop.f32.mrb[0].mxu0
      %v4049 = vadd.f32 0.0, %v4048
      %v4050 = vpop.f32.mrb[0].mxu0
      %4051 = vmatprep.mubr.bf16.mxu0 0
      %4052 = vmatmul.mubr.bf16.gmra.mrb[0].mxu0 %v1565
      %v4053 = vpop.f32.mrb[0].mxu0
      %v4054 = vadd.f32 0.0, %v4053
      %v4055 = vpop.f32.mrb[0].mxu0
      %v4056 = vpop.f32.mrb[0].mxu0
      %v4057 = vadd.f32 0.0, %v4056
      %v4058 = vpop.f32.mrb[0].mxu0
      %4059 = vmatprep.mubr.bf16.mxu0 0
      %4060 = vmatmul.mubr.bf16.gmra.mrb[0].mxu0 %v1574
      %v4061 = vpop.f32.mrb[0].mxu0
      %v4062 = vadd.f32 0.0, %v4061
      %v4063 = vpop.f32.mrb[0].mxu0
      %v4064 = vpop.f32.mrb[0].mxu0
      %v4065 = vadd.f32 0.0, %v4064
      %v4066 = vpop.f32.mrb[0].mxu0
      %4067 = vmatprep.mubr.bf16.mxu0 0
      %4068 = vmatmul.mubr.bf16.gmra.mrb[0].mxu0 %v1583
      %v4069 = vpop.f32.mrb[0].mxu0
      %v4070 = vadd.f32 0.0, %v4069
      %v4071 = vpop.f32.mrb[0].mxu0
      %v4072 = vpop.f32.mrb[0].mxu0
      %v4073 = vadd.f32 0.0, %v4072
      %v4074 = vpop.f32.mrb[0].mxu0
      %4075 = vmatprep.mubr.bf16.mxu0 0
      %4076 = vmatmul.mubr.bf16.gmra.mrb[0].mxu0 %v1592
      %v4077 = vpop.f32.mrb[0].mxu0
      %v4078 = vadd.f32 0.0, %v4077
      %v4079 = vpop.f32.mrb[0].mxu0
      %v4080 = vpop.f32.mrb[0].mxu0
      %v4081 = vadd.f32 0.0, %v4080
      %v4082 = vpop.f32.mrb[0].mxu0
      %4083 = vmatprep.mubr.bf16.mxu0 0
      %4084 = vmatmul.mubr.bf16.gmra.mrb[0].mxu0 %v1601
      %v4085 = vpop.f32.mrb[0].mxu0
      %v4086 = vadd.f32 0.0, %v4085
      %v4087 = vpop.f32.mrb[0].mxu0
      %v4088 = vpop.f32.mrb[0].mxu0
      %v4089 = vadd.f32 0.0, %v4088
      %v4090 = vpop.f32.mrb[0].mxu0
      %4091 = vmatprep.mubr.bf16.mxu0 0
      %4092 = vmatmul.mubr.bf16.gmra.mrb[0].mxu0 %v1610
      %v4093 = vpop.f32.mrb[0].mxu0
      %v4094 = vadd.f32 0.0, %v4093
      %v4095 = vpop.f32.mrb[0].mxu0
      %v4096 = vpop.f32.mrb[0].mxu0
      %v4097 = vadd.f32 0.0, %v4096
      %v4098 = vpop.f32.mrb[0].mxu0
      %4099 = vmatprep.mubr.bf16.mxu0 0
      %4100 = vmatmul.mubr.bf16.gmra.mrb[0].mxu0 %v1619
      %v4101 = vpop.f32.mrb[0].mxu0
      %v4102 = vadd.f32 0.0, %v4101
      %v4103 = vpop.f32.mrb[0].mxu0
      %v4104 = vpop.f32.mrb[0].mxu0
      %v4105 = vadd.f32 0.0, %v4104
      %v4106 = vpop.f32.mrb[0].mxu0
      %4107 = vmatprep.mubr.bf16.mxu0 0
      %4108 = vmatmul.mubr.bf16.gmra.mrb[0].mxu0 %v1628
      %v4109 = vpop.f32.mrb[0].mxu0
      %v4110 = vadd.f32 0.0, %v4109
      %v4111 = vpop.f32.mrb[0].mxu0
      %v4112 = vpop.f32.mrb[0].mxu0
      %v4113 = vadd.f32 0.0, %v4112
      %v4114 = vpop.f32.mrb[0].mxu0
      %4115 = vmatprep.mubr.bf16.mxu0 0
      %4116 = vmatmul.mubr.bf16.gmra.mrb[0].mxu0 %v1637
      %v4117 = vpop.f32.mrb[0].mxu0
      %v4118 = vadd.f32 0.0, %v4117
      %v4119 = vpop.f32.mrb[0].mxu0
      %v4120 = vpop.f32.mrb[0].mxu0
      %v4121 = vadd.f32 0.0, %v4120
      %v4122 = vpop.f32.mrb[0].mxu0
      %4123 = vmatprep.mubr.bf16.mxu0 0
      %4124 = vmatmul.mubr.bf16.gmra.mrb[0].mxu0 %v1646
      %v4125 = vpop.f32.mrb[0].mxu0
      %v4126 = vadd.f32 0.0, %v4125
      %v4127 = vpop.f32.mrb[0].mxu0
      %v4128 = vpop.f32.mrb[0].mxu0
      %v4129 = vadd.f32 0.0, %v4128
      %v4130 = vpop.f32.mrb[0].mxu0
      %4131 = vmatprep.mubr.bf16.mxu0 0
      %4132 = vmatmul.mubr.bf16.gmra.mrb[0].mxu0 %v1655
      %v4133 = vpop.f32.mrb[0].mxu0
      %v4134 = vadd.f32 0.0, %v4133
      %v4135 = vpop.f32.mrb[0].mxu0
      %v4136 = vpop.f32.mrb[0].mxu0
      %v4137 = vadd.f32 0.0, %v4136
      %v4138 = vpop.f32.mrb[0].mxu0
      %4139 = vmatprep.mubr.bf16.mxu0 0
      %4140 = vmatmul.mubr.bf16.gmra.mrb[0].mxu0 %v1664
      %v4141 = vpop.f32.mrb[0].mxu0
      %v4142 = vadd.f32 0.0, %v4141
      %v4143 = vpop.f32.mrb[0].mxu0
      %v4144 = vpop.f32.mrb[0].mxu0
      %v4145 = vadd.f32 0.0, %v4144
      %v4146 = vpop.f32.mrb[0].mxu0
      %4147 = vmatprep.mubr.bf16.mxu0 0
      %4148 = vmatmul.mubr.bf16.gmra.mrb[0].mxu0 %v1673
      %v4149 = vpop.f32.mrb[0].mxu0
      %v4150 = vadd.f32 0.0, %v4149
      %v4151 = vpop.f32.mrb[0].mxu0
      %v4152 = vpop.f32.mrb[0].mxu0
      %v4153 = vadd.f32 0.0, %v4152
      %v4154 = vpop.f32.mrb[0].mxu0
      %4155 = vmatprep.mubr.bf16.mxu0 0
      %4156 = vmatmul.mubr.bf16.gmra.mrb[0].mxu0 %v1682
      %v4157 = vpop.f32.mrb[0].mxu0
      %v4158 = vadd.f32 0.0, %v4157
      %v4159 = vpop.f32.mrb[0].mxu0
      %v4160 = vpop.f32.mrb[0].mxu0
      %v4161 = vadd.f32 0.0, %v4160
      %v4162 = vpop.f32.mrb[0].mxu0
      %4163 = vmatprep.mubr.bf16.mxu0 0
      %4164 = vmatmul.mubr.bf16.gmra.mrb[0].mxu0 %v1691
      %v4165 = vpop.f32.mrb[0].mxu0
      %v4166 = vadd.f32 0.0, %v4165
      %v4167 = vpop.f32.mrb[0].mxu0
      %v4168 = vpop.f32.mrb[0].mxu0
      %v4169 = vadd.f32 0.0, %v4168
      %v4170 = vpop.f32.mrb[0].mxu0
      %4171 = vmatprep.mubr.bf16.mxu0 0
      %4172 = vmatmul.mubr.bf16.gmra.mrb[0].mxu0 %v1700
      %v4173 = vpop.f32.mrb[0].mxu0
      %v4174 = vadd.f32 0.0, %v4173
      %v4175 = vpop.f32.mrb[0].mxu0
      %v4176 = vpop.f32.mrb[0].mxu0
      %v4177 = vadd.f32 0.0, %v4176
      %v4178 = vpop.f32.mrb[0].mxu0
      %4179 = vmatprep.mubr.bf16.mxu0 0
      %4180 = vmatmul.mubr.bf16.gmra.mrb[0].mxu0 %v1709
      %v4181 = vpop.f32.mrb[0].mxu0
      %v4182 = vadd.f32 0.0, %v4181
      %v4183 = vpop.f32.mrb[0].mxu0
      %v4184 = vpop.f32.mrb[0].mxu0
      %v4185 = vadd.f32 0.0, %v4184
      %v4186 = vpop.f32.mrb[0].mxu0
      %4187 = vmatprep.mubr.bf16.mxu0 0
      %4188 = vmatmul.mubr.bf16.gmra.mrb[0].mxu0 %v1718
      %v4189 = vpop.f32.mrb[0].mxu0
      %v4190 = vadd.f32 0.0, %v4189
      %v4191 = vpop.f32.mrb[0].mxu0
      %v4192 = vpop.f32.mrb[0].mxu0
      %v4193 = vadd.f32 0.0, %v4192
      %v4194 = vpop.f32.mrb[0].mxu0
      %4195 = vmatprep.mubr.bf16.mxu0 0
      %4196 = vmatmul.mubr.bf16.gmra.mrb[0].mxu0 %v1727
      %v4197 = vpop.f32.mrb[0].mxu0
      %v4198 = vadd.f32 0.0, %v4197
      %v4199 = vpop.f32.mrb[0].mxu0
      %v4200 = vpop.f32.mrb[0].mxu0
      %v4201 = vadd.f32 0.0, %v4200
      %v4202 = vpop.f32.mrb[0].mxu0
      %4203 = vmatprep.mubr.bf16.mxu0 0
      %4204 = vmatmul.mubr.bf16.gmra.mrb[0].mxu0 %v1736
      %v4205 = vpop.f32.mrb[0].mxu0
      %v4206 = vadd.f32 0.0, %v4205
      %v4207 = vpop.f32.mrb[0].mxu0
      %v4208 = vpop.f32.mrb[0].mxu0
      %v4209 = vadd.f32 0.0, %v4208
      %v4210 = vpop.f32.mrb[0].mxu0
      %4211 = vmatprep.mubr.bf16.mxu0 0
      %4212 = vmatmul.mubr.bf16.gmra.mrb[0].mxu0 %v3920
      %v4213 = vpop.f32.mrb[0].mxu0
      %v4214 = vadd.f32 0.0, %v4213
      %v4215 = vpop.f32.mrb[0].mxu0
      %v4216 = vpop.f32.mrb[0].mxu0
      %v4217 = vadd.f32 0.0, %v4216
      %v4218 = vpop.f32.mrb[0].mxu0
      %4219 = vmatprep.mubr.bf16.mxu0 0
      %4220 = vmatmul.mubr.bf16.gmra.mrb[0].mxu0 %v3926
      %v4221 = vpop.f32.mrb[0].mxu0
      %v4222 = vadd.f32 0.0, %v4221
      %v4223 = vpop.f32.mrb[0].mxu0
      %v4224 = vpop.f32.mrb[0].mxu0
      %v4225 = vadd.f32 0.0, %v4224
      %v4226 = vpop.f32.mrb[0].mxu0
      %4227 = vmatprep.mubr.bf16.mxu0 0
      %4228 = vmatmul.mubr.bf16.gmra.mrb[0].mxu0 %v3935
      %v4229 = vpop.f32.mrb[0].mxu0
      %v4230 = vadd.f32 0.0, %v4229
      %v4231 = vpop.f32.mrb[0].mxu0
      %v4232 = vpop.f32.mrb[0].mxu0
      %v4233 = vadd.f32 0.0, %v4232
      %v4234 = vpop.f32.mrb[0].mxu0
      %4235 = vdwg.mxu0
      %v4236 = vadd.f32 %v3846, %v4022
      %v4237 = vadd.f32 %v3847, %v4025
      %v4238 = vadd.f32 %v3848, %v4030
      %v4239 = vadd.f32 %v3849, %v4033
      %v4240 = vadd.f32 %v3850, %v4038
      %v4241 = vadd.f32 %v3851, %v4041
      %v4242 = vadd.f32 %v3852, %v4046
      %v4243 = vadd.f32 %v3853, %v4049
      %v4244 = vadd.f32 %v3854, %v4054
      %v4245 = vadd.f32 %v3855, %v4057
      %v4246 = vadd.f32 %v3856, %v4062
      %v4247 = vadd.f32 %v3857, %v4065
      %v4248 = vadd.f32 %v3858, %v4070
      %v4249 = vadd.f32 %v3859, %v4073
      %v4250 = vadd.f32 %v3860, %v4078
      %v4251 = vadd.f32 %v3861, %v4081
      %v4252 = vadd.f32 %v3862, %v4086
      %v4253 = vadd.f32 %v3863, %v4089
      %v4254 = vadd.f32 %v3864, %v4094
      %v4255 = vadd.f32 %v3865, %v4097
      %v4256 = vadd.f32 %v3866, %v4102
      %v4257 = vadd.f32 %v3867, %v4105
      %v4258 = vadd.f32 %v3868, %v4110
      %v4259 = vadd.f32 %v3869, %v4113
      %v4260 = vadd.f32 %v3870, %v4118
      %v4261 = vadd.f32 %v3871, %v4121
      %v4262 = vadd.f32 %v3872, %v4126
      %v4263 = vadd.f32 %v3873, %v4129
      %v4264 = vadd.f32 %v3874, %v4134
      %v4265 = vadd.f32 %v3875, %v4137
      %v4266 = vadd.f32 %v3876, %v4142
      %v4267 = vadd.f32 %v3877, %v4145
      %v4268 = vadd.f32 %v3878, %v4150
      %v4269 = vadd.f32 %v3879, %v4153
      %v4270 = vadd.f32 %v3880, %v4158
      %v4271 = vadd.f32 %v3881, %v4161
      %v4272 = vadd.f32 %v3882, %v4166
      %v4273 = vadd.f32 %v3883, %v4169
      %v4274 = vadd.f32 %v3884, %v4174
      %v4275 = vadd.f32 %v3885, %v4177
      %v4276 = vadd.f32 %v3886, %v4182
      %v4277 = vadd.f32 %v3887, %v4185
      %v4278 = vadd.f32 %v3888, %v4190
      %v4279 = vadd.f32 %v3889, %v4193
      %v4280 = vadd.f32 %v3890, %v4198
      %v4281 = vadd.f32 %v3891, %v4201
      %v4282 = vadd.f32 %v3892, %v4206
      %v4283 = vadd.f32 %v3893, %v4209
      %v4284 = vadd.f32 %v3894, %v4214
      %v4285 = vadd.f32 %v3895, %v4217
      %v4286 = vadd.f32 %v3896, %v4222
      %v4287 = vadd.f32 %v3897, %v4225
      %v4288 = vadd.f32 %v3898, %v4230
      %v4289 = vadd.f32 %v3899, %v4233
      %s4290 = scalar_lea.vmem %s1, 448
      %v4291 = vld [vmem:[%s4290] sm:$0xf]
      %v4292 = vld [vmem:[%s4290 + $0x4] sm:$0xf]
      %v4293 = vld [vmem:[%s4290 + $0x8] sm:$0xf]
      %v4294 = vld [vmem:[%s4290 + $0xc] sm:$0xf]
      %v4295 = vld [vmem:[%s4290 + $0x10] sm:$0xf]
      %v4296 = vld [vmem:[%s4290 + $0x14] sm:$0xf]
      %v4297 = vld [vmem:[%s4290 + $0x18] sm:$0xf]
      %v4298 = vld [vmem:[%s4290 + $0x1c] sm:$0xf]
      %v4299 = vld [vmem:[%s4290 + $0x20] sm:$0xf]
      %v4300 = vld [vmem:[%s4290 + $0x24] sm:$0xf]
      %v4301 = vld [vmem:[%s4290 + $0x28] sm:$0xf]
      %v4302 = vld [vmem:[%s4290 + $0x2c] sm:$0xf]
      %v4303 = vld [vmem:[%s4290 + $0x30] sm:$0xf]
      %v4304 = vld [vmem:[%s4290 + $0x34] sm:$0xf]
      %v4305 = vld [vmem:[%s4290 + $0x38] sm:$0xf]
      %v4306 = vld [vmem:[%s4290 + $0x3c] sm:$0xf]
      %v4310 = vrot.slane %v1041, 4
      %v4311 = vsel %vm1105, %v1159, %v4310
      %v4312 = vrot.slane %v1042, 4
      %v4313 = vsel %vm1105, %v4310, %v4312
      %v4314 = vrot.slane %v1043, 4
      %v4315 = vsel %vm1105, %v4312, %v4314
      %v4335 = vunpack.c.l.b16 %v4291
      %v4336 = vunpack.c.l.b16 %v4292
      %v4337 = vunpack.c.l.b16 %v4293
      %v4338 = vunpack.c.l.b16 %v4294
      %v4339 = vunpack.c.l.b16 %v4295
      %v4340 = vunpack.c.l.b16 %v4296
      %v4341 = vunpack.c.l.b16 %v4297
      %v4342 = vunpack.c.l.b16 %v4298
      %v4343 = vunpack.c.l.b16 %v4299
      %v4344 = vunpack.c.l.b16 %v4300
      %v4345 = vunpack.c.l.b16 %v4301
      %v4346 = vunpack.c.l.b16 %v4302
      %v4347 = vunpack.c.l.b16 %v4303
      %v4348 = vunpack.c.l.b16 %v4304
      %v4349 = vunpack.c.l.b16 %v4305
      %v4350 = vunpack.c.l.b16 %v4306
      %v4351 = vpack.c.b16 %v4336, %v4335
      %v4352 = vpack.c.b16 %v4338, %v4337
      %v4353 = vpack.c.b16 %v4340, %v4339
      %v4354 = vpack.c.b16 %v4342, %v4341
      %v4355 = vpack.c.b16 %v4344, %v4343
      %v4356 = vpack.c.b16 %v4346, %v4345
      %v4357 = vpack.c.b16 %v4348, %v4347
      %v4358 = vpack.c.b16 %v4350, %v4349
      %4367 = vmatprep.subr.bf16.mxu0 0
      %4368 = vmatpush1.bf16.msra.mxu0 %v4351
      %4369 = vmatprep.subr.bf16.mxu0 0
      %4370 = vmatpush1.bf16.msra.mxu0 %v4352
      %4371 = vmatprep.subr.bf16.mxu0 0
      %4372 = vmatpush1.bf16.msra.mxu0 %v4353
      %4373 = vmatprep.subr.bf16.mxu0 0
      %4374 = vmatpush1.bf16.msra.mxu0 %v4354
      %4375 = vmatprep.subr.bf16.mxu0 0
      %4376 = vmatpush1.bf16.msra.mxu0 %v4355
      %4377 = vmatprep.subr.bf16.mxu0 0
      %4378 = vmatpush1.bf16.msra.mxu0 %v4356
      %4379 = vmatprep.subr.bf16.mxu0 0
      %4380 = vmatpush1.bf16.msra.mxu0 %v4357
      %4381 = vmatprep.subr.bf16.mxu0 0
      %4382 = vmatpush1.bf16.msra.mxu0 %v4358
      %4383 = vmatprep.subr.bf16.mxu0 0
      %4384 = vmatpush1.bf16.msra.mxu0 0
      %4385 = vmatprep.subr.bf16.mxu0 0
      %4386 = vmatpush1.bf16.msra.mxu0 0
      %4387 = vmatprep.subr.bf16.mxu0 0
      %4388 = vmatpush1.bf16.msra.mxu0 0
      %4389 = vmatprep.subr.bf16.mxu0 0
      %4390 = vmatpush1.bf16.msra.mxu0 0
      %4391 = vmatprep.subr.bf16.mxu0 0
      %4392 = vmatpush1.bf16.msra.mxu0 0
      %4393 = vmatprep.subr.bf16.mxu0 0
      %4394 = vmatpush1.bf16.msra.mxu0 0
      %4395 = vmatprep.subr.bf16.mxu0 0
      %4396 = vmatpush1.bf16.msra.mxu0 0
      %4397 = vmatprep.subr.bf16.mxu0 0
      %4398 = vmatpush1.bf16.msra.mxu0 0
      %4399 = vmatprep.mubr.bf16.mxu0 0
      %4400 = vmatmul.mubr.bf16.gmra.mrb[0].mxu0 %v1114
      %v4401 = vpop.f32.mrb[0].mxu0
      %v4402 = vadd.f32 0.0, %v4401
      %v4403 = vpop.f32.mrb[0].mxu0
      %v4404 = vpop.f32.mrb[0].mxu0
      %v4405 = vadd.f32 0.0, %v4404
      %v4406 = vpop.f32.mrb[0].mxu0
      %4407 = vmatprep.mubr.bf16.mxu0 0
      %4408 = vmatmul.mubr.bf16.gmra.mrb[0].mxu0 %v1116
      %v4409 = vpop.f32.mrb[0].mxu0
      %v4410 = vadd.f32 0.0, %v4409
      %v4411 = vpop.f32.mrb[0].mxu0
      %v4412 = vpop.f32.mrb[0].mxu0
      %v4413 = vadd.f32 0.0, %v4412
      %v4414 = vpop.f32.mrb[0].mxu0
      %4415 = vmatprep.mubr.bf16.mxu0 0
      %4416 = vmatmul.mubr.bf16.gmra.mrb[0].mxu0 %v1118
      %v4417 = vpop.f32.mrb[0].mxu0
      %v4418 = vadd.f32 0.0, %v4417
      %v4419 = vpop.f32.mrb[0].mxu0
      %v4420 = vpop.f32.mrb[0].mxu0
      %v4421 = vadd.f32 0.0, %v4420
      %v4422 = vpop.f32.mrb[0].mxu0
      %4423 = vmatprep.mubr.bf16.mxu0 0
      %4424 = vmatmul.mubr.bf16.gmra.mrb[0].mxu0 %v1120
      %v4425 = vpop.f32.mrb[0].mxu0
      %v4426 = vadd.f32 0.0, %v4425
      %v4427 = vpop.f32.mrb[0].mxu0
      %v4428 = vpop.f32.mrb[0].mxu0
      %v4429 = vadd.f32 0.0, %v4428
      %v4430 = vpop.f32.mrb[0].mxu0
      %4431 = vmatprep.mubr.bf16.mxu0 0
      %4432 = vmatmul.mubr.bf16.gmra.mrb[0].mxu0 %v1122
      %v4433 = vpop.f32.mrb[0].mxu0
      %v4434 = vadd.f32 0.0, %v4433
      %v4435 = vpop.f32.mrb[0].mxu0
      %v4436 = vpop.f32.mrb[0].mxu0
      %v4437 = vadd.f32 0.0, %v4436
      %v4438 = vpop.f32.mrb[0].mxu0
      %4439 = vmatprep.mubr.bf16.mxu0 0
      %4440 = vmatmul.mubr.bf16.gmra.mrb[0].mxu0 %v1124
      %v4441 = vpop.f32.mrb[0].mxu0
      %v4442 = vadd.f32 0.0, %v4441
      %v4443 = vpop.f32.mrb[0].mxu0
      %v4444 = vpop.f32.mrb[0].mxu0
      %v4445 = vadd.f32 0.0, %v4444
      %v4446 = vpop.f32.mrb[0].mxu0
      %4447 = vmatprep.mubr.bf16.mxu0 0
      %4448 = vmatmul.mubr.bf16.gmra.mrb[0].mxu0 %v1126
      %v4449 = vpop.f32.mrb[0].mxu0
      %v4450 = vadd.f32 0.0, %v4449
      %v4451 = vpop.f32.mrb[0].mxu0
      %v4452 = vpop.f32.mrb[0].mxu0
      %v4453 = vadd.f32 0.0, %v4452
      %v4454 = vpop.f32.mrb[0].mxu0
      %4455 = vmatprep.mubr.bf16.mxu0 0
      %4456 = vmatmul.mubr.bf16.gmra.mrb[0].mxu0 %v1128
      %v4457 = vpop.f32.mrb[0].mxu0
      %v4458 = vadd.f32 0.0, %v4457
      %v4459 = vpop.f32.mrb[0].mxu0
      %v4460 = vpop.f32.mrb[0].mxu0
      %v4461 = vadd.f32 0.0, %v4460
      %v4462 = vpop.f32.mrb[0].mxu0
      %4463 = vmatprep.mubr.bf16.mxu0 0
      %4464 = vmatmul.mubr.bf16.gmra.mrb[0].mxu0 %v1130
      %v4465 = vpop.f32.mrb[0].mxu0
      %v4466 = vadd.f32 0.0, %v4465
      %v4467 = vpop.f32.mrb[0].mxu0
      %v4468 = vpop.f32.mrb[0].mxu0
      %v4469 = vadd.f32 0.0, %v4468
      %v4470 = vpop.f32.mrb[0].mxu0
      %4471 = vmatprep.mubr.bf16.mxu0 0
      %4472 = vmatmul.mubr.bf16.gmra.mrb[0].mxu0 %v1132
      %v4473 = vpop.f32.mrb[0].mxu0
      %v4474 = vadd.f32 0.0, %v4473
      %v4475 = vpop.f32.mrb[0].mxu0
      %v4476 = vpop.f32.mrb[0].mxu0
      %v4477 = vadd.f32 0.0, %v4476
      %v4478 = vpop.f32.mrb[0].mxu0
      %4479 = vmatprep.mubr.bf16.mxu0 0
      %4480 = vmatmul.mubr.bf16.gmra.mrb[0].mxu0 %v1134
      %v4481 = vpop.f32.mrb[0].mxu0
      %v4482 = vadd.f32 0.0, %v4481
      %v4483 = vpop.f32.mrb[0].mxu0
      %v4484 = vpop.f32.mrb[0].mxu0
      %v4485 = vadd.f32 0.0, %v4484
      %v4486 = vpop.f32.mrb[0].mxu0
      %4487 = vmatprep.mubr.bf16.mxu0 0
      %4488 = vmatmul.mubr.bf16.gmra.mrb[0].mxu0 %v1136
      %v4489 = vpop.f32.mrb[0].mxu0
      %v4490 = vadd.f32 0.0, %v4489
      %v4491 = vpop.f32.mrb[0].mxu0
      %v4492 = vpop.f32.mrb[0].mxu0
      %v4493 = vadd.f32 0.0, %v4492
      %v4494 = vpop.f32.mrb[0].mxu0
      %4495 = vmatprep.mubr.bf16.mxu0 0
      %4496 = vmatmul.mubr.bf16.gmra.mrb[0].mxu0 %v1138
      %v4497 = vpop.f32.mrb[0].mxu0
      %v4498 = vadd.f32 0.0, %v4497
      %v4499 = vpop.f32.mrb[0].mxu0
      %v4500 = vpop.f32.mrb[0].mxu0
      %v4501 = vadd.f32 0.0, %v4500
      %v4502 = vpop.f32.mrb[0].mxu0
      %4503 = vmatprep.mubr.bf16.mxu0 0
      %4504 = vmatmul.mubr.bf16.gmra.mrb[0].mxu0 %v1140
      %v4505 = vpop.f32.mrb[0].mxu0
      %v4506 = vadd.f32 0.0, %v4505
      %v4507 = vpop.f32.mrb[0].mxu0
      %v4508 = vpop.f32.mrb[0].mxu0
      %v4509 = vadd.f32 0.0, %v4508
      %v4510 = vpop.f32.mrb[0].mxu0
      %4511 = vmatprep.mubr.bf16.mxu0 0
      %4512 = vmatmul.mubr.bf16.gmra.mrb[0].mxu0 %v1142
      %v4513 = vpop.f32.mrb[0].mxu0
      %v4514 = vadd.f32 0.0, %v4513
      %v4515 = vpop.f32.mrb[0].mxu0
      %v4516 = vpop.f32.mrb[0].mxu0
      %v4517 = vadd.f32 0.0, %v4516
      %v4518 = vpop.f32.mrb[0].mxu0
      %4519 = vmatprep.mubr.bf16.mxu0 0
      %4520 = vmatmul.mubr.bf16.gmra.mrb[0].mxu0 %v1144
      %v4521 = vpop.f32.mrb[0].mxu0
      %v4522 = vadd.f32 0.0, %v4521
      %v4523 = vpop.f32.mrb[0].mxu0
      %v4524 = vpop.f32.mrb[0].mxu0
      %v4525 = vadd.f32 0.0, %v4524
      %v4526 = vpop.f32.mrb[0].mxu0
      %4527 = vmatprep.mubr.bf16.mxu0 0
      %4528 = vmatmul.mubr.bf16.gmra.mrb[0].mxu0 %v1146
      %v4529 = vpop.f32.mrb[0].mxu0
      %v4530 = vadd.f32 0.0, %v4529
      %v4531 = vpop.f32.mrb[0].mxu0
      %v4532 = vpop.f32.mrb[0].mxu0
      %v4533 = vadd.f32 0.0, %v4532
      %v4534 = vpop.f32.mrb[0].mxu0
      %4535 = vmatprep.mubr.bf16.mxu0 0
      %4536 = vmatmul.mubr.bf16.gmra.mrb[0].mxu0 %v1148
      %v4537 = vpop.f32.mrb[0].mxu0
      %v4538 = vadd.f32 0.0, %v4537
      %v4539 = vpop.f32.mrb[0].mxu0
      %v4540 = vpop.f32.mrb[0].mxu0
      %v4541 = vadd.f32 0.0, %v4540
      %v4542 = vpop.f32.mrb[0].mxu0
      %4543 = vmatprep.mubr.bf16.mxu0 0
      %4544 = vmatmul.mubr.bf16.gmra.mrb[0].mxu0 %v1150
      %v4545 = vpop.f32.mrb[0].mxu0
      %v4546 = vadd.f32 0.0, %v4545
      %v4547 = vpop.f32.mrb[0].mxu0
      %v4548 = vpop.f32.mrb[0].mxu0
      %v4549 = vadd.f32 0.0, %v4548
      %v4550 = vpop.f32.mrb[0].mxu0
      %4551 = vmatprep.mubr.bf16.mxu0 0
      %4552 = vmatmul.mubr.bf16.gmra.mrb[0].mxu0 %v1152
      %v4553 = vpop.f32.mrb[0].mxu0
      %v4554 = vadd.f32 0.0, %v4553
      %v4555 = vpop.f32.mrb[0].mxu0
      %v4556 = vpop.f32.mrb[0].mxu0
      %v4557 = vadd.f32 0.0, %v4556
      %v4558 = vpop.f32.mrb[0].mxu0
      %4559 = vmatprep.mubr.bf16.mxu0 0
      %4560 = vmatmul.mubr.bf16.gmra.mrb[0].mxu0 %v1154
      %v4561 = vpop.f32.mrb[0].mxu0
      %v4562 = vadd.f32 0.0, %v4561
      %v4563 = vpop.f32.mrb[0].mxu0
      %v4564 = vpop.f32.mrb[0].mxu0
      %v4565 = vadd.f32 0.0, %v4564
      %v4566 = vpop.f32.mrb[0].mxu0
      %4567 = vmatprep.mubr.bf16.mxu0 0
      %4568 = vmatmul.mubr.bf16.gmra.mrb[0].mxu0 %v1156
      %v4569 = vpop.f32.mrb[0].mxu0
      %v4570 = vadd.f32 0.0, %v4569
      %v4571 = vpop.f32.mrb[0].mxu0
      %v4572 = vpop.f32.mrb[0].mxu0
      %v4573 = vadd.f32 0.0, %v4572
      %v4574 = vpop.f32.mrb[0].mxu0
      %4575 = vmatprep.mubr.bf16.mxu0 0
      %4576 = vmatmul.mubr.bf16.gmra.mrb[0].mxu0 %v1158
      %v4577 = vpop.f32.mrb[0].mxu0
      %v4578 = vadd.f32 0.0, %v4577
      %v4579 = vpop.f32.mrb[0].mxu0
      %v4580 = vpop.f32.mrb[0].mxu0
      %v4581 = vadd.f32 0.0, %v4580
      %v4582 = vpop.f32.mrb[0].mxu0
      %4583 = vmatprep.mubr.bf16.mxu0 0
      %4584 = vmatmul.mubr.bf16.gmra.mrb[0].mxu0 %v1160
      %v4585 = vpop.f32.mrb[0].mxu0
      %v4586 = vadd.f32 0.0, %v4585
      %v4587 = vpop.f32.mrb[0].mxu0
      %v4588 = vpop.f32.mrb[0].mxu0
      %v4589 = vadd.f32 0.0, %v4588
      %v4590 = vpop.f32.mrb[0].mxu0
      %4591 = vmatprep.mubr.bf16.mxu0 0
      %4592 = vmatmul.mubr.bf16.gmra.mrb[0].mxu0 %v4311
      %v4593 = vpop.f32.mrb[0].mxu0
      %v4594 = vadd.f32 0.0, %v4593
      %v4595 = vpop.f32.mrb[0].mxu0
      %v4596 = vpop.f32.mrb[0].mxu0
      %v4597 = vadd.f32 0.0, %v4596
      %v4598 = vpop.f32.mrb[0].mxu0
      %4599 = vmatprep.mubr.bf16.mxu0 0
      %4600 = vmatmul.mubr.bf16.gmra.mrb[0].mxu0 %v4313
      %v4601 = vpop.f32.mrb[0].mxu0
      %v4602 = vadd.f32 0.0, %v4601
      %v4603 = vpop.f32.mrb[0].mxu0
      %v4604 = vpop.f32.mrb[0].mxu0
      %v4605 = vadd.f32 0.0, %v4604
      %v4606 = vpop.f32.mrb[0].mxu0
      %4607 = vmatprep.mubr.bf16.mxu0 0
      %4608 = vmatmul.mubr.bf16.gmra.mrb[0].mxu0 %v4315
      %v4609 = vpop.f32.mrb[0].mxu0
      %v4610 = vadd.f32 0.0, %v4609
      %v4611 = vpop.f32.mrb[0].mxu0
      %v4612 = vpop.f32.mrb[0].mxu0
      %v4613 = vadd.f32 0.0, %v4612
      %v4614 = vpop.f32.mrb[0].mxu0
      %4615 = vdwg.mxu0
      %v4616 = vadd.f32 %v4236, %v4402
      %v4617 = vadd.f32 %v4237, %v4405
      %v4618 = vadd.f32 %v4238, %v4410
      %v4619 = vadd.f32 %v4239, %v4413
      %v4620 = vadd.f32 %v4240, %v4418
      %v4621 = vadd.f32 %v4241, %v4421
      %v4622 = vadd.f32 %v4242, %v4426
      %v4623 = vadd.f32 %v4243, %v4429
      %v4624 = vadd.f32 %v4244, %v4434
      %v4625 = vadd.f32 %v4245, %v4437
      %v4626 = vadd.f32 %v4246, %v4442
      %v4627 = vadd.f32 %v4247, %v4445
      %v4628 = vadd.f32 %v4248, %v4450
      %v4629 = vadd.f32 %v4249, %v4453
      %v4630 = vadd.f32 %v4250, %v4458
      %v4631 = vadd.f32 %v4251, %v4461
      %v4632 = vadd.f32 %v4252, %v4466
      %v4633 = vadd.f32 %v4253, %v4469
      %v4634 = vadd.f32 %v4254, %v4474
      %v4635 = vadd.f32 %v4255, %v4477
      %v4636 = vadd.f32 %v4256, %v4482
      %v4637 = vadd.f32 %v4257, %v4485
      %v4638 = vadd.f32 %v4258, %v4490
      %v4639 = vadd.f32 %v4259, %v4493
      %v4640 = vadd.f32 %v4260, %v4498
      %v4641 = vadd.f32 %v4261, %v4501
      %v4642 = vadd.f32 %v4262, %v4506
      %v4643 = vadd.f32 %v4263, %v4509
      %v4644 = vadd.f32 %v4264, %v4514
      %v4645 = vadd.f32 %v4265, %v4517
      %v4646 = vadd.f32 %v4266, %v4522
      %v4647 = vadd.f32 %v4267, %v4525
      %v4648 = vadd.f32 %v4268, %v4530
      %v4649 = vadd.f32 %v4269, %v4533
      %v4650 = vadd.f32 %v4270, %v4538
      %v4651 = vadd.f32 %v4271, %v4541
      %v4652 = vadd.f32 %v4272, %v4546
      %v4653 = vadd.f32 %v4273, %v4549
      %v4654 = vadd.f32 %v4274, %v4554
      %v4655 = vadd.f32 %v4275, %v4557
      %v4656 = vadd.f32 %v4276, %v4562
      %v4657 = vadd.f32 %v4277, %v4565
      %v4658 = vadd.f32 %v4278, %v4570
      %v4659 = vadd.f32 %v4279, %v4573
      %v4660 = vadd.f32 %v4280, %v4578
      %v4661 = vadd.f32 %v4281, %v4581
      %v4662 = vadd.f32 %v4282, %v4586
      %v4663 = vadd.f32 %v4283, %v4589
      %v4664 = vadd.f32 %v4284, %v4594
      %v4665 = vadd.f32 %v4285, %v4597
      %v4666 = vadd.f32 %v4286, %v4602
      %v4667 = vadd.f32 %v4287, %v4605
      %v4668 = vadd.f32 %v4288, %v4610
      %v4669 = vadd.f32 %v4289, %v4613
      %s4670 = scalar_lea.vmem %s1, 512
      %v4671 = vld [vmem:[%s4670] sm:$0xf]
      %v4672 = vld [vmem:[%s4670 + $0x4] sm:$0xf]
      %v4673 = vld [vmem:[%s4670 + $0x8] sm:$0xf]
      %v4674 = vld [vmem:[%s4670 + $0xc] sm:$0xf]
      %v4675 = vld [vmem:[%s4670 + $0x10] sm:$0xf]
      %v4676 = vld [vmem:[%s4670 + $0x14] sm:$0xf]
      %v4677 = vld [vmem:[%s4670 + $0x18] sm:$0xf]
      %v4678 = vld [vmem:[%s4670 + $0x1c] sm:$0xf]
      %v4679 = vld [vmem:[%s4670 + $0x20] sm:$0xf]
      %v4680 = vld [vmem:[%s4670 + $0x24] sm:$0xf]
      %v4681 = vld [vmem:[%s4670 + $0x28] sm:$0xf]
      %v4682 = vld [vmem:[%s4670 + $0x2c] sm:$0xf]
      %v4683 = vld [vmem:[%s4670 + $0x30] sm:$0xf]
      %v4684 = vld [vmem:[%s4670 + $0x34] sm:$0xf]
      %v4685 = vld [vmem:[%s4670 + $0x38] sm:$0xf]
      %v4686 = vld [vmem:[%s4670 + $0x3c] sm:$0xf]
      %v4687 = vrot.slane %v2666, 4
      %v4688 = vrot.slane %v2669, 5
      %v4689 = vor.u32 %v4687, %v4688
      %v4690 = vsel %vm2078, %v2188, %v4689
      %v4691 = vrot.slane %v3921, 4
      %v4692 = vrot.slane %v3518, 5
      %v4693 = vor.u32 %v4691, %v4692
      %v4694 = vsel %vm2078, %v4689, %v4693
      %v4695 = vrot.slane %v3928, 4
      %v4696 = vrot.slane %v3931, 5
      %v4697 = vor.u32 %v4695, %v4696
      %v4698 = vsel %vm2078, %v4693, %v4697
      %v4718 = vunpack.c.l.b16 %v4671
      %v4719 = vunpack.c.l.b16 %v4672
      %v4720 = vunpack.c.l.b16 %v4673
      %v4721 = vunpack.c.l.b16 %v4674
      %v4722 = vunpack.c.l.b16 %v4675
      %v4723 = vunpack.c.l.b16 %v4676
      %v4724 = vunpack.c.l.b16 %v4677
      %v4725 = vunpack.c.l.b16 %v4678
      %v4726 = vunpack.c.l.b16 %v4679
      %v4727 = vunpack.c.l.b16 %v4680
      %v4728 = vunpack.c.l.b16 %v4681
      %v4729 = vunpack.c.l.b16 %v4682
      %v4730 = vunpack.c.l.b16 %v4683
      %v4731 = vunpack.c.l.b16 %v4684
      %v4732 = vunpack.c.l.b16 %v4685
      %v4733 = vunpack.c.l.b16 %v4686
      %v4734 = vpack.c.b16 %v4719, %v4718
      %v4735 = vpack.c.b16 %v4721, %v4720
      %v4736 = vpack.c.b16 %v4723, %v4722
      %v4737 = vpack.c.b16 %v4725, %v4724
      %v4738 = vpack.c.b16 %v4727, %v4726
      %v4739 = vpack.c.b16 %v4729, %v4728
      %v4740 = vpack.c.b16 %v4731, %v4730
      %v4741 = vpack.c.b16 %v4733, %v4732
      %4750 = vmatprep.subr.bf16.mxu0 0
      %4751 = vmatpush1.bf16.msra.mxu0 %v4734
      %4752 = vmatprep.subr.bf16.mxu0 0
      %4753 = vmatpush1.bf16.msra.mxu0 %v4735
      %4754 = vmatprep.subr.bf16.mxu0 0
      %4755 = vmatpush1.bf16.msra.mxu0 %v4736
      %4756 = vmatprep.subr.bf16.mxu0 0
      %4757 = vmatpush1.bf16.msra.mxu0 %v4737
      %4758 = vmatprep.subr.bf16.mxu0 0
      %4759 = vmatpush1.bf16.msra.mxu0 %v4738
      %4760 = vmatprep.subr.bf16.mxu0 0
      %4761 = vmatpush1.bf16.msra.mxu0 %v4739
      %4762 = vmatprep.subr.bf16.mxu0 0
      %4763 = vmatpush1.bf16.msra.mxu0 %v4740
      %4764 = vmatprep.subr.bf16.mxu0 0
      %4765 = vmatpush1.bf16.msra.mxu0 %v4741
      %4766 = vmatprep.subr.bf16.mxu0 0
      %4767 = vmatpush1.bf16.msra.mxu0 0
      %4768 = vmatprep.subr.bf16.mxu0 0
      %4769 = vmatpush1.bf16.msra.mxu0 0
      %4770 = vmatprep.subr.bf16.mxu0 0
      %4771 = vmatpush1.bf16.msra.mxu0 0
      %4772 = vmatprep.subr.bf16.mxu0 0
      %4773 = vmatpush1.bf16.msra.mxu0 0
      %4774 = vmatprep.subr.bf16.mxu0 0
      %4775 = vmatpush1.bf16.msra.mxu0 0
      %4776 = vmatprep.subr.bf16.mxu0 0
      %4777 = vmatpush1.bf16.msra.mxu0 0
      %4778 = vmatprep.subr.bf16.mxu0 0
      %4779 = vmatpush1.bf16.msra.mxu0 0
      %4780 = vmatprep.subr.bf16.mxu0 0
      %4781 = vmatpush1.bf16.msra.mxu0 0
      %4782 = vmatprep.mubr.bf16.mxu0 0
      %4783 = vmatmul.mubr.bf16.gmra.mrb[0].mxu0 %v2097
      %v4784 = vpop.f32.mrb[0].mxu0
      %v4785 = vadd.f32 0.0, %v4784
      %v4786 = vpop.f32.mrb[0].mxu0
      %v4787 = vpop.f32.mrb[0].mxu0
      %v4788 = vadd.f32 0.0, %v4787
      %v4789 = vpop.f32.mrb[0].mxu0
      %4790 = vmatprep.mubr.bf16.mxu0 0
      %4791 = vmatmul.mubr.bf16.gmra.mrb[0].mxu0 %v2101
      %v4792 = vpop.f32.mrb[0].mxu0
      %v4793 = vadd.f32 0.0, %v4792
      %v4794 = vpop.f32.mrb[0].mxu0
      %v4795 = vpop.f32.mrb[0].mxu0
      %v4796 = vadd.f32 0.0, %v4795
      %v4797 = vpop.f32.mrb[0].mxu0
      %4798 = vmatprep.mubr.bf16.mxu0 0
      %4799 = vmatmul.mubr.bf16.gmra.mrb[0].mxu0 %v2105
      %v4800 = vpop.f32.mrb[0].mxu0
      %v4801 = vadd.f32 0.0, %v4800
      %v4802 = vpop.f32.mrb[0].mxu0
      %v4803 = vpop.f32.mrb[0].mxu0
      %v4804 = vadd.f32 0.0, %v4803
      %v4805 = vpop.f32.mrb[0].mxu0
      %4806 = vmatprep.mubr.bf16.mxu0 0
      %4807 = vmatmul.mubr.bf16.gmra.mrb[0].mxu0 %v2109
      %v4808 = vpop.f32.mrb[0].mxu0
      %v4809 = vadd.f32 0.0, %v4808
      %v4810 = vpop.f32.mrb[0].mxu0
      %v4811 = vpop.f32.mrb[0].mxu0
      %v4812 = vadd.f32 0.0, %v4811
      %v4813 = vpop.f32.mrb[0].mxu0
      %4814 = vmatprep.mubr.bf16.mxu0 0
      %4815 = vmatmul.mubr.bf16.gmra.mrb[0].mxu0 %v2113
      %v4816 = vpop.f32.mrb[0].mxu0
      %v4817 = vadd.f32 0.0, %v4816
      %v4818 = vpop.f32.mrb[0].mxu0
      %v4819 = vpop.f32.mrb[0].mxu0
      %v4820 = vadd.f32 0.0, %v4819
      %v4821 = vpop.f32.mrb[0].mxu0
      %4822 = vmatprep.mubr.bf16.mxu0 0
      %4823 = vmatmul.mubr.bf16.gmra.mrb[0].mxu0 %v2117
      %v4824 = vpop.f32.mrb[0].mxu0
      %v4825 = vadd.f32 0.0, %v4824
      %v4826 = vpop.f32.mrb[0].mxu0
      %v4827 = vpop.f32.mrb[0].mxu0
      %v4828 = vadd.f32 0.0, %v4827
      %v4829 = vpop.f32.mrb[0].mxu0
      %4830 = vmatprep.mubr.bf16.mxu0 0
      %4831 = vmatmul.mubr.bf16.gmra.mrb[0].mxu0 %v2121
      %v4832 = vpop.f32.mrb[0].mxu0
      %v4833 = vadd.f32 0.0, %v4832
      %v4834 = vpop.f32.mrb[0].mxu0
      %v4835 = vpop.f32.mrb[0].mxu0
      %v4836 = vadd.f32 0.0, %v4835
      %v4837 = vpop.f32.mrb[0].mxu0
      %4838 = vmatprep.mubr.bf16.mxu0 0
      %4839 = vmatmul.mubr.bf16.gmra.mrb[0].mxu0 %v2125
      %v4840 = vpop.f32.mrb[0].mxu0
      %v4841 = vadd.f32 0.0, %v4840
      %v4842 = vpop.f32.mrb[0].mxu0
      %v4843 = vpop.f32.mrb[0].mxu0
      %v4844 = vadd.f32 0.0, %v4843
      %v4845 = vpop.f32.mrb[0].mxu0
      %4846 = vmatprep.mubr.bf16.mxu0 0
      %4847 = vmatmul.mubr.bf16.gmra.mrb[0].mxu0 %v2129
      %v4848 = vpop.f32.mrb[0].mxu0
      %v4849 = vadd.f32 0.0, %v4848
      %v4850 = vpop.f32.mrb[0].mxu0
      %v4851 = vpop.f32.mrb[0].mxu0
      %v4852 = vadd.f32 0.0, %v4851
      %v4853 = vpop.f32.mrb[0].mxu0
      %4854 = vmatprep.mubr.bf16.mxu0 0
      %4855 = vmatmul.mubr.bf16.gmra.mrb[0].mxu0 %v2133
      %v4856 = vpop.f32.mrb[0].mxu0
      %v4857 = vadd.f32 0.0, %v4856
      %v4858 = vpop.f32.mrb[0].mxu0
      %v4859 = vpop.f32.mrb[0].mxu0
      %v4860 = vadd.f32 0.0, %v4859
      %v4861 = vpop.f32.mrb[0].mxu0
      %4862 = vmatprep.mubr.bf16.mxu0 0
      %4863 = vmatmul.mubr.bf16.gmra.mrb[0].mxu0 %v2137
      %v4864 = vpop.f32.mrb[0].mxu0
      %v4865 = vadd.f32 0.0, %v4864
      %v4866 = vpop.f32.mrb[0].mxu0
      %v4867 = vpop.f32.mrb[0].mxu0
      %v4868 = vadd.f32 0.0, %v4867
      %v4869 = vpop.f32.mrb[0].mxu0
      %4870 = vmatprep.mubr.bf16.mxu0 0
      %4871 = vmatmul.mubr.bf16.gmra.mrb[0].mxu0 %v2141
      %v4872 = vpop.f32.mrb[0].mxu0
      %v4873 = vadd.f32 0.0, %v4872
      %v4874 = vpop.f32.mrb[0].mxu0
      %v4875 = vpop.f32.mrb[0].mxu0
      %v4876 = vadd.f32 0.0, %v4875
      %v4877 = vpop.f32.mrb[0].mxu0
      %4878 = vmatprep.mubr.bf16.mxu0 0
      %4879 = vmatmul.mubr.bf16.gmra.mrb[0].mxu0 %v2145
      %v4880 = vpop.f32.mrb[0].mxu0
      %v4881 = vadd.f32 0.0, %v4880
      %v4882 = vpop.f32.mrb[0].mxu0
      %v4883 = vpop.f32.mrb[0].mxu0
      %v4884 = vadd.f32 0.0, %v4883
      %v4885 = vpop.f32.mrb[0].mxu0
      %4886 = vmatprep.mubr.bf16.mxu0 0
      %4887 = vmatmul.mubr.bf16.gmra.mrb[0].mxu0 %v2149
      %v4888 = vpop.f32.mrb[0].mxu0
      %v4889 = vadd.f32 0.0, %v4888
      %v4890 = vpop.f32.mrb[0].mxu0
      %v4891 = vpop.f32.mrb[0].mxu0
      %v4892 = vadd.f32 0.0, %v4891
      %v4893 = vpop.f32.mrb[0].mxu0
      %4894 = vmatprep.mubr.bf16.mxu0 0
      %4895 = vmatmul.mubr.bf16.gmra.mrb[0].mxu0 %v2153
      %v4896 = vpop.f32.mrb[0].mxu0
      %v4897 = vadd.f32 0.0, %v4896
      %v4898 = vpop.f32.mrb[0].mxu0
      %v4899 = vpop.f32.mrb[0].mxu0
      %v4900 = vadd.f32 0.0, %v4899
      %v4901 = vpop.f32.mrb[0].mxu0
      %4902 = vmatprep.mubr.bf16.mxu0 0
      %4903 = vmatmul.mubr.bf16.gmra.mrb[0].mxu0 %v2157
      %v4904 = vpop.f32.mrb[0].mxu0
      %v4905 = vadd.f32 0.0, %v4904
      %v4906 = vpop.f32.mrb[0].mxu0
      %v4907 = vpop.f32.mrb[0].mxu0
      %v4908 = vadd.f32 0.0, %v4907
      %v4909 = vpop.f32.mrb[0].mxu0
      %4910 = vmatprep.mubr.bf16.mxu0 0
      %4911 = vmatmul.mubr.bf16.gmra.mrb[0].mxu0 %v2161
      %v4912 = vpop.f32.mrb[0].mxu0
      %v4913 = vadd.f32 0.0, %v4912
      %v4914 = vpop.f32.mrb[0].mxu0
      %v4915 = vpop.f32.mrb[0].mxu0
      %v4916 = vadd.f32 0.0, %v4915
      %v4917 = vpop.f32.mrb[0].mxu0
      %4918 = vmatprep.mubr.bf16.mxu0 0
      %4919 = vmatmul.mubr.bf16.gmra.mrb[0].mxu0 %v2165
      %v4920 = vpop.f32.mrb[0].mxu0
      %v4921 = vadd.f32 0.0, %v4920
      %v4922 = vpop.f32.mrb[0].mxu0
      %v4923 = vpop.f32.mrb[0].mxu0
      %v4924 = vadd.f32 0.0, %v4923
      %v4925 = vpop.f32.mrb[0].mxu0
      %4926 = vmatprep.mubr.bf16.mxu0 0
      %4927 = vmatmul.mubr.bf16.gmra.mrb[0].mxu0 %v2169
      %v4928 = vpop.f32.mrb[0].mxu0
      %v4929 = vadd.f32 0.0, %v4928
      %v4930 = vpop.f32.mrb[0].mxu0
      %v4931 = vpop.f32.mrb[0].mxu0
      %v4932 = vadd.f32 0.0, %v4931
      %v4933 = vpop.f32.mrb[0].mxu0
      %4934 = vmatprep.mubr.bf16.mxu0 0
      %4935 = vmatmul.mubr.bf16.gmra.mrb[0].mxu0 %v2173
      %v4936 = vpop.f32.mrb[0].mxu0
      %v4937 = vadd.f32 0.0, %v4936
      %v4938 = vpop.f32.mrb[0].mxu0
      %v4939 = vpop.f32.mrb[0].mxu0
      %v4940 = vadd.f32 0.0, %v4939
      %v4941 = vpop.f32.mrb[0].mxu0
      %4942 = vmatprep.mubr.bf16.mxu0 0
      %4943 = vmatmul.mubr.bf16.gmra.mrb[0].mxu0 %v2177
      %v4944 = vpop.f32.mrb[0].mxu0
      %v4945 = vadd.f32 0.0, %v4944
      %v4946 = vpop.f32.mrb[0].mxu0
      %v4947 = vpop.f32.mrb[0].mxu0
      %v4948 = vadd.f32 0.0, %v4947
      %v4949 = vpop.f32.mrb[0].mxu0
      %4950 = vmatprep.mubr.bf16.mxu0 0
      %4951 = vmatmul.mubr.bf16.gmra.mrb[0].mxu0 %v2181
      %v4952 = vpop.f32.mrb[0].mxu0
      %v4953 = vadd.f32 0.0, %v4952
      %v4954 = vpop.f32.mrb[0].mxu0
      %v4955 = vpop.f32.mrb[0].mxu0
      %v4956 = vadd.f32 0.0, %v4955
      %v4957 = vpop.f32.mrb[0].mxu0
      %4958 = vmatprep.mubr.bf16.mxu0 0
      %4959 = vmatmul.mubr.bf16.gmra.mrb[0].mxu0 %v2185
      %v4960 = vpop.f32.mrb[0].mxu0
      %v4961 = vadd.f32 0.0, %v4960
      %v4962 = vpop.f32.mrb[0].mxu0
      %v4963 = vpop.f32.mrb[0].mxu0
      %v4964 = vadd.f32 0.0, %v4963
      %v4965 = vpop.f32.mrb[0].mxu0
      %4966 = vmatprep.mubr.bf16.mxu0 0
      %4967 = vmatmul.mubr.bf16.gmra.mrb[0].mxu0 %v2189
      %v4968 = vpop.f32.mrb[0].mxu0
      %v4969 = vadd.f32 0.0, %v4968
      %v4970 = vpop.f32.mrb[0].mxu0
      %v4971 = vpop.f32.mrb[0].mxu0
      %v4972 = vadd.f32 0.0, %v4971
      %v4973 = vpop.f32.mrb[0].mxu0
      %4974 = vmatprep.mubr.bf16.mxu0 0
      %4975 = vmatmul.mubr.bf16.gmra.mrb[0].mxu0 %v4690
      %v4976 = vpop.f32.mrb[0].mxu0
      %v4977 = vadd.f32 0.0, %v4976
      %v4978 = vpop.f32.mrb[0].mxu0
      %v4979 = vpop.f32.mrb[0].mxu0
      %v4980 = vadd.f32 0.0, %v4979
      %v4981 = vpop.f32.mrb[0].mxu0
      %4982 = vmatprep.mubr.bf16.mxu0 0
      %4983 = vmatmul.mubr.bf16.gmra.mrb[0].mxu0 %v4694
      %v4984 = vpop.f32.mrb[0].mxu0
      %v4985 = vadd.f32 0.0, %v4984
      %v4986 = vpop.f32.mrb[0].mxu0
      %v4987 = vpop.f32.mrb[0].mxu0
      %v4988 = vadd.f32 0.0, %v4987
      %v4989 = vpop.f32.mrb[0].mxu0
      %4990 = vmatprep.mubr.bf16.mxu0 0
      %4991 = vmatmul.mubr.bf16.gmra.mrb[0].mxu0 %v4698
      %v4992 = vpop.f32.mrb[0].mxu0
      %v4993 = vadd.f32 0.0, %v4992
      %v4994 = vpop.f32.mrb[0].mxu0
      %v4995 = vpop.f32.mrb[0].mxu0
      %v4996 = vadd.f32 0.0, %v4995
      %v4997 = vpop.f32.mrb[0].mxu0
      %4998 = vdwg.mxu0
      %v4999 = vadd.f32 %v4616, %v4785
      %v5000 = vadd.f32 %v4617, %v4788
      %v5001 = vadd.f32 %v4618, %v4793
      %v5002 = vadd.f32 %v4619, %v4796
      %v5003 = vadd.f32 %v4620, %v4801
      %v5004 = vadd.f32 %v4621, %v4804
      %v5005 = vadd.f32 %v4622, %v4809
      %v5006 = vadd.f32 %v4623, %v4812
      %v5007 = vadd.f32 %v4624, %v4817
      %v5008 = vadd.f32 %v4625, %v4820
      %v5009 = vadd.f32 %v4626, %v4825
      %v5010 = vadd.f32 %v4627, %v4828
      %v5011 = vadd.f32 %v4628, %v4833
      %v5012 = vadd.f32 %v4629, %v4836
      %v5013 = vadd.f32 %v4630, %v4841
      %v5014 = vadd.f32 %v4631, %v4844
      %v5015 = vadd.f32 %v4632, %v4849
      %v5016 = vadd.f32 %v4633, %v4852
      %v5017 = vadd.f32 %v4634, %v4857
      %v5018 = vadd.f32 %v4635, %v4860
      %v5019 = vadd.f32 %v4636, %v4865
      %v5020 = vadd.f32 %v4637, %v4868
      %v5021 = vadd.f32 %v4638, %v4873
      %v5022 = vadd.f32 %v4639, %v4876
      %v5023 = vadd.f32 %v4640, %v4881
      %v5024 = vadd.f32 %v4641, %v4884
      %v5025 = vadd.f32 %v4642, %v4889
      %v5026 = vadd.f32 %v4643, %v4892
      %v5027 = vadd.f32 %v4644, %v4897
      %v5028 = vadd.f32 %v4645, %v4900
      %v5029 = vadd.f32 %v4646, %v4905
      %v5030 = vadd.f32 %v4647, %v4908
      %v5031 = vadd.f32 %v4648, %v4913
      %v5032 = vadd.f32 %v4649, %v4916
      %v5033 = vadd.f32 %v4650, %v4921
      %v5034 = vadd.f32 %v4651, %v4924
      %v5035 = vadd.f32 %v4652, %v4929
      %v5036 = vadd.f32 %v4653, %v4932
      %v5037 = vadd.f32 %v4654, %v4937
      %v5038 = vadd.f32 %v4655, %v4940
      %v5039 = vadd.f32 %v4656, %v4945
      %v5040 = vadd.f32 %v4657, %v4948
      %v5041 = vadd.f32 %v4658, %v4953
      %v5042 = vadd.f32 %v4659, %v4956
      %v5043 = vadd.f32 %v4660, %v4961
      %v5044 = vadd.f32 %v4661, %v4964
      %v5045 = vadd.f32 %v4662, %v4969
      %v5046 = vadd.f32 %v4663, %v4972
      %v5047 = vadd.f32 %v4664, %v4977
      %v5048 = vadd.f32 %v4665, %v4980
      %v5049 = vadd.f32 %v4666, %v4985
      %v5050 = vadd.f32 %v4667, %v4988
      %v5051 = vadd.f32 %v4668, %v4993
      %v5052 = vadd.f32 %v4669, %v4996
      %v5053 = vmul.f32 %v4999, %v606
      %v5054 = vmul.f32 %v5000, %v607
      %v5055 = vmul.f32 %v5001, %v608
      %v5056 = vmul.f32 %v5002, %v609
      %v5057 = vmul.f32 %v5003, %v610
      %v5058 = vmul.f32 %v5004, %v611
      %v5059 = vmul.f32 %v5005, %v612
      %v5060 = vmul.f32 %v5006, %v613
      %v5061 = vmul.f32 %v5007, %v614
      %v5062 = vmul.f32 %v5008, %v615
      %v5063 = vmul.f32 %v5009, %v616
      %v5064 = vmul.f32 %v5010, %v617
      %v5065 = vmul.f32 %v5011, %v618
      %v5066 = vmul.f32 %v5012, %v619
      %v5067 = vmul.f32 %v5013, %v620
      %v5068 = vmul.f32 %v5014, %v621
      %v5069 = vmul.f32 %v5015, %v622
      %v5070 = vmul.f32 %v5016, %v623
      %v5071 = vmul.f32 %v5017, %v624
      %v5072 = vmul.f32 %v5018, %v625
      %v5073 = vmul.f32 %v5019, %v626
      %v5074 = vmul.f32 %v5020, %v627
      %v5075 = vmul.f32 %v5021, %v628
      %v5076 = vmul.f32 %v5022, %v629
      %v5077 = vmul.f32 %v5023, %v630
      %v5078 = vmul.f32 %v5024, %v631
      %v5079 = vmul.f32 %v5025, %v632
      %v5080 = vmul.f32 %v5026, %v633
      %v5081 = vmul.f32 %v5027, %v634
      %v5082 = vmul.f32 %v5028, %v635
      %v5083 = vmul.f32 %v5029, %v636
      %v5084 = vmul.f32 %v5030, %v637
      %v5085 = vmul.f32 %v5031, %v638
      %v5086 = vmul.f32 %v5032, %v639
      %v5087 = vmul.f32 %v5033, %v640
      %v5088 = vmul.f32 %v5034, %v641
      %v5089 = vmul.f32 %v5035, %v642
      %v5090 = vmul.f32 %v5036, %v643
      %v5091 = vmul.f32 %v5037, %v644
      %v5092 = vmul.f32 %v5038, %v645
      %v5093 = vmul.f32 %v5039, %v646
      %v5094 = vmul.f32 %v5040, %v647
      %v5095 = vmul.f32 %v5041, %v648
      %v5096 = vmul.f32 %v5042, %v649
      %v5097 = vmul.f32 %v5043, %v650
      %v5098 = vmul.f32 %v5044, %v651
      %v5099 = vmul.f32 %v5045, %v652
      %v5100 = vmul.f32 %v5046, %v653
      %v5101 = vmul.f32 %v5047, %v654
      %v5102 = vmul.f32 %v5048, %v655
      %v5103 = vmul.f32 %v5049, %v656
      %v5104 = vmul.f32 %v5050, %v657
      %v5105 = vmul.f32 %v5051, %v658
      %v5106 = vmul.f32 %v5052, %v659
      %v5107 = vpack.c.bf16 %v5054, %v5053
      %v5108 = vpack.c.bf16 %v5055, %v5055
      %v5109 = vpack.c.bf16 %v5057, %v5056
      %v5110 = vpack.c.bf16 %v5058, %v5058
      %v5111 = vpack.c.bf16 %v5060, %v5059
      %v5112 = vpack.c.bf16 %v5061, %v5061
      %v5113 = vpack.c.bf16 %v5063, %v5062
      %v5114 = vpack.c.bf16 %v5064, %v5064
      %v5115 = vpack.c.bf16 %v5066, %v5065
      %v5116 = vpack.c.bf16 %v5067, %v5067
      %v5117 = vpack.c.bf16 %v5069, %v5068
      %v5118 = vpack.c.bf16 %v5070, %v5070
      %v5119 = vpack.c.bf16 %v5072, %v5071
      %v5120 = vpack.c.bf16 %v5073, %v5073
      %v5121 = vpack.c.bf16 %v5075, %v5074
      %v5122 = vpack.c.bf16 %v5076, %v5076
      %v5123 = vpack.c.bf16 %v5078, %v5077
      %v5124 = vpack.c.bf16 %v5079, %v5079
      %v5125 = vpack.c.bf16 %v5081, %v5080
      %v5126 = vpack.c.bf16 %v5082, %v5082
      %v5127 = vpack.c.bf16 %v5084, %v5083
      %v5128 = vpack.c.bf16 %v5085, %v5085
      %v5129 = vpack.c.bf16 %v5087, %v5086
      %v5130 = vpack.c.bf16 %v5088, %v5088
      %v5131 = vpack.c.bf16 %v5090, %v5089
      %v5132 = vpack.c.bf16 %v5091, %v5091
      %v5133 = vpack.c.bf16 %v5093, %v5092
      %v5134 = vpack.c.bf16 %v5094, %v5094
      %v5135 = vpack.c.bf16 %v5096, %v5095
      %v5136 = vpack.c.bf16 %v5097, %v5097
      %v5137 = vpack.c.bf16 %v5099, %v5098
      %v5138 = vpack.c.bf16 %v5100, %v5100
      %v5139 = vpack.c.bf16 %v5102, %v5101
      %v5140 = vpack.c.bf16 %v5103, %v5103
      %v5141 = vpack.c.bf16 %v5105, %v5104
      %v5142 = vpack.c.bf16 %v5106, %v5106
      %v5179 = vunpack.c.l.b16 %v5107
      %v5180 = vunpack.c.h.b16 %v5107
      %v5181 = vunpack.c.l.b16 %v5108
      %v5182 = vunpack.c.l.b16 %v5109
      %v5183 = vunpack.c.h.b16 %v5109
      %v5184 = vunpack.c.l.b16 %v5110
      %v5185 = vunpack.c.l.b16 %v5111
      %v5186 = vunpack.c.h.b16 %v5111
      %v5187 = vunpack.c.l.b16 %v5112
      %v5188 = vunpack.c.l.b16 %v5113
      %v5189 = vunpack.c.h.b16 %v5113
      %v5190 = vunpack.c.l.b16 %v5114
      %v5191 = vunpack.c.l.b16 %v5115
      %v5192 = vunpack.c.h.b16 %v5115
      %v5193 = vunpack.c.l.b16 %v5116
      %v5194 = vunpack.c.l.b16 %v5117
      %v5195 = vunpack.c.h.b16 %v5117
      %v5196 = vunpack.c.l.b16 %v5118
      %v5197 = vunpack.c.l.b16 %v5119
      %v5198 = vunpack.c.h.b16 %v5119
      %v5199 = vunpack.c.l.b16 %v5120
      %v5200 = vunpack.c.l.b16 %v5121
      %v5201 = vunpack.c.h.b16 %v5121
      %v5202 = vunpack.c.l.b16 %v5122
      %v5203 = vunpack.c.l.b16 %v5123
      %v5204 = vunpack.c.h.b16 %v5123
      %v5205 = vunpack.c.l.b16 %v5124
      %v5206 = vunpack.c.l.b16 %v5125
      %v5207 = vunpack.c.h.b16 %v5125
      %v5208 = vunpack.c.l.b16 %v5126
      %v5209 = vunpack.c.l.b16 %v5127
      %v5210 = vunpack.c.h.b16 %v5127
      %v5211 = vunpack.c.l.b16 %v5128
      %v5212 = vunpack.c.l.b16 %v5129
      %v5213 = vunpack.c.h.b16 %v5129
      %v5214 = vunpack.c.l.b16 %v5130
      %v5215 = vunpack.c.l.b16 %v5131
      %v5216 = vunpack.c.h.b16 %v5131
      %v5217 = vunpack.c.l.b16 %v5132
      %v5218 = vunpack.c.l.b16 %v5133
      %v5219 = vunpack.c.h.b16 %v5133
      %v5220 = vunpack.c.l.b16 %v5134
      %v5221 = vunpack.c.l.b16 %v5135
      %v5222 = vunpack.c.h.b16 %v5135
      %v5223 = vunpack.c.l.b16 %v5136
      %v5224 = vunpack.c.l.b16 %v5137
      %v5225 = vunpack.c.h.b16 %v5137
      %v5226 = vunpack.c.l.b16 %v5138
      %v5227 = vunpack.c.l.b16 %v5139
      %v5228 = vunpack.c.h.b16 %v5139
      %v5229 = vunpack.c.l.b16 %v5140
      %v5230 = vunpack.c.l.b16 %v5141
      %v5231 = vunpack.c.h.b16 %v5141
      %v5232 = vunpack.c.l.b16 %v5142
      %v5233 = vpack.c.b16 %v5179, %v5179
      %v5234 = vpack.c.b16 %v5180, %v5180
      %v5235 = vpack.c.b16 %v5181, %v5181
      %v5236 = vpack.c.b16 %v5182, %v5182
      %v5237 = vpack.c.b16 %v5183, %v5183
      %v5238 = vpack.c.b16 %v5184, %v5184
      %v5239 = vpack.c.b16 %v5185, %v5185
      %v5240 = vpack.c.b16 %v5186, %v5186
      %v5241 = vpack.c.b16 %v5187, %v5187
      %v5242 = vpack.c.b16 %v5188, %v5188
      %v5243 = vpack.c.b16 %v5189, %v5189
      %v5244 = vpack.c.b16 %v5190, %v5190
      %v5245 = vpack.c.b16 %v5191, %v5191
      %v5246 = vpack.c.b16 %v5192, %v5192
      %v5247 = vpack.c.b16 %v5193, %v5193
      %v5248 = vpack.c.b16 %v5194, %v5194
      %v5249 = vpack.c.b16 %v5195, %v5195
      %v5250 = vpack.c.b16 %v5196, %v5196
      %v5251 = vpack.c.b16 %v5197, %v5197
      %v5252 = vpack.c.b16 %v5198, %v5198
      %v5253 = vpack.c.b16 %v5199, %v5199
      %v5254 = vpack.c.b16 %v5200, %v5200
      %v5255 = vpack.c.b16 %v5201, %v5201
      %v5256 = vpack.c.b16 %v5202, %v5202
      %v5257 = vpack.c.b16 %v5203, %v5203
      %v5258 = vpack.c.b16 %v5204, %v5204
      %v5259 = vpack.c.b16 %v5205, %v5205
      %v5260 = vpack.c.b16 %v5206, %v5206
      %v5261 = vpack.c.b16 %v5207, %v5207
      %v5262 = vpack.c.b16 %v5208, %v5208
      %v5263 = vpack.c.b16 %v5209, %v5209
      %v5264 = vpack.c.b16 %v5210, %v5210
      %v5265 = vpack.c.b16 %v5211, %v5211
      %v5266 = vpack.c.b16 %v5212, %v5212
      %v5267 = vpack.c.b16 %v5213, %v5213
      %v5268 = vpack.c.b16 %v5214, %v5214
      %v5269 = vpack.c.b16 %v5215, %v5215
      %v5270 = vpack.c.b16 %v5216, %v5216
      %v5271 = vpack.c.b16 %v5217, %v5217
      %v5272 = vpack.c.b16 %v5218, %v5218
      %v5273 = vpack.c.b16 %v5219, %v5219
      %v5274 = vpack.c.b16 %v5220, %v5220
      %v5275 = vpack.c.b16 %v5221, %v5221
      %v5276 = vpack.c.b16 %v5222, %v5222
      %v5277 = vpack.c.b16 %v5223, %v5223
      %v5278 = vpack.c.b16 %v5224, %v5224
      %v5279 = vpack.c.b16 %v5225, %v5225
      %v5280 = vpack.c.b16 %v5226, %v5226
      %v5281 = vpack.c.b16 %v5227, %v5227
      %v5282 = vpack.c.b16 %v5228, %v5228
      %v5283 = vpack.c.b16 %v5229, %v5229
      %v5284 = vpack.c.b16 %v5230, %v5230
      %v5285 = vpack.c.b16 %v5231, %v5231
      %v5286 = vpack.c.b16 %v5232, %v5232
      %5341 = vst [vmem:[%s187] sm:$0xf] %v5233
      %5342 = vst [vmem:[%s187 + $0x4] sm:$0xf] %v5234
      %5343 = vst [vmem:[%s187 + $0x8] sm:$0xf] %v5235
      %5344 = vst [vmem:[%s187 + $0xc] sm:$0xf] %v5236
      %5345 = vst [vmem:[%s187 + $0x10] sm:$0xf] %v5237
      %5346 = vst [vmem:[%s187 + $0x14] sm:$0xf] %v5238
      %5347 = vst [vmem:[%s187 + $0x18] sm:$0xf] %v5239
      %5348 = vst [vmem:[%s187 + $0x1c] sm:$0xf] %v5240
      %5349 = vst [vmem:[%s187 + $0x20] sm:$0xf] %v5241
      %5350 = vst [vmem:[%s187 + $0x24] sm:$0xf] %v5242
      %5351 = vst [vmem:[%s187 + $0x28] sm:$0xf] %v5243
      %5352 = vst [vmem:[%s187 + $0x2c] sm:$0xf] %v5244
      %5353 = vst [vmem:[%s187 + $0x30] sm:$0xf] %v5245
      %5354 = vst [vmem:[%s187 + $0x34] sm:$0xf] %v5246
      %5355 = vst [vmem:[%s187 + $0x38] sm:$0xf] %v5247
      %5356 = vst [vmem:[%s187 + $0x3c] sm:$0xf] %v5248
      %5357 = vst [vmem:[%s187 + $0x40] sm:$0xf] %v5249
      %5358 = vst [vmem:[%s187 + $0x44] sm:$0xf] %v5250
      %5359 = vst [vmem:[%s187 + $0x48] sm:$0xf] %v5251
      %5360 = vst [vmem:[%s187 + $0x4c] sm:$0xf] %v5252
      %5361 = vst [vmem:[%s187 + $0x50] sm:$0xf] %v5253
      %5362 = vst [vmem:[%s187 + $0x54] sm:$0xf] %v5254
      %5363 = vst [vmem:[%s187 + $0x58] sm:$0xf] %v5255
      %5364 = vst [vmem:[%s187 + $0x5c] sm:$0xf] %v5256
      %5365 = vst [vmem:[%s187 + $0x60] sm:$0xf] %v5257
      %5366 = vst [vmem:[%s187 + $0x64] sm:$0xf] %v5258
      %5367 = vst [vmem:[%s187 + $0x68] sm:$0xf] %v5259
      %5368 = vst [vmem:[%s187 + $0x6c] sm:$0xf] %v5260
      %5369 = vst [vmem:[%s187 + $0x70] sm:$0xf] %v5261
      %5370 = vst [vmem:[%s187 + $0x74] sm:$0xf] %v5262
      %5371 = vst [vmem:[%s187 + $0x78] sm:$0xf] %v5263
      %5372 = vst [vmem:[%s187 + $0x7c] sm:$0xf] %v5264
      %5373 = vst [vmem:[%s187 + $0x80] sm:$0xf] %v5265
      %5374 = vst [vmem:[%s187 + $0x84] sm:$0xf] %v5266
      %5375 = vst [vmem:[%s187 + $0x88] sm:$0xf] %v5267
      %5376 = vst [vmem:[%s187 + $0x8c] sm:$0xf] %v5268
      %5377 = vst [vmem:[%s187 + $0x90] sm:$0xf] %v5269
      %5378 = vst [vmem:[%s187 + $0x94] sm:$0xf] %v5270
      %5379 = vst [vmem:[%s187 + $0x98] sm:$0xf] %v5271
      %5380 = vst [vmem:[%s187 + $0x9c] sm:$0xf] %v5272
      %5381 = vst [vmem:[%s187 + $0xa0] sm:$0xf] %v5273
      %5382 = vst [vmem:[%s187 + $0xa4] sm:$0xf] %v5274
      %5383 = vst [vmem:[%s187 + $0xa8] sm:$0xf] %v5275
      %5384 = vst [vmem:[%s187 + $0xac] sm:$0xf] %v5276
      %5385 = vst [vmem:[%s187 + $0xb0] sm:$0xf] %v5277
      %5386 = vst [vmem:[%s187 + $0xb4] sm:$0xf] %v5278
      %5387 = vst [vmem:[%s187 + $0xb8] sm:$0xf] %v5279
      %5388 = vst [vmem:[%s187 + $0xbc] sm:$0xf] %v5280
      %5389 = vst [vmem:[%s187 + $0xc0] sm:$0xf] %v5281
      %5390 = vst [vmem:[%s187 + $0xc4] sm:$0xf] %v5282
      %5391 = vst [vmem:[%s187 + $0xc8] sm:$0xf] %v5283
      %5392 = vst [vmem:[%s187 + $0xcc] sm:$0xf] %v5284
      %5393 = vst [vmem:[%s187 + $0xd0] sm:$0xf] %v5285
      %5394 = vst [vmem:[%s187 + $0xd4] sm:$0xf] %v5286
      %v5395 = vadd.f32 %v5053, %v5054
      %v5396 = vadd.f32 %v5395, %v5055
      %v5397 = vadd.f32 %v5396, %v5056
      %v5398 = vadd.f32 %v5397, %v5057
      %v5399 = vadd.f32 %v5398, %v5058
      %v5400 = vadd.f32 %v5399, %v5059
      %v5401 = vadd.f32 %v5400, %v5060
      %v5402 = vadd.f32 %v5401, %v5061
      %v5403 = vadd.f32 %v5402, %v5062
      %v5404 = vadd.f32 %v5403, %v5063
      %v5405 = vadd.f32 %v5404, %v5064
      %v5406 = vadd.f32 %v5405, %v5065
      %v5407 = vadd.f32 %v5406, %v5066
      %v5408 = vadd.f32 %v5407, %v5067
      %v5409 = vadd.f32 %v5408, %v5068
      %v5410 = vadd.f32 %v5409, %v5069
      %v5411 = vadd.f32 %v5410, %v5070
      %v5412 = vadd.f32 %v5411, %v5071
      %v5413 = vadd.f32 %v5412, %v5072
      %v5414 = vadd.f32 %v5413, %v5073
      %v5415 = vadd.f32 %v5414, %v5074
      %v5416 = vadd.f32 %v5415, %v5075
      %v5417 = vadd.f32 %v5416, %v5076
      %v5418 = vadd.f32 %v5417, %v5077
      %v5419 = vadd.f32 %v5418, %v5078
      %v5420 = vadd.f32 %v5419, %v5079
      %v5421 = vadd.f32 %v5420, %v5080
      %v5422 = vadd.f32 %v5421, %v5081
      %v5423 = vadd.f32 %v5422, %v5082
      %v5424 = vadd.f32 %v5423, %v5083
      %v5425 = vadd.f32 %v5424, %v5084
      %v5426 = vadd.f32 %v5425, %v5085
      %v5427 = vadd.f32 %v5426, %v5086
      %v5428 = vadd.f32 %v5427, %v5087
      %v5429 = vadd.f32 %v5428, %v5088
      %v5430 = vadd.f32 %v5429, %v5089
      %v5431 = vadd.f32 %v5430, %v5090
      %v5432 = vadd.f32 %v5431, %v5091
      %v5433 = vadd.f32 %v5432, %v5092
      %v5434 = vadd.f32 %v5433, %v5093
      %v5435 = vadd.f32 %v5434, %v5094
      %v5436 = vadd.f32 %v5435, %v5095
      %v5437 = vadd.f32 %v5436, %v5096
      %v5438 = vadd.f32 %v5437, %v5097
      %v5439 = vadd.f32 %v5438, %v5098
      %v5440 = vadd.f32 %v5439, %v5099
      %v5441 = vadd.f32 %v5440, %v5100
      %v5442 = vadd.f32 %v5441, %v5101
      %v5443 = vadd.f32 %v5442, %v5102
      %v5444 = vadd.f32 %v5443, %v5103
      %v5445 = vadd.f32 %v5444, %v5104
      %v5446 = vadd.f32 %v5445, %v5105
      %v5447 = vadd.f32 %v5446, %v5106
      %v5448 = vrot.slane %v5447, 4
      %v5449 = vadd.f32 %v5447, %v5448
      %v5450 = vrot.slane %v5449, 2
      %v5451 = vadd.f32 %v5449, %v5450
      %v5452 = vrot.slane %v5451, 1
      %v5453 = vadd.f32 %v5451, %v5452
      %v5454 = vmul.f32 %v5053, %v4999
      %v5455 = vmul.f32 %v5054, %v5000
      %v5456 = vmul.f32 %v5055, %v5001
      %v5457 = vmul.f32 %v5056, %v5002
      %v5458 = vmul.f32 %v5057, %v5003
      %v5459 = vmul.f32 %v5058, %v5004
      %v5460 = vmul.f32 %v5059, %v5005
      %v5461 = vmul.f32 %v5060, %v5006
      %v5462 = vmul.f32 %v5061, %v5007
      %v5463 = vmul.f32 %v5062, %v5008
      %v5464 = vmul.f32 %v5063, %v5009
      %v5465 = vmul.f32 %v5064, %v5010
      %v5466 = vmul.f32 %v5065, %v5011
      %v5467 = vmul.f32 %v5066, %v5012
      %v5468 = vmul.f32 %v5067, %v5013
      %v5469 = vmul.f32 %v5068, %v5014
      %v5470 = vmul.f32 %v5069, %v5015
      %v5471 = vmul.f32 %v5070, %v5016
      %v5472 = vmul.f32 %v5071, %v5017
      %v5473 = vmul.f32 %v5072, %v5018
      %v5474 = vmul.f32 %v5073, %v5019
      %v5475 = vmul.f32 %v5074, %v5020
      %v5476 = vmul.f32 %v5075, %v5021
      %v5477 = vmul.f32 %v5076, %v5022
      %v5478 = vmul.f32 %v5077, %v5023
      %v5479 = vmul.f32 %v5078, %v5024
      %v5480 = vmul.f32 %v5079, %v5025
      %v5481 = vmul.f32 %v5080, %v5026
      %v5482 = vmul.f32 %v5081, %v5027
      %v5483 = vmul.f32 %v5082, %v5028
      %v5484 = vmul.f32 %v5083, %v5029
      %v5485 = vmul.f32 %v5084, %v5030
      %v5486 = vmul.f32 %v5085, %v5031
      %v5487 = vmul.f32 %v5086, %v5032
      %v5488 = vmul.f32 %v5087, %v5033
      %v5489 = vmul.f32 %v5088, %v5034
      %v5490 = vmul.f32 %v5089, %v5035
      %v5491 = vmul.f32 %v5090, %v5036
      %v5492 = vmul.f32 %v5091, %v5037
      %v5493 = vmul.f32 %v5092, %v5038
      %v5494 = vmul.f32 %v5093, %v5039
      %v5495 = vmul.f32 %v5094, %v5040
      %v5496 = vmul.f32 %v5095, %v5041
      %v5497 = vmul.f32 %v5096, %v5042
      %v5498 = vmul.f32 %v5097, %v5043
      %v5499 = vmul.f32 %v5098, %v5044
      %v5500 = vmul.f32 %v5099, %v5045
      %v5501 = vmul.f32 %v5100, %v5046
      %v5502 = vmul.f32 %v5101, %v5047
      %v5503 = vmul.f32 %v5102, %v5048
      %v5504 = vmul.f32 %v5103, %v5049
      %v5505 = vmul.f32 %v5104, %v5050
      %v5506 = vmul.f32 %v5105, %v5051
      %v5507 = vmul.f32 %v5106, %v5052
      %v5508 = vadd.f32 %v5454, %v5455
      %v5509 = vadd.f32 %v5508, %v5456
      %v5510 = vadd.f32 %v5509, %v5457
      %v5511 = vadd.f32 %v5510, %v5458
      %v5512 = vadd.f32 %v5511, %v5459
      %v5513 = vadd.f32 %v5512, %v5460
      %v5514 = vadd.f32 %v5513, %v5461
      %v5515 = vadd.f32 %v5514, %v5462
      %v5516 = vadd.f32 %v5515, %v5463
      %v5517 = vadd.f32 %v5516, %v5464
      %v5518 = vadd.f32 %v5517, %v5465
      %v5519 = vadd.f32 %v5518, %v5466
      %v5520 = vadd.f32 %v5519, %v5467
      %v5521 = vadd.f32 %v5520, %v5468
      %v5522 = vadd.f32 %v5521, %v5469
      %v5523 = vadd.f32 %v5522, %v5470
      %v5524 = vadd.f32 %v5523, %v5471
      %v5525 = vadd.f32 %v5524, %v5472
      %v5526 = vadd.f32 %v5525, %v5473
      %v5527 = vadd.f32 %v5526, %v5474
      %v5528 = vadd.f32 %v5527, %v5475
      %v5529 = vadd.f32 %v5528, %v5476
      %v5530 = vadd.f32 %v5529, %v5477
      %v5531 = vadd.f32 %v5530, %v5478
      %v5532 = vadd.f32 %v5531, %v5479
      %v5533 = vadd.f32 %v5532, %v5480
      %v5534 = vadd.f32 %v5533, %v5481
      %v5535 = vadd.f32 %v5534, %v5482
      %v5536 = vadd.f32 %v5535, %v5483
      %v5537 = vadd.f32 %v5536, %v5484
      %v5538 = vadd.f32 %v5537, %v5485
      %v5539 = vadd.f32 %v5538, %v5486
      %v5540 = vadd.f32 %v5539, %v5487
      %v5541 = vadd.f32 %v5540, %v5488
      %v5542 = vadd.f32 %v5541, %v5489
      %v5543 = vadd.f32 %v5542, %v5490
      %v5544 = vadd.f32 %v5543, %v5491
      %v5545 = vadd.f32 %v5544, %v5492
      %v5546 = vadd.f32 %v5545, %v5493
      %v5547 = vadd.f32 %v5546, %v5494
      %v5548 = vadd.f32 %v5547, %v5495
      %v5549 = vadd.f32 %v5548, %v5496
      %v5550 = vadd.f32 %v5549, %v5497
      %v5551 = vadd.f32 %v5550, %v5498
      %v5552 = vadd.f32 %v5551, %v5499
      %v5553 = vadd.f32 %v5552, %v5500
      %v5554 = vadd.f32 %v5553, %v5501
      %v5555 = vadd.f32 %v5554, %v5502
      %v5556 = vadd.f32 %v5555, %v5503
      %v5557 = vadd.f32 %v5556, %v5504
      %v5558 = vadd.f32 %v5557, %v5505
      %v5559 = vadd.f32 %v5558, %v5506
      %v5560 = vadd.f32 %v5559, %v5507
      %v5561 = vrot.slane %v5560, 4
      %v5562 = vadd.f32 %v5560, %v5561
      %v5563 = vrot.slane %v5562, 2
      %v5564 = vadd.f32 %v5562, %v5563
      %v5565 = vrot.slane %v5564, 1
      %v5566 = vadd.f32 %v5564, %v5565
      %vm5567 = vcmask 1040384
      %v5568 = vsel %vm5567, %v5453, %v5566
      %vm5569 = vcmask 1041408
      %v5570 = vsel %vm5569, %v5568, 0.0
      %5571 = vst [vmem:[%s195] sm:$0xff] %v5570
      %s5572 = smul.u32 18, %s21
      %p5573 = scmp.lt.s32.totalorder %s20, 1
      %s5574 = scalar_select %p5573, %s20, 1
      %p5575 = scmp.lt.s32.totalorder %s5572, 17
      %s5576 = scalar_select %p5575, %s5572, 17
      %s5577 = smul.addr %s5576, 3
      %s5578 = smul.addr %s5574, 54
      %s5579 = sadd.s32 %s5577, %s5578
      %s5580 = smul.addr %s5579, 4
      %s5581 = scalar_lea.vmem %s3, %s5580
      %p5582 = scmp.lt.s32.totalorder %s20, 1
      %s5583 = scalar_select %p5582, %s20, 1
      %p5584 = scmp.lt.s32.totalorder %s21, 0
      %s5585 = scalar_select %p5584, %s21, 0
      %s5586 = sadd.s32 %s5585, %s5583
      %s5587 = smul.addr %s5586, 8
      %s5588 = scalar_lea.vmem %s4, %s5587
      // Predicated region
      $region63: #{double_conv_forward.4} parent=27 // pred_check
        %p5589 = pneg %p90
      $region64: #{double_conv_forward.4} parent=27 // pred_check_branch
        %5591 = sbr.rel (%p5589) target = $region66
      $region65: #{double_conv_forward.4} parent=27 // pred_region
        %s5592 = smul.u32 18, %s21
      $region66: #{double_conv_forward.4} parent=27 // pred_fallthru
        _
      // Predicated region
      $region67: #{double_conv_forward.4} parent=27 // pred_check
        %p5593 = pneg %p118
      $region68: #{double_conv_forward.4} parent=27 // pred_check_branch
        %5595 = sbr.rel (%p5593) target = $region70
      $region69: #{double_conv_forward.4} parent=27 // pred_region
        _
      $region70: #{double_conv_forward.4} parent=27 // pred_fallthru
        _
    $region28: #{double_conv_forward.4} parent=5 // pred_fallthru
      _
    %p5596 = scmp.le.s32.totalorder 2, %s11
    // Predicated region
    $region71: #{double_conv_forward.4} parent=5 // pred_check
      %p5597 = pneg %p5596
    $region72: #{double_conv_forward.4} parent=5 // pred_check_branch
      %5599 = sbr.rel (%p5597) target = $region74
    $region73: #{double_conv_forward.4} parent=5 // pred_region
      %s5600 = ssub.s32 %s11, 2
      // Predicated region
      $region75: #{double_conv_forward.4} parent=73 // pred_check
        %p5601 = pneg %p96
      $region76: #{double_conv_forward.4} parent=73 // pred_check_branch
        %5603 = sbr.rel (%p5601) target = $region78
      $region77: #{double_conv_forward.4} parent=73 // pred_region
        %s5604 = smul.u32 18, %s23
        %p5605 = scmp.lt.s32.totalorder %s22, 1
        %s5606 = scalar_select %p5605, %s22, 1
        %p5607 = scmp.lt.s32.totalorder %s5604, 17
        %s5608 = scalar_select %p5607, %s5604, 17
        %s5609 = smul.addr %s5608, 3
        %s5610 = smul.addr %s5606, 54
        %s5611 = sadd.s32 %s5609, %s5610
        %s5612 = smul.addr %s5611, 4
        %s5613 = scalar_lea.vmem %s3, %s5612
      $region78: #{double_conv_forward.4} parent=73 // pred_fallthru
        _
      // Predicated region
      $region79: #{double_conv_forward.4} parent=73 // pred_check
        %p5614 = pneg %p124
      $region80: #{double_conv_forward.4} parent=73 // pred_check_branch
        %5616 = sbr.rel (%p5614) target = $region82
      $region81: #{double_conv_forward.4} parent=73 // pred_region
        %p5617 = scmp.lt.s32.totalorder %s22, 1
        %s5618 = scalar_select %p5617, %s22, 1
        %p5619 = scmp.lt.s32.totalorder %s23, 0
        %s5620 = scalar_select %p5619, %s23, 0
        %s5621 = sadd.s32 %s5620, %s5618
        %s5622 = smul.addr %s5621, 8
        %s5623 = scalar_lea.vmem %s4, %s5622
      $region82: #{double_conv_forward.4} parent=73 // pred_fallthru
        _
    $region74: #{double_conv_forward.4} parent=5 // pred_fallthru
      _
  $region6: #{double_conv_forward.4} parent=0 // loop_footer
    %s15 = sadd.s32 1, %s11
  $region7: #{double_conv_forward.4} parent=0 // loop_footer_branch
    %10 = sbr.rel target = $region3
  $region8: #{double_conv_forward.4} parent=0 // loop_exit
    _
  %5624 = vsyncmov [#allocation3]
  %s5625 = vpop.sfrf %5624
  %p5626 = scmp.eq.s32.totalorder %s5625, 0
  %p5627 = pneg %p5626
  %5629 = shalt.err (%p5627)

</llo_original>
